<compile_context>
chip_gen: v6e
topology: v6e:2x2x1
jax: 0.10.0
libtpu: 0.0.40
codegen_flags: <defaults>
</compile_context>

<pallas_src>
import functools

import jax
import jax.numpy as jnp
from jax import lax
from jax.experimental import pallas as pl
from jax.experimental.pallas import tpu as pltpu


def up_kernel(x1_ref, x2_ref, yx_ref, ut_ref, w1_ref, bn1b_ref, w2_ref, bn2b_ref,
              sew1_ref, sew2_ref, saw_ref, sab_ref, bn3s_ref, bn3b_ref, o_ref,
              *, H, W):
    f32 = jnp.float32
    HW = H * W
    y_idx = yx_ref[0:1, :]                                                   # (1, HW) int32
    x_idx = yx_ref[1:2, :]

    def conv_taps(v, k):
        """All k*k zero-padded shift taps of v (C, HW), as a list of masked (C, HW) slabs.

        Tap (dy, dx): value at flat position p is v[p + (dy-half)*W + (dx-half)], i.e. the
        input pixel (y+dy-half, x+dx-half), zeroed where that pixel is out of bounds.
        Shifts are lane rotations (XLU), masks are VPU selects - no padded scratch, no
        lane concats, no reshapes.
        """
        half = k // 2
        taps = []
        for dy in range(k):
            for dx in range(k):
                r, c = dy - half, dx - half
                s = r * W + c
                t = v if s == 0 else pltpu.roll(v, shift=(-s) % HW, axis=1)
                if r != 0 or c != 0:
                    ok = ((y_idx + r >= 0) & (y_idx + r < H) &
                          (x_idx + c >= 0) & (x_idx + c < W))
                    t = jnp.where(ok, t, 0.0)
                taps.append(t)
        return taps

    # ---- bilinear 2x upsample (align_corners=True) of x1: one lane-dense MXU matmul ----
    x1_up = jnp.dot(x1_ref[0], ut_ref[...], preferred_element_type=f32)      # (C1, HW)

    # ---- channel concat [x2 | up(x1)] along sublanes (== torch.cat([x2, x1], dim=1)) ----
    x_cat = jnp.concatenate([x2_ref[0], x1_up], axis=0)                      # (Cin, HW)

    # ---- Conv1 (BN1 scale folded into weights) -> +bias -> ReLU ----
    p1 = jnp.concatenate(conv_taps(x_cat, 3), axis=0)                        # (9*Cin, HW)
    a1 = jnp.maximum(jnp.dot(w1_ref[...], p1, preferred_element_type=f32)
                     + bn1b_ref[...], 0.0)                                   # (Cmid, HW)

    # ---- Conv2 (BN2 scale folded) -> +bias  (CBAM sits before the final ReLU) ----
    p2 = jnp.concatenate(conv_taps(a1, 3), axis=0)                           # (9*Cmid, HW)
    h2 = (jnp.dot(w2_ref[...], p2, preferred_element_type=f32)
          + bn2b_ref[...])                                                   # (Cout, HW)

    # ---- CBAM channel attention: both SE branches batched into one matmul pair ----
    mv = jnp.concatenate([jnp.max(h2, axis=1, keepdims=True),
                          jnp.mean(h2, axis=1, keepdims=True)], axis=1)      # (Cout, 2)
    hid = jnp.maximum(jnp.dot(sew1_ref[...], mv, preferred_element_type=f32), 0.0)
    se = jnp.dot(sew2_ref[...], hid, preferred_element_type=f32)             # (Cout, 2)
    ca = jax.nn.sigmoid(se[:, 0:1] + se[:, 1:2])                             # (Cout, 1)
    out = h2 * ca                                                            # (Cout, HW)

    # ---- CBAM spatial attention: 7x7 2-ch conv as 49 shifted taps + scalar FMAs ----
    sm = jnp.concatenate([jnp.max(out, axis=0, keepdims=True),
                          jnp.mean(out, axis=0, keepdims=True)], axis=0)     # (2, HW)
    acc = jnp.zeros((1, HW), f32)
    for i, t in enumerate(conv_taps(sm, 7)):
        acc = acc + saw_ref[2 * i] * t[0:1, :] + saw_ref[2 * i + 1] * t[1:2, :]
    sa = jax.nn.sigmoid(acc + sab_ref[0])                                    # (1, HW)
    out = out * sa

    # ---- residual + CBAM BN (eval mode) + final ReLU of DoubleConv ----
    y = jnp.maximum((h2 + out) * bn3s_ref[...] + bn3b_ref[...], 0.0)
    o_ref[0] = y.astype(o_ref.dtype)                                         # lane-dense store


def _interp_matrix(n_in, n_out):
    """PyTorch bilinear upsample (align_corners=True) along one axis as (n_out, n_in)."""
    if n_in == 1:
        return jnp.ones((n_out, 1), jnp.float32)
    src = jnp.arange(n_out, dtype=jnp.float32) * (n_in - 1) / (n_out - 1)
    lo = jnp.clip(jnp.floor(src).astype(jnp.int32), 0, n_in - 2)
    frac = src - lo.astype(jnp.float32)
    rows = jnp.arange(n_out)
    m = jnp.zeros((n_out, n_in), jnp.float32)
    m = m.at[rows, lo].add(1.0 - frac)
    m = m.at[rows, lo + 1].add(frac)
    return m


def up_pallas(x1_nchw, x2_nchw, p):
    B, C1, H1, W1 = x1_nchw.shape
    B2, C2, H, W = x2_nchw.shape
    assert B == B2 and H == 2 * H1 and W == 2 * W1, "x2 must be 2x the spatial size of x1"
    Cin = C1 + C2
    Cmid = p["w1"].shape[3]
    Cout = p["w2"].shape[3]
    Cred = p["se_w1"].shape[1]
    HW = H * W

    # NCHW is already the kernel's (C, H*W) channels-on-sublanes layout: reshapes only.
    x1_flat = x1_nchw.reshape(B, C1, H1 * W1)
    x2_flat = x2_nchw.reshape(B, C2, HW)

    # Precomputed / folded operands (all layout & folding plumbing stays in the wrapper).
    ut = jnp.kron(_interp_matrix(H1, H), _interp_matrix(W1, W)).T            # (H1*W1, HW)
    w1t = (p["w1"].reshape(9 * Cin, Cmid) * p["bn1_s"][None, :]).T           # (Cmid, 9*Cin)
    w2t = (p["w2"].reshape(9 * Cmid, Cout) * p["bn2_s"][None, :]).T          # (Cout, 9*Cmid)
    saw = p["sa_w"].reshape(98)                                              # tap-major [max, mean]
    yx = jnp.stack([jnp.repeat(jnp.arange(H, dtype=jnp.int32), W),
                    jnp.tile(jnp.arange(W, dtype=jnp.int32), H)], axis=0)    # (2, HW)
    smem = pltpu.MemorySpace.SMEM

    out = pl.pallas_call(
        functools.partial(up_kernel, H=H, W=W),
        out_shape=jax.ShapeDtypeStruct((B, Cout, HW), jnp.float32),
        grid=(B,),
        in_specs=[
            pl.BlockSpec((1, C1, H1 * W1), lambda b: (b, 0, 0)),
            pl.BlockSpec((1, C2, HW), lambda b: (b, 0, 0)),
            pl.BlockSpec((2, HW), lambda b: (0, 0)),
            pl.BlockSpec((H1 * W1, HW), lambda b: (0, 0)),
            pl.BlockSpec((Cmid, 9 * Cin), lambda b: (0, 0)),
            pl.BlockSpec((Cmid, 1), lambda b: (0, 0)),
            pl.BlockSpec((Cout, 9 * Cmid), lambda b: (0, 0)),
            pl.BlockSpec((Cout, 1), lambda b: (0, 0)),
            pl.BlockSpec((Cred, Cout), lambda b: (0, 0)),
            pl.BlockSpec((Cout, Cred), lambda b: (0, 0)),
            pl.BlockSpec((98,), lambda b: (0,), memory_space=smem),
            pl.BlockSpec((1,), lambda b: (0,), memory_space=smem),
            pl.BlockSpec((Cout, 1), lambda b: (0, 0)),
            pl.BlockSpec((Cout, 1), lambda b: (0, 0)),
        ],
        out_specs=pl.BlockSpec((1, Cout, HW), lambda b: (b, 0, 0)),
        compiler_params=pltpu.CompilerParams(dimension_semantics=("parallel",)),
    )(
        x1_flat, x2_flat, yx, ut,
        w1t, p["bn1_b"][:, None],
        w2t, p["bn2_b"][:, None],
        p["se_w1"].T, p["se_w2"].T, saw, p["sa_b"],
        p["bn3_s"][:, None], p["bn3_b"][:, None],
    )
    return out.reshape(B, Cout, H, W)                                        # already NCHW


def make_params(key, c1, c2, cout, reduction=16):
    cin = c1 + c2
    cmid = cin // 2                       # DoubleConv(in, out, mid=in//2) in Up(bilinear)
    cred = max(cout // reduction, 1)
    ks = jax.random.split(key, 9)

    def nrm(k, shape, scale):
        return jax.random.normal(k, shape, jnp.float32) * scale

    def bn_fold(k, c):
        k1, k2, k3, k4 = jax.random.split(k, 4)
        gamma = 1.0 + 0.1 * jax.random.normal(k1, (c,), jnp.float32)
        beta = 0.1 * jax.random.normal(k2, (c,), jnp.float32)
        mean = 0.1 * jax.random.normal(k3, (c,), jnp.float32)
        var = 0.5 + jax.random.uniform(k4, (c,), jnp.float32)
        scale = gamma / jnp.sqrt(var + 1e-5)      # eval-mode BN folded to scale/bias
        bias = beta - mean * scale
        return scale, bias

    bn1_s, bn1_b = bn_fold(ks[5], cmid)
    bn2_s, bn2_b = bn_fold(ks[6], cout)
    bn3_s, bn3_b = bn_fold(ks[7], cout)
    return dict(
        w1=nrm(ks[0], (3, 3, cin, cmid), (9 * cin) ** -0.5),     # HWIO
        w2=nrm(ks[1], (3, 3, cmid, cout), (9 * cmid) ** -0.5),
        se_w1=nrm(ks[2], (cout, cred), cout ** -0.5),
        se_w2=nrm(ks[3], (cred, cout), cred ** -0.5),
        sa_w=nrm(ks[4], (7, 7, 2), (7 * 7 * 2) ** -0.5),         # [..., 0]=max, [..., 1]=mean
        sa_b=nrm(ks[8], (1,), 0.1),
        bn1_s=bn1_s, bn1_b=bn1_b, bn2_s=bn2_s, bn2_b=bn2_b,
        bn3_s=bn3_s, bn3_b=bn3_b,
    )


def _bilinear_up_ref(x_nhwc, scale=2):
    """PyTorch-style bilinear upsample, align_corners=True (gather/lerp reference path)."""
    B, H, W, C = x_nhwc.shape
    Ho, Wo = H * scale, W * scale

    def coords(n_in, n_out):
        src = jnp.arange(n_out, dtype=jnp.float32) * (n_in - 1) / max(n_out - 1, 1)
        lo = jnp.clip(jnp.floor(src).astype(jnp.int32), 0, max(n_in - 2, 0))
        return lo, jnp.minimum(lo + 1, n_in - 1), src - lo.astype(jnp.float32)

    hlo, hhi, hf = coords(H, Ho)
    wlo, whi, wf = coords(W, Wo)
    wf_ = wf[None, None, :, None]

    def lerp_w(rows):
        g = x_nhwc[:, rows]                                     # (B, Ho, W, C)
        return g[:, :, wlo] * (1.0 - wf_) + g[:, :, whi] * wf_  # (B, Ho, Wo, C)

    hf_ = hf[None, :, None, None]
    return lerp_w(hlo) * (1.0 - hf_) + lerp_w(hhi) * hf_


def up_ref(x1_nchw, x2_nchw, p):
    """Pure-JAX reference with identical semantics (for validation)."""
    hi = lax.Precision.HIGHEST
    x1 = jnp.transpose(x1_nchw, (0, 2, 3, 1))
    x2 = jnp.transpose(x2_nchw, (0, 2, 3, 1))
    x = jnp.concatenate([x2, _bilinear_up_ref(x1)], axis=-1)

    def conv(v, w_hwio):
        return lax.conv_general_dilated(
            v, w_hwio, (1, 1), "SAME",
            dimension_numbers=("NHWC", "HWIO", "NHWC"), precision=hi)

    h = conv(x, p["w1"])
    h = jnp.maximum(h * p["bn1_s"] + p["bn1_b"], 0.0)
    h2 = conv(h, p["w2"])
    h2 = h2 * p["bn2_s"] + p["bn2_b"]

    maxc = jnp.max(h2, axis=(1, 2))
    avgc = jnp.mean(h2, axis=(1, 2))

    def se(v):
        return jnp.dot(jnp.maximum(jnp.dot(v, p["se_w1"], precision=hi), 0.0),
                       p["se_w2"], precision=hi)

    ca = jax.nn.sigmoid(se(maxc) + se(avgc))[:, None, None, :]
    out = h2 * ca
    smax = jnp.max(out, axis=-1, keepdims=True)
    smean = jnp.mean(out, axis=-1, keepdims=True)
    sa = jax.nn.sigmoid(conv(jnp.concatenate([smax, smean], axis=-1),
                             p["sa_w"][..., None]) + p["sa_b"])
    out = out * sa
    y = jnp.maximum((h2 + out) * p["bn3_s"] + p["bn3_b"], 0.0)
    return jnp.transpose(y, (0, 3, 1, 2))


if __name__ == "__main__":
    B = 2
    C1, C2 = 4, 4            # Up(in_channels=8, out_channels=32): concat of 4-ch up(x1) and 4-ch skip x2
    H1, W1 = 8, 8
    Cout = 32
    key = jax.random.PRNGKey(0)
    k1, k2, kp = jax.random.split(key, 3)
    x1 = jax.random.normal(k1, (B, C1, H1, W1), jnp.float32)
    x2 = jax.random.normal(k2, (B, C2, 2 * H1, 2 * W1), jnp.float32)
    params = make_params(kp, C1, C2, Cout)

    y = up_pallas(x1, x2, params)
    y = jax.block_until_ready(y)
    assert y.shape == (B, Cout, 2 * H1, 2 * W1), y.shape

    y_ref = up_ref(x1, x2, params)
    if not bool(jnp.allclose(y, y_ref, atol=1e-3, rtol=1e-3)):
        max_err = float(jnp.max(jnp.abs(y - y_ref)))
        raise AssertionError(f"Pallas kernel mismatch vs reference, max abs err={max_err}")

    print("KERNEL_OK")
</pallas_src>

<mosaic_0001>
module attributes {stable_mosaic.version = 11 : i64} {
  func.func @up_kernel(%arg0: i32, %arg1: memref<1x4x64xf32, #tpu.memory_space<vmem>>, %arg2: memref<1x4x256xf32, #tpu.memory_space<vmem>>, %arg3: memref<2x256xi32, #tpu.memory_space<vmem>>, %arg4: memref<64x256xf32, #tpu.memory_space<vmem>>, %arg5: memref<4x72xf32, #tpu.memory_space<vmem>>, %arg6: memref<4x1xf32, #tpu.memory_space<vmem>>, %arg7: memref<32x36xf32, #tpu.memory_space<vmem>>, %arg8: memref<32x1xf32, #tpu.memory_space<vmem>>, %arg9: memref<2x32xf32, #tpu.memory_space<vmem>>, %arg10: memref<32x2xf32, #tpu.memory_space<vmem>>, %arg11: memref<98xf32, #tpu.memory_space<smem>>, %arg12: memref<1xf32, #tpu.memory_space<smem>>, %arg13: memref<32x1xf32, #tpu.memory_space<vmem>>, %arg14: memref<32x1xf32, #tpu.memory_space<vmem>>, %arg15: memref<1x32x256xf32, #tpu.memory_space<vmem>>) attributes {dimension_semantics = [#tpu.dimension_semantics<parallel>], iteration_bounds = array<i64: 2>, scalar_prefetch = 0 : i64, scratch_operands = 0 : i64, tpu.core_type = #tpu.core_type<tc>, window_params = [{transform_indices = @transform_0, window_bounds = array<i64: 1, 4, 64>}, {transform_indices = @transform_1, window_bounds = array<i64: 1, 4, 256>}, {pipeline_mode = #tpu.pipeline_mode<synchronous>, transform_indices = @transform_2, window_bounds = array<i64: 2, 256>}, {pipeline_mode = #tpu.pipeline_mode<synchronous>, transform_indices = @transform_3, window_bounds = array<i64: 64, 256>}, {pipeline_mode = #tpu.pipeline_mode<synchronous>, transform_indices = @transform_4, window_bounds = array<i64: 4, 72>}, {pipeline_mode = #tpu.pipeline_mode<synchronous>, transform_indices = @transform_5, window_bounds = array<i64: 4, 1>}, {pipeline_mode = #tpu.pipeline_mode<synchronous>, transform_indices = @transform_6, window_bounds = array<i64: 32, 36>}, {pipeline_mode = #tpu.pipeline_mode<synchronous>, transform_indices = @transform_7, window_bounds = array<i64: 32, 1>}, {pipeline_mode = #tpu.pipeline_mode<synchronous>, transform_indices = @transform_8, window_bounds = array<i64: 2, 32>}, {pipeline_mode = #tpu.pipeline_mode<synchronous>, transform_indices = @transform_9, window_bounds = array<i64: 32, 2>}, {transform_indices = @transform_10, window_bounds = array<i64: 98>}, {transform_indices = @transform_11, window_bounds = array<i64: 1>}, {pipeline_mode = #tpu.pipeline_mode<synchronous>, transform_indices = @transform_12, window_bounds = array<i64: 32, 1>}, {pipeline_mode = #tpu.pipeline_mode<synchronous>, transform_indices = @transform_13, window_bounds = array<i64: 32, 1>}, {transform_indices = @transform_14, window_bounds = array<i64: 1, 32, 256>}]} {
    %c0 = arith.constant 0 : index
    %c0_0 = arith.constant 0 : index
    %0 = vector.load %arg3[%c0, %c0_0] : memref<2x256xi32, #tpu.memory_space<vmem>>, vector<1x256xi32>
    %c1 = arith.constant 1 : index
    %c0_1 = arith.constant 0 : index
    %1 = vector.load %arg3[%c1, %c0_1] : memref<2x256xi32, #tpu.memory_space<vmem>>, vector<1x256xi32>
    %c0_2 = arith.constant 0 : index
    %c0_3 = arith.constant 0 : index
    %c0_4 = arith.constant 0 : index
    %2 = vector.load %arg1[%c0_2, %c0_3, %c0_4] : memref<1x4x64xf32, #tpu.memory_space<vmem>>, vector<1x4x64xf32>
    %3 = vector.shape_cast %2 : vector<1x4x64xf32> to vector<4x64xf32>
    %c0_5 = arith.constant 0 : index
    %c0_6 = arith.constant 0 : index
    %4 = vector.load %arg4[%c0_5, %c0_6] : memref<64x256xf32, #tpu.memory_space<vmem>>, vector<64x256xf32>
    %cst = arith.constant dense<0.000000e+00> : vector<4x256xf32>
    %5 = tpu.matmul %3, %4, %cst {dimension_numbers = #tpu.dot_dimension_numbers<[1], [0], [0], [1], [0, 0, 1, 1], [], []>} : vector<4x64xf32>, vector<64x256xf32>, vector<4x256xf32> -> vector<4x256xf32>
    %c0_7 = arith.constant 0 : index
    %c0_8 = arith.constant 0 : index
    %c0_9 = arith.constant 0 : index
    %6 = vector.load %arg2[%c0_7, %c0_8, %c0_9] : memref<1x4x256xf32, #tpu.memory_space<vmem>>, vector<1x4x256xf32>
    %7 = vector.shape_cast %6 : vector<1x4x256xf32> to vector<4x256xf32>
    %8 = tpu.concatenate %7, %5 in 0 : vector<4x256xf32>, vector<4x256xf32> -> vector<8x256xf32>
    %c17_i32 = arith.constant 17 : i32
    %9 = tpu.dynamic_rotate %8 by %c17_i32 dim 1 : vector<8x256xf32>, i32 -> vector<8x256xf32>
    %c-1_i32 = arith.constant -1 : i32
    %10 = vector.broadcast %c-1_i32 : i32 to vector<1x256xi32>
    %11 = arith.addi %0, %10 : vector<1x256xi32>
    %c0_i32 = arith.constant 0 : i32
    %12 = vector.broadcast %c0_i32 : i32 to vector<1x256xi32>
    %13 = arith.cmpi sge, %11, %12 : vector<1x256xi32>
    %c-1_i32_10 = arith.constant -1 : i32
    %14 = vector.broadcast %c-1_i32_10 : i32 to vector<1x256xi32>
    %15 = arith.addi %0, %14 : vector<1x256xi32>
    %c16_i32 = arith.constant 16 : i32
    %16 = vector.broadcast %c16_i32 : i32 to vector<1x256xi32>
    %17 = arith.cmpi slt, %15, %16 : vector<1x256xi32>
    %18 = arith.andi %13, %17 : vector<1x256xi1>
    %c-1_i32_11 = arith.constant -1 : i32
    %19 = vector.broadcast %c-1_i32_11 : i32 to vector<1x256xi32>
    %20 = arith.addi %1, %19 : vector<1x256xi32>
    %c0_i32_12 = arith.constant 0 : i32
    %21 = vector.broadcast %c0_i32_12 : i32 to vector<1x256xi32>
    %22 = arith.cmpi sge, %20, %21 : vector<1x256xi32>
    %23 = arith.andi %18, %22 : vector<1x256xi1>
    %c-1_i32_13 = arith.constant -1 : i32
    %24 = vector.broadcast %c-1_i32_13 : i32 to vector<1x256xi32>
    %25 = arith.addi %1, %24 : vector<1x256xi32>
    %c16_i32_14 = arith.constant 16 : i32
    %26 = vector.broadcast %c16_i32_14 : i32 to vector<1x256xi32>
    %27 = arith.cmpi slt, %25, %26 : vector<1x256xi32>
    %28 = arith.andi %23, %27 : vector<1x256xi1>
    %cst_15 = arith.constant 0.000000e+00 : f32
    %29 = vector.shape_cast %28 : vector<1x256xi1> to vector<1x256xi1>
    %30 = vector.broadcast %29 : vector<1x256xi1> to vector<8x256xi1>
    %31 = vector.broadcast %cst_15 : f32 to vector<8x256xf32>
    %32 = arith.select %30, %9, %31 : vector<8x256xi1>, vector<8x256xf32>
    %c16_i32_16 = arith.constant 16 : i32
    %33 = tpu.dynamic_rotate %8 by %c16_i32_16 dim 1 : vector<8x256xf32>, i32 -> vector<8x256xf32>
    %c-1_i32_17 = arith.constant -1 : i32
    %34 = vector.broadcast %c-1_i32_17 : i32 to vector<1x256xi32>
    %35 = arith.addi %0, %34 : vector<1x256xi32>
    %c0_i32_18 = arith.constant 0 : i32
    %36 = vector.broadcast %c0_i32_18 : i32 to vector<1x256xi32>
    %37 = arith.cmpi sge, %35, %36 : vector<1x256xi32>
    %c-1_i32_19 = arith.constant -1 : i32
    %38 = vector.broadcast %c-1_i32_19 : i32 to vector<1x256xi32>
    %39 = arith.addi %0, %38 : vector<1x256xi32>
    %c16_i32_20 = arith.constant 16 : i32
    %40 = vector.broadcast %c16_i32_20 : i32 to vector<1x256xi32>
    %41 = arith.cmpi slt, %39, %40 : vector<1x256xi32>
    %42 = arith.andi %37, %41 : vector<1x256xi1>
    %c0_i32_21 = arith.constant 0 : i32
    %43 = vector.broadcast %c0_i32_21 : i32 to vector<1x256xi32>
    %44 = arith.addi %1, %43 : vector<1x256xi32>
    %c0_i32_22 = arith.constant 0 : i32
    %45 = vector.broadcast %c0_i32_22 : i32 to vector<1x256xi32>
    %46 = arith.cmpi sge, %44, %45 : vector<1x256xi32>
    %47 = arith.andi %42, %46 : vector<1x256xi1>
    %c0_i32_23 = arith.constant 0 : i32
    %48 = vector.broadcast %c0_i32_23 : i32 to vector<1x256xi32>
    %49 = arith.addi %1, %48 : vector<1x256xi32>
    %c16_i32_24 = arith.constant 16 : i32
    %50 = vector.broadcast %c16_i32_24 : i32 to vector<1x256xi32>
    %51 = arith.cmpi slt, %49, %50 : vector<1x256xi32>
    %52 = arith.andi %47, %51 : vector<1x256xi1>
    %cst_25 = arith.constant 0.000000e+00 : f32
    %53 = vector.shape_cast %52 : vector<1x256xi1> to vector<1x256xi1>
    %54 = vector.broadcast %53 : vector<1x256xi1> to vector<8x256xi1>
    %55 = vector.broadcast %cst_25 : f32 to vector<8x256xf32>
    %56 = arith.select %54, %33, %55 : vector<8x256xi1>, vector<8x256xf32>
    %c15_i32 = arith.constant 15 : i32
    %57 = tpu.dynamic_rotate %8 by %c15_i32 dim 1 : vector<8x256xf32>, i32 -> vector<8x256xf32>
    %c-1_i32_26 = arith.constant -1 : i32
    %58 = vector.broadcast %c-1_i32_26 : i32 to vector<1x256xi32>
    %59 = arith.addi %0, %58 : vector<1x256xi32>
    %c0_i32_27 = arith.constant 0 : i32
    %60 = vector.broadcast %c0_i32_27 : i32 to vector<1x256xi32>
    %61 = arith.cmpi sge, %59, %60 : vector<1x256xi32>
    %c-1_i32_28 = arith.constant -1 : i32
    %62 = vector.broadcast %c-1_i32_28 : i32 to vector<1x256xi32>
    %63 = arith.addi %0, %62 : vector<1x256xi32>
    %c16_i32_29 = arith.constant 16 : i32
    %64 = vector.broadcast %c16_i32_29 : i32 to vector<1x256xi32>
    %65 = arith.cmpi slt, %63, %64 : vector<1x256xi32>
    %66 = arith.andi %61, %65 : vector<1x256xi1>
    %c1_i32 = arith.constant 1 : i32
    %67 = vector.broadcast %c1_i32 : i32 to vector<1x256xi32>
    %68 = arith.addi %1, %67 : vector<1x256xi32>
    %c0_i32_30 = arith.constant 0 : i32
    %69 = vector.broadcast %c0_i32_30 : i32 to vector<1x256xi32>
    %70 = arith.cmpi sge, %68, %69 : vector<1x256xi32>
    %71 = arith.andi %66, %70 : vector<1x256xi1>
    %c1_i32_31 = arith.constant 1 : i32
    %72 = vector.broadcast %c1_i32_31 : i32 to vector<1x256xi32>
    %73 = arith.addi %1, %72 : vector<1x256xi32>
    %c16_i32_32 = arith.constant 16 : i32
    %74 = vector.broadcast %c16_i32_32 : i32 to vector<1x256xi32>
    %75 = arith.cmpi slt, %73, %74 : vector<1x256xi32>
    %76 = arith.andi %71, %75 : vector<1x256xi1>
    %cst_33 = arith.constant 0.000000e+00 : f32
    %77 = vector.shape_cast %76 : vector<1x256xi1> to vector<1x256xi1>
    %78 = vector.broadcast %77 : vector<1x256xi1> to vector<8x256xi1>
    %79 = vector.broadcast %cst_33 : f32 to vector<8x256xf32>
    %80 = arith.select %78, %57, %79 : vector<8x256xi1>, vector<8x256xf32>
    %c1_i32_34 = arith.constant 1 : i32
    %81 = tpu.dynamic_rotate %8 by %c1_i32_34 dim 1 : vector<8x256xf32>, i32 -> vector<8x256xf32>
    %c0_i32_35 = arith.constant 0 : i32
    %82 = vector.broadcast %c0_i32_35 : i32 to vector<1x256xi32>
    %83 = arith.addi %0, %82 : vector<1x256xi32>
    %c0_i32_36 = arith.constant 0 : i32
    %84 = vector.broadcast %c0_i32_36 : i32 to vector<1x256xi32>
    %85 = arith.cmpi sge, %83, %84 : vector<1x256xi32>
    %c0_i32_37 = arith.constant 0 : i32
    %86 = vector.broadcast %c0_i32_37 : i32 to vector<1x256xi32>
    %87 = arith.addi %0, %86 : vector<1x256xi32>
    %c16_i32_38 = arith.constant 16 : i32
    %88 = vector.broadcast %c16_i32_38 : i32 to vector<1x256xi32>
    %89 = arith.cmpi slt, %87, %88 : vector<1x256xi32>
    %90 = arith.andi %85, %89 : vector<1x256xi1>
    %c-1_i32_39 = arith.constant -1 : i32
    %91 = vector.broadcast %c-1_i32_39 : i32 to vector<1x256xi32>
    %92 = arith.addi %1, %91 : vector<1x256xi32>
    %c0_i32_40 = arith.constant 0 : i32
    %93 = vector.broadcast %c0_i32_40 : i32 to vector<1x256xi32>
    %94 = arith.cmpi sge, %92, %93 : vector<1x256xi32>
    %95 = arith.andi %90, %94 : vector<1x256xi1>
    %c-1_i32_41 = arith.constant -1 : i32
    %96 = vector.broadcast %c-1_i32_41 : i32 to vector<1x256xi32>
    %97 = arith.addi %1, %96 : vector<1x256xi32>
    %c16_i32_42 = arith.constant 16 : i32
    %98 = vector.broadcast %c16_i32_42 : i32 to vector<1x256xi32>
    %99 = arith.cmpi slt, %97, %98 : vector<1x256xi32>
    %100 = arith.andi %95, %99 : vector<1x256xi1>
    %cst_43 = arith.constant 0.000000e+00 : f32
    %101 = vector.shape_cast %100 : vector<1x256xi1> to vector<1x256xi1>
    %102 = vector.broadcast %101 : vector<1x256xi1> to vector<8x256xi1>
    %103 = vector.broadcast %cst_43 : f32 to vector<8x256xf32>
    %104 = arith.select %102, %81, %103 : vector<8x256xi1>, vector<8x256xf32>
    %c255_i32 = arith.constant 255 : i32
    %105 = tpu.dynamic_rotate %8 by %c255_i32 dim 1 : vector<8x256xf32>, i32 -> vector<8x256xf32>
    %c0_i32_44 = arith.constant 0 : i32
    %106 = vector.broadcast %c0_i32_44 : i32 to vector<1x256xi32>
    %107 = arith.addi %0, %106 : vector<1x256xi32>
    %c0_i32_45 = arith.constant 0 : i32
    %108 = vector.broadcast %c0_i32_45 : i32 to vector<1x256xi32>
    %109 = arith.cmpi sge, %107, %108 : vector<1x256xi32>
    %c0_i32_46 = arith.constant 0 : i32
    %110 = vector.broadcast %c0_i32_46 : i32 to vector<1x256xi32>
    %111 = arith.addi %0, %110 : vector<1x256xi32>
    %c16_i32_47 = arith.constant 16 : i32
    %112 = vector.broadcast %c16_i32_47 : i32 to vector<1x256xi32>
    %113 = arith.cmpi slt, %111, %112 : vector<1x256xi32>
    %114 = arith.andi %109, %113 : vector<1x256xi1>
    %c1_i32_48 = arith.constant 1 : i32
    %115 = vector.broadcast %c1_i32_48 : i32 to vector<1x256xi32>
    %116 = arith.addi %1, %115 : vector<1x256xi32>
    %c0_i32_49 = arith.constant 0 : i32
    %117 = vector.broadcast %c0_i32_49 : i32 to vector<1x256xi32>
    %118 = arith.cmpi sge, %116, %117 : vector<1x256xi32>
    %119 = arith.andi %114, %118 : vector<1x256xi1>
    %c1_i32_50 = arith.constant 1 : i32
    %120 = vector.broadcast %c1_i32_50 : i32 to vector<1x256xi32>
    %121 = arith.addi %1, %120 : vector<1x256xi32>
    %c16_i32_51 = arith.constant 16 : i32
    %122 = vector.broadcast %c16_i32_51 : i32 to vector<1x256xi32>
    %123 = arith.cmpi slt, %121, %122 : vector<1x256xi32>
    %124 = arith.andi %119, %123 : vector<1x256xi1>
    %cst_52 = arith.constant 0.000000e+00 : f32
    %125 = vector.shape_cast %124 : vector<1x256xi1> to vector<1x256xi1>
    %126 = vector.broadcast %125 : vector<1x256xi1> to vector<8x256xi1>
    %127 = vector.broadcast %cst_52 : f32 to vector<8x256xf32>
    %128 = arith.select %126, %105, %127 : vector<8x256xi1>, vector<8x256xf32>
    %c241_i32 = arith.constant 241 : i32
    %129 = tpu.dynamic_rotate %8 by %c241_i32 dim 1 : vector<8x256xf32>, i32 -> vector<8x256xf32>
    %c1_i32_53 = arith.constant 1 : i32
    %130 = vector.broadcast %c1_i32_53 : i32 to vector<1x256xi32>
    %131 = arith.addi %0, %130 : vector<1x256xi32>
    %c0_i32_54 = arith.constant 0 : i32
    %132 = vector.broadcast %c0_i32_54 : i32 to vector<1x256xi32>
    %133 = arith.cmpi sge, %131, %132 : vector<1x256xi32>
    %c1_i32_55 = arith.constant 1 : i32
    %134 = vector.broadcast %c1_i32_55 : i32 to vector<1x256xi32>
    %135 = arith.addi %0, %134 : vector<1x256xi32>
    %c16_i32_56 = arith.constant 16 : i32
    %136 = vector.broadcast %c16_i32_56 : i32 to vector<1x256xi32>
    %137 = arith.cmpi slt, %135, %136 : vector<1x256xi32>
    %138 = arith.andi %133, %137 : vector<1x256xi1>
    %c-1_i32_57 = arith.constant -1 : i32
    %139 = vector.broadcast %c-1_i32_57 : i32 to vector<1x256xi32>
    %140 = arith.addi %1, %139 : vector<1x256xi32>
    %c0_i32_58 = arith.constant 0 : i32
    %141 = vector.broadcast %c0_i32_58 : i32 to vector<1x256xi32>
    %142 = arith.cmpi sge, %140, %141 : vector<1x256xi32>
    %143 = arith.andi %138, %142 : vector<1x256xi1>
    %c-1_i32_59 = arith.constant -1 : i32
    %144 = vector.broadcast %c-1_i32_59 : i32 to vector<1x256xi32>
    %145 = arith.addi %1, %144 : vector<1x256xi32>
    %c16_i32_60 = arith.constant 16 : i32
    %146 = vector.broadcast %c16_i32_60 : i32 to vector<1x256xi32>
    %147 = arith.cmpi slt, %145, %146 : vector<1x256xi32>
    %148 = arith.andi %143, %147 : vector<1x256xi1>
    %cst_61 = arith.constant 0.000000e+00 : f32
    %149 = vector.shape_cast %148 : vector<1x256xi1> to vector<1x256xi1>
    %150 = vector.broadcast %149 : vector<1x256xi1> to vector<8x256xi1>
    %151 = vector.broadcast %cst_61 : f32 to vector<8x256xf32>
    %152 = arith.select %150, %129, %151 : vector<8x256xi1>, vector<8x256xf32>
    %c240_i32 = arith.constant 240 : i32
    %153 = tpu.dynamic_rotate %8 by %c240_i32 dim 1 : vector<8x256xf32>, i32 -> vector<8x256xf32>
    %c1_i32_62 = arith.constant 1 : i32
    %154 = vector.broadcast %c1_i32_62 : i32 to vector<1x256xi32>
    %155 = arith.addi %0, %154 : vector<1x256xi32>
    %c0_i32_63 = arith.constant 0 : i32
    %156 = vector.broadcast %c0_i32_63 : i32 to vector<1x256xi32>
    %157 = arith.cmpi sge, %155, %156 : vector<1x256xi32>
    %c1_i32_64 = arith.constant 1 : i32
    %158 = vector.broadcast %c1_i32_64 : i32 to vector<1x256xi32>
    %159 = arith.addi %0, %158 : vector<1x256xi32>
    %c16_i32_65 = arith.constant 16 : i32
    %160 = vector.broadcast %c16_i32_65 : i32 to vector<1x256xi32>
    %161 = arith.cmpi slt, %159, %160 : vector<1x256xi32>
    %162 = arith.andi %157, %161 : vector<1x256xi1>
    %c0_i32_66 = arith.constant 0 : i32
    %163 = vector.broadcast %c0_i32_66 : i32 to vector<1x256xi32>
    %164 = arith.addi %1, %163 : vector<1x256xi32>
    %c0_i32_67 = arith.constant 0 : i32
    %165 = vector.broadcast %c0_i32_67 : i32 to vector<1x256xi32>
    %166 = arith.cmpi sge, %164, %165 : vector<1x256xi32>
    %167 = arith.andi %162, %166 : vector<1x256xi1>
    %c0_i32_68 = arith.constant 0 : i32
    %168 = vector.broadcast %c0_i32_68 : i32 to vector<1x256xi32>
    %169 = arith.addi %1, %168 : vector<1x256xi32>
    %c16_i32_69 = arith.constant 16 : i32
    %170 = vector.broadcast %c16_i32_69 : i32 to vector<1x256xi32>
    %171 = arith.cmpi slt, %169, %170 : vector<1x256xi32>
    %172 = arith.andi %167, %171 : vector<1x256xi1>
    %cst_70 = arith.constant 0.000000e+00 : f32
    %173 = vector.shape_cast %172 : vector<1x256xi1> to vector<1x256xi1>
    %174 = vector.broadcast %173 : vector<1x256xi1> to vector<8x256xi1>
    %175 = vector.broadcast %cst_70 : f32 to vector<8x256xf32>
    %176 = arith.select %174, %153, %175 : vector<8x256xi1>, vector<8x256xf32>
    %c239_i32 = arith.constant 239 : i32
    %177 = tpu.dynamic_rotate %8 by %c239_i32 dim 1 : vector<8x256xf32>, i32 -> vector<8x256xf32>
    %c1_i32_71 = arith.constant 1 : i32
    %178 = vector.broadcast %c1_i32_71 : i32 to vector<1x256xi32>
    %179 = arith.addi %0, %178 : vector<1x256xi32>
    %c0_i32_72 = arith.constant 0 : i32
    %180 = vector.broadcast %c0_i32_72 : i32 to vector<1x256xi32>
    %181 = arith.cmpi sge, %179, %180 : vector<1x256xi32>
    %c1_i32_73 = arith.constant 1 : i32
    %182 = vector.broadcast %c1_i32_73 : i32 to vector<1x256xi32>
    %183 = arith.addi %0, %182 : vector<1x256xi32>
    %c16_i32_74 = arith.constant 16 : i32
    %184 = vector.broadcast %c16_i32_74 : i32 to vector<1x256xi32>
    %185 = arith.cmpi slt, %183, %184 : vector<1x256xi32>
    %186 = arith.andi %181, %185 : vector<1x256xi1>
    %c1_i32_75 = arith.constant 1 : i32
    %187 = vector.broadcast %c1_i32_75 : i32 to vector<1x256xi32>
    %188 = arith.addi %1, %187 : vector<1x256xi32>
    %c0_i32_76 = arith.constant 0 : i32
    %189 = vector.broadcast %c0_i32_76 : i32 to vector<1x256xi32>
    %190 = arith.cmpi sge, %188, %189 : vector<1x256xi32>
    %191 = arith.andi %186, %190 : vector<1x256xi1>
    %c1_i32_77 = arith.constant 1 : i32
    %192 = vector.broadcast %c1_i32_77 : i32 to vector<1x256xi32>
    %193 = arith.addi %1, %192 : vector<1x256xi32>
    %c16_i32_78 = arith.constant 16 : i32
    %194 = vector.broadcast %c16_i32_78 : i32 to vector<1x256xi32>
    %195 = arith.cmpi slt, %193, %194 : vector<1x256xi32>
    %196 = arith.andi %191, %195 : vector<1x256xi1>
    %cst_79 = arith.constant 0.000000e+00 : f32
    %197 = vector.shape_cast %196 : vector<1x256xi1> to vector<1x256xi1>
    %198 = vector.broadcast %197 : vector<1x256xi1> to vector<8x256xi1>
    %199 = vector.broadcast %cst_79 : f32 to vector<8x256xf32>
    %200 = arith.select %198, %177, %199 : vector<8x256xi1>, vector<8x256xf32>
    %201 = tpu.concatenate %32, %56, %80, %104, %8, %128, %152, %176, %200 in 0 : vector<8x256xf32>, vector<8x256xf32>, vector<8x256xf32>, vector<8x256xf32>, vector<8x256xf32>, vector<8x256xf32>, vector<8x256xf32>, vector<8x256xf32>, vector<8x256xf32> -> vector<72x256xf32>
    %c0_80 = arith.constant 0 : index
    %c0_81 = arith.constant 0 : index
    %202 = vector.load %arg5[%c0_80, %c0_81] : memref<4x72xf32, #tpu.memory_space<vmem>>, vector<4x72xf32>
    %cst_82 = arith.constant dense<0.000000e+00> : vector<4x256xf32>
    %203 = tpu.matmul %202, %201, %cst_82 {dimension_numbers = #tpu.dot_dimension_numbers<[1], [0], [0], [1], [0, 0, 1, 1], [], []>} : vector<4x72xf32>, vector<72x256xf32>, vector<4x256xf32> -> vector<4x256xf32>
    %c0_83 = arith.constant 0 : index
    %c0_84 = arith.constant 0 : index
    %204 = vector.load %arg6[%c0_83, %c0_84] : memref<4x1xf32, #tpu.memory_space<vmem>>, vector<4x1xf32>
    %205 = vector.broadcast %204 : vector<4x1xf32> to vector<4x256xf32>
    %206 = arith.addf %203, %205 : vector<4x256xf32>
    %cst_85 = arith.constant 0.000000e+00 : f32
    %207 = vector.broadcast %cst_85 : f32 to vector<4x256xf32>
    %208 = arith.maximumf %206, %207 : vector<4x256xf32>
    %c17_i32_86 = arith.constant 17 : i32
    %209 = tpu.dynamic_rotate %208 by %c17_i32_86 dim 1 : vector<4x256xf32>, i32 -> vector<4x256xf32>
    %c-1_i32_87 = arith.constant -1 : i32
    %210 = vector.broadcast %c-1_i32_87 : i32 to vector<1x256xi32>
    %211 = arith.addi %0, %210 : vector<1x256xi32>
    %c0_i32_88 = arith.constant 0 : i32
    %212 = vector.broadcast %c0_i32_88 : i32 to vector<1x256xi32>
    %213 = arith.cmpi sge, %211, %212 : vector<1x256xi32>
    %c-1_i32_89 = arith.constant -1 : i32
    %214 = vector.broadcast %c-1_i32_89 : i32 to vector<1x256xi32>
    %215 = arith.addi %0, %214 : vector<1x256xi32>
    %c16_i32_90 = arith.constant 16 : i32
    %216 = vector.broadcast %c16_i32_90 : i32 to vector<1x256xi32>
    %217 = arith.cmpi slt, %215, %216 : vector<1x256xi32>
    %218 = arith.andi %213, %217 : vector<1x256xi1>
    %c-1_i32_91 = arith.constant -1 : i32
    %219 = vector.broadcast %c-1_i32_91 : i32 to vector<1x256xi32>
    %220 = arith.addi %1, %219 : vector<1x256xi32>
    %c0_i32_92 = arith.constant 0 : i32
    %221 = vector.broadcast %c0_i32_92 : i32 to vector<1x256xi32>
    %222 = arith.cmpi sge, %220, %221 : vector<1x256xi32>
    %223 = arith.andi %218, %222 : vector<1x256xi1>
    %c-1_i32_93 = arith.constant -1 : i32
    %224 = vector.broadcast %c-1_i32_93 : i32 to vector<1x256xi32>
    %225 = arith.addi %1, %224 : vector<1x256xi32>
    %c16_i32_94 = arith.constant 16 : i32
    %226 = vector.broadcast %c16_i32_94 : i32 to vector<1x256xi32>
    %227 = arith.cmpi slt, %225, %226 : vector<1x256xi32>
    %228 = arith.andi %223, %227 : vector<1x256xi1>
    %cst_95 = arith.constant 0.000000e+00 : f32
    %229 = vector.shape_cast %228 : vector<1x256xi1> to vector<1x256xi1>
    %230 = vector.broadcast %229 : vector<1x256xi1> to vector<4x256xi1>
    %231 = vector.broadcast %cst_95 : f32 to vector<4x256xf32>
    %232 = arith.select %230, %209, %231 : vector<4x256xi1>, vector<4x256xf32>
    %c16_i32_96 = arith.constant 16 : i32
    %233 = tpu.dynamic_rotate %208 by %c16_i32_96 dim 1 : vector<4x256xf32>, i32 -> vector<4x256xf32>
    %c-1_i32_97 = arith.constant -1 : i32
    %234 = vector.broadcast %c-1_i32_97 : i32 to vector<1x256xi32>
    %235 = arith.addi %0, %234 : vector<1x256xi32>
    %c0_i32_98 = arith.constant 0 : i32
    %236 = vector.broadcast %c0_i32_98 : i32 to vector<1x256xi32>
    %237 = arith.cmpi sge, %235, %236 : vector<1x256xi32>
    %c-1_i32_99 = arith.constant -1 : i32
    %238 = vector.broadcast %c-1_i32_99 : i32 to vector<1x256xi32>
    %239 = arith.addi %0, %238 : vector<1x256xi32>
    %c16_i32_100 = arith.constant 16 : i32
    %240 = vector.broadcast %c16_i32_100 : i32 to vector<1x256xi32>
    %241 = arith.cmpi slt, %239, %240 : vector<1x256xi32>
    %242 = arith.andi %237, %241 : vector<1x256xi1>
    %c0_i32_101 = arith.constant 0 : i32
    %243 = vector.broadcast %c0_i32_101 : i32 to vector<1x256xi32>
    %244 = arith.addi %1, %243 : vector<1x256xi32>
    %c0_i32_102 = arith.constant 0 : i32
    %245 = vector.broadcast %c0_i32_102 : i32 to vector<1x256xi32>
    %246 = arith.cmpi sge, %244, %245 : vector<1x256xi32>
    %247 = arith.andi %242, %246 : vector<1x256xi1>
    %c0_i32_103 = arith.constant 0 : i32
    %248 = vector.broadcast %c0_i32_103 : i32 to vector<1x256xi32>
    %249 = arith.addi %1, %248 : vector<1x256xi32>
    %c16_i32_104 = arith.constant 16 : i32
    %250 = vector.broadcast %c16_i32_104 : i32 to vector<1x256xi32>
    %251 = arith.cmpi slt, %249, %250 : vector<1x256xi32>
    %252 = arith.andi %247, %251 : vector<1x256xi1>
    %cst_105 = arith.constant 0.000000e+00 : f32
    %253 = vector.shape_cast %252 : vector<1x256xi1> to vector<1x256xi1>
    %254 = vector.broadcast %253 : vector<1x256xi1> to vector<4x256xi1>
    %255 = vector.broadcast %cst_105 : f32 to vector<4x256xf32>
    %256 = arith.select %254, %233, %255 : vector<4x256xi1>, vector<4x256xf32>
    %c15_i32_106 = arith.constant 15 : i32
    %257 = tpu.dynamic_rotate %208 by %c15_i32_106 dim 1 : vector<4x256xf32>, i32 -> vector<4x256xf32>
    %c-1_i32_107 = arith.constant -1 : i32
    %258 = vector.broadcast %c-1_i32_107 : i32 to vector<1x256xi32>
    %259 = arith.addi %0, %258 : vector<1x256xi32>
    %c0_i32_108 = arith.constant 0 : i32
    %260 = vector.broadcast %c0_i32_108 : i32 to vector<1x256xi32>
    %261 = arith.cmpi sge, %259, %260 : vector<1x256xi32>
    %c-1_i32_109 = arith.constant -1 : i32
    %262 = vector.broadcast %c-1_i32_109 : i32 to vector<1x256xi32>
    %263 = arith.addi %0, %262 : vector<1x256xi32>
    %c16_i32_110 = arith.constant 16 : i32
    %264 = vector.broadcast %c16_i32_110 : i32 to vector<1x256xi32>
    %265 = arith.cmpi slt, %263, %264 : vector<1x256xi32>
    %266 = arith.andi %261, %265 : vector<1x256xi1>
    %c1_i32_111 = arith.constant 1 : i32
    %267 = vector.broadcast %c1_i32_111 : i32 to vector<1x256xi32>
    %268 = arith.addi %1, %267 : vector<1x256xi32>
    %c0_i32_112 = arith.constant 0 : i32
    %269 = vector.broadcast %c0_i32_112 : i32 to vector<1x256xi32>
    %270 = arith.cmpi sge, %268, %269 : vector<1x256xi32>
    %271 = arith.andi %266, %270 : vector<1x256xi1>
    %c1_i32_113 = arith.constant 1 : i32
    %272 = vector.broadcast %c1_i32_113 : i32 to vector<1x256xi32>
    %273 = arith.addi %1, %272 : vector<1x256xi32>
    %c16_i32_114 = arith.constant 16 : i32
    %274 = vector.broadcast %c16_i32_114 : i32 to vector<1x256xi32>
    %275 = arith.cmpi slt, %273, %274 : vector<1x256xi32>
    %276 = arith.andi %271, %275 : vector<1x256xi1>
    %cst_115 = arith.constant 0.000000e+00 : f32
    %277 = vector.shape_cast %276 : vector<1x256xi1> to vector<1x256xi1>
    %278 = vector.broadcast %277 : vector<1x256xi1> to vector<4x256xi1>
    %279 = vector.broadcast %cst_115 : f32 to vector<4x256xf32>
    %280 = arith.select %278, %257, %279 : vector<4x256xi1>, vector<4x256xf32>
    %c1_i32_116 = arith.constant 1 : i32
    %281 = tpu.dynamic_rotate %208 by %c1_i32_116 dim 1 : vector<4x256xf32>, i32 -> vector<4x256xf32>
    %c0_i32_117 = arith.constant 0 : i32
    %282 = vector.broadcast %c0_i32_117 : i32 to vector<1x256xi32>
    %283 = arith.addi %0, %282 : vector<1x256xi32>
    %c0_i32_118 = arith.constant 0 : i32
    %284 = vector.broadcast %c0_i32_118 : i32 to vector<1x256xi32>
    %285 = arith.cmpi sge, %283, %284 : vector<1x256xi32>
    %c0_i32_119 = arith.constant 0 : i32
    %286 = vector.broadcast %c0_i32_119 : i32 to vector<1x256xi32>
    %287 = arith.addi %0, %286 : vector<1x256xi32>
    %c16_i32_120 = arith.constant 16 : i32
    %288 = vector.broadcast %c16_i32_120 : i32 to vector<1x256xi32>
    %289 = arith.cmpi slt, %287, %288 : vector<1x256xi32>
    %290 = arith.andi %285, %289 : vector<1x256xi1>
    %c-1_i32_121 = arith.constant -1 : i32
    %291 = vector.broadcast %c-1_i32_121 : i32 to vector<1x256xi32>
    %292 = arith.addi %1, %291 : vector<1x256xi32>
    %c0_i32_122 = arith.constant 0 : i32
    %293 = vector.broadcast %c0_i32_122 : i32 to vector<1x256xi32>
    %294 = arith.cmpi sge, %292, %293 : vector<1x256xi32>
    %295 = arith.andi %290, %294 : vector<1x256xi1>
    %c-1_i32_123 = arith.constant -1 : i32
    %296 = vector.broadcast %c-1_i32_123 : i32 to vector<1x256xi32>
    %297 = arith.addi %1, %296 : vector<1x256xi32>
    %c16_i32_124 = arith.constant 16 : i32
    %298 = vector.broadcast %c16_i32_124 : i32 to vector<1x256xi32>
    %299 = arith.cmpi slt, %297, %298 : vector<1x256xi32>
    %300 = arith.andi %295, %299 : vector<1x256xi1>
    %cst_125 = arith.constant 0.000000e+00 : f32
    %301 = vector.shape_cast %300 : vector<1x256xi1> to vector<1x256xi1>
    %302 = vector.broadcast %301 : vector<1x256xi1> to vector<4x256xi1>
    %303 = vector.broadcast %cst_125 : f32 to vector<4x256xf32>
    %304 = arith.select %302, %281, %303 : vector<4x256xi1>, vector<4x256xf32>
    %c255_i32_126 = arith.constant 255 : i32
    %305 = tpu.dynamic_rotate %208 by %c255_i32_126 dim 1 : vector<4x256xf32>, i32 -> vector<4x256xf32>
    %c0_i32_127 = arith.constant 0 : i32
    %306 = vector.broadcast %c0_i32_127 : i32 to vector<1x256xi32>
    %307 = arith.addi %0, %306 : vector<1x256xi32>
    %c0_i32_128 = arith.constant 0 : i32
    %308 = vector.broadcast %c0_i32_128 : i32 to vector<1x256xi32>
    %309 = arith.cmpi sge, %307, %308 : vector<1x256xi32>
    %c0_i32_129 = arith.constant 0 : i32
    %310 = vector.broadcast %c0_i32_129 : i32 to vector<1x256xi32>
    %311 = arith.addi %0, %310 : vector<1x256xi32>
    %c16_i32_130 = arith.constant 16 : i32
    %312 = vector.broadcast %c16_i32_130 : i32 to vector<1x256xi32>
    %313 = arith.cmpi slt, %311, %312 : vector<1x256xi32>
    %314 = arith.andi %309, %313 : vector<1x256xi1>
    %c1_i32_131 = arith.constant 1 : i32
    %315 = vector.broadcast %c1_i32_131 : i32 to vector<1x256xi32>
    %316 = arith.addi %1, %315 : vector<1x256xi32>
    %c0_i32_132 = arith.constant 0 : i32
    %317 = vector.broadcast %c0_i32_132 : i32 to vector<1x256xi32>
    %318 = arith.cmpi sge, %316, %317 : vector<1x256xi32>
    %319 = arith.andi %314, %318 : vector<1x256xi1>
    %c1_i32_133 = arith.constant 1 : i32
    %320 = vector.broadcast %c1_i32_133 : i32 to vector<1x256xi32>
    %321 = arith.addi %1, %320 : vector<1x256xi32>
    %c16_i32_134 = arith.constant 16 : i32
    %322 = vector.broadcast %c16_i32_134 : i32 to vector<1x256xi32>
    %323 = arith.cmpi slt, %321, %322 : vector<1x256xi32>
    %324 = arith.andi %319, %323 : vector<1x256xi1>
    %cst_135 = arith.constant 0.000000e+00 : f32
    %325 = vector.shape_cast %324 : vector<1x256xi1> to vector<1x256xi1>
    %326 = vector.broadcast %325 : vector<1x256xi1> to vector<4x256xi1>
    %327 = vector.broadcast %cst_135 : f32 to vector<4x256xf32>
    %328 = arith.select %326, %305, %327 : vector<4x256xi1>, vector<4x256xf32>
    %c241_i32_136 = arith.constant 241 : i32
    %329 = tpu.dynamic_rotate %208 by %c241_i32_136 dim 1 : vector<4x256xf32>, i32 -> vector<4x256xf32>
    %c1_i32_137 = arith.constant 1 : i32
    %330 = vector.broadcast %c1_i32_137 : i32 to vector<1x256xi32>
    %331 = arith.addi %0, %330 : vector<1x256xi32>
    %c0_i32_138 = arith.constant 0 : i32
    %332 = vector.broadcast %c0_i32_138 : i32 to vector<1x256xi32>
    %333 = arith.cmpi sge, %331, %332 : vector<1x256xi32>
    %c1_i32_139 = arith.constant 1 : i32
    %334 = vector.broadcast %c1_i32_139 : i32 to vector<1x256xi32>
    %335 = arith.addi %0, %334 : vector<1x256xi32>
    %c16_i32_140 = arith.constant 16 : i32
    %336 = vector.broadcast %c16_i32_140 : i32 to vector<1x256xi32>
    %337 = arith.cmpi slt, %335, %336 : vector<1x256xi32>
    %338 = arith.andi %333, %337 : vector<1x256xi1>
    %c-1_i32_141 = arith.constant -1 : i32
    %339 = vector.broadcast %c-1_i32_141 : i32 to vector<1x256xi32>
    %340 = arith.addi %1, %339 : vector<1x256xi32>
    %c0_i32_142 = arith.constant 0 : i32
    %341 = vector.broadcast %c0_i32_142 : i32 to vector<1x256xi32>
    %342 = arith.cmpi sge, %340, %341 : vector<1x256xi32>
    %343 = arith.andi %338, %342 : vector<1x256xi1>
    %c-1_i32_143 = arith.constant -1 : i32
    %344 = vector.broadcast %c-1_i32_143 : i32 to vector<1x256xi32>
    %345 = arith.addi %1, %344 : vector<1x256xi32>
    %c16_i32_144 = arith.constant 16 : i32
    %346 = vector.broadcast %c16_i32_144 : i32 to vector<1x256xi32>
    %347 = arith.cmpi slt, %345, %346 : vector<1x256xi32>
    %348 = arith.andi %343, %347 : vector<1x256xi1>
    %cst_145 = arith.constant 0.000000e+00 : f32
    %349 = vector.shape_cast %348 : vector<1x256xi1> to vector<1x256xi1>
    %350 = vector.broadcast %349 : vector<1x256xi1> to vector<4x256xi1>
    %351 = vector.broadcast %cst_145 : f32 to vector<4x256xf32>
    %352 = arith.select %350, %329, %351 : vector<4x256xi1>, vector<4x256xf32>
    %c240_i32_146 = arith.constant 240 : i32
    %353 = tpu.dynamic_rotate %208 by %c240_i32_146 dim 1 : vector<4x256xf32>, i32 -> vector<4x256xf32>
    %c1_i32_147 = arith.constant 1 : i32
    %354 = vector.broadcast %c1_i32_147 : i32 to vector<1x256xi32>
    %355 = arith.addi %0, %354 : vector<1x256xi32>
    %c0_i32_148 = arith.constant 0 : i32
    %356 = vector.broadcast %c0_i32_148 : i32 to vector<1x256xi32>
    %357 = arith.cmpi sge, %355, %356 : vector<1x256xi32>
    %c1_i32_149 = arith.constant 1 : i32
    %358 = vector.broadcast %c1_i32_149 : i32 to vector<1x256xi32>
    %359 = arith.addi %0, %358 : vector<1x256xi32>
    %c16_i32_150 = arith.constant 16 : i32
    %360 = vector.broadcast %c16_i32_150 : i32 to vector<1x256xi32>
    %361 = arith.cmpi slt, %359, %360 : vector<1x256xi32>
    %362 = arith.andi %357, %361 : vector<1x256xi1>
    %c0_i32_151 = arith.constant 0 : i32
    %363 = vector.broadcast %c0_i32_151 : i32 to vector<1x256xi32>
    %364 = arith.addi %1, %363 : vector<1x256xi32>
    %c0_i32_152 = arith.constant 0 : i32
    %365 = vector.broadcast %c0_i32_152 : i32 to vector<1x256xi32>
    %366 = arith.cmpi sge, %364, %365 : vector<1x256xi32>
    %367 = arith.andi %362, %366 : vector<1x256xi1>
    %c0_i32_153 = arith.constant 0 : i32
    %368 = vector.broadcast %c0_i32_153 : i32 to vector<1x256xi32>
    %369 = arith.addi %1, %368 : vector<1x256xi32>
    %c16_i32_154 = arith.constant 16 : i32
    %370 = vector.broadcast %c16_i32_154 : i32 to vector<1x256xi32>
    %371 = arith.cmpi slt, %369, %370 : vector<1x256xi32>
    %372 = arith.andi %367, %371 : vector<1x256xi1>
    %cst_155 = arith.constant 0.000000e+00 : f32
    %373 = vector.shape_cast %372 : vector<1x256xi1> to vector<1x256xi1>
    %374 = vector.broadcast %373 : vector<1x256xi1> to vector<4x256xi1>
    %375 = vector.broadcast %cst_155 : f32 to vector<4x256xf32>
    %376 = arith.select %374, %353, %375 : vector<4x256xi1>, vector<4x256xf32>
    %c239_i32_156 = arith.constant 239 : i32
    %377 = tpu.dynamic_rotate %208 by %c239_i32_156 dim 1 : vector<4x256xf32>, i32 -> vector<4x256xf32>
    %c1_i32_157 = arith.constant 1 : i32
    %378 = vector.broadcast %c1_i32_157 : i32 to vector<1x256xi32>
    %379 = arith.addi %0, %378 : vector<1x256xi32>
    %c0_i32_158 = arith.constant 0 : i32
    %380 = vector.broadcast %c0_i32_158 : i32 to vector<1x256xi32>
    %381 = arith.cmpi sge, %379, %380 : vector<1x256xi32>
    %c1_i32_159 = arith.constant 1 : i32
    %382 = vector.broadcast %c1_i32_159 : i32 to vector<1x256xi32>
    %383 = arith.addi %0, %382 : vector<1x256xi32>
    %c16_i32_160 = arith.constant 16 : i32
    %384 = vector.broadcast %c16_i32_160 : i32 to vector<1x256xi32>
    %385 = arith.cmpi slt, %383, %384 : vector<1x256xi32>
    %386 = arith.andi %381, %385 : vector<1x256xi1>
    %c1_i32_161 = arith.constant 1 : i32
    %387 = vector.broadcast %c1_i32_161 : i32 to vector<1x256xi32>
    %388 = arith.addi %1, %387 : vector<1x256xi32>
    %c0_i32_162 = arith.constant 0 : i32
    %389 = vector.broadcast %c0_i32_162 : i32 to vector<1x256xi32>
    %390 = arith.cmpi sge, %388, %389 : vector<1x256xi32>
    %391 = arith.andi %386, %390 : vector<1x256xi1>
    %c1_i32_163 = arith.constant 1 : i32
    %392 = vector.broadcast %c1_i32_163 : i32 to vector<1x256xi32>
    %393 = arith.addi %1, %392 : vector<1x256xi32>
    %c16_i32_164 = arith.constant 16 : i32
    %394 = vector.broadcast %c16_i32_164 : i32 to vector<1x256xi32>
    %395 = arith.cmpi slt, %393, %394 : vector<1x256xi32>
    %396 = arith.andi %391, %395 : vector<1x256xi1>
    %cst_165 = arith.constant 0.000000e+00 : f32
    %397 = vector.shape_cast %396 : vector<1x256xi1> to vector<1x256xi1>
    %398 = vector.broadcast %397 : vector<1x256xi1> to vector<4x256xi1>
    %399 = vector.broadcast %cst_165 : f32 to vector<4x256xf32>
    %400 = arith.select %398, %377, %399 : vector<4x256xi1>, vector<4x256xf32>
    %401 = tpu.concatenate %232, %256, %280, %304, %208, %328, %352, %376, %400 in 0 : vector<4x256xf32>, vector<4x256xf32>, vector<4x256xf32>, vector<4x256xf32>, vector<4x256xf32>, vector<4x256xf32>, vector<4x256xf32>, vector<4x256xf32>, vector<4x256xf32> -> vector<36x256xf32>
    %c0_166 = arith.constant 0 : index
    %c0_167 = arith.constant 0 : index
    %402 = vector.load %arg7[%c0_166, %c0_167] : memref<32x36xf32, #tpu.memory_space<vmem>>, vector<32x36xf32>
    %cst_168 = arith.constant dense<0.000000e+00> : vector<32x256xf32>
    %403 = tpu.matmul %402, %401, %cst_168 {dimension_numbers = #tpu.dot_dimension_numbers<[1], [0], [0], [1], [0, 0, 1, 1], [], []>} : vector<32x36xf32>, vector<36x256xf32>, vector<32x256xf32> -> vector<32x256xf32>
    %c0_169 = arith.constant 0 : index
    %c0_170 = arith.constant 0 : index
    %404 = vector.load %arg8[%c0_169, %c0_170] : memref<32x1xf32, #tpu.memory_space<vmem>>, vector<32x1xf32>
    %405 = vector.broadcast %404 : vector<32x1xf32> to vector<32x256xf32>
    %406 = arith.addf %403, %405 : vector<32x256xf32>
    %cst_171 = arith.constant dense<0xFF800000> : vector<32xf32>
    %407 = vector.multi_reduction <maximumf>, %406, %cst_171 [1] : vector<32x256xf32> to vector<32xf32>
    %408 = vector.shape_cast %407 : vector<32xf32> to vector<32x1xf32>
    %cst_172 = arith.constant dense<0.000000e+00> : vector<32xf32>
    %409 = vector.multi_reduction <add>, %406, %cst_172 [1] : vector<32x256xf32> to vector<32xf32>
    %410 = vector.shape_cast %409 : vector<32xf32> to vector<32x1xf32>
    %cst_173 = arith.constant 2.560000e+02 : f32
    %411 = vector.broadcast %cst_173 : f32 to vector<32x1xf32>
    %412 = arith.divf %410, %411 : vector<32x1xf32>
    %413 = tpu.concatenate %408, %412 in 1 : vector<32x1xf32>, vector<32x1xf32> -> vector<32x2xf32>
    %c0_174 = arith.constant 0 : index
    %c0_175 = arith.constant 0 : index
    %414 = vector.load %arg9[%c0_174, %c0_175] : memref<2x32xf32, #tpu.memory_space<vmem>>, vector<2x32xf32>
    %cst_176 = arith.constant dense<0.000000e+00> : vector<2x2xf32>
    %415 = tpu.matmul %414, %413, %cst_176 {dimension_numbers = #tpu.dot_dimension_numbers<[1], [0], [0], [1], [0, 0, 1, 1], [], []>} : vector<2x32xf32>, vector<32x2xf32>, vector<2x2xf32> -> vector<2x2xf32>
    %cst_177 = arith.constant 0.000000e+00 : f32
    %416 = vector.broadcast %cst_177 : f32 to vector<2x2xf32>
    %417 = arith.maximumf %415, %416 : vector<2x2xf32>
    %c0_178 = arith.constant 0 : index
    %c0_179 = arith.constant 0 : index
    %418 = vector.load %arg10[%c0_178, %c0_179] : memref<32x2xf32, #tpu.memory_space<vmem>>, vector<32x2xf32>
    %cst_180 = arith.constant dense<0.000000e+00> : vector<32x2xf32>
    %419 = tpu.matmul %418, %417, %cst_180 {dimension_numbers = #tpu.dot_dimension_numbers<[1], [0], [0], [1], [0, 0, 1, 1], [], []>} : vector<32x2xf32>, vector<2x2xf32>, vector<32x2xf32> -> vector<32x2xf32>
    %420 = vector.extract_strided_slice %419 {offsets = [0, 0], sizes = [32, 1], strides = [1, 1]} : vector<32x2xf32> to vector<32x1xf32>
    %421 = vector.extract_strided_slice %419 {offsets = [0, 1], sizes = [32, 1], strides = [1, 1]} : vector<32x2xf32> to vector<32x1xf32>
    %422 = arith.addf %420, %421 : vector<32x1xf32>
    %423 = arith.negf %422 : vector<32x1xf32>
    %424 = math.exp %423 : vector<32x1xf32>
    %cst_181 = arith.constant 1.000000e+00 : f32
    %425 = vector.broadcast %cst_181 : f32 to vector<32x1xf32>
    %426 = arith.addf %425, %424 : vector<32x1xf32>
    %427 = arith.divf %425, %426 : vector<32x1xf32>
    %428 = vector.broadcast %427 : vector<32x1xf32> to vector<32x256xf32>
    %429 = arith.mulf %406, %428 : vector<32x256xf32>
    %cst_182 = arith.constant dense<0xFF800000> : vector<256xf32>
    %430 = vector.multi_reduction <maximumf>, %429, %cst_182 [0] : vector<32x256xf32> to vector<256xf32>
    %431 = vector.shape_cast %430 : vector<256xf32> to vector<1x256xf32>
    %cst_183 = arith.constant dense<0.000000e+00> : vector<256xf32>
    %432 = vector.multi_reduction <add>, %429, %cst_183 [0] : vector<32x256xf32> to vector<256xf32>
    %433 = vector.shape_cast %432 : vector<256xf32> to vector<1x256xf32>
    %cst_184 = arith.constant 3.200000e+01 : f32
    %434 = vector.broadcast %cst_184 : f32 to vector<1x256xf32>
    %435 = arith.divf %433, %434 : vector<1x256xf32>
    %436 = tpu.concatenate %431, %435 in 0 : vector<1x256xf32>, vector<1x256xf32> -> vector<2x256xf32>
    %cst_185 = arith.constant 0.000000e+00 : f32
    %437 = vector.broadcast %cst_185 : f32 to vector<1x256xf32>
    %c51_i32 = arith.constant 51 : i32
    %438 = tpu.dynamic_rotate %436 by %c51_i32 dim 1 : vector<2x256xf32>, i32 -> vector<2x256xf32>
    %c-3_i32 = arith.constant -3 : i32
    %439 = vector.broadcast %c-3_i32 : i32 to vector<1x256xi32>
    %440 = arith.addi %0, %439 : vector<1x256xi32>
    %c0_i32_186 = arith.constant 0 : i32
    %441 = vector.broadcast %c0_i32_186 : i32 to vector<1x256xi32>
    %442 = arith.cmpi sge, %440, %441 : vector<1x256xi32>
    %c-3_i32_187 = arith.constant -3 : i32
    %443 = vector.broadcast %c-3_i32_187 : i32 to vector<1x256xi32>
    %444 = arith.addi %0, %443 : vector<1x256xi32>
    %c16_i32_188 = arith.constant 16 : i32
    %445 = vector.broadcast %c16_i32_188 : i32 to vector<1x256xi32>
    %446 = arith.cmpi slt, %444, %445 : vector<1x256xi32>
    %447 = arith.andi %442, %446 : vector<1x256xi1>
    %c-3_i32_189 = arith.constant -3 : i32
    %448 = vector.broadcast %c-3_i32_189 : i32 to vector<1x256xi32>
    %449 = arith.addi %1, %448 : vector<1x256xi32>
    %c0_i32_190 = arith.constant 0 : i32
    %450 = vector.broadcast %c0_i32_190 : i32 to vector<1x256xi32>
    %451 = arith.cmpi sge, %449, %450 : vector<1x256xi32>
    %452 = arith.andi %447, %451 : vector<1x256xi1>
    %c-3_i32_191 = arith.constant -3 : i32
    %453 = vector.broadcast %c-3_i32_191 : i32 to vector<1x256xi32>
    %454 = arith.addi %1, %453 : vector<1x256xi32>
    %c16_i32_192 = arith.constant 16 : i32
    %455 = vector.broadcast %c16_i32_192 : i32 to vector<1x256xi32>
    %456 = arith.cmpi slt, %454, %455 : vector<1x256xi32>
    %457 = arith.andi %452, %456 : vector<1x256xi1>
    %cst_193 = arith.constant 0.000000e+00 : f32
    %458 = vector.shape_cast %457 : vector<1x256xi1> to vector<1x256xi1>
    %459 = vector.broadcast %458 : vector<1x256xi1> to vector<2x256xi1>
    %460 = vector.broadcast %cst_193 : f32 to vector<2x256xf32>
    %461 = arith.select %459, %438, %460 : vector<2x256xi1>, vector<2x256xf32>
    %c50_i32 = arith.constant 50 : i32
    %462 = tpu.dynamic_rotate %436 by %c50_i32 dim 1 : vector<2x256xf32>, i32 -> vector<2x256xf32>
    %c-3_i32_194 = arith.constant -3 : i32
    %463 = vector.broadcast %c-3_i32_194 : i32 to vector<1x256xi32>
    %464 = arith.addi %0, %463 : vector<1x256xi32>
    %c0_i32_195 = arith.constant 0 : i32
    %465 = vector.broadcast %c0_i32_195 : i32 to vector<1x256xi32>
    %466 = arith.cmpi sge, %464, %465 : vector<1x256xi32>
    %c-3_i32_196 = arith.constant -3 : i32
    %467 = vector.broadcast %c-3_i32_196 : i32 to vector<1x256xi32>
    %468 = arith.addi %0, %467 : vector<1x256xi32>
    %c16_i32_197 = arith.constant 16 : i32
    %469 = vector.broadcast %c16_i32_197 : i32 to vector<1x256xi32>
    %470 = arith.cmpi slt, %468, %469 : vector<1x256xi32>
    %471 = arith.andi %466, %470 : vector<1x256xi1>
    %c-2_i32 = arith.constant -2 : i32
    %472 = vector.broadcast %c-2_i32 : i32 to vector<1x256xi32>
    %473 = arith.addi %1, %472 : vector<1x256xi32>
    %c0_i32_198 = arith.constant 0 : i32
    %474 = vector.broadcast %c0_i32_198 : i32 to vector<1x256xi32>
    %475 = arith.cmpi sge, %473, %474 : vector<1x256xi32>
    %476 = arith.andi %471, %475 : vector<1x256xi1>
    %c-2_i32_199 = arith.constant -2 : i32
    %477 = vector.broadcast %c-2_i32_199 : i32 to vector<1x256xi32>
    %478 = arith.addi %1, %477 : vector<1x256xi32>
    %c16_i32_200 = arith.constant 16 : i32
    %479 = vector.broadcast %c16_i32_200 : i32 to vector<1x256xi32>
    %480 = arith.cmpi slt, %478, %479 : vector<1x256xi32>
    %481 = arith.andi %476, %480 : vector<1x256xi1>
    %cst_201 = arith.constant 0.000000e+00 : f32
    %482 = vector.shape_cast %481 : vector<1x256xi1> to vector<1x256xi1>
    %483 = vector.broadcast %482 : vector<1x256xi1> to vector<2x256xi1>
    %484 = vector.broadcast %cst_201 : f32 to vector<2x256xf32>
    %485 = arith.select %483, %462, %484 : vector<2x256xi1>, vector<2x256xf32>
    %c49_i32 = arith.constant 49 : i32
    %486 = tpu.dynamic_rotate %436 by %c49_i32 dim 1 : vector<2x256xf32>, i32 -> vector<2x256xf32>
    %c-3_i32_202 = arith.constant -3 : i32
    %487 = vector.broadcast %c-3_i32_202 : i32 to vector<1x256xi32>
    %488 = arith.addi %0, %487 : vector<1x256xi32>
    %c0_i32_203 = arith.constant 0 : i32
    %489 = vector.broadcast %c0_i32_203 : i32 to vector<1x256xi32>
    %490 = arith.cmpi sge, %488, %489 : vector<1x256xi32>
    %c-3_i32_204 = arith.constant -3 : i32
    %491 = vector.broadcast %c-3_i32_204 : i32 to vector<1x256xi32>
    %492 = arith.addi %0, %491 : vector<1x256xi32>
    %c16_i32_205 = arith.constant 16 : i32
    %493 = vector.broadcast %c16_i32_205 : i32 to vector<1x256xi32>
    %494 = arith.cmpi slt, %492, %493 : vector<1x256xi32>
    %495 = arith.andi %490, %494 : vector<1x256xi1>
    %c-1_i32_206 = arith.constant -1 : i32
    %496 = vector.broadcast %c-1_i32_206 : i32 to vector<1x256xi32>
    %497 = arith.addi %1, %496 : vector<1x256xi32>
    %c0_i32_207 = arith.constant 0 : i32
    %498 = vector.broadcast %c0_i32_207 : i32 to vector<1x256xi32>
    %499 = arith.cmpi sge, %497, %498 : vector<1x256xi32>
    %500 = arith.andi %495, %499 : vector<1x256xi1>
    %c-1_i32_208 = arith.constant -1 : i32
    %501 = vector.broadcast %c-1_i32_208 : i32 to vector<1x256xi32>
    %502 = arith.addi %1, %501 : vector<1x256xi32>
    %c16_i32_209 = arith.constant 16 : i32
    %503 = vector.broadcast %c16_i32_209 : i32 to vector<1x256xi32>
    %504 = arith.cmpi slt, %502, %503 : vector<1x256xi32>
    %505 = arith.andi %500, %504 : vector<1x256xi1>
    %cst_210 = arith.constant 0.000000e+00 : f32
    %506 = vector.shape_cast %505 : vector<1x256xi1> to vector<1x256xi1>
    %507 = vector.broadcast %506 : vector<1x256xi1> to vector<2x256xi1>
    %508 = vector.broadcast %cst_210 : f32 to vector<2x256xf32>
    %509 = arith.select %507, %486, %508 : vector<2x256xi1>, vector<2x256xf32>
    %c48_i32 = arith.constant 48 : i32
    %510 = tpu.dynamic_rotate %436 by %c48_i32 dim 1 : vector<2x256xf32>, i32 -> vector<2x256xf32>
    %c-3_i32_211 = arith.constant -3 : i32
    %511 = vector.broadcast %c-3_i32_211 : i32 to vector<1x256xi32>
    %512 = arith.addi %0, %511 : vector<1x256xi32>
    %c0_i32_212 = arith.constant 0 : i32
    %513 = vector.broadcast %c0_i32_212 : i32 to vector<1x256xi32>
    %514 = arith.cmpi sge, %512, %513 : vector<1x256xi32>
    %c-3_i32_213 = arith.constant -3 : i32
    %515 = vector.broadcast %c-3_i32_213 : i32 to vector<1x256xi32>
    %516 = arith.addi %0, %515 : vector<1x256xi32>
    %c16_i32_214 = arith.constant 16 : i32
    %517 = vector.broadcast %c16_i32_214 : i32 to vector<1x256xi32>
    %518 = arith.cmpi slt, %516, %517 : vector<1x256xi32>
    %519 = arith.andi %514, %518 : vector<1x256xi1>
    %c0_i32_215 = arith.constant 0 : i32
    %520 = vector.broadcast %c0_i32_215 : i32 to vector<1x256xi32>
    %521 = arith.addi %1, %520 : vector<1x256xi32>
    %c0_i32_216 = arith.constant 0 : i32
    %522 = vector.broadcast %c0_i32_216 : i32 to vector<1x256xi32>
    %523 = arith.cmpi sge, %521, %522 : vector<1x256xi32>
    %524 = arith.andi %519, %523 : vector<1x256xi1>
    %c0_i32_217 = arith.constant 0 : i32
    %525 = vector.broadcast %c0_i32_217 : i32 to vector<1x256xi32>
    %526 = arith.addi %1, %525 : vector<1x256xi32>
    %c16_i32_218 = arith.constant 16 : i32
    %527 = vector.broadcast %c16_i32_218 : i32 to vector<1x256xi32>
    %528 = arith.cmpi slt, %526, %527 : vector<1x256xi32>
    %529 = arith.andi %524, %528 : vector<1x256xi1>
    %cst_219 = arith.constant 0.000000e+00 : f32
    %530 = vector.shape_cast %529 : vector<1x256xi1> to vector<1x256xi1>
    %531 = vector.broadcast %530 : vector<1x256xi1> to vector<2x256xi1>
    %532 = vector.broadcast %cst_219 : f32 to vector<2x256xf32>
    %533 = arith.select %531, %510, %532 : vector<2x256xi1>, vector<2x256xf32>
    %c47_i32 = arith.constant 47 : i32
    %534 = tpu.dynamic_rotate %436 by %c47_i32 dim 1 : vector<2x256xf32>, i32 -> vector<2x256xf32>
    %c-3_i32_220 = arith.constant -3 : i32
    %535 = vector.broadcast %c-3_i32_220 : i32 to vector<1x256xi32>
    %536 = arith.addi %0, %535 : vector<1x256xi32>
    %c0_i32_221 = arith.constant 0 : i32
    %537 = vector.broadcast %c0_i32_221 : i32 to vector<1x256xi32>
    %538 = arith.cmpi sge, %536, %537 : vector<1x256xi32>
    %c-3_i32_222 = arith.constant -3 : i32
    %539 = vector.broadcast %c-3_i32_222 : i32 to vector<1x256xi32>
    %540 = arith.addi %0, %539 : vector<1x256xi32>
    %c16_i32_223 = arith.constant 16 : i32
    %541 = vector.broadcast %c16_i32_223 : i32 to vector<1x256xi32>
    %542 = arith.cmpi slt, %540, %541 : vector<1x256xi32>
    %543 = arith.andi %538, %542 : vector<1x256xi1>
    %c1_i32_224 = arith.constant 1 : i32
    %544 = vector.broadcast %c1_i32_224 : i32 to vector<1x256xi32>
    %545 = arith.addi %1, %544 : vector<1x256xi32>
    %c0_i32_225 = arith.constant 0 : i32
    %546 = vector.broadcast %c0_i32_225 : i32 to vector<1x256xi32>
    %547 = arith.cmpi sge, %545, %546 : vector<1x256xi32>
    %548 = arith.andi %543, %547 : vector<1x256xi1>
    %c1_i32_226 = arith.constant 1 : i32
    %549 = vector.broadcast %c1_i32_226 : i32 to vector<1x256xi32>
    %550 = arith.addi %1, %549 : vector<1x256xi32>
    %c16_i32_227 = arith.constant 16 : i32
    %551 = vector.broadcast %c16_i32_227 : i32 to vector<1x256xi32>
    %552 = arith.cmpi slt, %550, %551 : vector<1x256xi32>
    %553 = arith.andi %548, %552 : vector<1x256xi1>
    %cst_228 = arith.constant 0.000000e+00 : f32
    %554 = vector.shape_cast %553 : vector<1x256xi1> to vector<1x256xi1>
    %555 = vector.broadcast %554 : vector<1x256xi1> to vector<2x256xi1>
    %556 = vector.broadcast %cst_228 : f32 to vector<2x256xf32>
    %557 = arith.select %555, %534, %556 : vector<2x256xi1>, vector<2x256xf32>
    %c46_i32 = arith.constant 46 : i32
    %558 = tpu.dynamic_rotate %436 by %c46_i32 dim 1 : vector<2x256xf32>, i32 -> vector<2x256xf32>
    %c-3_i32_229 = arith.constant -3 : i32
    %559 = vector.broadcast %c-3_i32_229 : i32 to vector<1x256xi32>
    %560 = arith.addi %0, %559 : vector<1x256xi32>
    %c0_i32_230 = arith.constant 0 : i32
    %561 = vector.broadcast %c0_i32_230 : i32 to vector<1x256xi32>
    %562 = arith.cmpi sge, %560, %561 : vector<1x256xi32>
    %c-3_i32_231 = arith.constant -3 : i32
    %563 = vector.broadcast %c-3_i32_231 : i32 to vector<1x256xi32>
    %564 = arith.addi %0, %563 : vector<1x256xi32>
    %c16_i32_232 = arith.constant 16 : i32
    %565 = vector.broadcast %c16_i32_232 : i32 to vector<1x256xi32>
    %566 = arith.cmpi slt, %564, %565 : vector<1x256xi32>
    %567 = arith.andi %562, %566 : vector<1x256xi1>
    %c2_i32 = arith.constant 2 : i32
    %568 = vector.broadcast %c2_i32 : i32 to vector<1x256xi32>
    %569 = arith.addi %1, %568 : vector<1x256xi32>
    %c0_i32_233 = arith.constant 0 : i32
    %570 = vector.broadcast %c0_i32_233 : i32 to vector<1x256xi32>
    %571 = arith.cmpi sge, %569, %570 : vector<1x256xi32>
    %572 = arith.andi %567, %571 : vector<1x256xi1>
    %c2_i32_234 = arith.constant 2 : i32
    %573 = vector.broadcast %c2_i32_234 : i32 to vector<1x256xi32>
    %574 = arith.addi %1, %573 : vector<1x256xi32>
    %c16_i32_235 = arith.constant 16 : i32
    %575 = vector.broadcast %c16_i32_235 : i32 to vector<1x256xi32>
    %576 = arith.cmpi slt, %574, %575 : vector<1x256xi32>
    %577 = arith.andi %572, %576 : vector<1x256xi1>
    %cst_236 = arith.constant 0.000000e+00 : f32
    %578 = vector.shape_cast %577 : vector<1x256xi1> to vector<1x256xi1>
    %579 = vector.broadcast %578 : vector<1x256xi1> to vector<2x256xi1>
    %580 = vector.broadcast %cst_236 : f32 to vector<2x256xf32>
    %581 = arith.select %579, %558, %580 : vector<2x256xi1>, vector<2x256xf32>
    %c45_i32 = arith.constant 45 : i32
    %582 = tpu.dynamic_rotate %436 by %c45_i32 dim 1 : vector<2x256xf32>, i32 -> vector<2x256xf32>
    %c-3_i32_237 = arith.constant -3 : i32
    %583 = vector.broadcast %c-3_i32_237 : i32 to vector<1x256xi32>
    %584 = arith.addi %0, %583 : vector<1x256xi32>
    %c0_i32_238 = arith.constant 0 : i32
    %585 = vector.broadcast %c0_i32_238 : i32 to vector<1x256xi32>
    %586 = arith.cmpi sge, %584, %585 : vector<1x256xi32>
    %c-3_i32_239 = arith.constant -3 : i32
    %587 = vector.broadcast %c-3_i32_239 : i32 to vector<1x256xi32>
    %588 = arith.addi %0, %587 : vector<1x256xi32>
    %c16_i32_240 = arith.constant 16 : i32
    %589 = vector.broadcast %c16_i32_240 : i32 to vector<1x256xi32>
    %590 = arith.cmpi slt, %588, %589 : vector<1x256xi32>
    %591 = arith.andi %586, %590 : vector<1x256xi1>
    %c3_i32 = arith.constant 3 : i32
    %592 = vector.broadcast %c3_i32 : i32 to vector<1x256xi32>
    %593 = arith.addi %1, %592 : vector<1x256xi32>
    %c0_i32_241 = arith.constant 0 : i32
    %594 = vector.broadcast %c0_i32_241 : i32 to vector<1x256xi32>
    %595 = arith.cmpi sge, %593, %594 : vector<1x256xi32>
    %596 = arith.andi %591, %595 : vector<1x256xi1>
    %c3_i32_242 = arith.constant 3 : i32
    %597 = vector.broadcast %c3_i32_242 : i32 to vector<1x256xi32>
    %598 = arith.addi %1, %597 : vector<1x256xi32>
    %c16_i32_243 = arith.constant 16 : i32
    %599 = vector.broadcast %c16_i32_243 : i32 to vector<1x256xi32>
    %600 = arith.cmpi slt, %598, %599 : vector<1x256xi32>
    %601 = arith.andi %596, %600 : vector<1x256xi1>
    %cst_244 = arith.constant 0.000000e+00 : f32
    %602 = vector.shape_cast %601 : vector<1x256xi1> to vector<1x256xi1>
    %603 = vector.broadcast %602 : vector<1x256xi1> to vector<2x256xi1>
    %604 = vector.broadcast %cst_244 : f32 to vector<2x256xf32>
    %605 = arith.select %603, %582, %604 : vector<2x256xi1>, vector<2x256xf32>
    %c35_i32 = arith.constant 35 : i32
    %606 = tpu.dynamic_rotate %436 by %c35_i32 dim 1 : vector<2x256xf32>, i32 -> vector<2x256xf32>
    %c-2_i32_245 = arith.constant -2 : i32
    %607 = vector.broadcast %c-2_i32_245 : i32 to vector<1x256xi32>
    %608 = arith.addi %0, %607 : vector<1x256xi32>
    %c0_i32_246 = arith.constant 0 : i32
    %609 = vector.broadcast %c0_i32_246 : i32 to vector<1x256xi32>
    %610 = arith.cmpi sge, %608, %609 : vector<1x256xi32>
    %c-2_i32_247 = arith.constant -2 : i32
    %611 = vector.broadcast %c-2_i32_247 : i32 to vector<1x256xi32>
    %612 = arith.addi %0, %611 : vector<1x256xi32>
    %c16_i32_248 = arith.constant 16 : i32
    %613 = vector.broadcast %c16_i32_248 : i32 to vector<1x256xi32>
    %614 = arith.cmpi slt, %612, %613 : vector<1x256xi32>
    %615 = arith.andi %610, %614 : vector<1x256xi1>
    %c-3_i32_249 = arith.constant -3 : i32
    %616 = vector.broadcast %c-3_i32_249 : i32 to vector<1x256xi32>
    %617 = arith.addi %1, %616 : vector<1x256xi32>
    %c0_i32_250 = arith.constant 0 : i32
    %618 = vector.broadcast %c0_i32_250 : i32 to vector<1x256xi32>
    %619 = arith.cmpi sge, %617, %618 : vector<1x256xi32>
    %620 = arith.andi %615, %619 : vector<1x256xi1>
    %c-3_i32_251 = arith.constant -3 : i32
    %621 = vector.broadcast %c-3_i32_251 : i32 to vector<1x256xi32>
    %622 = arith.addi %1, %621 : vector<1x256xi32>
    %c16_i32_252 = arith.constant 16 : i32
    %623 = vector.broadcast %c16_i32_252 : i32 to vector<1x256xi32>
    %624 = arith.cmpi slt, %622, %623 : vector<1x256xi32>
    %625 = arith.andi %620, %624 : vector<1x256xi1>
    %cst_253 = arith.constant 0.000000e+00 : f32
    %626 = vector.shape_cast %625 : vector<1x256xi1> to vector<1x256xi1>
    %627 = vector.broadcast %626 : vector<1x256xi1> to vector<2x256xi1>
    %628 = vector.broadcast %cst_253 : f32 to vector<2x256xf32>
    %629 = arith.select %627, %606, %628 : vector<2x256xi1>, vector<2x256xf32>
    %c34_i32 = arith.constant 34 : i32
    %630 = tpu.dynamic_rotate %436 by %c34_i32 dim 1 : vector<2x256xf32>, i32 -> vector<2x256xf32>
    %c-2_i32_254 = arith.constant -2 : i32
    %631 = vector.broadcast %c-2_i32_254 : i32 to vector<1x256xi32>
    %632 = arith.addi %0, %631 : vector<1x256xi32>
    %c0_i32_255 = arith.constant 0 : i32
    %633 = vector.broadcast %c0_i32_255 : i32 to vector<1x256xi32>
    %634 = arith.cmpi sge, %632, %633 : vector<1x256xi32>
    %c-2_i32_256 = arith.constant -2 : i32
    %635 = vector.broadcast %c-2_i32_256 : i32 to vector<1x256xi32>
    %636 = arith.addi %0, %635 : vector<1x256xi32>
    %c16_i32_257 = arith.constant 16 : i32
    %637 = vector.broadcast %c16_i32_257 : i32 to vector<1x256xi32>
    %638 = arith.cmpi slt, %636, %637 : vector<1x256xi32>
    %639 = arith.andi %634, %638 : vector<1x256xi1>
    %c-2_i32_258 = arith.constant -2 : i32
    %640 = vector.broadcast %c-2_i32_258 : i32 to vector<1x256xi32>
    %641 = arith.addi %1, %640 : vector<1x256xi32>
    %c0_i32_259 = arith.constant 0 : i32
    %642 = vector.broadcast %c0_i32_259 : i32 to vector<1x256xi32>
    %643 = arith.cmpi sge, %641, %642 : vector<1x256xi32>
    %644 = arith.andi %639, %643 : vector<1x256xi1>
    %c-2_i32_260 = arith.constant -2 : i32
    %645 = vector.broadcast %c-2_i32_260 : i32 to vector<1x256xi32>
    %646 = arith.addi %1, %645 : vector<1x256xi32>
    %c16_i32_261 = arith.constant 16 : i32
    %647 = vector.broadcast %c16_i32_261 : i32 to vector<1x256xi32>
    %648 = arith.cmpi slt, %646, %647 : vector<1x256xi32>
    %649 = arith.andi %644, %648 : vector<1x256xi1>
    %cst_262 = arith.constant 0.000000e+00 : f32
    %650 = vector.shape_cast %649 : vector<1x256xi1> to vector<1x256xi1>
    %651 = vector.broadcast %650 : vector<1x256xi1> to vector<2x256xi1>
    %652 = vector.broadcast %cst_262 : f32 to vector<2x256xf32>
    %653 = arith.select %651, %630, %652 : vector<2x256xi1>, vector<2x256xf32>
    %c33_i32 = arith.constant 33 : i32
    %654 = tpu.dynamic_rotate %436 by %c33_i32 dim 1 : vector<2x256xf32>, i32 -> vector<2x256xf32>
    %c-2_i32_263 = arith.constant -2 : i32
    %655 = vector.broadcast %c-2_i32_263 : i32 to vector<1x256xi32>
    %656 = arith.addi %0, %655 : vector<1x256xi32>
    %c0_i32_264 = arith.constant 0 : i32
    %657 = vector.broadcast %c0_i32_264 : i32 to vector<1x256xi32>
    %658 = arith.cmpi sge, %656, %657 : vector<1x256xi32>
    %c-2_i32_265 = arith.constant -2 : i32
    %659 = vector.broadcast %c-2_i32_265 : i32 to vector<1x256xi32>
    %660 = arith.addi %0, %659 : vector<1x256xi32>
    %c16_i32_266 = arith.constant 16 : i32
    %661 = vector.broadcast %c16_i32_266 : i32 to vector<1x256xi32>
    %662 = arith.cmpi slt, %660, %661 : vector<1x256xi32>
    %663 = arith.andi %658, %662 : vector<1x256xi1>
    %c-1_i32_267 = arith.constant -1 : i32
    %664 = vector.broadcast %c-1_i32_267 : i32 to vector<1x256xi32>
    %665 = arith.addi %1, %664 : vector<1x256xi32>
    %c0_i32_268 = arith.constant 0 : i32
    %666 = vector.broadcast %c0_i32_268 : i32 to vector<1x256xi32>
    %667 = arith.cmpi sge, %665, %666 : vector<1x256xi32>
    %668 = arith.andi %663, %667 : vector<1x256xi1>
    %c-1_i32_269 = arith.constant -1 : i32
    %669 = vector.broadcast %c-1_i32_269 : i32 to vector<1x256xi32>
    %670 = arith.addi %1, %669 : vector<1x256xi32>
    %c16_i32_270 = arith.constant 16 : i32
    %671 = vector.broadcast %c16_i32_270 : i32 to vector<1x256xi32>
    %672 = arith.cmpi slt, %670, %671 : vector<1x256xi32>
    %673 = arith.andi %668, %672 : vector<1x256xi1>
    %cst_271 = arith.constant 0.000000e+00 : f32
    %674 = vector.shape_cast %673 : vector<1x256xi1> to vector<1x256xi1>
    %675 = vector.broadcast %674 : vector<1x256xi1> to vector<2x256xi1>
    %676 = vector.broadcast %cst_271 : f32 to vector<2x256xf32>
    %677 = arith.select %675, %654, %676 : vector<2x256xi1>, vector<2x256xf32>
    %c32_i32 = arith.constant 32 : i32
    %678 = tpu.dynamic_rotate %436 by %c32_i32 dim 1 : vector<2x256xf32>, i32 -> vector<2x256xf32>
    %c-2_i32_272 = arith.constant -2 : i32
    %679 = vector.broadcast %c-2_i32_272 : i32 to vector<1x256xi32>
    %680 = arith.addi %0, %679 : vector<1x256xi32>
    %c0_i32_273 = arith.constant 0 : i32
    %681 = vector.broadcast %c0_i32_273 : i32 to vector<1x256xi32>
    %682 = arith.cmpi sge, %680, %681 : vector<1x256xi32>
    %c-2_i32_274 = arith.constant -2 : i32
    %683 = vector.broadcast %c-2_i32_274 : i32 to vector<1x256xi32>
    %684 = arith.addi %0, %683 : vector<1x256xi32>
    %c16_i32_275 = arith.constant 16 : i32
    %685 = vector.broadcast %c16_i32_275 : i32 to vector<1x256xi32>
    %686 = arith.cmpi slt, %684, %685 : vector<1x256xi32>
    %687 = arith.andi %682, %686 : vector<1x256xi1>
    %c0_i32_276 = arith.constant 0 : i32
    %688 = vector.broadcast %c0_i32_276 : i32 to vector<1x256xi32>
    %689 = arith.addi %1, %688 : vector<1x256xi32>
    %c0_i32_277 = arith.constant 0 : i32
    %690 = vector.broadcast %c0_i32_277 : i32 to vector<1x256xi32>
    %691 = arith.cmpi sge, %689, %690 : vector<1x256xi32>
    %692 = arith.andi %687, %691 : vector<1x256xi1>
    %c0_i32_278 = arith.constant 0 : i32
    %693 = vector.broadcast %c0_i32_278 : i32 to vector<1x256xi32>
    %694 = arith.addi %1, %693 : vector<1x256xi32>
    %c16_i32_279 = arith.constant 16 : i32
    %695 = vector.broadcast %c16_i32_279 : i32 to vector<1x256xi32>
    %696 = arith.cmpi slt, %694, %695 : vector<1x256xi32>
    %697 = arith.andi %692, %696 : vector<1x256xi1>
    %cst_280 = arith.constant 0.000000e+00 : f32
    %698 = vector.shape_cast %697 : vector<1x256xi1> to vector<1x256xi1>
    %699 = vector.broadcast %698 : vector<1x256xi1> to vector<2x256xi1>
    %700 = vector.broadcast %cst_280 : f32 to vector<2x256xf32>
    %701 = arith.select %699, %678, %700 : vector<2x256xi1>, vector<2x256xf32>
    %c31_i32 = arith.constant 31 : i32
    %702 = tpu.dynamic_rotate %436 by %c31_i32 dim 1 : vector<2x256xf32>, i32 -> vector<2x256xf32>
    %c-2_i32_281 = arith.constant -2 : i32
    %703 = vector.broadcast %c-2_i32_281 : i32 to vector<1x256xi32>
    %704 = arith.addi %0, %703 : vector<1x256xi32>
    %c0_i32_282 = arith.constant 0 : i32
    %705 = vector.broadcast %c0_i32_282 : i32 to vector<1x256xi32>
    %706 = arith.cmpi sge, %704, %705 : vector<1x256xi32>
    %c-2_i32_283 = arith.constant -2 : i32
    %707 = vector.broadcast %c-2_i32_283 : i32 to vector<1x256xi32>
    %708 = arith.addi %0, %707 : vector<1x256xi32>
    %c16_i32_284 = arith.constant 16 : i32
    %709 = vector.broadcast %c16_i32_284 : i32 to vector<1x256xi32>
    %710 = arith.cmpi slt, %708, %709 : vector<1x256xi32>
    %711 = arith.andi %706, %710 : vector<1x256xi1>
    %c1_i32_285 = arith.constant 1 : i32
    %712 = vector.broadcast %c1_i32_285 : i32 to vector<1x256xi32>
    %713 = arith.addi %1, %712 : vector<1x256xi32>
    %c0_i32_286 = arith.constant 0 : i32
    %714 = vector.broadcast %c0_i32_286 : i32 to vector<1x256xi32>
    %715 = arith.cmpi sge, %713, %714 : vector<1x256xi32>
    %716 = arith.andi %711, %715 : vector<1x256xi1>
    %c1_i32_287 = arith.constant 1 : i32
    %717 = vector.broadcast %c1_i32_287 : i32 to vector<1x256xi32>
    %718 = arith.addi %1, %717 : vector<1x256xi32>
    %c16_i32_288 = arith.constant 16 : i32
    %719 = vector.broadcast %c16_i32_288 : i32 to vector<1x256xi32>
    %720 = arith.cmpi slt, %718, %719 : vector<1x256xi32>
    %721 = arith.andi %716, %720 : vector<1x256xi1>
    %cst_289 = arith.constant 0.000000e+00 : f32
    %722 = vector.shape_cast %721 : vector<1x256xi1> to vector<1x256xi1>
    %723 = vector.broadcast %722 : vector<1x256xi1> to vector<2x256xi1>
    %724 = vector.broadcast %cst_289 : f32 to vector<2x256xf32>
    %725 = arith.select %723, %702, %724 : vector<2x256xi1>, vector<2x256xf32>
    %c30_i32 = arith.constant 30 : i32
    %726 = tpu.dynamic_rotate %436 by %c30_i32 dim 1 : vector<2x256xf32>, i32 -> vector<2x256xf32>
    %c-2_i32_290 = arith.constant -2 : i32
    %727 = vector.broadcast %c-2_i32_290 : i32 to vector<1x256xi32>
    %728 = arith.addi %0, %727 : vector<1x256xi32>
    %c0_i32_291 = arith.constant 0 : i32
    %729 = vector.broadcast %c0_i32_291 : i32 to vector<1x256xi32>
    %730 = arith.cmpi sge, %728, %729 : vector<1x256xi32>
    %c-2_i32_292 = arith.constant -2 : i32
    %731 = vector.broadcast %c-2_i32_292 : i32 to vector<1x256xi32>
    %732 = arith.addi %0, %731 : vector<1x256xi32>
    %c16_i32_293 = arith.constant 16 : i32
    %733 = vector.broadcast %c16_i32_293 : i32 to vector<1x256xi32>
    %734 = arith.cmpi slt, %732, %733 : vector<1x256xi32>
    %735 = arith.andi %730, %734 : vector<1x256xi1>
    %c2_i32_294 = arith.constant 2 : i32
    %736 = vector.broadcast %c2_i32_294 : i32 to vector<1x256xi32>
    %737 = arith.addi %1, %736 : vector<1x256xi32>
    %c0_i32_295 = arith.constant 0 : i32
    %738 = vector.broadcast %c0_i32_295 : i32 to vector<1x256xi32>
    %739 = arith.cmpi sge, %737, %738 : vector<1x256xi32>
    %740 = arith.andi %735, %739 : vector<1x256xi1>
    %c2_i32_296 = arith.constant 2 : i32
    %741 = vector.broadcast %c2_i32_296 : i32 to vector<1x256xi32>
    %742 = arith.addi %1, %741 : vector<1x256xi32>
    %c16_i32_297 = arith.constant 16 : i32
    %743 = vector.broadcast %c16_i32_297 : i32 to vector<1x256xi32>
    %744 = arith.cmpi slt, %742, %743 : vector<1x256xi32>
    %745 = arith.andi %740, %744 : vector<1x256xi1>
    %cst_298 = arith.constant 0.000000e+00 : f32
    %746 = vector.shape_cast %745 : vector<1x256xi1> to vector<1x256xi1>
    %747 = vector.broadcast %746 : vector<1x256xi1> to vector<2x256xi1>
    %748 = vector.broadcast %cst_298 : f32 to vector<2x256xf32>
    %749 = arith.select %747, %726, %748 : vector<2x256xi1>, vector<2x256xf32>
    %c29_i32 = arith.constant 29 : i32
    %750 = tpu.dynamic_rotate %436 by %c29_i32 dim 1 : vector<2x256xf32>, i32 -> vector<2x256xf32>
    %c-2_i32_299 = arith.constant -2 : i32
    %751 = vector.broadcast %c-2_i32_299 : i32 to vector<1x256xi32>
    %752 = arith.addi %0, %751 : vector<1x256xi32>
    %c0_i32_300 = arith.constant 0 : i32
    %753 = vector.broadcast %c0_i32_300 : i32 to vector<1x256xi32>
    %754 = arith.cmpi sge, %752, %753 : vector<1x256xi32>
    %c-2_i32_301 = arith.constant -2 : i32
    %755 = vector.broadcast %c-2_i32_301 : i32 to vector<1x256xi32>
    %756 = arith.addi %0, %755 : vector<1x256xi32>
    %c16_i32_302 = arith.constant 16 : i32
    %757 = vector.broadcast %c16_i32_302 : i32 to vector<1x256xi32>
    %758 = arith.cmpi slt, %756, %757 : vector<1x256xi32>
    %759 = arith.andi %754, %758 : vector<1x256xi1>
    %c3_i32_303 = arith.constant 3 : i32
    %760 = vector.broadcast %c3_i32_303 : i32 to vector<1x256xi32>
    %761 = arith.addi %1, %760 : vector<1x256xi32>
    %c0_i32_304 = arith.constant 0 : i32
    %762 = vector.broadcast %c0_i32_304 : i32 to vector<1x256xi32>
    %763 = arith.cmpi sge, %761, %762 : vector<1x256xi32>
    %764 = arith.andi %759, %763 : vector<1x256xi1>
    %c3_i32_305 = arith.constant 3 : i32
    %765 = vector.broadcast %c3_i32_305 : i32 to vector<1x256xi32>
    %766 = arith.addi %1, %765 : vector<1x256xi32>
    %c16_i32_306 = arith.constant 16 : i32
    %767 = vector.broadcast %c16_i32_306 : i32 to vector<1x256xi32>
    %768 = arith.cmpi slt, %766, %767 : vector<1x256xi32>
    %769 = arith.andi %764, %768 : vector<1x256xi1>
    %cst_307 = arith.constant 0.000000e+00 : f32
    %770 = vector.shape_cast %769 : vector<1x256xi1> to vector<1x256xi1>
    %771 = vector.broadcast %770 : vector<1x256xi1> to vector<2x256xi1>
    %772 = vector.broadcast %cst_307 : f32 to vector<2x256xf32>
    %773 = arith.select %771, %750, %772 : vector<2x256xi1>, vector<2x256xf32>
    %c19_i32 = arith.constant 19 : i32
    %774 = tpu.dynamic_rotate %436 by %c19_i32 dim 1 : vector<2x256xf32>, i32 -> vector<2x256xf32>
    %c-1_i32_308 = arith.constant -1 : i32
    %775 = vector.broadcast %c-1_i32_308 : i32 to vector<1x256xi32>
    %776 = arith.addi %0, %775 : vector<1x256xi32>
    %c0_i32_309 = arith.constant 0 : i32
    %777 = vector.broadcast %c0_i32_309 : i32 to vector<1x256xi32>
    %778 = arith.cmpi sge, %776, %777 : vector<1x256xi32>
    %c-1_i32_310 = arith.constant -1 : i32
    %779 = vector.broadcast %c-1_i32_310 : i32 to vector<1x256xi32>
    %780 = arith.addi %0, %779 : vector<1x256xi32>
    %c16_i32_311 = arith.constant 16 : i32
    %781 = vector.broadcast %c16_i32_311 : i32 to vector<1x256xi32>
    %782 = arith.cmpi slt, %780, %781 : vector<1x256xi32>
    %783 = arith.andi %778, %782 : vector<1x256xi1>
    %c-3_i32_312 = arith.constant -3 : i32
    %784 = vector.broadcast %c-3_i32_312 : i32 to vector<1x256xi32>
    %785 = arith.addi %1, %784 : vector<1x256xi32>
    %c0_i32_313 = arith.constant 0 : i32
    %786 = vector.broadcast %c0_i32_313 : i32 to vector<1x256xi32>
    %787 = arith.cmpi sge, %785, %786 : vector<1x256xi32>
    %788 = arith.andi %783, %787 : vector<1x256xi1>
    %c-3_i32_314 = arith.constant -3 : i32
    %789 = vector.broadcast %c-3_i32_314 : i32 to vector<1x256xi32>
    %790 = arith.addi %1, %789 : vector<1x256xi32>
    %c16_i32_315 = arith.constant 16 : i32
    %791 = vector.broadcast %c16_i32_315 : i32 to vector<1x256xi32>
    %792 = arith.cmpi slt, %790, %791 : vector<1x256xi32>
    %793 = arith.andi %788, %792 : vector<1x256xi1>
    %cst_316 = arith.constant 0.000000e+00 : f32
    %794 = vector.shape_cast %793 : vector<1x256xi1> to vector<1x256xi1>
    %795 = vector.broadcast %794 : vector<1x256xi1> to vector<2x256xi1>
    %796 = vector.broadcast %cst_316 : f32 to vector<2x256xf32>
    %797 = arith.select %795, %774, %796 : vector<2x256xi1>, vector<2x256xf32>
    %c18_i32 = arith.constant 18 : i32
    %798 = tpu.dynamic_rotate %436 by %c18_i32 dim 1 : vector<2x256xf32>, i32 -> vector<2x256xf32>
    %c-1_i32_317 = arith.constant -1 : i32
    %799 = vector.broadcast %c-1_i32_317 : i32 to vector<1x256xi32>
    %800 = arith.addi %0, %799 : vector<1x256xi32>
    %c0_i32_318 = arith.constant 0 : i32
    %801 = vector.broadcast %c0_i32_318 : i32 to vector<1x256xi32>
    %802 = arith.cmpi sge, %800, %801 : vector<1x256xi32>
    %c-1_i32_319 = arith.constant -1 : i32
    %803 = vector.broadcast %c-1_i32_319 : i32 to vector<1x256xi32>
    %804 = arith.addi %0, %803 : vector<1x256xi32>
    %c16_i32_320 = arith.constant 16 : i32
    %805 = vector.broadcast %c16_i32_320 : i32 to vector<1x256xi32>
    %806 = arith.cmpi slt, %804, %805 : vector<1x256xi32>
    %807 = arith.andi %802, %806 : vector<1x256xi1>
    %c-2_i32_321 = arith.constant -2 : i32
    %808 = vector.broadcast %c-2_i32_321 : i32 to vector<1x256xi32>
    %809 = arith.addi %1, %808 : vector<1x256xi32>
    %c0_i32_322 = arith.constant 0 : i32
    %810 = vector.broadcast %c0_i32_322 : i32 to vector<1x256xi32>
    %811 = arith.cmpi sge, %809, %810 : vector<1x256xi32>
    %812 = arith.andi %807, %811 : vector<1x256xi1>
    %c-2_i32_323 = arith.constant -2 : i32
    %813 = vector.broadcast %c-2_i32_323 : i32 to vector<1x256xi32>
    %814 = arith.addi %1, %813 : vector<1x256xi32>
    %c16_i32_324 = arith.constant 16 : i32
    %815 = vector.broadcast %c16_i32_324 : i32 to vector<1x256xi32>
    %816 = arith.cmpi slt, %814, %815 : vector<1x256xi32>
    %817 = arith.andi %812, %816 : vector<1x256xi1>
    %cst_325 = arith.constant 0.000000e+00 : f32
    %818 = vector.shape_cast %817 : vector<1x256xi1> to vector<1x256xi1>
    %819 = vector.broadcast %818 : vector<1x256xi1> to vector<2x256xi1>
    %820 = vector.broadcast %cst_325 : f32 to vector<2x256xf32>
    %821 = arith.select %819, %798, %820 : vector<2x256xi1>, vector<2x256xf32>
    %c17_i32_326 = arith.constant 17 : i32
    %822 = tpu.dynamic_rotate %436 by %c17_i32_326 dim 1 : vector<2x256xf32>, i32 -> vector<2x256xf32>
    %c-1_i32_327 = arith.constant -1 : i32
    %823 = vector.broadcast %c-1_i32_327 : i32 to vector<1x256xi32>
    %824 = arith.addi %0, %823 : vector<1x256xi32>
    %c0_i32_328 = arith.constant 0 : i32
    %825 = vector.broadcast %c0_i32_328 : i32 to vector<1x256xi32>
    %826 = arith.cmpi sge, %824, %825 : vector<1x256xi32>
    %c-1_i32_329 = arith.constant -1 : i32
    %827 = vector.broadcast %c-1_i32_329 : i32 to vector<1x256xi32>
    %828 = arith.addi %0, %827 : vector<1x256xi32>
    %c16_i32_330 = arith.constant 16 : i32
    %829 = vector.broadcast %c16_i32_330 : i32 to vector<1x256xi32>
    %830 = arith.cmpi slt, %828, %829 : vector<1x256xi32>
    %831 = arith.andi %826, %830 : vector<1x256xi1>
    %c-1_i32_331 = arith.constant -1 : i32
    %832 = vector.broadcast %c-1_i32_331 : i32 to vector<1x256xi32>
    %833 = arith.addi %1, %832 : vector<1x256xi32>
    %c0_i32_332 = arith.constant 0 : i32
    %834 = vector.broadcast %c0_i32_332 : i32 to vector<1x256xi32>
    %835 = arith.cmpi sge, %833, %834 : vector<1x256xi32>
    %836 = arith.andi %831, %835 : vector<1x256xi1>
    %c-1_i32_333 = arith.constant -1 : i32
    %837 = vector.broadcast %c-1_i32_333 : i32 to vector<1x256xi32>
    %838 = arith.addi %1, %837 : vector<1x256xi32>
    %c16_i32_334 = arith.constant 16 : i32
    %839 = vector.broadcast %c16_i32_334 : i32 to vector<1x256xi32>
    %840 = arith.cmpi slt, %838, %839 : vector<1x256xi32>
    %841 = arith.andi %836, %840 : vector<1x256xi1>
    %cst_335 = arith.constant 0.000000e+00 : f32
    %842 = vector.shape_cast %841 : vector<1x256xi1> to vector<1x256xi1>
    %843 = vector.broadcast %842 : vector<1x256xi1> to vector<2x256xi1>
    %844 = vector.broadcast %cst_335 : f32 to vector<2x256xf32>
    %845 = arith.select %843, %822, %844 : vector<2x256xi1>, vector<2x256xf32>
    %c16_i32_336 = arith.constant 16 : i32
    %846 = tpu.dynamic_rotate %436 by %c16_i32_336 dim 1 : vector<2x256xf32>, i32 -> vector<2x256xf32>
    %c-1_i32_337 = arith.constant -1 : i32
    %847 = vector.broadcast %c-1_i32_337 : i32 to vector<1x256xi32>
    %848 = arith.addi %0, %847 : vector<1x256xi32>
    %c0_i32_338 = arith.constant 0 : i32
    %849 = vector.broadcast %c0_i32_338 : i32 to vector<1x256xi32>
    %850 = arith.cmpi sge, %848, %849 : vector<1x256xi32>
    %c-1_i32_339 = arith.constant -1 : i32
    %851 = vector.broadcast %c-1_i32_339 : i32 to vector<1x256xi32>
    %852 = arith.addi %0, %851 : vector<1x256xi32>
    %c16_i32_340 = arith.constant 16 : i32
    %853 = vector.broadcast %c16_i32_340 : i32 to vector<1x256xi32>
    %854 = arith.cmpi slt, %852, %853 : vector<1x256xi32>
    %855 = arith.andi %850, %854 : vector<1x256xi1>
    %c0_i32_341 = arith.constant 0 : i32
    %856 = vector.broadcast %c0_i32_341 : i32 to vector<1x256xi32>
    %857 = arith.addi %1, %856 : vector<1x256xi32>
    %c0_i32_342 = arith.constant 0 : i32
    %858 = vector.broadcast %c0_i32_342 : i32 to vector<1x256xi32>
    %859 = arith.cmpi sge, %857, %858 : vector<1x256xi32>
    %860 = arith.andi %855, %859 : vector<1x256xi1>
    %c0_i32_343 = arith.constant 0 : i32
    %861 = vector.broadcast %c0_i32_343 : i32 to vector<1x256xi32>
    %862 = arith.addi %1, %861 : vector<1x256xi32>
    %c16_i32_344 = arith.constant 16 : i32
    %863 = vector.broadcast %c16_i32_344 : i32 to vector<1x256xi32>
    %864 = arith.cmpi slt, %862, %863 : vector<1x256xi32>
    %865 = arith.andi %860, %864 : vector<1x256xi1>
    %cst_345 = arith.constant 0.000000e+00 : f32
    %866 = vector.shape_cast %865 : vector<1x256xi1> to vector<1x256xi1>
    %867 = vector.broadcast %866 : vector<1x256xi1> to vector<2x256xi1>
    %868 = vector.broadcast %cst_345 : f32 to vector<2x256xf32>
    %869 = arith.select %867, %846, %868 : vector<2x256xi1>, vector<2x256xf32>
    %c15_i32_346 = arith.constant 15 : i32
    %870 = tpu.dynamic_rotate %436 by %c15_i32_346 dim 1 : vector<2x256xf32>, i32 -> vector<2x256xf32>
    %c-1_i32_347 = arith.constant -1 : i32
    %871 = vector.broadcast %c-1_i32_347 : i32 to vector<1x256xi32>
    %872 = arith.addi %0, %871 : vector<1x256xi32>
    %c0_i32_348 = arith.constant 0 : i32
    %873 = vector.broadcast %c0_i32_348 : i32 to vector<1x256xi32>
    %874 = arith.cmpi sge, %872, %873 : vector<1x256xi32>
    %c-1_i32_349 = arith.constant -1 : i32
    %875 = vector.broadcast %c-1_i32_349 : i32 to vector<1x256xi32>
    %876 = arith.addi %0, %875 : vector<1x256xi32>
    %c16_i32_350 = arith.constant 16 : i32
    %877 = vector.broadcast %c16_i32_350 : i32 to vector<1x256xi32>
    %878 = arith.cmpi slt, %876, %877 : vector<1x256xi32>
    %879 = arith.andi %874, %878 : vector<1x256xi1>
    %c1_i32_351 = arith.constant 1 : i32
    %880 = vector.broadcast %c1_i32_351 : i32 to vector<1x256xi32>
    %881 = arith.addi %1, %880 : vector<1x256xi32>
    %c0_i32_352 = arith.constant 0 : i32
    %882 = vector.broadcast %c0_i32_352 : i32 to vector<1x256xi32>
    %883 = arith.cmpi sge, %881, %882 : vector<1x256xi32>
    %884 = arith.andi %879, %883 : vector<1x256xi1>
    %c1_i32_353 = arith.constant 1 : i32
    %885 = vector.broadcast %c1_i32_353 : i32 to vector<1x256xi32>
    %886 = arith.addi %1, %885 : vector<1x256xi32>
    %c16_i32_354 = arith.constant 16 : i32
    %887 = vector.broadcast %c16_i32_354 : i32 to vector<1x256xi32>
    %888 = arith.cmpi slt, %886, %887 : vector<1x256xi32>
    %889 = arith.andi %884, %888 : vector<1x256xi1>
    %cst_355 = arith.constant 0.000000e+00 : f32
    %890 = vector.shape_cast %889 : vector<1x256xi1> to vector<1x256xi1>
    %891 = vector.broadcast %890 : vector<1x256xi1> to vector<2x256xi1>
    %892 = vector.broadcast %cst_355 : f32 to vector<2x256xf32>
    %893 = arith.select %891, %870, %892 : vector<2x256xi1>, vector<2x256xf32>
    %c14_i32 = arith.constant 14 : i32
    %894 = tpu.dynamic_rotate %436 by %c14_i32 dim 1 : vector<2x256xf32>, i32 -> vector<2x256xf32>
    %c-1_i32_356 = arith.constant -1 : i32
    %895 = vector.broadcast %c-1_i32_356 : i32 to vector<1x256xi32>
    %896 = arith.addi %0, %895 : vector<1x256xi32>
    %c0_i32_357 = arith.constant 0 : i32
    %897 = vector.broadcast %c0_i32_357 : i32 to vector<1x256xi32>
    %898 = arith.cmpi sge, %896, %897 : vector<1x256xi32>
    %c-1_i32_358 = arith.constant -1 : i32
    %899 = vector.broadcast %c-1_i32_358 : i32 to vector<1x256xi32>
    %900 = arith.addi %0, %899 : vector<1x256xi32>
    %c16_i32_359 = arith.constant 16 : i32
    %901 = vector.broadcast %c16_i32_359 : i32 to vector<1x256xi32>
    %902 = arith.cmpi slt, %900, %901 : vector<1x256xi32>
    %903 = arith.andi %898, %902 : vector<1x256xi1>
    %c2_i32_360 = arith.constant 2 : i32
    %904 = vector.broadcast %c2_i32_360 : i32 to vector<1x256xi32>
    %905 = arith.addi %1, %904 : vector<1x256xi32>
    %c0_i32_361 = arith.constant 0 : i32
    %906 = vector.broadcast %c0_i32_361 : i32 to vector<1x256xi32>
    %907 = arith.cmpi sge, %905, %906 : vector<1x256xi32>
    %908 = arith.andi %903, %907 : vector<1x256xi1>
    %c2_i32_362 = arith.constant 2 : i32
    %909 = vector.broadcast %c2_i32_362 : i32 to vector<1x256xi32>
    %910 = arith.addi %1, %909 : vector<1x256xi32>
    %c16_i32_363 = arith.constant 16 : i32
    %911 = vector.broadcast %c16_i32_363 : i32 to vector<1x256xi32>
    %912 = arith.cmpi slt, %910, %911 : vector<1x256xi32>
    %913 = arith.andi %908, %912 : vector<1x256xi1>
    %cst_364 = arith.constant 0.000000e+00 : f32
    %914 = vector.shape_cast %913 : vector<1x256xi1> to vector<1x256xi1>
    %915 = vector.broadcast %914 : vector<1x256xi1> to vector<2x256xi1>
    %916 = vector.broadcast %cst_364 : f32 to vector<2x256xf32>
    %917 = arith.select %915, %894, %916 : vector<2x256xi1>, vector<2x256xf32>
    %c13_i32 = arith.constant 13 : i32
    %918 = tpu.dynamic_rotate %436 by %c13_i32 dim 1 : vector<2x256xf32>, i32 -> vector<2x256xf32>
    %c-1_i32_365 = arith.constant -1 : i32
    %919 = vector.broadcast %c-1_i32_365 : i32 to vector<1x256xi32>
    %920 = arith.addi %0, %919 : vector<1x256xi32>
    %c0_i32_366 = arith.constant 0 : i32
    %921 = vector.broadcast %c0_i32_366 : i32 to vector<1x256xi32>
    %922 = arith.cmpi sge, %920, %921 : vector<1x256xi32>
    %c-1_i32_367 = arith.constant -1 : i32
    %923 = vector.broadcast %c-1_i32_367 : i32 to vector<1x256xi32>
    %924 = arith.addi %0, %923 : vector<1x256xi32>
    %c16_i32_368 = arith.constant 16 : i32
    %925 = vector.broadcast %c16_i32_368 : i32 to vector<1x256xi32>
    %926 = arith.cmpi slt, %924, %925 : vector<1x256xi32>
    %927 = arith.andi %922, %926 : vector<1x256xi1>
    %c3_i32_369 = arith.constant 3 : i32
    %928 = vector.broadcast %c3_i32_369 : i32 to vector<1x256xi32>
    %929 = arith.addi %1, %928 : vector<1x256xi32>
    %c0_i32_370 = arith.constant 0 : i32
    %930 = vector.broadcast %c0_i32_370 : i32 to vector<1x256xi32>
    %931 = arith.cmpi sge, %929, %930 : vector<1x256xi32>
    %932 = arith.andi %927, %931 : vector<1x256xi1>
    %c3_i32_371 = arith.constant 3 : i32
    %933 = vector.broadcast %c3_i32_371 : i32 to vector<1x256xi32>
    %934 = arith.addi %1, %933 : vector<1x256xi32>
    %c16_i32_372 = arith.constant 16 : i32
    %935 = vector.broadcast %c16_i32_372 : i32 to vector<1x256xi32>
    %936 = arith.cmpi slt, %934, %935 : vector<1x256xi32>
    %937 = arith.andi %932, %936 : vector<1x256xi1>
    %cst_373 = arith.constant 0.000000e+00 : f32
    %938 = vector.shape_cast %937 : vector<1x256xi1> to vector<1x256xi1>
    %939 = vector.broadcast %938 : vector<1x256xi1> to vector<2x256xi1>
    %940 = vector.broadcast %cst_373 : f32 to vector<2x256xf32>
    %941 = arith.select %939, %918, %940 : vector<2x256xi1>, vector<2x256xf32>
    %c3_i32_374 = arith.constant 3 : i32
    %942 = tpu.dynamic_rotate %436 by %c3_i32_374 dim 1 : vector<2x256xf32>, i32 -> vector<2x256xf32>
    %c0_i32_375 = arith.constant 0 : i32
    %943 = vector.broadcast %c0_i32_375 : i32 to vector<1x256xi32>
    %944 = arith.addi %0, %943 : vector<1x256xi32>
    %c0_i32_376 = arith.constant 0 : i32
    %945 = vector.broadcast %c0_i32_376 : i32 to vector<1x256xi32>
    %946 = arith.cmpi sge, %944, %945 : vector<1x256xi32>
    %c0_i32_377 = arith.constant 0 : i32
    %947 = vector.broadcast %c0_i32_377 : i32 to vector<1x256xi32>
    %948 = arith.addi %0, %947 : vector<1x256xi32>
    %c16_i32_378 = arith.constant 16 : i32
    %949 = vector.broadcast %c16_i32_378 : i32 to vector<1x256xi32>
    %950 = arith.cmpi slt, %948, %949 : vector<1x256xi32>
    %951 = arith.andi %946, %950 : vector<1x256xi1>
    %c-3_i32_379 = arith.constant -3 : i32
    %952 = vector.broadcast %c-3_i32_379 : i32 to vector<1x256xi32>
    %953 = arith.addi %1, %952 : vector<1x256xi32>
    %c0_i32_380 = arith.constant 0 : i32
    %954 = vector.broadcast %c0_i32_380 : i32 to vector<1x256xi32>
    %955 = arith.cmpi sge, %953, %954 : vector<1x256xi32>
    %956 = arith.andi %951, %955 : vector<1x256xi1>
    %c-3_i32_381 = arith.constant -3 : i32
    %957 = vector.broadcast %c-3_i32_381 : i32 to vector<1x256xi32>
    %958 = arith.addi %1, %957 : vector<1x256xi32>
    %c16_i32_382 = arith.constant 16 : i32
    %959 = vector.broadcast %c16_i32_382 : i32 to vector<1x256xi32>
    %960 = arith.cmpi slt, %958, %959 : vector<1x256xi32>
    %961 = arith.andi %956, %960 : vector<1x256xi1>
    %cst_383 = arith.constant 0.000000e+00 : f32
    %962 = vector.shape_cast %961 : vector<1x256xi1> to vector<1x256xi1>
    %963 = vector.broadcast %962 : vector<1x256xi1> to vector<2x256xi1>
    %964 = vector.broadcast %cst_383 : f32 to vector<2x256xf32>
    %965 = arith.select %963, %942, %964 : vector<2x256xi1>, vector<2x256xf32>
    %c2_i32_384 = arith.constant 2 : i32
    %966 = tpu.dynamic_rotate %436 by %c2_i32_384 dim 1 : vector<2x256xf32>, i32 -> vector<2x256xf32>
    %c0_i32_385 = arith.constant 0 : i32
    %967 = vector.broadcast %c0_i32_385 : i32 to vector<1x256xi32>
    %968 = arith.addi %0, %967 : vector<1x256xi32>
    %c0_i32_386 = arith.constant 0 : i32
    %969 = vector.broadcast %c0_i32_386 : i32 to vector<1x256xi32>
    %970 = arith.cmpi sge, %968, %969 : vector<1x256xi32>
    %c0_i32_387 = arith.constant 0 : i32
    %971 = vector.broadcast %c0_i32_387 : i32 to vector<1x256xi32>
    %972 = arith.addi %0, %971 : vector<1x256xi32>
    %c16_i32_388 = arith.constant 16 : i32
    %973 = vector.broadcast %c16_i32_388 : i32 to vector<1x256xi32>
    %974 = arith.cmpi slt, %972, %973 : vector<1x256xi32>
    %975 = arith.andi %970, %974 : vector<1x256xi1>
    %c-2_i32_389 = arith.constant -2 : i32
    %976 = vector.broadcast %c-2_i32_389 : i32 to vector<1x256xi32>
    %977 = arith.addi %1, %976 : vector<1x256xi32>
    %c0_i32_390 = arith.constant 0 : i32
    %978 = vector.broadcast %c0_i32_390 : i32 to vector<1x256xi32>
    %979 = arith.cmpi sge, %977, %978 : vector<1x256xi32>
    %980 = arith.andi %975, %979 : vector<1x256xi1>
    %c-2_i32_391 = arith.constant -2 : i32
    %981 = vector.broadcast %c-2_i32_391 : i32 to vector<1x256xi32>
    %982 = arith.addi %1, %981 : vector<1x256xi32>
    %c16_i32_392 = arith.constant 16 : i32
    %983 = vector.broadcast %c16_i32_392 : i32 to vector<1x256xi32>
    %984 = arith.cmpi slt, %982, %983 : vector<1x256xi32>
    %985 = arith.andi %980, %984 : vector<1x256xi1>
    %cst_393 = arith.constant 0.000000e+00 : f32
    %986 = vector.shape_cast %985 : vector<1x256xi1> to vector<1x256xi1>
    %987 = vector.broadcast %986 : vector<1x256xi1> to vector<2x256xi1>
    %988 = vector.broadcast %cst_393 : f32 to vector<2x256xf32>
    %989 = arith.select %987, %966, %988 : vector<2x256xi1>, vector<2x256xf32>
    %c1_i32_394 = arith.constant 1 : i32
    %990 = tpu.dynamic_rotate %436 by %c1_i32_394 dim 1 : vector<2x256xf32>, i32 -> vector<2x256xf32>
    %c0_i32_395 = arith.constant 0 : i32
    %991 = vector.broadcast %c0_i32_395 : i32 to vector<1x256xi32>
    %992 = arith.addi %0, %991 : vector<1x256xi32>
    %c0_i32_396 = arith.constant 0 : i32
    %993 = vector.broadcast %c0_i32_396 : i32 to vector<1x256xi32>
    %994 = arith.cmpi sge, %992, %993 : vector<1x256xi32>
    %c0_i32_397 = arith.constant 0 : i32
    %995 = vector.broadcast %c0_i32_397 : i32 to vector<1x256xi32>
    %996 = arith.addi %0, %995 : vector<1x256xi32>
    %c16_i32_398 = arith.constant 16 : i32
    %997 = vector.broadcast %c16_i32_398 : i32 to vector<1x256xi32>
    %998 = arith.cmpi slt, %996, %997 : vector<1x256xi32>
    %999 = arith.andi %994, %998 : vector<1x256xi1>
    %c-1_i32_399 = arith.constant -1 : i32
    %1000 = vector.broadcast %c-1_i32_399 : i32 to vector<1x256xi32>
    %1001 = arith.addi %1, %1000 : vector<1x256xi32>
    %c0_i32_400 = arith.constant 0 : i32
    %1002 = vector.broadcast %c0_i32_400 : i32 to vector<1x256xi32>
    %1003 = arith.cmpi sge, %1001, %1002 : vector<1x256xi32>
    %1004 = arith.andi %999, %1003 : vector<1x256xi1>
    %c-1_i32_401 = arith.constant -1 : i32
    %1005 = vector.broadcast %c-1_i32_401 : i32 to vector<1x256xi32>
    %1006 = arith.addi %1, %1005 : vector<1x256xi32>
    %c16_i32_402 = arith.constant 16 : i32
    %1007 = vector.broadcast %c16_i32_402 : i32 to vector<1x256xi32>
    %1008 = arith.cmpi slt, %1006, %1007 : vector<1x256xi32>
    %1009 = arith.andi %1004, %1008 : vector<1x256xi1>
    %cst_403 = arith.constant 0.000000e+00 : f32
    %1010 = vector.shape_cast %1009 : vector<1x256xi1> to vector<1x256xi1>
    %1011 = vector.broadcast %1010 : vector<1x256xi1> to vector<2x256xi1>
    %1012 = vector.broadcast %cst_403 : f32 to vector<2x256xf32>
    %1013 = arith.select %1011, %990, %1012 : vector<2x256xi1>, vector<2x256xf32>
    %c255_i32_404 = arith.constant 255 : i32
    %1014 = tpu.dynamic_rotate %436 by %c255_i32_404 dim 1 : vector<2x256xf32>, i32 -> vector<2x256xf32>
    %c0_i32_405 = arith.constant 0 : i32
    %1015 = vector.broadcast %c0_i32_405 : i32 to vector<1x256xi32>
    %1016 = arith.addi %0, %1015 : vector<1x256xi32>
    %c0_i32_406 = arith.constant 0 : i32
    %1017 = vector.broadcast %c0_i32_406 : i32 to vector<1x256xi32>
    %1018 = arith.cmpi sge, %1016, %1017 : vector<1x256xi32>
    %c0_i32_407 = arith.constant 0 : i32
    %1019 = vector.broadcast %c0_i32_407 : i32 to vector<1x256xi32>
    %1020 = arith.addi %0, %1019 : vector<1x256xi32>
    %c16_i32_408 = arith.constant 16 : i32
    %1021 = vector.broadcast %c16_i32_408 : i32 to vector<1x256xi32>
    %1022 = arith.cmpi slt, %1020, %1021 : vector<1x256xi32>
    %1023 = arith.andi %1018, %1022 : vector<1x256xi1>
    %c1_i32_409 = arith.constant 1 : i32
    %1024 = vector.broadcast %c1_i32_409 : i32 to vector<1x256xi32>
    %1025 = arith.addi %1, %1024 : vector<1x256xi32>
    %c0_i32_410 = arith.constant 0 : i32
    %1026 = vector.broadcast %c0_i32_410 : i32 to vector<1x256xi32>
    %1027 = arith.cmpi sge, %1025, %1026 : vector<1x256xi32>
    %1028 = arith.andi %1023, %1027 : vector<1x256xi1>
    %c1_i32_411 = arith.constant 1 : i32
    %1029 = vector.broadcast %c1_i32_411 : i32 to vector<1x256xi32>
    %1030 = arith.addi %1, %1029 : vector<1x256xi32>
    %c16_i32_412 = arith.constant 16 : i32
    %1031 = vector.broadcast %c16_i32_412 : i32 to vector<1x256xi32>
    %1032 = arith.cmpi slt, %1030, %1031 : vector<1x256xi32>
    %1033 = arith.andi %1028, %1032 : vector<1x256xi1>
    %cst_413 = arith.constant 0.000000e+00 : f32
    %1034 = vector.shape_cast %1033 : vector<1x256xi1> to vector<1x256xi1>
    %1035 = vector.broadcast %1034 : vector<1x256xi1> to vector<2x256xi1>
    %1036 = vector.broadcast %cst_413 : f32 to vector<2x256xf32>
    %1037 = arith.select %1035, %1014, %1036 : vector<2x256xi1>, vector<2x256xf32>
    %c254_i32 = arith.constant 254 : i32
    %1038 = tpu.dynamic_rotate %436 by %c254_i32 dim 1 : vector<2x256xf32>, i32 -> vector<2x256xf32>
    %c0_i32_414 = arith.constant 0 : i32
    %1039 = vector.broadcast %c0_i32_414 : i32 to vector<1x256xi32>
    %1040 = arith.addi %0, %1039 : vector<1x256xi32>
    %c0_i32_415 = arith.constant 0 : i32
    %1041 = vector.broadcast %c0_i32_415 : i32 to vector<1x256xi32>
    %1042 = arith.cmpi sge, %1040, %1041 : vector<1x256xi32>
    %c0_i32_416 = arith.constant 0 : i32
    %1043 = vector.broadcast %c0_i32_416 : i32 to vector<1x256xi32>
    %1044 = arith.addi %0, %1043 : vector<1x256xi32>
    %c16_i32_417 = arith.constant 16 : i32
    %1045 = vector.broadcast %c16_i32_417 : i32 to vector<1x256xi32>
    %1046 = arith.cmpi slt, %1044, %1045 : vector<1x256xi32>
    %1047 = arith.andi %1042, %1046 : vector<1x256xi1>
    %c2_i32_418 = arith.constant 2 : i32
    %1048 = vector.broadcast %c2_i32_418 : i32 to vector<1x256xi32>
    %1049 = arith.addi %1, %1048 : vector<1x256xi32>
    %c0_i32_419 = arith.constant 0 : i32
    %1050 = vector.broadcast %c0_i32_419 : i32 to vector<1x256xi32>
    %1051 = arith.cmpi sge, %1049, %1050 : vector<1x256xi32>
    %1052 = arith.andi %1047, %1051 : vector<1x256xi1>
    %c2_i32_420 = arith.constant 2 : i32
    %1053 = vector.broadcast %c2_i32_420 : i32 to vector<1x256xi32>
    %1054 = arith.addi %1, %1053 : vector<1x256xi32>
    %c16_i32_421 = arith.constant 16 : i32
    %1055 = vector.broadcast %c16_i32_421 : i32 to vector<1x256xi32>
    %1056 = arith.cmpi slt, %1054, %1055 : vector<1x256xi32>
    %1057 = arith.andi %1052, %1056 : vector<1x256xi1>
    %cst_422 = arith.constant 0.000000e+00 : f32
    %1058 = vector.shape_cast %1057 : vector<1x256xi1> to vector<1x256xi1>
    %1059 = vector.broadcast %1058 : vector<1x256xi1> to vector<2x256xi1>
    %1060 = vector.broadcast %cst_422 : f32 to vector<2x256xf32>
    %1061 = arith.select %1059, %1038, %1060 : vector<2x256xi1>, vector<2x256xf32>
    %c253_i32 = arith.constant 253 : i32
    %1062 = tpu.dynamic_rotate %436 by %c253_i32 dim 1 : vector<2x256xf32>, i32 -> vector<2x256xf32>
    %c0_i32_423 = arith.constant 0 : i32
    %1063 = vector.broadcast %c0_i32_423 : i32 to vector<1x256xi32>
    %1064 = arith.addi %0, %1063 : vector<1x256xi32>
    %c0_i32_424 = arith.constant 0 : i32
    %1065 = vector.broadcast %c0_i32_424 : i32 to vector<1x256xi32>
    %1066 = arith.cmpi sge, %1064, %1065 : vector<1x256xi32>
    %c0_i32_425 = arith.constant 0 : i32
    %1067 = vector.broadcast %c0_i32_425 : i32 to vector<1x256xi32>
    %1068 = arith.addi %0, %1067 : vector<1x256xi32>
    %c16_i32_426 = arith.constant 16 : i32
    %1069 = vector.broadcast %c16_i32_426 : i32 to vector<1x256xi32>
    %1070 = arith.cmpi slt, %1068, %1069 : vector<1x256xi32>
    %1071 = arith.andi %1066, %1070 : vector<1x256xi1>
    %c3_i32_427 = arith.constant 3 : i32
    %1072 = vector.broadcast %c3_i32_427 : i32 to vector<1x256xi32>
    %1073 = arith.addi %1, %1072 : vector<1x256xi32>
    %c0_i32_428 = arith.constant 0 : i32
    %1074 = vector.broadcast %c0_i32_428 : i32 to vector<1x256xi32>
    %1075 = arith.cmpi sge, %1073, %1074 : vector<1x256xi32>
    %1076 = arith.andi %1071, %1075 : vector<1x256xi1>
    %c3_i32_429 = arith.constant 3 : i32
    %1077 = vector.broadcast %c3_i32_429 : i32 to vector<1x256xi32>
    %1078 = arith.addi %1, %1077 : vector<1x256xi32>
    %c16_i32_430 = arith.constant 16 : i32
    %1079 = vector.broadcast %c16_i32_430 : i32 to vector<1x256xi32>
    %1080 = arith.cmpi slt, %1078, %1079 : vector<1x256xi32>
    %1081 = arith.andi %1076, %1080 : vector<1x256xi1>
    %cst_431 = arith.constant 0.000000e+00 : f32
    %1082 = vector.shape_cast %1081 : vector<1x256xi1> to vector<1x256xi1>
    %1083 = vector.broadcast %1082 : vector<1x256xi1> to vector<2x256xi1>
    %1084 = vector.broadcast %cst_431 : f32 to vector<2x256xf32>
    %1085 = arith.select %1083, %1062, %1084 : vector<2x256xi1>, vector<2x256xf32>
    %c243_i32 = arith.constant 243 : i32
    %1086 = tpu.dynamic_rotate %436 by %c243_i32 dim 1 : vector<2x256xf32>, i32 -> vector<2x256xf32>
    %c1_i32_432 = arith.constant 1 : i32
    %1087 = vector.broadcast %c1_i32_432 : i32 to vector<1x256xi32>
    %1088 = arith.addi %0, %1087 : vector<1x256xi32>
    %c0_i32_433 = arith.constant 0 : i32
    %1089 = vector.broadcast %c0_i32_433 : i32 to vector<1x256xi32>
    %1090 = arith.cmpi sge, %1088, %1089 : vector<1x256xi32>
    %c1_i32_434 = arith.constant 1 : i32
    %1091 = vector.broadcast %c1_i32_434 : i32 to vector<1x256xi32>
    %1092 = arith.addi %0, %1091 : vector<1x256xi32>
    %c16_i32_435 = arith.constant 16 : i32
    %1093 = vector.broadcast %c16_i32_435 : i32 to vector<1x256xi32>
    %1094 = arith.cmpi slt, %1092, %1093 : vector<1x256xi32>
    %1095 = arith.andi %1090, %1094 : vector<1x256xi1>
    %c-3_i32_436 = arith.constant -3 : i32
    %1096 = vector.broadcast %c-3_i32_436 : i32 to vector<1x256xi32>
    %1097 = arith.addi %1, %1096 : vector<1x256xi32>
    %c0_i32_437 = arith.constant 0 : i32
    %1098 = vector.broadcast %c0_i32_437 : i32 to vector<1x256xi32>
    %1099 = arith.cmpi sge, %1097, %1098 : vector<1x256xi32>
    %1100 = arith.andi %1095, %1099 : vector<1x256xi1>
    %c-3_i32_438 = arith.constant -3 : i32
    %1101 = vector.broadcast %c-3_i32_438 : i32 to vector<1x256xi32>
    %1102 = arith.addi %1, %1101 : vector<1x256xi32>
    %c16_i32_439 = arith.constant 16 : i32
    %1103 = vector.broadcast %c16_i32_439 : i32 to vector<1x256xi32>
    %1104 = arith.cmpi slt, %1102, %1103 : vector<1x256xi32>
    %1105 = arith.andi %1100, %1104 : vector<1x256xi1>
    %cst_440 = arith.constant 0.000000e+00 : f32
    %1106 = vector.shape_cast %1105 : vector<1x256xi1> to vector<1x256xi1>
    %1107 = vector.broadcast %1106 : vector<1x256xi1> to vector<2x256xi1>
    %1108 = vector.broadcast %cst_440 : f32 to vector<2x256xf32>
    %1109 = arith.select %1107, %1086, %1108 : vector<2x256xi1>, vector<2x256xf32>
    %c242_i32 = arith.constant 242 : i32
    %1110 = tpu.dynamic_rotate %436 by %c242_i32 dim 1 : vector<2x256xf32>, i32 -> vector<2x256xf32>
    %c1_i32_441 = arith.constant 1 : i32
    %1111 = vector.broadcast %c1_i32_441 : i32 to vector<1x256xi32>
    %1112 = arith.addi %0, %1111 : vector<1x256xi32>
    %c0_i32_442 = arith.constant 0 : i32
    %1113 = vector.broadcast %c0_i32_442 : i32 to vector<1x256xi32>
    %1114 = arith.cmpi sge, %1112, %1113 : vector<1x256xi32>
    %c1_i32_443 = arith.constant 1 : i32
    %1115 = vector.broadcast %c1_i32_443 : i32 to vector<1x256xi32>
    %1116 = arith.addi %0, %1115 : vector<1x256xi32>
    %c16_i32_444 = arith.constant 16 : i32
    %1117 = vector.broadcast %c16_i32_444 : i32 to vector<1x256xi32>
    %1118 = arith.cmpi slt, %1116, %1117 : vector<1x256xi32>
    %1119 = arith.andi %1114, %1118 : vector<1x256xi1>
    %c-2_i32_445 = arith.constant -2 : i32
    %1120 = vector.broadcast %c-2_i32_445 : i32 to vector<1x256xi32>
    %1121 = arith.addi %1, %1120 : vector<1x256xi32>
    %c0_i32_446 = arith.constant 0 : i32
    %1122 = vector.broadcast %c0_i32_446 : i32 to vector<1x256xi32>
    %1123 = arith.cmpi sge, %1121, %1122 : vector<1x256xi32>
    %1124 = arith.andi %1119, %1123 : vector<1x256xi1>
    %c-2_i32_447 = arith.constant -2 : i32
    %1125 = vector.broadcast %c-2_i32_447 : i32 to vector<1x256xi32>
    %1126 = arith.addi %1, %1125 : vector<1x256xi32>
    %c16_i32_448 = arith.constant 16 : i32
    %1127 = vector.broadcast %c16_i32_448 : i32 to vector<1x256xi32>
    %1128 = arith.cmpi slt, %1126, %1127 : vector<1x256xi32>
    %1129 = arith.andi %1124, %1128 : vector<1x256xi1>
    %cst_449 = arith.constant 0.000000e+00 : f32
    %1130 = vector.shape_cast %1129 : vector<1x256xi1> to vector<1x256xi1>
    %1131 = vector.broadcast %1130 : vector<1x256xi1> to vector<2x256xi1>
    %1132 = vector.broadcast %cst_449 : f32 to vector<2x256xf32>
    %1133 = arith.select %1131, %1110, %1132 : vector<2x256xi1>, vector<2x256xf32>
    %c241_i32_450 = arith.constant 241 : i32
    %1134 = tpu.dynamic_rotate %436 by %c241_i32_450 dim 1 : vector<2x256xf32>, i32 -> vector<2x256xf32>
    %c1_i32_451 = arith.constant 1 : i32
    %1135 = vector.broadcast %c1_i32_451 : i32 to vector<1x256xi32>
    %1136 = arith.addi %0, %1135 : vector<1x256xi32>
    %c0_i32_452 = arith.constant 0 : i32
    %1137 = vector.broadcast %c0_i32_452 : i32 to vector<1x256xi32>
    %1138 = arith.cmpi sge, %1136, %1137 : vector<1x256xi32>
    %c1_i32_453 = arith.constant 1 : i32
    %1139 = vector.broadcast %c1_i32_453 : i32 to vector<1x256xi32>
    %1140 = arith.addi %0, %1139 : vector<1x256xi32>
    %c16_i32_454 = arith.constant 16 : i32
    %1141 = vector.broadcast %c16_i32_454 : i32 to vector<1x256xi32>
    %1142 = arith.cmpi slt, %1140, %1141 : vector<1x256xi32>
    %1143 = arith.andi %1138, %1142 : vector<1x256xi1>
    %c-1_i32_455 = arith.constant -1 : i32
    %1144 = vector.broadcast %c-1_i32_455 : i32 to vector<1x256xi32>
    %1145 = arith.addi %1, %1144 : vector<1x256xi32>
    %c0_i32_456 = arith.constant 0 : i32
    %1146 = vector.broadcast %c0_i32_456 : i32 to vector<1x256xi32>
    %1147 = arith.cmpi sge, %1145, %1146 : vector<1x256xi32>
    %1148 = arith.andi %1143, %1147 : vector<1x256xi1>
    %c-1_i32_457 = arith.constant -1 : i32
    %1149 = vector.broadcast %c-1_i32_457 : i32 to vector<1x256xi32>
    %1150 = arith.addi %1, %1149 : vector<1x256xi32>
    %c16_i32_458 = arith.constant 16 : i32
    %1151 = vector.broadcast %c16_i32_458 : i32 to vector<1x256xi32>
    %1152 = arith.cmpi slt, %1150, %1151 : vector<1x256xi32>
    %1153 = arith.andi %1148, %1152 : vector<1x256xi1>
    %cst_459 = arith.constant 0.000000e+00 : f32
    %1154 = vector.shape_cast %1153 : vector<1x256xi1> to vector<1x256xi1>
    %1155 = vector.broadcast %1154 : vector<1x256xi1> to vector<2x256xi1>
    %1156 = vector.broadcast %cst_459 : f32 to vector<2x256xf32>
    %1157 = arith.select %1155, %1134, %1156 : vector<2x256xi1>, vector<2x256xf32>
    %c240_i32_460 = arith.constant 240 : i32
    %1158 = tpu.dynamic_rotate %436 by %c240_i32_460 dim 1 : vector<2x256xf32>, i32 -> vector<2x256xf32>
    %c1_i32_461 = arith.constant 1 : i32
    %1159 = vector.broadcast %c1_i32_461 : i32 to vector<1x256xi32>
    %1160 = arith.addi %0, %1159 : vector<1x256xi32>
    %c0_i32_462 = arith.constant 0 : i32
    %1161 = vector.broadcast %c0_i32_462 : i32 to vector<1x256xi32>
    %1162 = arith.cmpi sge, %1160, %1161 : vector<1x256xi32>
    %c1_i32_463 = arith.constant 1 : i32
    %1163 = vector.broadcast %c1_i32_463 : i32 to vector<1x256xi32>
    %1164 = arith.addi %0, %1163 : vector<1x256xi32>
    %c16_i32_464 = arith.constant 16 : i32
    %1165 = vector.broadcast %c16_i32_464 : i32 to vector<1x256xi32>
    %1166 = arith.cmpi slt, %1164, %1165 : vector<1x256xi32>
    %1167 = arith.andi %1162, %1166 : vector<1x256xi1>
    %c0_i32_465 = arith.constant 0 : i32
    %1168 = vector.broadcast %c0_i32_465 : i32 to vector<1x256xi32>
    %1169 = arith.addi %1, %1168 : vector<1x256xi32>
    %c0_i32_466 = arith.constant 0 : i32
    %1170 = vector.broadcast %c0_i32_466 : i32 to vector<1x256xi32>
    %1171 = arith.cmpi sge, %1169, %1170 : vector<1x256xi32>
    %1172 = arith.andi %1167, %1171 : vector<1x256xi1>
    %c0_i32_467 = arith.constant 0 : i32
    %1173 = vector.broadcast %c0_i32_467 : i32 to vector<1x256xi32>
    %1174 = arith.addi %1, %1173 : vector<1x256xi32>
    %c16_i32_468 = arith.constant 16 : i32
    %1175 = vector.broadcast %c16_i32_468 : i32 to vector<1x256xi32>
    %1176 = arith.cmpi slt, %1174, %1175 : vector<1x256xi32>
    %1177 = arith.andi %1172, %1176 : vector<1x256xi1>
    %cst_469 = arith.constant 0.000000e+00 : f32
    %1178 = vector.shape_cast %1177 : vector<1x256xi1> to vector<1x256xi1>
    %1179 = vector.broadcast %1178 : vector<1x256xi1> to vector<2x256xi1>
    %1180 = vector.broadcast %cst_469 : f32 to vector<2x256xf32>
    %1181 = arith.select %1179, %1158, %1180 : vector<2x256xi1>, vector<2x256xf32>
    %c239_i32_470 = arith.constant 239 : i32
    %1182 = tpu.dynamic_rotate %436 by %c239_i32_470 dim 1 : vector<2x256xf32>, i32 -> vector<2x256xf32>
    %c1_i32_471 = arith.constant 1 : i32
    %1183 = vector.broadcast %c1_i32_471 : i32 to vector<1x256xi32>
    %1184 = arith.addi %0, %1183 : vector<1x256xi32>
    %c0_i32_472 = arith.constant 0 : i32
    %1185 = vector.broadcast %c0_i32_472 : i32 to vector<1x256xi32>
    %1186 = arith.cmpi sge, %1184, %1185 : vector<1x256xi32>
    %c1_i32_473 = arith.constant 1 : i32
    %1187 = vector.broadcast %c1_i32_473 : i32 to vector<1x256xi32>
    %1188 = arith.addi %0, %1187 : vector<1x256xi32>
    %c16_i32_474 = arith.constant 16 : i32
    %1189 = vector.broadcast %c16_i32_474 : i32 to vector<1x256xi32>
    %1190 = arith.cmpi slt, %1188, %1189 : vector<1x256xi32>
    %1191 = arith.andi %1186, %1190 : vector<1x256xi1>
    %c1_i32_475 = arith.constant 1 : i32
    %1192 = vector.broadcast %c1_i32_475 : i32 to vector<1x256xi32>
    %1193 = arith.addi %1, %1192 : vector<1x256xi32>
    %c0_i32_476 = arith.constant 0 : i32
    %1194 = vector.broadcast %c0_i32_476 : i32 to vector<1x256xi32>
    %1195 = arith.cmpi sge, %1193, %1194 : vector<1x256xi32>
    %1196 = arith.andi %1191, %1195 : vector<1x256xi1>
    %c1_i32_477 = arith.constant 1 : i32
    %1197 = vector.broadcast %c1_i32_477 : i32 to vector<1x256xi32>
    %1198 = arith.addi %1, %1197 : vector<1x256xi32>
    %c16_i32_478 = arith.constant 16 : i32
    %1199 = vector.broadcast %c16_i32_478 : i32 to vector<1x256xi32>
    %1200 = arith.cmpi slt, %1198, %1199 : vector<1x256xi32>
    %1201 = arith.andi %1196, %1200 : vector<1x256xi1>
    %cst_479 = arith.constant 0.000000e+00 : f32
    %1202 = vector.shape_cast %1201 : vector<1x256xi1> to vector<1x256xi1>
    %1203 = vector.broadcast %1202 : vector<1x256xi1> to vector<2x256xi1>
    %1204 = vector.broadcast %cst_479 : f32 to vector<2x256xf32>
    %1205 = arith.select %1203, %1182, %1204 : vector<2x256xi1>, vector<2x256xf32>
    %c238_i32 = arith.constant 238 : i32
    %1206 = tpu.dynamic_rotate %436 by %c238_i32 dim 1 : vector<2x256xf32>, i32 -> vector<2x256xf32>
    %c1_i32_480 = arith.constant 1 : i32
    %1207 = vector.broadcast %c1_i32_480 : i32 to vector<1x256xi32>
    %1208 = arith.addi %0, %1207 : vector<1x256xi32>
    %c0_i32_481 = arith.constant 0 : i32
    %1209 = vector.broadcast %c0_i32_481 : i32 to vector<1x256xi32>
    %1210 = arith.cmpi sge, %1208, %1209 : vector<1x256xi32>
    %c1_i32_482 = arith.constant 1 : i32
    %1211 = vector.broadcast %c1_i32_482 : i32 to vector<1x256xi32>
    %1212 = arith.addi %0, %1211 : vector<1x256xi32>
    %c16_i32_483 = arith.constant 16 : i32
    %1213 = vector.broadcast %c16_i32_483 : i32 to vector<1x256xi32>
    %1214 = arith.cmpi slt, %1212, %1213 : vector<1x256xi32>
    %1215 = arith.andi %1210, %1214 : vector<1x256xi1>
    %c2_i32_484 = arith.constant 2 : i32
    %1216 = vector.broadcast %c2_i32_484 : i32 to vector<1x256xi32>
    %1217 = arith.addi %1, %1216 : vector<1x256xi32>
    %c0_i32_485 = arith.constant 0 : i32
    %1218 = vector.broadcast %c0_i32_485 : i32 to vector<1x256xi32>
    %1219 = arith.cmpi sge, %1217, %1218 : vector<1x256xi32>
    %1220 = arith.andi %1215, %1219 : vector<1x256xi1>
    %c2_i32_486 = arith.constant 2 : i32
    %1221 = vector.broadcast %c2_i32_486 : i32 to vector<1x256xi32>
    %1222 = arith.addi %1, %1221 : vector<1x256xi32>
    %c16_i32_487 = arith.constant 16 : i32
    %1223 = vector.broadcast %c16_i32_487 : i32 to vector<1x256xi32>
    %1224 = arith.cmpi slt, %1222, %1223 : vector<1x256xi32>
    %1225 = arith.andi %1220, %1224 : vector<1x256xi1>
    %cst_488 = arith.constant 0.000000e+00 : f32
    %1226 = vector.shape_cast %1225 : vector<1x256xi1> to vector<1x256xi1>
    %1227 = vector.broadcast %1226 : vector<1x256xi1> to vector<2x256xi1>
    %1228 = vector.broadcast %cst_488 : f32 to vector<2x256xf32>
    %1229 = arith.select %1227, %1206, %1228 : vector<2x256xi1>, vector<2x256xf32>
    %c237_i32 = arith.constant 237 : i32
    %1230 = tpu.dynamic_rotate %436 by %c237_i32 dim 1 : vector<2x256xf32>, i32 -> vector<2x256xf32>
    %c1_i32_489 = arith.constant 1 : i32
    %1231 = vector.broadcast %c1_i32_489 : i32 to vector<1x256xi32>
    %1232 = arith.addi %0, %1231 : vector<1x256xi32>
    %c0_i32_490 = arith.constant 0 : i32
    %1233 = vector.broadcast %c0_i32_490 : i32 to vector<1x256xi32>
    %1234 = arith.cmpi sge, %1232, %1233 : vector<1x256xi32>
    %c1_i32_491 = arith.constant 1 : i32
    %1235 = vector.broadcast %c1_i32_491 : i32 to vector<1x256xi32>
    %1236 = arith.addi %0, %1235 : vector<1x256xi32>
    %c16_i32_492 = arith.constant 16 : i32
    %1237 = vector.broadcast %c16_i32_492 : i32 to vector<1x256xi32>
    %1238 = arith.cmpi slt, %1236, %1237 : vector<1x256xi32>
    %1239 = arith.andi %1234, %1238 : vector<1x256xi1>
    %c3_i32_493 = arith.constant 3 : i32
    %1240 = vector.broadcast %c3_i32_493 : i32 to vector<1x256xi32>
    %1241 = arith.addi %1, %1240 : vector<1x256xi32>
    %c0_i32_494 = arith.constant 0 : i32
    %1242 = vector.broadcast %c0_i32_494 : i32 to vector<1x256xi32>
    %1243 = arith.cmpi sge, %1241, %1242 : vector<1x256xi32>
    %1244 = arith.andi %1239, %1243 : vector<1x256xi1>
    %c3_i32_495 = arith.constant 3 : i32
    %1245 = vector.broadcast %c3_i32_495 : i32 to vector<1x256xi32>
    %1246 = arith.addi %1, %1245 : vector<1x256xi32>
    %c16_i32_496 = arith.constant 16 : i32
    %1247 = vector.broadcast %c16_i32_496 : i32 to vector<1x256xi32>
    %1248 = arith.cmpi slt, %1246, %1247 : vector<1x256xi32>
    %1249 = arith.andi %1244, %1248 : vector<1x256xi1>
    %cst_497 = arith.constant 0.000000e+00 : f32
    %1250 = vector.shape_cast %1249 : vector<1x256xi1> to vector<1x256xi1>
    %1251 = vector.broadcast %1250 : vector<1x256xi1> to vector<2x256xi1>
    %1252 = vector.broadcast %cst_497 : f32 to vector<2x256xf32>
    %1253 = arith.select %1251, %1230, %1252 : vector<2x256xi1>, vector<2x256xf32>
    %c227_i32 = arith.constant 227 : i32
    %1254 = tpu.dynamic_rotate %436 by %c227_i32 dim 1 : vector<2x256xf32>, i32 -> vector<2x256xf32>
    %c2_i32_498 = arith.constant 2 : i32
    %1255 = vector.broadcast %c2_i32_498 : i32 to vector<1x256xi32>
    %1256 = arith.addi %0, %1255 : vector<1x256xi32>
    %c0_i32_499 = arith.constant 0 : i32
    %1257 = vector.broadcast %c0_i32_499 : i32 to vector<1x256xi32>
    %1258 = arith.cmpi sge, %1256, %1257 : vector<1x256xi32>
    %c2_i32_500 = arith.constant 2 : i32
    %1259 = vector.broadcast %c2_i32_500 : i32 to vector<1x256xi32>
    %1260 = arith.addi %0, %1259 : vector<1x256xi32>
    %c16_i32_501 = arith.constant 16 : i32
    %1261 = vector.broadcast %c16_i32_501 : i32 to vector<1x256xi32>
    %1262 = arith.cmpi slt, %1260, %1261 : vector<1x256xi32>
    %1263 = arith.andi %1258, %1262 : vector<1x256xi1>
    %c-3_i32_502 = arith.constant -3 : i32
    %1264 = vector.broadcast %c-3_i32_502 : i32 to vector<1x256xi32>
    %1265 = arith.addi %1, %1264 : vector<1x256xi32>
    %c0_i32_503 = arith.constant 0 : i32
    %1266 = vector.broadcast %c0_i32_503 : i32 to vector<1x256xi32>
    %1267 = arith.cmpi sge, %1265, %1266 : vector<1x256xi32>
    %1268 = arith.andi %1263, %1267 : vector<1x256xi1>
    %c-3_i32_504 = arith.constant -3 : i32
    %1269 = vector.broadcast %c-3_i32_504 : i32 to vector<1x256xi32>
    %1270 = arith.addi %1, %1269 : vector<1x256xi32>
    %c16_i32_505 = arith.constant 16 : i32
    %1271 = vector.broadcast %c16_i32_505 : i32 to vector<1x256xi32>
    %1272 = arith.cmpi slt, %1270, %1271 : vector<1x256xi32>
    %1273 = arith.andi %1268, %1272 : vector<1x256xi1>
    %cst_506 = arith.constant 0.000000e+00 : f32
    %1274 = vector.shape_cast %1273 : vector<1x256xi1> to vector<1x256xi1>
    %1275 = vector.broadcast %1274 : vector<1x256xi1> to vector<2x256xi1>
    %1276 = vector.broadcast %cst_506 : f32 to vector<2x256xf32>
    %1277 = arith.select %1275, %1254, %1276 : vector<2x256xi1>, vector<2x256xf32>
    %c226_i32 = arith.constant 226 : i32
    %1278 = tpu.dynamic_rotate %436 by %c226_i32 dim 1 : vector<2x256xf32>, i32 -> vector<2x256xf32>
    %c2_i32_507 = arith.constant 2 : i32
    %1279 = vector.broadcast %c2_i32_507 : i32 to vector<1x256xi32>
    %1280 = arith.addi %0, %1279 : vector<1x256xi32>
    %c0_i32_508 = arith.constant 0 : i32
    %1281 = vector.broadcast %c0_i32_508 : i32 to vector<1x256xi32>
    %1282 = arith.cmpi sge, %1280, %1281 : vector<1x256xi32>
    %c2_i32_509 = arith.constant 2 : i32
    %1283 = vector.broadcast %c2_i32_509 : i32 to vector<1x256xi32>
    %1284 = arith.addi %0, %1283 : vector<1x256xi32>
    %c16_i32_510 = arith.constant 16 : i32
    %1285 = vector.broadcast %c16_i32_510 : i32 to vector<1x256xi32>
    %1286 = arith.cmpi slt, %1284, %1285 : vector<1x256xi32>
    %1287 = arith.andi %1282, %1286 : vector<1x256xi1>
    %c-2_i32_511 = arith.constant -2 : i32
    %1288 = vector.broadcast %c-2_i32_511 : i32 to vector<1x256xi32>
    %1289 = arith.addi %1, %1288 : vector<1x256xi32>
    %c0_i32_512 = arith.constant 0 : i32
    %1290 = vector.broadcast %c0_i32_512 : i32 to vector<1x256xi32>
    %1291 = arith.cmpi sge, %1289, %1290 : vector<1x256xi32>
    %1292 = arith.andi %1287, %1291 : vector<1x256xi1>
    %c-2_i32_513 = arith.constant -2 : i32
    %1293 = vector.broadcast %c-2_i32_513 : i32 to vector<1x256xi32>
    %1294 = arith.addi %1, %1293 : vector<1x256xi32>
    %c16_i32_514 = arith.constant 16 : i32
    %1295 = vector.broadcast %c16_i32_514 : i32 to vector<1x256xi32>
    %1296 = arith.cmpi slt, %1294, %1295 : vector<1x256xi32>
    %1297 = arith.andi %1292, %1296 : vector<1x256xi1>
    %cst_515 = arith.constant 0.000000e+00 : f32
    %1298 = vector.shape_cast %1297 : vector<1x256xi1> to vector<1x256xi1>
    %1299 = vector.broadcast %1298 : vector<1x256xi1> to vector<2x256xi1>
    %1300 = vector.broadcast %cst_515 : f32 to vector<2x256xf32>
    %1301 = arith.select %1299, %1278, %1300 : vector<2x256xi1>, vector<2x256xf32>
    %c225_i32 = arith.constant 225 : i32
    %1302 = tpu.dynamic_rotate %436 by %c225_i32 dim 1 : vector<2x256xf32>, i32 -> vector<2x256xf32>
    %c2_i32_516 = arith.constant 2 : i32
    %1303 = vector.broadcast %c2_i32_516 : i32 to vector<1x256xi32>
    %1304 = arith.addi %0, %1303 : vector<1x256xi32>
    %c0_i32_517 = arith.constant 0 : i32
    %1305 = vector.broadcast %c0_i32_517 : i32 to vector<1x256xi32>
    %1306 = arith.cmpi sge, %1304, %1305 : vector<1x256xi32>
    %c2_i32_518 = arith.constant 2 : i32
    %1307 = vector.broadcast %c2_i32_518 : i32 to vector<1x256xi32>
    %1308 = arith.addi %0, %1307 : vector<1x256xi32>
    %c16_i32_519 = arith.constant 16 : i32
    %1309 = vector.broadcast %c16_i32_519 : i32 to vector<1x256xi32>
    %1310 = arith.cmpi slt, %1308, %1309 : vector<1x256xi32>
    %1311 = arith.andi %1306, %1310 : vector<1x256xi1>
    %c-1_i32_520 = arith.constant -1 : i32
    %1312 = vector.broadcast %c-1_i32_520 : i32 to vector<1x256xi32>
    %1313 = arith.addi %1, %1312 : vector<1x256xi32>
    %c0_i32_521 = arith.constant 0 : i32
    %1314 = vector.broadcast %c0_i32_521 : i32 to vector<1x256xi32>
    %1315 = arith.cmpi sge, %1313, %1314 : vector<1x256xi32>
    %1316 = arith.andi %1311, %1315 : vector<1x256xi1>
    %c-1_i32_522 = arith.constant -1 : i32
    %1317 = vector.broadcast %c-1_i32_522 : i32 to vector<1x256xi32>
    %1318 = arith.addi %1, %1317 : vector<1x256xi32>
    %c16_i32_523 = arith.constant 16 : i32
    %1319 = vector.broadcast %c16_i32_523 : i32 to vector<1x256xi32>
    %1320 = arith.cmpi slt, %1318, %1319 : vector<1x256xi32>
    %1321 = arith.andi %1316, %1320 : vector<1x256xi1>
    %cst_524 = arith.constant 0.000000e+00 : f32
    %1322 = vector.shape_cast %1321 : vector<1x256xi1> to vector<1x256xi1>
    %1323 = vector.broadcast %1322 : vector<1x256xi1> to vector<2x256xi1>
    %1324 = vector.broadcast %cst_524 : f32 to vector<2x256xf32>
    %1325 = arith.select %1323, %1302, %1324 : vector<2x256xi1>, vector<2x256xf32>
    %c224_i32 = arith.constant 224 : i32
    %1326 = tpu.dynamic_rotate %436 by %c224_i32 dim 1 : vector<2x256xf32>, i32 -> vector<2x256xf32>
    %c2_i32_525 = arith.constant 2 : i32
    %1327 = vector.broadcast %c2_i32_525 : i32 to vector<1x256xi32>
    %1328 = arith.addi %0, %1327 : vector<1x256xi32>
    %c0_i32_526 = arith.constant 0 : i32
    %1329 = vector.broadcast %c0_i32_526 : i32 to vector<1x256xi32>
    %1330 = arith.cmpi sge, %1328, %1329 : vector<1x256xi32>
    %c2_i32_527 = arith.constant 2 : i32
    %1331 = vector.broadcast %c2_i32_527 : i32 to vector<1x256xi32>
    %1332 = arith.addi %0, %1331 : vector<1x256xi32>
    %c16_i32_528 = arith.constant 16 : i32
    %1333 = vector.broadcast %c16_i32_528 : i32 to vector<1x256xi32>
    %1334 = arith.cmpi slt, %1332, %1333 : vector<1x256xi32>
    %1335 = arith.andi %1330, %1334 : vector<1x256xi1>
    %c0_i32_529 = arith.constant 0 : i32
    %1336 = vector.broadcast %c0_i32_529 : i32 to vector<1x256xi32>
    %1337 = arith.addi %1, %1336 : vector<1x256xi32>
    %c0_i32_530 = arith.constant 0 : i32
    %1338 = vector.broadcast %c0_i32_530 : i32 to vector<1x256xi32>
    %1339 = arith.cmpi sge, %1337, %1338 : vector<1x256xi32>
    %1340 = arith.andi %1335, %1339 : vector<1x256xi1>
    %c0_i32_531 = arith.constant 0 : i32
    %1341 = vector.broadcast %c0_i32_531 : i32 to vector<1x256xi32>
    %1342 = arith.addi %1, %1341 : vector<1x256xi32>
    %c16_i32_532 = arith.constant 16 : i32
    %1343 = vector.broadcast %c16_i32_532 : i32 to vector<1x256xi32>
    %1344 = arith.cmpi slt, %1342, %1343 : vector<1x256xi32>
    %1345 = arith.andi %1340, %1344 : vector<1x256xi1>
    %cst_533 = arith.constant 0.000000e+00 : f32
    %1346 = vector.shape_cast %1345 : vector<1x256xi1> to vector<1x256xi1>
    %1347 = vector.broadcast %1346 : vector<1x256xi1> to vector<2x256xi1>
    %1348 = vector.broadcast %cst_533 : f32 to vector<2x256xf32>
    %1349 = arith.select %1347, %1326, %1348 : vector<2x256xi1>, vector<2x256xf32>
    %c223_i32 = arith.constant 223 : i32
    %1350 = tpu.dynamic_rotate %436 by %c223_i32 dim 1 : vector<2x256xf32>, i32 -> vector<2x256xf32>
    %c2_i32_534 = arith.constant 2 : i32
    %1351 = vector.broadcast %c2_i32_534 : i32 to vector<1x256xi32>
    %1352 = arith.addi %0, %1351 : vector<1x256xi32>
    %c0_i32_535 = arith.constant 0 : i32
    %1353 = vector.broadcast %c0_i32_535 : i32 to vector<1x256xi32>
    %1354 = arith.cmpi sge, %1352, %1353 : vector<1x256xi32>
    %c2_i32_536 = arith.constant 2 : i32
    %1355 = vector.broadcast %c2_i32_536 : i32 to vector<1x256xi32>
    %1356 = arith.addi %0, %1355 : vector<1x256xi32>
    %c16_i32_537 = arith.constant 16 : i32
    %1357 = vector.broadcast %c16_i32_537 : i32 to vector<1x256xi32>
    %1358 = arith.cmpi slt, %1356, %1357 : vector<1x256xi32>
    %1359 = arith.andi %1354, %1358 : vector<1x256xi1>
    %c1_i32_538 = arith.constant 1 : i32
    %1360 = vector.broadcast %c1_i32_538 : i32 to vector<1x256xi32>
    %1361 = arith.addi %1, %1360 : vector<1x256xi32>
    %c0_i32_539 = arith.constant 0 : i32
    %1362 = vector.broadcast %c0_i32_539 : i32 to vector<1x256xi32>
    %1363 = arith.cmpi sge, %1361, %1362 : vector<1x256xi32>
    %1364 = arith.andi %1359, %1363 : vector<1x256xi1>
    %c1_i32_540 = arith.constant 1 : i32
    %1365 = vector.broadcast %c1_i32_540 : i32 to vector<1x256xi32>
    %1366 = arith.addi %1, %1365 : vector<1x256xi32>
    %c16_i32_541 = arith.constant 16 : i32
    %1367 = vector.broadcast %c16_i32_541 : i32 to vector<1x256xi32>
    %1368 = arith.cmpi slt, %1366, %1367 : vector<1x256xi32>
    %1369 = arith.andi %1364, %1368 : vector<1x256xi1>
    %cst_542 = arith.constant 0.000000e+00 : f32
    %1370 = vector.shape_cast %1369 : vector<1x256xi1> to vector<1x256xi1>
    %1371 = vector.broadcast %1370 : vector<1x256xi1> to vector<2x256xi1>
    %1372 = vector.broadcast %cst_542 : f32 to vector<2x256xf32>
    %1373 = arith.select %1371, %1350, %1372 : vector<2x256xi1>, vector<2x256xf32>
    %c222_i32 = arith.constant 222 : i32
    %1374 = tpu.dynamic_rotate %436 by %c222_i32 dim 1 : vector<2x256xf32>, i32 -> vector<2x256xf32>
    %c2_i32_543 = arith.constant 2 : i32
    %1375 = vector.broadcast %c2_i32_543 : i32 to vector<1x256xi32>
    %1376 = arith.addi %0, %1375 : vector<1x256xi32>
    %c0_i32_544 = arith.constant 0 : i32
    %1377 = vector.broadcast %c0_i32_544 : i32 to vector<1x256xi32>
    %1378 = arith.cmpi sge, %1376, %1377 : vector<1x256xi32>
    %c2_i32_545 = arith.constant 2 : i32
    %1379 = vector.broadcast %c2_i32_545 : i32 to vector<1x256xi32>
    %1380 = arith.addi %0, %1379 : vector<1x256xi32>
    %c16_i32_546 = arith.constant 16 : i32
    %1381 = vector.broadcast %c16_i32_546 : i32 to vector<1x256xi32>
    %1382 = arith.cmpi slt, %1380, %1381 : vector<1x256xi32>
    %1383 = arith.andi %1378, %1382 : vector<1x256xi1>
    %c2_i32_547 = arith.constant 2 : i32
    %1384 = vector.broadcast %c2_i32_547 : i32 to vector<1x256xi32>
    %1385 = arith.addi %1, %1384 : vector<1x256xi32>
    %c0_i32_548 = arith.constant 0 : i32
    %1386 = vector.broadcast %c0_i32_548 : i32 to vector<1x256xi32>
    %1387 = arith.cmpi sge, %1385, %1386 : vector<1x256xi32>
    %1388 = arith.andi %1383, %1387 : vector<1x256xi1>
    %c2_i32_549 = arith.constant 2 : i32
    %1389 = vector.broadcast %c2_i32_549 : i32 to vector<1x256xi32>
    %1390 = arith.addi %1, %1389 : vector<1x256xi32>
    %c16_i32_550 = arith.constant 16 : i32
    %1391 = vector.broadcast %c16_i32_550 : i32 to vector<1x256xi32>
    %1392 = arith.cmpi slt, %1390, %1391 : vector<1x256xi32>
    %1393 = arith.andi %1388, %1392 : vector<1x256xi1>
    %cst_551 = arith.constant 0.000000e+00 : f32
    %1394 = vector.shape_cast %1393 : vector<1x256xi1> to vector<1x256xi1>
    %1395 = vector.broadcast %1394 : vector<1x256xi1> to vector<2x256xi1>
    %1396 = vector.broadcast %cst_551 : f32 to vector<2x256xf32>
    %1397 = arith.select %1395, %1374, %1396 : vector<2x256xi1>, vector<2x256xf32>
    %c221_i32 = arith.constant 221 : i32
    %1398 = tpu.dynamic_rotate %436 by %c221_i32 dim 1 : vector<2x256xf32>, i32 -> vector<2x256xf32>
    %c2_i32_552 = arith.constant 2 : i32
    %1399 = vector.broadcast %c2_i32_552 : i32 to vector<1x256xi32>
    %1400 = arith.addi %0, %1399 : vector<1x256xi32>
    %c0_i32_553 = arith.constant 0 : i32
    %1401 = vector.broadcast %c0_i32_553 : i32 to vector<1x256xi32>
    %1402 = arith.cmpi sge, %1400, %1401 : vector<1x256xi32>
    %c2_i32_554 = arith.constant 2 : i32
    %1403 = vector.broadcast %c2_i32_554 : i32 to vector<1x256xi32>
    %1404 = arith.addi %0, %1403 : vector<1x256xi32>
    %c16_i32_555 = arith.constant 16 : i32
    %1405 = vector.broadcast %c16_i32_555 : i32 to vector<1x256xi32>
    %1406 = arith.cmpi slt, %1404, %1405 : vector<1x256xi32>
    %1407 = arith.andi %1402, %1406 : vector<1x256xi1>
    %c3_i32_556 = arith.constant 3 : i32
    %1408 = vector.broadcast %c3_i32_556 : i32 to vector<1x256xi32>
    %1409 = arith.addi %1, %1408 : vector<1x256xi32>
    %c0_i32_557 = arith.constant 0 : i32
    %1410 = vector.broadcast %c0_i32_557 : i32 to vector<1x256xi32>
    %1411 = arith.cmpi sge, %1409, %1410 : vector<1x256xi32>
    %1412 = arith.andi %1407, %1411 : vector<1x256xi1>
    %c3_i32_558 = arith.constant 3 : i32
    %1413 = vector.broadcast %c3_i32_558 : i32 to vector<1x256xi32>
    %1414 = arith.addi %1, %1413 : vector<1x256xi32>
    %c16_i32_559 = arith.constant 16 : i32
    %1415 = vector.broadcast %c16_i32_559 : i32 to vector<1x256xi32>
    %1416 = arith.cmpi slt, %1414, %1415 : vector<1x256xi32>
    %1417 = arith.andi %1412, %1416 : vector<1x256xi1>
    %cst_560 = arith.constant 0.000000e+00 : f32
    %1418 = vector.shape_cast %1417 : vector<1x256xi1> to vector<1x256xi1>
    %1419 = vector.broadcast %1418 : vector<1x256xi1> to vector<2x256xi1>
    %1420 = vector.broadcast %cst_560 : f32 to vector<2x256xf32>
    %1421 = arith.select %1419, %1398, %1420 : vector<2x256xi1>, vector<2x256xf32>
    %c211_i32 = arith.constant 211 : i32
    %1422 = tpu.dynamic_rotate %436 by %c211_i32 dim 1 : vector<2x256xf32>, i32 -> vector<2x256xf32>
    %c3_i32_561 = arith.constant 3 : i32
    %1423 = vector.broadcast %c3_i32_561 : i32 to vector<1x256xi32>
    %1424 = arith.addi %0, %1423 : vector<1x256xi32>
    %c0_i32_562 = arith.constant 0 : i32
    %1425 = vector.broadcast %c0_i32_562 : i32 to vector<1x256xi32>
    %1426 = arith.cmpi sge, %1424, %1425 : vector<1x256xi32>
    %c3_i32_563 = arith.constant 3 : i32
    %1427 = vector.broadcast %c3_i32_563 : i32 to vector<1x256xi32>
    %1428 = arith.addi %0, %1427 : vector<1x256xi32>
    %c16_i32_564 = arith.constant 16 : i32
    %1429 = vector.broadcast %c16_i32_564 : i32 to vector<1x256xi32>
    %1430 = arith.cmpi slt, %1428, %1429 : vector<1x256xi32>
    %1431 = arith.andi %1426, %1430 : vector<1x256xi1>
    %c-3_i32_565 = arith.constant -3 : i32
    %1432 = vector.broadcast %c-3_i32_565 : i32 to vector<1x256xi32>
    %1433 = arith.addi %1, %1432 : vector<1x256xi32>
    %c0_i32_566 = arith.constant 0 : i32
    %1434 = vector.broadcast %c0_i32_566 : i32 to vector<1x256xi32>
    %1435 = arith.cmpi sge, %1433, %1434 : vector<1x256xi32>
    %1436 = arith.andi %1431, %1435 : vector<1x256xi1>
    %c-3_i32_567 = arith.constant -3 : i32
    %1437 = vector.broadcast %c-3_i32_567 : i32 to vector<1x256xi32>
    %1438 = arith.addi %1, %1437 : vector<1x256xi32>
    %c16_i32_568 = arith.constant 16 : i32
    %1439 = vector.broadcast %c16_i32_568 : i32 to vector<1x256xi32>
    %1440 = arith.cmpi slt, %1438, %1439 : vector<1x256xi32>
    %1441 = arith.andi %1436, %1440 : vector<1x256xi1>
    %cst_569 = arith.constant 0.000000e+00 : f32
    %1442 = vector.shape_cast %1441 : vector<1x256xi1> to vector<1x256xi1>
    %1443 = vector.broadcast %1442 : vector<1x256xi1> to vector<2x256xi1>
    %1444 = vector.broadcast %cst_569 : f32 to vector<2x256xf32>
    %1445 = arith.select %1443, %1422, %1444 : vector<2x256xi1>, vector<2x256xf32>
    %c210_i32 = arith.constant 210 : i32
    %1446 = tpu.dynamic_rotate %436 by %c210_i32 dim 1 : vector<2x256xf32>, i32 -> vector<2x256xf32>
    %c3_i32_570 = arith.constant 3 : i32
    %1447 = vector.broadcast %c3_i32_570 : i32 to vector<1x256xi32>
    %1448 = arith.addi %0, %1447 : vector<1x256xi32>
    %c0_i32_571 = arith.constant 0 : i32
    %1449 = vector.broadcast %c0_i32_571 : i32 to vector<1x256xi32>
    %1450 = arith.cmpi sge, %1448, %1449 : vector<1x256xi32>
    %c3_i32_572 = arith.constant 3 : i32
    %1451 = vector.broadcast %c3_i32_572 : i32 to vector<1x256xi32>
    %1452 = arith.addi %0, %1451 : vector<1x256xi32>
    %c16_i32_573 = arith.constant 16 : i32
    %1453 = vector.broadcast %c16_i32_573 : i32 to vector<1x256xi32>
    %1454 = arith.cmpi slt, %1452, %1453 : vector<1x256xi32>
    %1455 = arith.andi %1450, %1454 : vector<1x256xi1>
    %c-2_i32_574 = arith.constant -2 : i32
    %1456 = vector.broadcast %c-2_i32_574 : i32 to vector<1x256xi32>
    %1457 = arith.addi %1, %1456 : vector<1x256xi32>
    %c0_i32_575 = arith.constant 0 : i32
    %1458 = vector.broadcast %c0_i32_575 : i32 to vector<1x256xi32>
    %1459 = arith.cmpi sge, %1457, %1458 : vector<1x256xi32>
    %1460 = arith.andi %1455, %1459 : vector<1x256xi1>
    %c-2_i32_576 = arith.constant -2 : i32
    %1461 = vector.broadcast %c-2_i32_576 : i32 to vector<1x256xi32>
    %1462 = arith.addi %1, %1461 : vector<1x256xi32>
    %c16_i32_577 = arith.constant 16 : i32
    %1463 = vector.broadcast %c16_i32_577 : i32 to vector<1x256xi32>
    %1464 = arith.cmpi slt, %1462, %1463 : vector<1x256xi32>
    %1465 = arith.andi %1460, %1464 : vector<1x256xi1>
    %cst_578 = arith.constant 0.000000e+00 : f32
    %1466 = vector.shape_cast %1465 : vector<1x256xi1> to vector<1x256xi1>
    %1467 = vector.broadcast %1466 : vector<1x256xi1> to vector<2x256xi1>
    %1468 = vector.broadcast %cst_578 : f32 to vector<2x256xf32>
    %1469 = arith.select %1467, %1446, %1468 : vector<2x256xi1>, vector<2x256xf32>
    %c209_i32 = arith.constant 209 : i32
    %1470 = tpu.dynamic_rotate %436 by %c209_i32 dim 1 : vector<2x256xf32>, i32 -> vector<2x256xf32>
    %c3_i32_579 = arith.constant 3 : i32
    %1471 = vector.broadcast %c3_i32_579 : i32 to vector<1x256xi32>
    %1472 = arith.addi %0, %1471 : vector<1x256xi32>
    %c0_i32_580 = arith.constant 0 : i32
    %1473 = vector.broadcast %c0_i32_580 : i32 to vector<1x256xi32>
    %1474 = arith.cmpi sge, %1472, %1473 : vector<1x256xi32>
    %c3_i32_581 = arith.constant 3 : i32
    %1475 = vector.broadcast %c3_i32_581 : i32 to vector<1x256xi32>
    %1476 = arith.addi %0, %1475 : vector<1x256xi32>
    %c16_i32_582 = arith.constant 16 : i32
    %1477 = vector.broadcast %c16_i32_582 : i32 to vector<1x256xi32>
    %1478 = arith.cmpi slt, %1476, %1477 : vector<1x256xi32>
    %1479 = arith.andi %1474, %1478 : vector<1x256xi1>
    %c-1_i32_583 = arith.constant -1 : i32
    %1480 = vector.broadcast %c-1_i32_583 : i32 to vector<1x256xi32>
    %1481 = arith.addi %1, %1480 : vector<1x256xi32>
    %c0_i32_584 = arith.constant 0 : i32
    %1482 = vector.broadcast %c0_i32_584 : i32 to vector<1x256xi32>
    %1483 = arith.cmpi sge, %1481, %1482 : vector<1x256xi32>
    %1484 = arith.andi %1479, %1483 : vector<1x256xi1>
    %c-1_i32_585 = arith.constant -1 : i32
    %1485 = vector.broadcast %c-1_i32_585 : i32 to vector<1x256xi32>
    %1486 = arith.addi %1, %1485 : vector<1x256xi32>
    %c16_i32_586 = arith.constant 16 : i32
    %1487 = vector.broadcast %c16_i32_586 : i32 to vector<1x256xi32>
    %1488 = arith.cmpi slt, %1486, %1487 : vector<1x256xi32>
    %1489 = arith.andi %1484, %1488 : vector<1x256xi1>
    %cst_587 = arith.constant 0.000000e+00 : f32
    %1490 = vector.shape_cast %1489 : vector<1x256xi1> to vector<1x256xi1>
    %1491 = vector.broadcast %1490 : vector<1x256xi1> to vector<2x256xi1>
    %1492 = vector.broadcast %cst_587 : f32 to vector<2x256xf32>
    %1493 = arith.select %1491, %1470, %1492 : vector<2x256xi1>, vector<2x256xf32>
    %c208_i32 = arith.constant 208 : i32
    %1494 = tpu.dynamic_rotate %436 by %c208_i32 dim 1 : vector<2x256xf32>, i32 -> vector<2x256xf32>
    %c3_i32_588 = arith.constant 3 : i32
    %1495 = vector.broadcast %c3_i32_588 : i32 to vector<1x256xi32>
    %1496 = arith.addi %0, %1495 : vector<1x256xi32>
    %c0_i32_589 = arith.constant 0 : i32
    %1497 = vector.broadcast %c0_i32_589 : i32 to vector<1x256xi32>
    %1498 = arith.cmpi sge, %1496, %1497 : vector<1x256xi32>
    %c3_i32_590 = arith.constant 3 : i32
    %1499 = vector.broadcast %c3_i32_590 : i32 to vector<1x256xi32>
    %1500 = arith.addi %0, %1499 : vector<1x256xi32>
    %c16_i32_591 = arith.constant 16 : i32
    %1501 = vector.broadcast %c16_i32_591 : i32 to vector<1x256xi32>
    %1502 = arith.cmpi slt, %1500, %1501 : vector<1x256xi32>
    %1503 = arith.andi %1498, %1502 : vector<1x256xi1>
    %c0_i32_592 = arith.constant 0 : i32
    %1504 = vector.broadcast %c0_i32_592 : i32 to vector<1x256xi32>
    %1505 = arith.addi %1, %1504 : vector<1x256xi32>
    %c0_i32_593 = arith.constant 0 : i32
    %1506 = vector.broadcast %c0_i32_593 : i32 to vector<1x256xi32>
    %1507 = arith.cmpi sge, %1505, %1506 : vector<1x256xi32>
    %1508 = arith.andi %1503, %1507 : vector<1x256xi1>
    %c0_i32_594 = arith.constant 0 : i32
    %1509 = vector.broadcast %c0_i32_594 : i32 to vector<1x256xi32>
    %1510 = arith.addi %1, %1509 : vector<1x256xi32>
    %c16_i32_595 = arith.constant 16 : i32
    %1511 = vector.broadcast %c16_i32_595 : i32 to vector<1x256xi32>
    %1512 = arith.cmpi slt, %1510, %1511 : vector<1x256xi32>
    %1513 = arith.andi %1508, %1512 : vector<1x256xi1>
    %cst_596 = arith.constant 0.000000e+00 : f32
    %1514 = vector.shape_cast %1513 : vector<1x256xi1> to vector<1x256xi1>
    %1515 = vector.broadcast %1514 : vector<1x256xi1> to vector<2x256xi1>
    %1516 = vector.broadcast %cst_596 : f32 to vector<2x256xf32>
    %1517 = arith.select %1515, %1494, %1516 : vector<2x256xi1>, vector<2x256xf32>
    %c207_i32 = arith.constant 207 : i32
    %1518 = tpu.dynamic_rotate %436 by %c207_i32 dim 1 : vector<2x256xf32>, i32 -> vector<2x256xf32>
    %c3_i32_597 = arith.constant 3 : i32
    %1519 = vector.broadcast %c3_i32_597 : i32 to vector<1x256xi32>
    %1520 = arith.addi %0, %1519 : vector<1x256xi32>
    %c0_i32_598 = arith.constant 0 : i32
    %1521 = vector.broadcast %c0_i32_598 : i32 to vector<1x256xi32>
    %1522 = arith.cmpi sge, %1520, %1521 : vector<1x256xi32>
    %c3_i32_599 = arith.constant 3 : i32
    %1523 = vector.broadcast %c3_i32_599 : i32 to vector<1x256xi32>
    %1524 = arith.addi %0, %1523 : vector<1x256xi32>
    %c16_i32_600 = arith.constant 16 : i32
    %1525 = vector.broadcast %c16_i32_600 : i32 to vector<1x256xi32>
    %1526 = arith.cmpi slt, %1524, %1525 : vector<1x256xi32>
    %1527 = arith.andi %1522, %1526 : vector<1x256xi1>
    %c1_i32_601 = arith.constant 1 : i32
    %1528 = vector.broadcast %c1_i32_601 : i32 to vector<1x256xi32>
    %1529 = arith.addi %1, %1528 : vector<1x256xi32>
    %c0_i32_602 = arith.constant 0 : i32
    %1530 = vector.broadcast %c0_i32_602 : i32 to vector<1x256xi32>
    %1531 = arith.cmpi sge, %1529, %1530 : vector<1x256xi32>
    %1532 = arith.andi %1527, %1531 : vector<1x256xi1>
    %c1_i32_603 = arith.constant 1 : i32
    %1533 = vector.broadcast %c1_i32_603 : i32 to vector<1x256xi32>
    %1534 = arith.addi %1, %1533 : vector<1x256xi32>
    %c16_i32_604 = arith.constant 16 : i32
    %1535 = vector.broadcast %c16_i32_604 : i32 to vector<1x256xi32>
    %1536 = arith.cmpi slt, %1534, %1535 : vector<1x256xi32>
    %1537 = arith.andi %1532, %1536 : vector<1x256xi1>
    %cst_605 = arith.constant 0.000000e+00 : f32
    %1538 = vector.shape_cast %1537 : vector<1x256xi1> to vector<1x256xi1>
    %1539 = vector.broadcast %1538 : vector<1x256xi1> to vector<2x256xi1>
    %1540 = vector.broadcast %cst_605 : f32 to vector<2x256xf32>
    %1541 = arith.select %1539, %1518, %1540 : vector<2x256xi1>, vector<2x256xf32>
    %c206_i32 = arith.constant 206 : i32
    %1542 = tpu.dynamic_rotate %436 by %c206_i32 dim 1 : vector<2x256xf32>, i32 -> vector<2x256xf32>
    %c3_i32_606 = arith.constant 3 : i32
    %1543 = vector.broadcast %c3_i32_606 : i32 to vector<1x256xi32>
    %1544 = arith.addi %0, %1543 : vector<1x256xi32>
    %c0_i32_607 = arith.constant 0 : i32
    %1545 = vector.broadcast %c0_i32_607 : i32 to vector<1x256xi32>
    %1546 = arith.cmpi sge, %1544, %1545 : vector<1x256xi32>
    %c3_i32_608 = arith.constant 3 : i32
    %1547 = vector.broadcast %c3_i32_608 : i32 to vector<1x256xi32>
    %1548 = arith.addi %0, %1547 : vector<1x256xi32>
    %c16_i32_609 = arith.constant 16 : i32
    %1549 = vector.broadcast %c16_i32_609 : i32 to vector<1x256xi32>
    %1550 = arith.cmpi slt, %1548, %1549 : vector<1x256xi32>
    %1551 = arith.andi %1546, %1550 : vector<1x256xi1>
    %c2_i32_610 = arith.constant 2 : i32
    %1552 = vector.broadcast %c2_i32_610 : i32 to vector<1x256xi32>
    %1553 = arith.addi %1, %1552 : vector<1x256xi32>
    %c0_i32_611 = arith.constant 0 : i32
    %1554 = vector.broadcast %c0_i32_611 : i32 to vector<1x256xi32>
    %1555 = arith.cmpi sge, %1553, %1554 : vector<1x256xi32>
    %1556 = arith.andi %1551, %1555 : vector<1x256xi1>
    %c2_i32_612 = arith.constant 2 : i32
    %1557 = vector.broadcast %c2_i32_612 : i32 to vector<1x256xi32>
    %1558 = arith.addi %1, %1557 : vector<1x256xi32>
    %c16_i32_613 = arith.constant 16 : i32
    %1559 = vector.broadcast %c16_i32_613 : i32 to vector<1x256xi32>
    %1560 = arith.cmpi slt, %1558, %1559 : vector<1x256xi32>
    %1561 = arith.andi %1556, %1560 : vector<1x256xi1>
    %cst_614 = arith.constant 0.000000e+00 : f32
    %1562 = vector.shape_cast %1561 : vector<1x256xi1> to vector<1x256xi1>
    %1563 = vector.broadcast %1562 : vector<1x256xi1> to vector<2x256xi1>
    %1564 = vector.broadcast %cst_614 : f32 to vector<2x256xf32>
    %1565 = arith.select %1563, %1542, %1564 : vector<2x256xi1>, vector<2x256xf32>
    %c205_i32 = arith.constant 205 : i32
    %1566 = tpu.dynamic_rotate %436 by %c205_i32 dim 1 : vector<2x256xf32>, i32 -> vector<2x256xf32>
    %c3_i32_615 = arith.constant 3 : i32
    %1567 = vector.broadcast %c3_i32_615 : i32 to vector<1x256xi32>
    %1568 = arith.addi %0, %1567 : vector<1x256xi32>
    %c0_i32_616 = arith.constant 0 : i32
    %1569 = vector.broadcast %c0_i32_616 : i32 to vector<1x256xi32>
    %1570 = arith.cmpi sge, %1568, %1569 : vector<1x256xi32>
    %c3_i32_617 = arith.constant 3 : i32
    %1571 = vector.broadcast %c3_i32_617 : i32 to vector<1x256xi32>
    %1572 = arith.addi %0, %1571 : vector<1x256xi32>
    %c16_i32_618 = arith.constant 16 : i32
    %1573 = vector.broadcast %c16_i32_618 : i32 to vector<1x256xi32>
    %1574 = arith.cmpi slt, %1572, %1573 : vector<1x256xi32>
    %1575 = arith.andi %1570, %1574 : vector<1x256xi1>
    %c3_i32_619 = arith.constant 3 : i32
    %1576 = vector.broadcast %c3_i32_619 : i32 to vector<1x256xi32>
    %1577 = arith.addi %1, %1576 : vector<1x256xi32>
    %c0_i32_620 = arith.constant 0 : i32
    %1578 = vector.broadcast %c0_i32_620 : i32 to vector<1x256xi32>
    %1579 = arith.cmpi sge, %1577, %1578 : vector<1x256xi32>
    %1580 = arith.andi %1575, %1579 : vector<1x256xi1>
    %c3_i32_621 = arith.constant 3 : i32
    %1581 = vector.broadcast %c3_i32_621 : i32 to vector<1x256xi32>
    %1582 = arith.addi %1, %1581 : vector<1x256xi32>
    %c16_i32_622 = arith.constant 16 : i32
    %1583 = vector.broadcast %c16_i32_622 : i32 to vector<1x256xi32>
    %1584 = arith.cmpi slt, %1582, %1583 : vector<1x256xi32>
    %1585 = arith.andi %1580, %1584 : vector<1x256xi1>
    %cst_623 = arith.constant 0.000000e+00 : f32
    %1586 = vector.shape_cast %1585 : vector<1x256xi1> to vector<1x256xi1>
    %1587 = vector.broadcast %1586 : vector<1x256xi1> to vector<2x256xi1>
    %1588 = vector.broadcast %cst_623 : f32 to vector<2x256xf32>
    %1589 = arith.select %1587, %1566, %1588 : vector<2x256xi1>, vector<2x256xf32>
    %c0_624 = arith.constant 0 : index
    %1590 = memref.load %arg11[%c0_624] : memref<98xf32, #tpu.memory_space<smem>>
    %1591 = vector.extract_strided_slice %461 {offsets = [0, 0], sizes = [1, 256], strides = [1, 1]} : vector<2x256xf32> to vector<1x256xf32>
    %1592 = vector.broadcast %1590 : f32 to vector<1x256xf32>
    %1593 = arith.mulf %1592, %1591 : vector<1x256xf32>
    %1594 = arith.addf %437, %1593 : vector<1x256xf32>
    %c1_625 = arith.constant 1 : index
    %1595 = memref.load %arg11[%c1_625] : memref<98xf32, #tpu.memory_space<smem>>
    %1596 = vector.extract_strided_slice %461 {offsets = [1, 0], sizes = [1, 256], strides = [1, 1]} : vector<2x256xf32> to vector<1x256xf32>
    %1597 = vector.broadcast %1595 : f32 to vector<1x256xf32>
    %1598 = arith.mulf %1597, %1596 : vector<1x256xf32>
    %1599 = arith.addf %1594, %1598 : vector<1x256xf32>
    %c2 = arith.constant 2 : index
    %1600 = memref.load %arg11[%c2] : memref<98xf32, #tpu.memory_space<smem>>
    %1601 = vector.extract_strided_slice %485 {offsets = [0, 0], sizes = [1, 256], strides = [1, 1]} : vector<2x256xf32> to vector<1x256xf32>
    %1602 = vector.broadcast %1600 : f32 to vector<1x256xf32>
    %1603 = arith.mulf %1602, %1601 : vector<1x256xf32>
    %1604 = arith.addf %1599, %1603 : vector<1x256xf32>
    %c3 = arith.constant 3 : index
    %1605 = memref.load %arg11[%c3] : memref<98xf32, #tpu.memory_space<smem>>
    %1606 = vector.extract_strided_slice %485 {offsets = [1, 0], sizes = [1, 256], strides = [1, 1]} : vector<2x256xf32> to vector<1x256xf32>
    %1607 = vector.broadcast %1605 : f32 to vector<1x256xf32>
    %1608 = arith.mulf %1607, %1606 : vector<1x256xf32>
    %1609 = arith.addf %1604, %1608 : vector<1x256xf32>
    %c4 = arith.constant 4 : index
    %1610 = memref.load %arg11[%c4] : memref<98xf32, #tpu.memory_space<smem>>
    %1611 = vector.extract_strided_slice %509 {offsets = [0, 0], sizes = [1, 256], strides = [1, 1]} : vector<2x256xf32> to vector<1x256xf32>
    %1612 = vector.broadcast %1610 : f32 to vector<1x256xf32>
    %1613 = arith.mulf %1612, %1611 : vector<1x256xf32>
    %1614 = arith.addf %1609, %1613 : vector<1x256xf32>
    %c5 = arith.constant 5 : index
    %1615 = memref.load %arg11[%c5] : memref<98xf32, #tpu.memory_space<smem>>
    %1616 = vector.extract_strided_slice %509 {offsets = [1, 0], sizes = [1, 256], strides = [1, 1]} : vector<2x256xf32> to vector<1x256xf32>
    %1617 = vector.broadcast %1615 : f32 to vector<1x256xf32>
    %1618 = arith.mulf %1617, %1616 : vector<1x256xf32>
    %1619 = arith.addf %1614, %1618 : vector<1x256xf32>
    %c6 = arith.constant 6 : index
    %1620 = memref.load %arg11[%c6] : memref<98xf32, #tpu.memory_space<smem>>
    %1621 = vector.extract_strided_slice %533 {offsets = [0, 0], sizes = [1, 256], strides = [1, 1]} : vector<2x256xf32> to vector<1x256xf32>
    %1622 = vector.broadcast %1620 : f32 to vector<1x256xf32>
    %1623 = arith.mulf %1622, %1621 : vector<1x256xf32>
    %1624 = arith.addf %1619, %1623 : vector<1x256xf32>
    %c7 = arith.constant 7 : index
    %1625 = memref.load %arg11[%c7] : memref<98xf32, #tpu.memory_space<smem>>
    %1626 = vector.extract_strided_slice %533 {offsets = [1, 0], sizes = [1, 256], strides = [1, 1]} : vector<2x256xf32> to vector<1x256xf32>
    %1627 = vector.broadcast %1625 : f32 to vector<1x256xf32>
    %1628 = arith.mulf %1627, %1626 : vector<1x256xf32>
    %1629 = arith.addf %1624, %1628 : vector<1x256xf32>
    %c8 = arith.constant 8 : index
    %1630 = memref.load %arg11[%c8] : memref<98xf32, #tpu.memory_space<smem>>
    %1631 = vector.extract_strided_slice %557 {offsets = [0, 0], sizes = [1, 256], strides = [1, 1]} : vector<2x256xf32> to vector<1x256xf32>
    %1632 = vector.broadcast %1630 : f32 to vector<1x256xf32>
    %1633 = arith.mulf %1632, %1631 : vector<1x256xf32>
    %1634 = arith.addf %1629, %1633 : vector<1x256xf32>
    %c9 = arith.constant 9 : index
    %1635 = memref.load %arg11[%c9] : memref<98xf32, #tpu.memory_space<smem>>
    %1636 = vector.extract_strided_slice %557 {offsets = [1, 0], sizes = [1, 256], strides = [1, 1]} : vector<2x256xf32> to vector<1x256xf32>
    %1637 = vector.broadcast %1635 : f32 to vector<1x256xf32>
    %1638 = arith.mulf %1637, %1636 : vector<1x256xf32>
    %1639 = arith.addf %1634, %1638 : vector<1x256xf32>
    %c10 = arith.constant 10 : index
    %1640 = memref.load %arg11[%c10] : memref<98xf32, #tpu.memory_space<smem>>
    %1641 = vector.extract_strided_slice %581 {offsets = [0, 0], sizes = [1, 256], strides = [1, 1]} : vector<2x256xf32> to vector<1x256xf32>
    %1642 = vector.broadcast %1640 : f32 to vector<1x256xf32>
    %1643 = arith.mulf %1642, %1641 : vector<1x256xf32>
    %1644 = arith.addf %1639, %1643 : vector<1x256xf32>
    %c11 = arith.constant 11 : index
    %1645 = memref.load %arg11[%c11] : memref<98xf32, #tpu.memory_space<smem>>
    %1646 = vector.extract_strided_slice %581 {offsets = [1, 0], sizes = [1, 256], strides = [1, 1]} : vector<2x256xf32> to vector<1x256xf32>
    %1647 = vector.broadcast %1645 : f32 to vector<1x256xf32>
    %1648 = arith.mulf %1647, %1646 : vector<1x256xf32>
    %1649 = arith.addf %1644, %1648 : vector<1x256xf32>
    %c12 = arith.constant 12 : index
    %1650 = memref.load %arg11[%c12] : memref<98xf32, #tpu.memory_space<smem>>
    %1651 = vector.extract_strided_slice %605 {offsets = [0, 0], sizes = [1, 256], strides = [1, 1]} : vector<2x256xf32> to vector<1x256xf32>
    %1652 = vector.broadcast %1650 : f32 to vector<1x256xf32>
    %1653 = arith.mulf %1652, %1651 : vector<1x256xf32>
    %1654 = arith.addf %1649, %1653 : vector<1x256xf32>
    %c13 = arith.constant 13 : index
    %1655 = memref.load %arg11[%c13] : memref<98xf32, #tpu.memory_space<smem>>
    %1656 = vector.extract_strided_slice %605 {offsets = [1, 0], sizes = [1, 256], strides = [1, 1]} : vector<2x256xf32> to vector<1x256xf32>
    %1657 = vector.broadcast %1655 : f32 to vector<1x256xf32>
    %1658 = arith.mulf %1657, %1656 : vector<1x256xf32>
    %1659 = arith.addf %1654, %1658 : vector<1x256xf32>
    %c14 = arith.constant 14 : index
    %1660 = memref.load %arg11[%c14] : memref<98xf32, #tpu.memory_space<smem>>
    %1661 = vector.extract_strided_slice %629 {offsets = [0, 0], sizes = [1, 256], strides = [1, 1]} : vector<2x256xf32> to vector<1x256xf32>
    %1662 = vector.broadcast %1660 : f32 to vector<1x256xf32>
    %1663 = arith.mulf %1662, %1661 : vector<1x256xf32>
    %1664 = arith.addf %1659, %1663 : vector<1x256xf32>
    %c15 = arith.constant 15 : index
    %1665 = memref.load %arg11[%c15] : memref<98xf32, #tpu.memory_space<smem>>
    %1666 = vector.extract_strided_slice %629 {offsets = [1, 0], sizes = [1, 256], strides = [1, 1]} : vector<2x256xf32> to vector<1x256xf32>
    %1667 = vector.broadcast %1665 : f32 to vector<1x256xf32>
    %1668 = arith.mulf %1667, %1666 : vector<1x256xf32>
    %1669 = arith.addf %1664, %1668 : vector<1x256xf32>
    %c16 = arith.constant 16 : index
    %1670 = memref.load %arg11[%c16] : memref<98xf32, #tpu.memory_space<smem>>
    %1671 = vector.extract_strided_slice %653 {offsets = [0, 0], sizes = [1, 256], strides = [1, 1]} : vector<2x256xf32> to vector<1x256xf32>
    %1672 = vector.broadcast %1670 : f32 to vector<1x256xf32>
    %1673 = arith.mulf %1672, %1671 : vector<1x256xf32>
    %1674 = arith.addf %1669, %1673 : vector<1x256xf32>
    %c17 = arith.constant 17 : index
    %1675 = memref.load %arg11[%c17] : memref<98xf32, #tpu.memory_space<smem>>
    %1676 = vector.extract_strided_slice %653 {offsets = [1, 0], sizes = [1, 256], strides = [1, 1]} : vector<2x256xf32> to vector<1x256xf32>
    %1677 = vector.broadcast %1675 : f32 to vector<1x256xf32>
    %1678 = arith.mulf %1677, %1676 : vector<1x256xf32>
    %1679 = arith.addf %1674, %1678 : vector<1x256xf32>
    %c18 = arith.constant 18 : index
    %1680 = memref.load %arg11[%c18] : memref<98xf32, #tpu.memory_space<smem>>
    %1681 = vector.extract_strided_slice %677 {offsets = [0, 0], sizes = [1, 256], strides = [1, 1]} : vector<2x256xf32> to vector<1x256xf32>
    %1682 = vector.broadcast %1680 : f32 to vector<1x256xf32>
    %1683 = arith.mulf %1682, %1681 : vector<1x256xf32>
    %1684 = arith.addf %1679, %1683 : vector<1x256xf32>
    %c19 = arith.constant 19 : index
    %1685 = memref.load %arg11[%c19] : memref<98xf32, #tpu.memory_space<smem>>
    %1686 = vector.extract_strided_slice %677 {offsets = [1, 0], sizes = [1, 256], strides = [1, 1]} : vector<2x256xf32> to vector<1x256xf32>
    %1687 = vector.broadcast %1685 : f32 to vector<1x256xf32>
    %1688 = arith.mulf %1687, %1686 : vector<1x256xf32>
    %1689 = arith.addf %1684, %1688 : vector<1x256xf32>
    %c20 = arith.constant 20 : index
    %1690 = memref.load %arg11[%c20] : memref<98xf32, #tpu.memory_space<smem>>
    %1691 = vector.extract_strided_slice %701 {offsets = [0, 0], sizes = [1, 256], strides = [1, 1]} : vector<2x256xf32> to vector<1x256xf32>
    %1692 = vector.broadcast %1690 : f32 to vector<1x256xf32>
    %1693 = arith.mulf %1692, %1691 : vector<1x256xf32>
    %1694 = arith.addf %1689, %1693 : vector<1x256xf32>
    %c21 = arith.constant 21 : index
    %1695 = memref.load %arg11[%c21] : memref<98xf32, #tpu.memory_space<smem>>
    %1696 = vector.extract_strided_slice %701 {offsets = [1, 0], sizes = [1, 256], strides = [1, 1]} : vector<2x256xf32> to vector<1x256xf32>
    %1697 = vector.broadcast %1695 : f32 to vector<1x256xf32>
    %1698 = arith.mulf %1697, %1696 : vector<1x256xf32>
    %1699 = arith.addf %1694, %1698 : vector<1x256xf32>
    %c22 = arith.constant 22 : index
    %1700 = memref.load %arg11[%c22] : memref<98xf32, #tpu.memory_space<smem>>
    %1701 = vector.extract_strided_slice %725 {offsets = [0, 0], sizes = [1, 256], strides = [1, 1]} : vector<2x256xf32> to vector<1x256xf32>
    %1702 = vector.broadcast %1700 : f32 to vector<1x256xf32>
    %1703 = arith.mulf %1702, %1701 : vector<1x256xf32>
    %1704 = arith.addf %1699, %1703 : vector<1x256xf32>
    %c23 = arith.constant 23 : index
    %1705 = memref.load %arg11[%c23] : memref<98xf32, #tpu.memory_space<smem>>
    %1706 = vector.extract_strided_slice %725 {offsets = [1, 0], sizes = [1, 256], strides = [1, 1]} : vector<2x256xf32> to vector<1x256xf32>
    %1707 = vector.broadcast %1705 : f32 to vector<1x256xf32>
    %1708 = arith.mulf %1707, %1706 : vector<1x256xf32>
    %1709 = arith.addf %1704, %1708 : vector<1x256xf32>
    %c24 = arith.constant 24 : index
    %1710 = memref.load %arg11[%c24] : memref<98xf32, #tpu.memory_space<smem>>
    %1711 = vector.extract_strided_slice %749 {offsets = [0, 0], sizes = [1, 256], strides = [1, 1]} : vector<2x256xf32> to vector<1x256xf32>
    %1712 = vector.broadcast %1710 : f32 to vector<1x256xf32>
    %1713 = arith.mulf %1712, %1711 : vector<1x256xf32>
    %1714 = arith.addf %1709, %1713 : vector<1x256xf32>
    %c25 = arith.constant 25 : index
    %1715 = memref.load %arg11[%c25] : memref<98xf32, #tpu.memory_space<smem>>
    %1716 = vector.extract_strided_slice %749 {offsets = [1, 0], sizes = [1, 256], strides = [1, 1]} : vector<2x256xf32> to vector<1x256xf32>
    %1717 = vector.broadcast %1715 : f32 to vector<1x256xf32>
    %1718 = arith.mulf %1717, %1716 : vector<1x256xf32>
    %1719 = arith.addf %1714, %1718 : vector<1x256xf32>
    %c26 = arith.constant 26 : index
    %1720 = memref.load %arg11[%c26] : memref<98xf32, #tpu.memory_space<smem>>
    %1721 = vector.extract_strided_slice %773 {offsets = [0, 0], sizes = [1, 256], strides = [1, 1]} : vector<2x256xf32> to vector<1x256xf32>
    %1722 = vector.broadcast %1720 : f32 to vector<1x256xf32>
    %1723 = arith.mulf %1722, %1721 : vector<1x256xf32>
    %1724 = arith.addf %1719, %1723 : vector<1x256xf32>
    %c27 = arith.constant 27 : index
    %1725 = memref.load %arg11[%c27] : memref<98xf32, #tpu.memory_space<smem>>
    %1726 = vector.extract_strided_slice %773 {offsets = [1, 0], sizes = [1, 256], strides = [1, 1]} : vector<2x256xf32> to vector<1x256xf32>
    %1727 = vector.broadcast %1725 : f32 to vector<1x256xf32>
    %1728 = arith.mulf %1727, %1726 : vector<1x256xf32>
    %1729 = arith.addf %1724, %1728 : vector<1x256xf32>
    %c28 = arith.constant 28 : index
    %1730 = memref.load %arg11[%c28] : memref<98xf32, #tpu.memory_space<smem>>
    %1731 = vector.extract_strided_slice %797 {offsets = [0, 0], sizes = [1, 256], strides = [1, 1]} : vector<2x256xf32> to vector<1x256xf32>
    %1732 = vector.broadcast %1730 : f32 to vector<1x256xf32>
    %1733 = arith.mulf %1732, %1731 : vector<1x256xf32>
    %1734 = arith.addf %1729, %1733 : vector<1x256xf32>
    %c29 = arith.constant 29 : index
    %1735 = memref.load %arg11[%c29] : memref<98xf32, #tpu.memory_space<smem>>
    %1736 = vector.extract_strided_slice %797 {offsets = [1, 0], sizes = [1, 256], strides = [1, 1]} : vector<2x256xf32> to vector<1x256xf32>
    %1737 = vector.broadcast %1735 : f32 to vector<1x256xf32>
    %1738 = arith.mulf %1737, %1736 : vector<1x256xf32>
    %1739 = arith.addf %1734, %1738 : vector<1x256xf32>
    %c30 = arith.constant 30 : index
    %1740 = memref.load %arg11[%c30] : memref<98xf32, #tpu.memory_space<smem>>
    %1741 = vector.extract_strided_slice %821 {offsets = [0, 0], sizes = [1, 256], strides = [1, 1]} : vector<2x256xf32> to vector<1x256xf32>
    %1742 = vector.broadcast %1740 : f32 to vector<1x256xf32>
    %1743 = arith.mulf %1742, %1741 : vector<1x256xf32>
    %1744 = arith.addf %1739, %1743 : vector<1x256xf32>
    %c31 = arith.constant 31 : index
    %1745 = memref.load %arg11[%c31] : memref<98xf32, #tpu.memory_space<smem>>
    %1746 = vector.extract_strided_slice %821 {offsets = [1, 0], sizes = [1, 256], strides = [1, 1]} : vector<2x256xf32> to vector<1x256xf32>
    %1747 = vector.broadcast %1745 : f32 to vector<1x256xf32>
    %1748 = arith.mulf %1747, %1746 : vector<1x256xf32>
    %1749 = arith.addf %1744, %1748 : vector<1x256xf32>
    %c32 = arith.constant 32 : index
    %1750 = memref.load %arg11[%c32] : memref<98xf32, #tpu.memory_space<smem>>
    %1751 = vector.extract_strided_slice %845 {offsets = [0, 0], sizes = [1, 256], strides = [1, 1]} : vector<2x256xf32> to vector<1x256xf32>
    %1752 = vector.broadcast %1750 : f32 to vector<1x256xf32>
    %1753 = arith.mulf %1752, %1751 : vector<1x256xf32>
    %1754 = arith.addf %1749, %1753 : vector<1x256xf32>
    %c33 = arith.constant 33 : index
    %1755 = memref.load %arg11[%c33] : memref<98xf32, #tpu.memory_space<smem>>
    %1756 = vector.extract_strided_slice %845 {offsets = [1, 0], sizes = [1, 256], strides = [1, 1]} : vector<2x256xf32> to vector<1x256xf32>
    %1757 = vector.broadcast %1755 : f32 to vector<1x256xf32>
    %1758 = arith.mulf %1757, %1756 : vector<1x256xf32>
    %1759 = arith.addf %1754, %1758 : vector<1x256xf32>
    %c34 = arith.constant 34 : index
    %1760 = memref.load %arg11[%c34] : memref<98xf32, #tpu.memory_space<smem>>
    %1761 = vector.extract_strided_slice %869 {offsets = [0, 0], sizes = [1, 256], strides = [1, 1]} : vector<2x256xf32> to vector<1x256xf32>
    %1762 = vector.broadcast %1760 : f32 to vector<1x256xf32>
    %1763 = arith.mulf %1762, %1761 : vector<1x256xf32>
    %1764 = arith.addf %1759, %1763 : vector<1x256xf32>
    %c35 = arith.constant 35 : index
    %1765 = memref.load %arg11[%c35] : memref<98xf32, #tpu.memory_space<smem>>
    %1766 = vector.extract_strided_slice %869 {offsets = [1, 0], sizes = [1, 256], strides = [1, 1]} : vector<2x256xf32> to vector<1x256xf32>
    %1767 = vector.broadcast %1765 : f32 to vector<1x256xf32>
    %1768 = arith.mulf %1767, %1766 : vector<1x256xf32>
    %1769 = arith.addf %1764, %1768 : vector<1x256xf32>
    %c36 = arith.constant 36 : index
    %1770 = memref.load %arg11[%c36] : memref<98xf32, #tpu.memory_space<smem>>
    %1771 = vector.extract_strided_slice %893 {offsets = [0, 0], sizes = [1, 256], strides = [1, 1]} : vector<2x256xf32> to vector<1x256xf32>
    %1772 = vector.broadcast %1770 : f32 to vector<1x256xf32>
    %1773 = arith.mulf %1772, %1771 : vector<1x256xf32>
    %1774 = arith.addf %1769, %1773 : vector<1x256xf32>
    %c37 = arith.constant 37 : index
    %1775 = memref.load %arg11[%c37] : memref<98xf32, #tpu.memory_space<smem>>
    %1776 = vector.extract_strided_slice %893 {offsets = [1, 0], sizes = [1, 256], strides = [1, 1]} : vector<2x256xf32> to vector<1x256xf32>
    %1777 = vector.broadcast %1775 : f32 to vector<1x256xf32>
    %1778 = arith.mulf %1777, %1776 : vector<1x256xf32>
    %1779 = arith.addf %1774, %1778 : vector<1x256xf32>
    %c38 = arith.constant 38 : index
    %1780 = memref.load %arg11[%c38] : memref<98xf32, #tpu.memory_space<smem>>
    %1781 = vector.extract_strided_slice %917 {offsets = [0, 0], sizes = [1, 256], strides = [1, 1]} : vector<2x256xf32> to vector<1x256xf32>
    %1782 = vector.broadcast %1780 : f32 to vector<1x256xf32>
    %1783 = arith.mulf %1782, %1781 : vector<1x256xf32>
    %1784 = arith.addf %1779, %1783 : vector<1x256xf32>
    %c39 = arith.constant 39 : index
    %1785 = memref.load %arg11[%c39] : memref<98xf32, #tpu.memory_space<smem>>
    %1786 = vector.extract_strided_slice %917 {offsets = [1, 0], sizes = [1, 256], strides = [1, 1]} : vector<2x256xf32> to vector<1x256xf32>
    %1787 = vector.broadcast %1785 : f32 to vector<1x256xf32>
    %1788 = arith.mulf %1787, %1786 : vector<1x256xf32>
    %1789 = arith.addf %1784, %1788 : vector<1x256xf32>
    %c40 = arith.constant 40 : index
    %1790 = memref.load %arg11[%c40] : memref<98xf32, #tpu.memory_space<smem>>
    %1791 = vector.extract_strided_slice %941 {offsets = [0, 0], sizes = [1, 256], strides = [1, 1]} : vector<2x256xf32> to vector<1x256xf32>
    %1792 = vector.broadcast %1790 : f32 to vector<1x256xf32>
    %1793 = arith.mulf %1792, %1791 : vector<1x256xf32>
    %1794 = arith.addf %1789, %1793 : vector<1x256xf32>
    %c41 = arith.constant 41 : index
    %1795 = memref.load %arg11[%c41] : memref<98xf32, #tpu.memory_space<smem>>
    %1796 = vector.extract_strided_slice %941 {offsets = [1, 0], sizes = [1, 256], strides = [1, 1]} : vector<2x256xf32> to vector<1x256xf32>
    %1797 = vector.broadcast %1795 : f32 to vector<1x256xf32>
    %1798 = arith.mulf %1797, %1796 : vector<1x256xf32>
    %1799 = arith.addf %1794, %1798 : vector<1x256xf32>
    %c42 = arith.constant 42 : index
    %1800 = memref.load %arg11[%c42] : memref<98xf32, #tpu.memory_space<smem>>
    %1801 = vector.extract_strided_slice %965 {offsets = [0, 0], sizes = [1, 256], strides = [1, 1]} : vector<2x256xf32> to vector<1x256xf32>
    %1802 = vector.broadcast %1800 : f32 to vector<1x256xf32>
    %1803 = arith.mulf %1802, %1801 : vector<1x256xf32>
    %1804 = arith.addf %1799, %1803 : vector<1x256xf32>
    %c43 = arith.constant 43 : index
    %1805 = memref.load %arg11[%c43] : memref<98xf32, #tpu.memory_space<smem>>
    %1806 = vector.extract_strided_slice %965 {offsets = [1, 0], sizes = [1, 256], strides = [1, 1]} : vector<2x256xf32> to vector<1x256xf32>
    %1807 = vector.broadcast %1805 : f32 to vector<1x256xf32>
    %1808 = arith.mulf %1807, %1806 : vector<1x256xf32>
    %1809 = arith.addf %1804, %1808 : vector<1x256xf32>
    %c44 = arith.constant 44 : index
    %1810 = memref.load %arg11[%c44] : memref<98xf32, #tpu.memory_space<smem>>
    %1811 = vector.extract_strided_slice %989 {offsets = [0, 0], sizes = [1, 256], strides = [1, 1]} : vector<2x256xf32> to vector<1x256xf32>
    %1812 = vector.broadcast %1810 : f32 to vector<1x256xf32>
    %1813 = arith.mulf %1812, %1811 : vector<1x256xf32>
    %1814 = arith.addf %1809, %1813 : vector<1x256xf32>
    %c45 = arith.constant 45 : index
    %1815 = memref.load %arg11[%c45] : memref<98xf32, #tpu.memory_space<smem>>
    %1816 = vector.extract_strided_slice %989 {offsets = [1, 0], sizes = [1, 256], strides = [1, 1]} : vector<2x256xf32> to vector<1x256xf32>
    %1817 = vector.broadcast %1815 : f32 to vector<1x256xf32>
    %1818 = arith.mulf %1817, %1816 : vector<1x256xf32>
    %1819 = arith.addf %1814, %1818 : vector<1x256xf32>
    %c46 = arith.constant 46 : index
    %1820 = memref.load %arg11[%c46] : memref<98xf32, #tpu.memory_space<smem>>
    %1821 = vector.extract_strided_slice %1013 {offsets = [0, 0], sizes = [1, 256], strides = [1, 1]} : vector<2x256xf32> to vector<1x256xf32>
    %1822 = vector.broadcast %1820 : f32 to vector<1x256xf32>
    %1823 = arith.mulf %1822, %1821 : vector<1x256xf32>
    %1824 = arith.addf %1819, %1823 : vector<1x256xf32>
    %c47 = arith.constant 47 : index
    %1825 = memref.load %arg11[%c47] : memref<98xf32, #tpu.memory_space<smem>>
    %1826 = vector.extract_strided_slice %1013 {offsets = [1, 0], sizes = [1, 256], strides = [1, 1]} : vector<2x256xf32> to vector<1x256xf32>
    %1827 = vector.broadcast %1825 : f32 to vector<1x256xf32>
    %1828 = arith.mulf %1827, %1826 : vector<1x256xf32>
    %1829 = arith.addf %1824, %1828 : vector<1x256xf32>
    %c48 = arith.constant 48 : index
    %1830 = memref.load %arg11[%c48] : memref<98xf32, #tpu.memory_space<smem>>
    %1831 = vector.extract_strided_slice %436 {offsets = [0, 0], sizes = [1, 256], strides = [1, 1]} : vector<2x256xf32> to vector<1x256xf32>
    %1832 = vector.broadcast %1830 : f32 to vector<1x256xf32>
    %1833 = arith.mulf %1832, %1831 : vector<1x256xf32>
    %1834 = arith.addf %1829, %1833 : vector<1x256xf32>
    %c49 = arith.constant 49 : index
    %1835 = memref.load %arg11[%c49] : memref<98xf32, #tpu.memory_space<smem>>
    %1836 = vector.extract_strided_slice %436 {offsets = [1, 0], sizes = [1, 256], strides = [1, 1]} : vector<2x256xf32> to vector<1x256xf32>
    %1837 = vector.broadcast %1835 : f32 to vector<1x256xf32>
    %1838 = arith.mulf %1837, %1836 : vector<1x256xf32>
    %1839 = arith.addf %1834, %1838 : vector<1x256xf32>
    %c50 = arith.constant 50 : index
    %1840 = memref.load %arg11[%c50] : memref<98xf32, #tpu.memory_space<smem>>
    %1841 = vector.extract_strided_slice %1037 {offsets = [0, 0], sizes = [1, 256], strides = [1, 1]} : vector<2x256xf32> to vector<1x256xf32>
    %1842 = vector.broadcast %1840 : f32 to vector<1x256xf32>
    %1843 = arith.mulf %1842, %1841 : vector<1x256xf32>
    %1844 = arith.addf %1839, %1843 : vector<1x256xf32>
    %c51 = arith.constant 51 : index
    %1845 = memref.load %arg11[%c51] : memref<98xf32, #tpu.memory_space<smem>>
    %1846 = vector.extract_strided_slice %1037 {offsets = [1, 0], sizes = [1, 256], strides = [1, 1]} : vector<2x256xf32> to vector<1x256xf32>
    %1847 = vector.broadcast %1845 : f32 to vector<1x256xf32>
    %1848 = arith.mulf %1847, %1846 : vector<1x256xf32>
    %1849 = arith.addf %1844, %1848 : vector<1x256xf32>
    %c52 = arith.constant 52 : index
    %1850 = memref.load %arg11[%c52] : memref<98xf32, #tpu.memory_space<smem>>
    %1851 = vector.extract_strided_slice %1061 {offsets = [0, 0], sizes = [1, 256], strides = [1, 1]} : vector<2x256xf32> to vector<1x256xf32>
    %1852 = vector.broadcast %1850 : f32 to vector<1x256xf32>
    %1853 = arith.mulf %1852, %1851 : vector<1x256xf32>
    %1854 = arith.addf %1849, %1853 : vector<1x256xf32>
    %c53 = arith.constant 53 : index
    %1855 = memref.load %arg11[%c53] : memref<98xf32, #tpu.memory_space<smem>>
    %1856 = vector.extract_strided_slice %1061 {offsets = [1, 0], sizes = [1, 256], strides = [1, 1]} : vector<2x256xf32> to vector<1x256xf32>
    %1857 = vector.broadcast %1855 : f32 to vector<1x256xf32>
    %1858 = arith.mulf %1857, %1856 : vector<1x256xf32>
    %1859 = arith.addf %1854, %1858 : vector<1x256xf32>
    %c54 = arith.constant 54 : index
    %1860 = memref.load %arg11[%c54] : memref<98xf32, #tpu.memory_space<smem>>
    %1861 = vector.extract_strided_slice %1085 {offsets = [0, 0], sizes = [1, 256], strides = [1, 1]} : vector<2x256xf32> to vector<1x256xf32>
    %1862 = vector.broadcast %1860 : f32 to vector<1x256xf32>
    %1863 = arith.mulf %1862, %1861 : vector<1x256xf32>
    %1864 = arith.addf %1859, %1863 : vector<1x256xf32>
    %c55 = arith.constant 55 : index
    %1865 = memref.load %arg11[%c55] : memref<98xf32, #tpu.memory_space<smem>>
    %1866 = vector.extract_strided_slice %1085 {offsets = [1, 0], sizes = [1, 256], strides = [1, 1]} : vector<2x256xf32> to vector<1x256xf32>
    %1867 = vector.broadcast %1865 : f32 to vector<1x256xf32>
    %1868 = arith.mulf %1867, %1866 : vector<1x256xf32>
    %1869 = arith.addf %1864, %1868 : vector<1x256xf32>
    %c56 = arith.constant 56 : index
    %1870 = memref.load %arg11[%c56] : memref<98xf32, #tpu.memory_space<smem>>
    %1871 = vector.extract_strided_slice %1109 {offsets = [0, 0], sizes = [1, 256], strides = [1, 1]} : vector<2x256xf32> to vector<1x256xf32>
    %1872 = vector.broadcast %1870 : f32 to vector<1x256xf32>
    %1873 = arith.mulf %1872, %1871 : vector<1x256xf32>
    %1874 = arith.addf %1869, %1873 : vector<1x256xf32>
    %c57 = arith.constant 57 : index
    %1875 = memref.load %arg11[%c57] : memref<98xf32, #tpu.memory_space<smem>>
    %1876 = vector.extract_strided_slice %1109 {offsets = [1, 0], sizes = [1, 256], strides = [1, 1]} : vector<2x256xf32> to vector<1x256xf32>
    %1877 = vector.broadcast %1875 : f32 to vector<1x256xf32>
    %1878 = arith.mulf %1877, %1876 : vector<1x256xf32>
    %1879 = arith.addf %1874, %1878 : vector<1x256xf32>
    %c58 = arith.constant 58 : index
    %1880 = memref.load %arg11[%c58] : memref<98xf32, #tpu.memory_space<smem>>
    %1881 = vector.extract_strided_slice %1133 {offsets = [0, 0], sizes = [1, 256], strides = [1, 1]} : vector<2x256xf32> to vector<1x256xf32>
    %1882 = vector.broadcast %1880 : f32 to vector<1x256xf32>
    %1883 = arith.mulf %1882, %1881 : vector<1x256xf32>
    %1884 = arith.addf %1879, %1883 : vector<1x256xf32>
    %c59 = arith.constant 59 : index
    %1885 = memref.load %arg11[%c59] : memref<98xf32, #tpu.memory_space<smem>>
    %1886 = vector.extract_strided_slice %1133 {offsets = [1, 0], sizes = [1, 256], strides = [1, 1]} : vector<2x256xf32> to vector<1x256xf32>
    %1887 = vector.broadcast %1885 : f32 to vector<1x256xf32>
    %1888 = arith.mulf %1887, %1886 : vector<1x256xf32>
    %1889 = arith.addf %1884, %1888 : vector<1x256xf32>
    %c60 = arith.constant 60 : index
    %1890 = memref.load %arg11[%c60] : memref<98xf32, #tpu.memory_space<smem>>
    %1891 = vector.extract_strided_slice %1157 {offsets = [0, 0], sizes = [1, 256], strides = [1, 1]} : vector<2x256xf32> to vector<1x256xf32>
    %1892 = vector.broadcast %1890 : f32 to vector<1x256xf32>
    %1893 = arith.mulf %1892, %1891 : vector<1x256xf32>
    %1894 = arith.addf %1889, %1893 : vector<1x256xf32>
    %c61 = arith.constant 61 : index
    %1895 = memref.load %arg11[%c61] : memref<98xf32, #tpu.memory_space<smem>>
    %1896 = vector.extract_strided_slice %1157 {offsets = [1, 0], sizes = [1, 256], strides = [1, 1]} : vector<2x256xf32> to vector<1x256xf32>
    %1897 = vector.broadcast %1895 : f32 to vector<1x256xf32>
    %1898 = arith.mulf %1897, %1896 : vector<1x256xf32>
    %1899 = arith.addf %1894, %1898 : vector<1x256xf32>
    %c62 = arith.constant 62 : index
    %1900 = memref.load %arg11[%c62] : memref<98xf32, #tpu.memory_space<smem>>
    %1901 = vector.extract_strided_slice %1181 {offsets = [0, 0], sizes = [1, 256], strides = [1, 1]} : vector<2x256xf32> to vector<1x256xf32>
    %1902 = vector.broadcast %1900 : f32 to vector<1x256xf32>
    %1903 = arith.mulf %1902, %1901 : vector<1x256xf32>
    %1904 = arith.addf %1899, %1903 : vector<1x256xf32>
    %c63 = arith.constant 63 : index
    %1905 = memref.load %arg11[%c63] : memref<98xf32, #tpu.memory_space<smem>>
    %1906 = vector.extract_strided_slice %1181 {offsets = [1, 0], sizes = [1, 256], strides = [1, 1]} : vector<2x256xf32> to vector<1x256xf32>
    %1907 = vector.broadcast %1905 : f32 to vector<1x256xf32>
    %1908 = arith.mulf %1907, %1906 : vector<1x256xf32>
    %1909 = arith.addf %1904, %1908 : vector<1x256xf32>
    %c64 = arith.constant 64 : index
    %1910 = memref.load %arg11[%c64] : memref<98xf32, #tpu.memory_space<smem>>
    %1911 = vector.extract_strided_slice %1205 {offsets = [0, 0], sizes = [1, 256], strides = [1, 1]} : vector<2x256xf32> to vector<1x256xf32>
    %1912 = vector.broadcast %1910 : f32 to vector<1x256xf32>
    %1913 = arith.mulf %1912, %1911 : vector<1x256xf32>
    %1914 = arith.addf %1909, %1913 : vector<1x256xf32>
    %c65 = arith.constant 65 : index
    %1915 = memref.load %arg11[%c65] : memref<98xf32, #tpu.memory_space<smem>>
    %1916 = vector.extract_strided_slice %1205 {offsets = [1, 0], sizes = [1, 256], strides = [1, 1]} : vector<2x256xf32> to vector<1x256xf32>
    %1917 = vector.broadcast %1915 : f32 to vector<1x256xf32>
    %1918 = arith.mulf %1917, %1916 : vector<1x256xf32>
    %1919 = arith.addf %1914, %1918 : vector<1x256xf32>
    %c66 = arith.constant 66 : index
    %1920 = memref.load %arg11[%c66] : memref<98xf32, #tpu.memory_space<smem>>
    %1921 = vector.extract_strided_slice %1229 {offsets = [0, 0], sizes = [1, 256], strides = [1, 1]} : vector<2x256xf32> to vector<1x256xf32>
    %1922 = vector.broadcast %1920 : f32 to vector<1x256xf32>
    %1923 = arith.mulf %1922, %1921 : vector<1x256xf32>
    %1924 = arith.addf %1919, %1923 : vector<1x256xf32>
    %c67 = arith.constant 67 : index
    %1925 = memref.load %arg11[%c67] : memref<98xf32, #tpu.memory_space<smem>>
    %1926 = vector.extract_strided_slice %1229 {offsets = [1, 0], sizes = [1, 256], strides = [1, 1]} : vector<2x256xf32> to vector<1x256xf32>
    %1927 = vector.broadcast %1925 : f32 to vector<1x256xf32>
    %1928 = arith.mulf %1927, %1926 : vector<1x256xf32>
    %1929 = arith.addf %1924, %1928 : vector<1x256xf32>
    %c68 = arith.constant 68 : index
    %1930 = memref.load %arg11[%c68] : memref<98xf32, #tpu.memory_space<smem>>
    %1931 = vector.extract_strided_slice %1253 {offsets = [0, 0], sizes = [1, 256], strides = [1, 1]} : vector<2x256xf32> to vector<1x256xf32>
    %1932 = vector.broadcast %1930 : f32 to vector<1x256xf32>
    %1933 = arith.mulf %1932, %1931 : vector<1x256xf32>
    %1934 = arith.addf %1929, %1933 : vector<1x256xf32>
    %c69 = arith.constant 69 : index
    %1935 = memref.load %arg11[%c69] : memref<98xf32, #tpu.memory_space<smem>>
    %1936 = vector.extract_strided_slice %1253 {offsets = [1, 0], sizes = [1, 256], strides = [1, 1]} : vector<2x256xf32> to vector<1x256xf32>
    %1937 = vector.broadcast %1935 : f32 to vector<1x256xf32>
    %1938 = arith.mulf %1937, %1936 : vector<1x256xf32>
    %1939 = arith.addf %1934, %1938 : vector<1x256xf32>
    %c70 = arith.constant 70 : index
    %1940 = memref.load %arg11[%c70] : memref<98xf32, #tpu.memory_space<smem>>
    %1941 = vector.extract_strided_slice %1277 {offsets = [0, 0], sizes = [1, 256], strides = [1, 1]} : vector<2x256xf32> to vector<1x256xf32>
    %1942 = vector.broadcast %1940 : f32 to vector<1x256xf32>
    %1943 = arith.mulf %1942, %1941 : vector<1x256xf32>
    %1944 = arith.addf %1939, %1943 : vector<1x256xf32>
    %c71 = arith.constant 71 : index
    %1945 = memref.load %arg11[%c71] : memref<98xf32, #tpu.memory_space<smem>>
    %1946 = vector.extract_strided_slice %1277 {offsets = [1, 0], sizes = [1, 256], strides = [1, 1]} : vector<2x256xf32> to vector<1x256xf32>
    %1947 = vector.broadcast %1945 : f32 to vector<1x256xf32>
    %1948 = arith.mulf %1947, %1946 : vector<1x256xf32>
    %1949 = arith.addf %1944, %1948 : vector<1x256xf32>
    %c72 = arith.constant 72 : index
    %1950 = memref.load %arg11[%c72] : memref<98xf32, #tpu.memory_space<smem>>
    %1951 = vector.extract_strided_slice %1301 {offsets = [0, 0], sizes = [1, 256], strides = [1, 1]} : vector<2x256xf32> to vector<1x256xf32>
    %1952 = vector.broadcast %1950 : f32 to vector<1x256xf32>
    %1953 = arith.mulf %1952, %1951 : vector<1x256xf32>
    %1954 = arith.addf %1949, %1953 : vector<1x256xf32>
    %c73 = arith.constant 73 : index
    %1955 = memref.load %arg11[%c73] : memref<98xf32, #tpu.memory_space<smem>>
    %1956 = vector.extract_strided_slice %1301 {offsets = [1, 0], sizes = [1, 256], strides = [1, 1]} : vector<2x256xf32> to vector<1x256xf32>
    %1957 = vector.broadcast %1955 : f32 to vector<1x256xf32>
    %1958 = arith.mulf %1957, %1956 : vector<1x256xf32>
    %1959 = arith.addf %1954, %1958 : vector<1x256xf32>
    %c74 = arith.constant 74 : index
    %1960 = memref.load %arg11[%c74] : memref<98xf32, #tpu.memory_space<smem>>
    %1961 = vector.extract_strided_slice %1325 {offsets = [0, 0], sizes = [1, 256], strides = [1, 1]} : vector<2x256xf32> to vector<1x256xf32>
    %1962 = vector.broadcast %1960 : f32 to vector<1x256xf32>
    %1963 = arith.mulf %1962, %1961 : vector<1x256xf32>
    %1964 = arith.addf %1959, %1963 : vector<1x256xf32>
    %c75 = arith.constant 75 : index
    %1965 = memref.load %arg11[%c75] : memref<98xf32, #tpu.memory_space<smem>>
    %1966 = vector.extract_strided_slice %1325 {offsets = [1, 0], sizes = [1, 256], strides = [1, 1]} : vector<2x256xf32> to vector<1x256xf32>
    %1967 = vector.broadcast %1965 : f32 to vector<1x256xf32>
    %1968 = arith.mulf %1967, %1966 : vector<1x256xf32>
    %1969 = arith.addf %1964, %1968 : vector<1x256xf32>
    %c76 = arith.constant 76 : index
    %1970 = memref.load %arg11[%c76] : memref<98xf32, #tpu.memory_space<smem>>
    %1971 = vector.extract_strided_slice %1349 {offsets = [0, 0], sizes = [1, 256], strides = [1, 1]} : vector<2x256xf32> to vector<1x256xf32>
    %1972 = vector.broadcast %1970 : f32 to vector<1x256xf32>
    %1973 = arith.mulf %1972, %1971 : vector<1x256xf32>
    %1974 = arith.addf %1969, %1973 : vector<1x256xf32>
    %c77 = arith.constant 77 : index
    %1975 = memref.load %arg11[%c77] : memref<98xf32, #tpu.memory_space<smem>>
    %1976 = vector.extract_strided_slice %1349 {offsets = [1, 0], sizes = [1, 256], strides = [1, 1]} : vector<2x256xf32> to vector<1x256xf32>
    %1977 = vector.broadcast %1975 : f32 to vector<1x256xf32>
    %1978 = arith.mulf %1977, %1976 : vector<1x256xf32>
    %1979 = arith.addf %1974, %1978 : vector<1x256xf32>
    %c78 = arith.constant 78 : index
    %1980 = memref.load %arg11[%c78] : memref<98xf32, #tpu.memory_space<smem>>
    %1981 = vector.extract_strided_slice %1373 {offsets = [0, 0], sizes = [1, 256], strides = [1, 1]} : vector<2x256xf32> to vector<1x256xf32>
    %1982 = vector.broadcast %1980 : f32 to vector<1x256xf32>
    %1983 = arith.mulf %1982, %1981 : vector<1x256xf32>
    %1984 = arith.addf %1979, %1983 : vector<1x256xf32>
    %c79 = arith.constant 79 : index
    %1985 = memref.load %arg11[%c79] : memref<98xf32, #tpu.memory_space<smem>>
    %1986 = vector.extract_strided_slice %1373 {offsets = [1, 0], sizes = [1, 256], strides = [1, 1]} : vector<2x256xf32> to vector<1x256xf32>
    %1987 = vector.broadcast %1985 : f32 to vector<1x256xf32>
    %1988 = arith.mulf %1987, %1986 : vector<1x256xf32>
    %1989 = arith.addf %1984, %1988 : vector<1x256xf32>
    %c80 = arith.constant 80 : index
    %1990 = memref.load %arg11[%c80] : memref<98xf32, #tpu.memory_space<smem>>
    %1991 = vector.extract_strided_slice %1397 {offsets = [0, 0], sizes = [1, 256], strides = [1, 1]} : vector<2x256xf32> to vector<1x256xf32>
    %1992 = vector.broadcast %1990 : f32 to vector<1x256xf32>
    %1993 = arith.mulf %1992, %1991 : vector<1x256xf32>
    %1994 = arith.addf %1989, %1993 : vector<1x256xf32>
    %c81 = arith.constant 81 : index
    %1995 = memref.load %arg11[%c81] : memref<98xf32, #tpu.memory_space<smem>>
    %1996 = vector.extract_strided_slice %1397 {offsets = [1, 0], sizes = [1, 256], strides = [1, 1]} : vector<2x256xf32> to vector<1x256xf32>
    %1997 = vector.broadcast %1995 : f32 to vector<1x256xf32>
    %1998 = arith.mulf %1997, %1996 : vector<1x256xf32>
    %1999 = arith.addf %1994, %1998 : vector<1x256xf32>
    %c82 = arith.constant 82 : index
    %2000 = memref.load %arg11[%c82] : memref<98xf32, #tpu.memory_space<smem>>
    %2001 = vector.extract_strided_slice %1421 {offsets = [0, 0], sizes = [1, 256], strides = [1, 1]} : vector<2x256xf32> to vector<1x256xf32>
    %2002 = vector.broadcast %2000 : f32 to vector<1x256xf32>
    %2003 = arith.mulf %2002, %2001 : vector<1x256xf32>
    %2004 = arith.addf %1999, %2003 : vector<1x256xf32>
    %c83 = arith.constant 83 : index
    %2005 = memref.load %arg11[%c83] : memref<98xf32, #tpu.memory_space<smem>>
    %2006 = vector.extract_strided_slice %1421 {offsets = [1, 0], sizes = [1, 256], strides = [1, 1]} : vector<2x256xf32> to vector<1x256xf32>
    %2007 = vector.broadcast %2005 : f32 to vector<1x256xf32>
    %2008 = arith.mulf %2007, %2006 : vector<1x256xf32>
    %2009 = arith.addf %2004, %2008 : vector<1x256xf32>
    %c84 = arith.constant 84 : index
    %2010 = memref.load %arg11[%c84] : memref<98xf32, #tpu.memory_space<smem>>
    %2011 = vector.extract_strided_slice %1445 {offsets = [0, 0], sizes = [1, 256], strides = [1, 1]} : vector<2x256xf32> to vector<1x256xf32>
    %2012 = vector.broadcast %2010 : f32 to vector<1x256xf32>
    %2013 = arith.mulf %2012, %2011 : vector<1x256xf32>
    %2014 = arith.addf %2009, %2013 : vector<1x256xf32>
    %c85 = arith.constant 85 : index
    %2015 = memref.load %arg11[%c85] : memref<98xf32, #tpu.memory_space<smem>>
    %2016 = vector.extract_strided_slice %1445 {offsets = [1, 0], sizes = [1, 256], strides = [1, 1]} : vector<2x256xf32> to vector<1x256xf32>
    %2017 = vector.broadcast %2015 : f32 to vector<1x256xf32>
    %2018 = arith.mulf %2017, %2016 : vector<1x256xf32>
    %2019 = arith.addf %2014, %2018 : vector<1x256xf32>
    %c86 = arith.constant 86 : index
    %2020 = memref.load %arg11[%c86] : memref<98xf32, #tpu.memory_space<smem>>
    %2021 = vector.extract_strided_slice %1469 {offsets = [0, 0], sizes = [1, 256], strides = [1, 1]} : vector<2x256xf32> to vector<1x256xf32>
    %2022 = vector.broadcast %2020 : f32 to vector<1x256xf32>
    %2023 = arith.mulf %2022, %2021 : vector<1x256xf32>
    %2024 = arith.addf %2019, %2023 : vector<1x256xf32>
    %c87 = arith.constant 87 : index
    %2025 = memref.load %arg11[%c87] : memref<98xf32, #tpu.memory_space<smem>>
    %2026 = vector.extract_strided_slice %1469 {offsets = [1, 0], sizes = [1, 256], strides = [1, 1]} : vector<2x256xf32> to vector<1x256xf32>
    %2027 = vector.broadcast %2025 : f32 to vector<1x256xf32>
    %2028 = arith.mulf %2027, %2026 : vector<1x256xf32>
    %2029 = arith.addf %2024, %2028 : vector<1x256xf32>
    %c88 = arith.constant 88 : index
    %2030 = memref.load %arg11[%c88] : memref<98xf32, #tpu.memory_space<smem>>
    %2031 = vector.extract_strided_slice %1493 {offsets = [0, 0], sizes = [1, 256], strides = [1, 1]} : vector<2x256xf32> to vector<1x256xf32>
    %2032 = vector.broadcast %2030 : f32 to vector<1x256xf32>
    %2033 = arith.mulf %2032, %2031 : vector<1x256xf32>
    %2034 = arith.addf %2029, %2033 : vector<1x256xf32>
    %c89 = arith.constant 89 : index
    %2035 = memref.load %arg11[%c89] : memref<98xf32, #tpu.memory_space<smem>>
    %2036 = vector.extract_strided_slice %1493 {offsets = [1, 0], sizes = [1, 256], strides = [1, 1]} : vector<2x256xf32> to vector<1x256xf32>
    %2037 = vector.broadcast %2035 : f32 to vector<1x256xf32>
    %2038 = arith.mulf %2037, %2036 : vector<1x256xf32>
    %2039 = arith.addf %2034, %2038 : vector<1x256xf32>
    %c90 = arith.constant 90 : index
    %2040 = memref.load %arg11[%c90] : memref<98xf32, #tpu.memory_space<smem>>
    %2041 = vector.extract_strided_slice %1517 {offsets = [0, 0], sizes = [1, 256], strides = [1, 1]} : vector<2x256xf32> to vector<1x256xf32>
    %2042 = vector.broadcast %2040 : f32 to vector<1x256xf32>
    %2043 = arith.mulf %2042, %2041 : vector<1x256xf32>
    %2044 = arith.addf %2039, %2043 : vector<1x256xf32>
    %c91 = arith.constant 91 : index
    %2045 = memref.load %arg11[%c91] : memref<98xf32, #tpu.memory_space<smem>>
    %2046 = vector.extract_strided_slice %1517 {offsets = [1, 0], sizes = [1, 256], strides = [1, 1]} : vector<2x256xf32> to vector<1x256xf32>
    %2047 = vector.broadcast %2045 : f32 to vector<1x256xf32>
    %2048 = arith.mulf %2047, %2046 : vector<1x256xf32>
    %2049 = arith.addf %2044, %2048 : vector<1x256xf32>
    %c92 = arith.constant 92 : index
    %2050 = memref.load %arg11[%c92] : memref<98xf32, #tpu.memory_space<smem>>
    %2051 = vector.extract_strided_slice %1541 {offsets = [0, 0], sizes = [1, 256], strides = [1, 1]} : vector<2x256xf32> to vector<1x256xf32>
    %2052 = vector.broadcast %2050 : f32 to vector<1x256xf32>
    %2053 = arith.mulf %2052, %2051 : vector<1x256xf32>
    %2054 = arith.addf %2049, %2053 : vector<1x256xf32>
    %c93 = arith.constant 93 : index
    %2055 = memref.load %arg11[%c93] : memref<98xf32, #tpu.memory_space<smem>>
    %2056 = vector.extract_strided_slice %1541 {offsets = [1, 0], sizes = [1, 256], strides = [1, 1]} : vector<2x256xf32> to vector<1x256xf32>
    %2057 = vector.broadcast %2055 : f32 to vector<1x256xf32>
    %2058 = arith.mulf %2057, %2056 : vector<1x256xf32>
    %2059 = arith.addf %2054, %2058 : vector<1x256xf32>
    %c94 = arith.constant 94 : index
    %2060 = memref.load %arg11[%c94] : memref<98xf32, #tpu.memory_space<smem>>
    %2061 = vector.extract_strided_slice %1565 {offsets = [0, 0], sizes = [1, 256], strides = [1, 1]} : vector<2x256xf32> to vector<1x256xf32>
    %2062 = vector.broadcast %2060 : f32 to vector<1x256xf32>
    %2063 = arith.mulf %2062, %2061 : vector<1x256xf32>
    %2064 = arith.addf %2059, %2063 : vector<1x256xf32>
    %c95 = arith.constant 95 : index
    %2065 = memref.load %arg11[%c95] : memref<98xf32, #tpu.memory_space<smem>>
    %2066 = vector.extract_strided_slice %1565 {offsets = [1, 0], sizes = [1, 256], strides = [1, 1]} : vector<2x256xf32> to vector<1x256xf32>
    %2067 = vector.broadcast %2065 : f32 to vector<1x256xf32>
    %2068 = arith.mulf %2067, %2066 : vector<1x256xf32>
    %2069 = arith.addf %2064, %2068 : vector<1x256xf32>
    %c96 = arith.constant 96 : index
    %2070 = memref.load %arg11[%c96] : memref<98xf32, #tpu.memory_space<smem>>
    %2071 = vector.extract_strided_slice %1589 {offsets = [0, 0], sizes = [1, 256], strides = [1, 1]} : vector<2x256xf32> to vector<1x256xf32>
    %2072 = vector.broadcast %2070 : f32 to vector<1x256xf32>
    %2073 = arith.mulf %2072, %2071 : vector<1x256xf32>
    %2074 = arith.addf %2069, %2073 : vector<1x256xf32>
    %c97 = arith.constant 97 : index
    %2075 = memref.load %arg11[%c97] : memref<98xf32, #tpu.memory_space<smem>>
    %2076 = vector.extract_strided_slice %1589 {offsets = [1, 0], sizes = [1, 256], strides = [1, 1]} : vector<2x256xf32> to vector<1x256xf32>
    %2077 = vector.broadcast %2075 : f32 to vector<1x256xf32>
    %2078 = arith.mulf %2077, %2076 : vector<1x256xf32>
    %2079 = arith.addf %2074, %2078 : vector<1x256xf32>
    %c0_626 = arith.constant 0 : index
    %2080 = memref.load %arg12[%c0_626] : memref<1xf32, #tpu.memory_space<smem>>
    %2081 = vector.broadcast %2080 : f32 to vector<1x256xf32>
    %2082 = arith.addf %2079, %2081 : vector<1x256xf32>
    %2083 = arith.negf %2082 : vector<1x256xf32>
    %2084 = math.exp %2083 : vector<1x256xf32>
    %cst_627 = arith.constant 1.000000e+00 : f32
    %2085 = vector.broadcast %cst_627 : f32 to vector<1x256xf32>
    %2086 = arith.addf %2085, %2084 : vector<1x256xf32>
    %2087 = arith.divf %2085, %2086 : vector<1x256xf32>
    %2088 = vector.broadcast %2087 : vector<1x256xf32> to vector<32x256xf32>
    %2089 = arith.mulf %429, %2088 : vector<32x256xf32>
    %2090 = arith.addf %406, %2089 : vector<32x256xf32>
    %c0_628 = arith.constant 0 : index
    %c0_629 = arith.constant 0 : index
    %2091 = vector.load %arg13[%c0_628, %c0_629] : memref<32x1xf32, #tpu.memory_space<vmem>>, vector<32x1xf32>
    %2092 = vector.broadcast %2091 : vector<32x1xf32> to vector<32x256xf32>
    %2093 = arith.mulf %2090, %2092 : vector<32x256xf32>
    %c0_630 = arith.constant 0 : index
    %c0_631 = arith.constant 0 : index
    %2094 = vector.load %arg14[%c0_630, %c0_631] : memref<32x1xf32, #tpu.memory_space<vmem>>, vector<32x1xf32>
    %2095 = vector.broadcast %2094 : vector<32x1xf32> to vector<32x256xf32>
    %2096 = arith.addf %2093, %2095 : vector<32x256xf32>
    %cst_632 = arith.constant 0.000000e+00 : f32
    %2097 = vector.broadcast %cst_632 : f32 to vector<32x256xf32>
    %2098 = arith.maximumf %2096, %2097 : vector<32x256xf32>
    %c0_633 = arith.constant 0 : index
    %c0_634 = arith.constant 0 : index
    %c0_635 = arith.constant 0 : index
    %2099 = vector.load %arg15[%c0_633, %c0_634, %c0_635] : memref<1x32x256xf32, #tpu.memory_space<vmem>>, vector<1x32x256xf32>
    %2100 = vector.shape_cast %2099 : vector<1x32x256xf32> to vector<32x256xf32>
    %2101 = vector.shape_cast %2098 : vector<32x256xf32> to vector<1x32x256xf32>
    tpu.vector_store %arg15[%c0_633, %c0_634, %c0_635], %2101 {strides = array<i32>} : memref<1x32x256xf32, #tpu.memory_space<vmem>>, vector<1x32x256xf32>,
    return
  }
  func.func @transform_0(%arg0: i32) -> (i32, i32, i32) {
    %c0_i32 = arith.constant 0 : i32
    %c0_i32_0 = arith.constant 0 : i32
    %c0_i32_1 = arith.constant 0 : i32
    return %arg0, %c0_i32, %c0_i32_0 : i32, i32, i32
  }
  func.func @transform_1(%arg0: i32) -> (i32, i32, i32) {
    %c0_i32 = arith.constant 0 : i32
    %c0_i32_0 = arith.constant 0 : i32
    %c0_i32_1 = arith.constant 0 : i32
    return %arg0, %c0_i32, %c0_i32_0 : i32, i32, i32
  }
  func.func @transform_2(%arg0: i32) -> (i32, i32) {
    %c0_i32 = arith.constant 0 : i32
    %c0_i32_0 = arith.constant 0 : i32
    %c0_i32_1 = arith.constant 0 : i32
    return %c0_i32, %c0_i32_0 : i32, i32
  }
  func.func @transform_3(%arg0: i32) -> (i32, i32) {
    %c0_i32 = arith.constant 0 : i32
    %c0_i32_0 = arith.constant 0 : i32
    %c0_i32_1 = arith.constant 0 : i32
    return %c0_i32, %c0_i32_0 : i32, i32
  }
  func.func @transform_4(%arg0: i32) -> (i32, i32) {
    %c0_i32 = arith.constant 0 : i32
    %c0_i32_0 = arith.constant 0 : i32
    %c0_i32_1 = arith.constant 0 : i32
    return %c0_i32, %c0_i32_0 : i32, i32
  }
  func.func @transform_5(%arg0: i32) -> (i32, i32) {
    %c0_i32 = arith.constant 0 : i32
    %c0_i32_0 = arith.constant 0 : i32
    %c0_i32_1 = arith.constant 0 : i32
    return %c0_i32, %c0_i32_0 : i32, i32
  }
  func.func @transform_6(%arg0: i32) -> (i32, i32) {
    %c0_i32 = arith.constant 0 : i32
    %c0_i32_0 = arith.constant 0 : i32
    %c0_i32_1 = arith.constant 0 : i32
    return %c0_i32, %c0_i32_0 : i32, i32
  }
  func.func @transform_7(%arg0: i32) -> (i32, i32) {
    %c0_i32 = arith.constant 0 : i32
    %c0_i32_0 = arith.constant 0 : i32
    %c0_i32_1 = arith.constant 0 : i32
    return %c0_i32, %c0_i32_0 : i32, i32
  }
  func.func @transform_8(%arg0: i32) -> (i32, i32) {
    %c0_i32 = arith.constant 0 : i32
    %c0_i32_0 = arith.constant 0 : i32
    %c0_i32_1 = arith.constant 0 : i32
    return %c0_i32, %c0_i32_0 : i32, i32
  }
  func.func @transform_9(%arg0: i32) -> (i32, i32) {
    %c0_i32 = arith.constant 0 : i32
    %c0_i32_0 = arith.constant 0 : i32
    %c0_i32_1 = arith.constant 0 : i32
    return %c0_i32, %c0_i32_0 : i32, i32
  }
  func.func @transform_10(%arg0: i32) -> i32 {
    %c0_i32 = arith.constant 0 : i32
    %c0_i32_0 = arith.constant 0 : i32
    return %c0_i32 : i32
  }
  func.func @transform_11(%arg0: i32) -> i32 {
    %c0_i32 = arith.constant 0 : i32
    %c0_i32_0 = arith.constant 0 : i32
    return %c0_i32 : i32
  }
  func.func @transform_12(%arg0: i32) -> (i32, i32) {
    %c0_i32 = arith.constant 0 : i32
    %c0_i32_0 = arith.constant 0 : i32
    %c0_i32_1 = arith.constant 0 : i32
    return %c0_i32, %c0_i32_0 : i32, i32
  }
  func.func @transform_13(%arg0: i32) -> (i32, i32) {
    %c0_i32 = arith.constant 0 : i32
    %c0_i32_0 = arith.constant 0 : i32
    %c0_i32_1 = arith.constant 0 : i32
    return %c0_i32, %c0_i32_0 : i32, i32
  }
  func.func @transform_14(%arg0: i32) -> (i32, i32, i32) {
    %c0_i32 = arith.constant 0 : i32
    %c0_i32_0 = arith.constant 0 : i32
    %c0_i32_1 = arith.constant 0 : i32
    return %arg0, %c0_i32, %c0_i32_0 : i32, i32, i32
  }
}

</mosaic_0001>

<llo_original>
// kernel: tpu_custom_call.1
$region0: #{tpu_custom_call.1}
  #allocation0 [shape = 'u32[]', space=smem, size = 0x4, offset = 0x4, fixed_abs, tag = 'smem constant byte address 0x4 - core index']
  #allocation1 [shape = 'u32[144,128]{1,0:T(1,128)}', space=vmem, size = 0x12000, scoped, tag = 'internal scratch']
  #allocation2 [shape = 'f32[1]{0:T(128)S(6)}', space=smem, size = 0x200, scoped, tag = 'scoped memory for tpu_custom_call.1']
  %s0 = inlined_call_operand.hbm [shape: f32[2,4,64], index: 0, kind: input, shape index: {}]
  %s1 = inlined_call_operand.vmem [shape: f32[2,4,256], index: 1, kind: input, shape index: {}]
  %s2 = inlined_call_operand.hbm [shape: s32[2,256], index: 2, kind: input, shape index: {}]
  %s3 = inlined_call_operand.vmem [shape: f32[64,256], index: 3, kind: input, shape index: {}]
  %s4 = inlined_call_operand.hbm [shape: f32[4,72], index: 4, kind: input, shape index: {}]
  %s5 = inlined_call_operand.vmem [shape: f32[4,1], index: 5, kind: input, shape index: {}]
  %s6 = inlined_call_operand.hbm [shape: f32[32,36], index: 6, kind: input, shape index: {}]
  %s7 = inlined_call_operand.vmem [shape: f32[32,1], index: 7, kind: input, shape index: {}]
  %s8 = inlined_call_operand.vmem [shape: f32[2,32], index: 8, kind: input, shape index: {}]
  %s9 = inlined_call_operand.vmem [shape: f32[32,2], index: 9, kind: input, shape index: {}]
  %s10 = inlined_call_operand.vmem [shape: f32[98], index: 10, kind: input, shape index: {}]
  %s11 = inlined_call_operand.<no memory space> [shape: f32[1], index: 11, kind: input, shape index: {}]
  %s12 = inlined_call_operand.vmem [shape: f32[32,1], index: 12, kind: input, shape index: {}]
  %s13 = inlined_call_operand.vmem [shape: f32[32,1], index: 13, kind: input, shape index: {}]
  %s14 = inlined_call_operand.hbm [shape: f32[2,32,256], index: 14, kind: output, shape index: {}]
  %s15 = sld [smem:[#allocation0]]
  $region109: #{tpu_custom_call.1} parent=0
    _
  %s17 = ssub.s32 1, %s15
  %s18 = scalar_select 0, %s17, %s15
  %19 = sst [smem:[#allocation2]] %s11
  $region1: #{tpu_custom_call.1} parent=0
    #allocation3 [shape = 'u8[4096]{0}', space=vmem, size = 0x1000, scoped, tag = 'input window, operand 0']
    #allocation4 [shape = 's32[2]{0}', space=sflag, size = 0x8, scoped, tag = 'scoped memory for tpu_custom_call.1']
    #allocation5 [shape = 's32[2]{0}', space=sflag, size = 0x8, scoped, tag = 'scoped memory for tpu_custom_call.1']
    #allocation6 [shape = 's32[2]{0}', space=sflag, size = 0x8, scoped, tag = 'scoped memory for tpu_custom_call.1']
    #allocation7 [shape = 'u8[2048]{0}', space=vmem, size = 0x800, scoped, tag = 'input window, operand 2, single buffered']
    #allocation8 [shape = 's32[1]{0}', space=sflag, size = 0x4, scoped, tag = 'scoped memory for tpu_custom_call.1']
    #allocation9 [shape = 'u8[2048]{0}', space=vmem, size = 0x800, scoped, tag = 'input window, operand 4, single buffered']
    #allocation10 [shape = 'u8[16384]{0}', space=vmem, size = 0x4000, scoped, tag = 'input window, operand 6, single buffered']
    #allocation11 [shape = 's32[1]{0}', space=sflag, size = 0x4, scoped, tag = 'scoped memory for tpu_custom_call.1']
    #allocation12 [shape = 'u8[512]{0}', space=smem, size = 0x200, scoped, tag = 'input window, operand 10, single buffered']
    #allocation13 [shape = 'u8[65536]{0}', space=vmem, size = 0x10000, scoped, tag = 'output window, operand 0']
    %20 = vsyncpa [#allocation4], 0
    %s21 = scalar_lea.sflag [#allocation4], 1
    %22 = vsyncpa %s21, 0
    %23 = vsyncpa [#allocation8], 0
    %24 = vsyncpa [#allocation11], 0
    %25 = vsyncpa [#allocation6], 0
    %26 = vsyncpa [#allocation5], 0
    %s27 = scalar_lea.sflag [#allocation5], 1
    %28 = vsyncpa %s27, 0
    loop: start=0, step=1, limit=4
    $region2: #{tpu_custom_call.1} parent=1 // loop_pre_header
      _
    $region3: #{tpu_custom_call.1} parent=1 // loop_header
      %s30 = sphi 0, %s34
      %p31 = scmp.ge.s32.totalorder %s30, 4
      %s40 = sphi 0, %s42
      %s43 = sphi 0, %s40
      %s44 = sphi 0, %s43
      %s60 = sphi 0, %s44
      %s66 = sphi 0, %s68
      %s69 = sphi 0, %s66
      %s70 = sphi 0, %s69
      %s86 = sphi 0, %s70
      %s90 = sphi 0, %s90
      %s92 = sphi 0, %s90
      %s93 = sphi 0, %s92
      %s107 = sphi 0, %s93
      %s111 = sphi 0, %s111
      %s113 = sphi 0, %s111
      %s114 = sphi 0, %s113
      %s128 = sphi 0, %s114
      %s132 = sphi 0, %s132
      %s134 = sphi 0, %s132
      %s135 = sphi 0, %s134
      %s149 = sphi 0, %s135
      %s153 = sphi 0, %s153
      %s155 = sphi 0, %s153
      %s156 = sphi 0, %s155
      %s170 = sphi 0, %s156
      %s174 = sphi 0, %s174
      %s176 = sphi 0, %s174
      %s177 = sphi 0, %s176
      %s191 = sphi 0, %s177
      %s195 = sphi 0, %s195
      %s197 = sphi 0, %s195
      %s198 = sphi 0, %s197
      %s212 = sphi 0, %s198
      %s216 = sphi 0, %s216
      %s218 = sphi 0, %s216
      %s219 = sphi 0, %s218
      %s233 = sphi 0, %s219
      %s237 = sphi 0, %s237
      %s239 = sphi 0, %s237
      %s240 = sphi 0, %s239
      %s254 = sphi 0, %s240
      %s258 = sphi 0, %s258
      %s260 = sphi 0, %s258
      %s261 = sphi 0, %s260
      %s275 = sphi 0, %s261
      %s279 = sphi 0, %s279
      %s281 = sphi 0, %s279
      %s282 = sphi 0, %s281
      %s296 = sphi 0, %s282
      %s300 = sphi 0, %s300
      %s302 = sphi 0, %s300
      %s303 = sphi 0, %s302
      %s317 = sphi 0, %s303
      %s321 = sphi 0, %s321
      %s323 = sphi 0, %s321
      %s324 = sphi 0, %s323
      %s338 = sphi 0, %s324
      %s344 = sphi 0, %s346
      %s347 = sphi 0, %s344
      %s348 = sphi 0, %s347
      %s364 = sphi 0, %s348
    $region4: #{tpu_custom_call.1} parent=1 // loop_header_branch
      %33 = sbr.rel (%p31) target = $region8
    $region5: #{tpu_custom_call.1} parent=1 // loop_body
      %s35 = ssub.s32 %s30, 1
      %s36 = ssub.s32 %s30, 2
      %s37 = sadd.s32 %s30, 1
      %s38 = ssub.s32 %s30, %s37
      %p39 = scmp.eq.s32.totalorder %s38, 0
      %s41 = sadd.s32 %s40, 1
      %s42 = scalar_select %p39, %s40, %s41
      %p45 = pneg %p39
      %p46 = scmp.eq.s32.totalorder %s30, 1
      %p47 = por %p45, %p46
      %p48 = scmp.ne.s32.totalorder %s40, %s43
      %p49 = scmp.eq.s32.totalorder %s30, 0
      %p50 = por %p48, %p49
      %p51 = scmp.ne.s32.totalorder %s40, %s43
      %p52 = scmp.eq.s32.totalorder %s35, 1
      %p53 = por %p51, %p52
      %p54 = scmp.ne.s32.totalorder %s43, %s44
      %p55 = scmp.eq.s32.totalorder %s35, 0
      %p56 = por %p54, %p55
      %p57 = scmp.ne.s32.totalorder %s43, %s44
      %p58 = scmp.eq.s32.totalorder %s36, 1
      %p59 = por %p57, %p58
      %p61 = scmp.ne.s32.totalorder %s44, %s60
      %p62 = scmp.eq.s32.totalorder %s36, 0
      %p63 = por %p61, %p62
      %s64 = ssub.s32 %s30, %s37
      %p65 = scmp.eq.s32.totalorder %s64, 0
      %s67 = sadd.s32 %s66, 1
      %s68 = scalar_select %p65, %s66, %s67
      %p71 = pneg %p65
      %p72 = scmp.eq.s32.totalorder %s30, 1
      %p73 = por %p71, %p72
      %p74 = scmp.ne.s32.totalorder %s66, %s69
      %p75 = scmp.eq.s32.totalorder %s30, 0
      %p76 = por %p74, %p75
      %p77 = scmp.ne.s32.totalorder %s66, %s69
      %p78 = scmp.eq.s32.totalorder %s35, 1
      %p79 = por %p77, %p78
      %p80 = scmp.ne.s32.totalorder %s69, %s70
      %p81 = scmp.eq.s32.totalorder %s35, 0
      %p82 = por %p80, %p81
      %p83 = scmp.ne.s32.totalorder %s69, %s70
      %p84 = scmp.eq.s32.totalorder %s36, 1
      %p85 = por %p83, %p84
      %p87 = scmp.ne.s32.totalorder %s70, %s86
      %p88 = scmp.eq.s32.totalorder %s36, 0
      %p89 = por %p87, %p88
      %s91 = sadd.s32 %s90, 1
      %p94 = scmp.eq.s32.totalorder %s30, 1
      %p95 = scmp.ne.s32.totalorder %s90, %s92
      %p96 = scmp.eq.s32.totalorder %s30, 0
      %p97 = por %p95, %p96
      %p98 = scmp.ne.s32.totalorder %s90, %s92
      %p99 = scmp.eq.s32.totalorder %s35, 1
      %p100 = por %p98, %p99
      %p101 = scmp.ne.s32.totalorder %s92, %s93
      %p102 = scmp.eq.s32.totalorder %s35, 0
      %p103 = por %p101, %p102
      %p104 = scmp.ne.s32.totalorder %s92, %s93
      %p105 = scmp.eq.s32.totalorder %s36, 1
      %p106 = por %p104, %p105
      %p108 = scmp.ne.s32.totalorder %s93, %s107
      %p109 = scmp.eq.s32.totalorder %s36, 0
      %p110 = por %p108, %p109
      %s112 = sadd.s32 %s111, 1
      %p115 = scmp.eq.s32.totalorder %s30, 1
      %p116 = scmp.ne.s32.totalorder %s111, %s113
      %p117 = scmp.eq.s32.totalorder %s30, 0
      %p118 = por %p116, %p117
      %p119 = scmp.ne.s32.totalorder %s111, %s113
      %p120 = scmp.eq.s32.totalorder %s35, 1
      %p121 = por %p119, %p120
      %p122 = scmp.ne.s32.totalorder %s113, %s114
      %p123 = scmp.eq.s32.totalorder %s35, 0
      %p124 = por %p122, %p123
      %p125 = scmp.ne.s32.totalorder %s113, %s114
      %p126 = scmp.eq.s32.totalorder %s36, 1
      %p127 = por %p125, %p126
      %p129 = scmp.ne.s32.totalorder %s114, %s128
      %p130 = scmp.eq.s32.totalorder %s36, 0
      %p131 = por %p129, %p130
      %s133 = sadd.s32 %s132, 1
      %p136 = scmp.eq.s32.totalorder %s30, 1
      %p137 = scmp.ne.s32.totalorder %s132, %s134
      %p138 = scmp.eq.s32.totalorder %s30, 0
      %p139 = por %p137, %p138
      %p140 = scmp.ne.s32.totalorder %s132, %s134
      %p141 = scmp.eq.s32.totalorder %s35, 1
      %p142 = por %p140, %p141
      %p143 = scmp.ne.s32.totalorder %s134, %s135
      %p144 = scmp.eq.s32.totalorder %s35, 0
      %p145 = por %p143, %p144
      %p146 = scmp.ne.s32.totalorder %s134, %s135
      %p147 = scmp.eq.s32.totalorder %s36, 1
      %p148 = por %p146, %p147
      %p150 = scmp.ne.s32.totalorder %s135, %s149
      %p151 = scmp.eq.s32.totalorder %s36, 0
      %p152 = por %p150, %p151
      %s154 = sadd.s32 %s153, 1
      %p157 = scmp.eq.s32.totalorder %s30, 1
      %p158 = scmp.ne.s32.totalorder %s153, %s155
      %p159 = scmp.eq.s32.totalorder %s30, 0
      %p160 = por %p158, %p159
      %p161 = scmp.ne.s32.totalorder %s153, %s155
      %p162 = scmp.eq.s32.totalorder %s35, 1
      %p163 = por %p161, %p162
      %p164 = scmp.ne.s32.totalorder %s155, %s156
      %p165 = scmp.eq.s32.totalorder %s35, 0
      %p166 = por %p164, %p165
      %p167 = scmp.ne.s32.totalorder %s155, %s156
      %p168 = scmp.eq.s32.totalorder %s36, 1
      %p169 = por %p167, %p168
      %p171 = scmp.ne.s32.totalorder %s156, %s170
      %p172 = scmp.eq.s32.totalorder %s36, 0
      %p173 = por %p171, %p172
      %s175 = sadd.s32 %s174, 1
      %p178 = scmp.eq.s32.totalorder %s30, 1
      %p179 = scmp.ne.s32.totalorder %s174, %s176
      %p180 = scmp.eq.s32.totalorder %s30, 0
      %p181 = por %p179, %p180
      %p182 = scmp.ne.s32.totalorder %s174, %s176
      %p183 = scmp.eq.s32.totalorder %s35, 1
      %p184 = por %p182, %p183
      %p185 = scmp.ne.s32.totalorder %s176, %s177
      %p186 = scmp.eq.s32.totalorder %s35, 0
      %p187 = por %p185, %p186
      %p188 = scmp.ne.s32.totalorder %s176, %s177
      %p189 = scmp.eq.s32.totalorder %s36, 1
      %p190 = por %p188, %p189
      %p192 = scmp.ne.s32.totalorder %s177, %s191
      %p193 = scmp.eq.s32.totalorder %s36, 0
      %p194 = por %p192, %p193
      %s196 = sadd.s32 %s195, 1
      %p199 = scmp.eq.s32.totalorder %s30, 1
      %p200 = scmp.ne.s32.totalorder %s195, %s197
      %p201 = scmp.eq.s32.totalorder %s30, 0
      %p202 = por %p200, %p201
      %p203 = scmp.ne.s32.totalorder %s195, %s197
      %p204 = scmp.eq.s32.totalorder %s35, 1
      %p205 = por %p203, %p204
      %p206 = scmp.ne.s32.totalorder %s197, %s198
      %p207 = scmp.eq.s32.totalorder %s35, 0
      %p208 = por %p206, %p207
      %p209 = scmp.ne.s32.totalorder %s197, %s198
      %p210 = scmp.eq.s32.totalorder %s36, 1
      %p211 = por %p209, %p210
      %p213 = scmp.ne.s32.totalorder %s198, %s212
      %p214 = scmp.eq.s32.totalorder %s36, 0
      %p215 = por %p213, %p214
      %s217 = sadd.s32 %s216, 1
      %p220 = scmp.eq.s32.totalorder %s30, 1
      %p221 = scmp.ne.s32.totalorder %s216, %s218
      %p222 = scmp.eq.s32.totalorder %s30, 0
      %p223 = por %p221, %p222
      %p224 = scmp.ne.s32.totalorder %s216, %s218
      %p225 = scmp.eq.s32.totalorder %s35, 1
      %p226 = por %p224, %p225
      %p227 = scmp.ne.s32.totalorder %s218, %s219
      %p228 = scmp.eq.s32.totalorder %s35, 0
      %p229 = por %p227, %p228
      %p230 = scmp.ne.s32.totalorder %s218, %s219
      %p231 = scmp.eq.s32.totalorder %s36, 1
      %p232 = por %p230, %p231
      %p234 = scmp.ne.s32.totalorder %s219, %s233
      %p235 = scmp.eq.s32.totalorder %s36, 0
      %p236 = por %p234, %p235
      %s238 = sadd.s32 %s237, 1
      %p241 = scmp.eq.s32.totalorder %s30, 1
      %p242 = scmp.ne.s32.totalorder %s237, %s239
      %p243 = scmp.eq.s32.totalorder %s30, 0
      %p244 = por %p242, %p243
      %p245 = scmp.ne.s32.totalorder %s237, %s239
      %p246 = scmp.eq.s32.totalorder %s35, 1
      %p247 = por %p245, %p246
      %p248 = scmp.ne.s32.totalorder %s239, %s240
      %p249 = scmp.eq.s32.totalorder %s35, 0
      %p250 = por %p248, %p249
      %p251 = scmp.ne.s32.totalorder %s239, %s240
      %p252 = scmp.eq.s32.totalorder %s36, 1
      %p253 = por %p251, %p252
      %p255 = scmp.ne.s32.totalorder %s240, %s254
      %p256 = scmp.eq.s32.totalorder %s36, 0
      %p257 = por %p255, %p256
      %s259 = sadd.s32 %s258, 1
      %p262 = scmp.eq.s32.totalorder %s30, 1
      %p263 = scmp.ne.s32.totalorder %s258, %s260
      %p264 = scmp.eq.s32.totalorder %s30, 0
      %p265 = por %p263, %p264
      %p266 = scmp.ne.s32.totalorder %s258, %s260
      %p267 = scmp.eq.s32.totalorder %s35, 1
      %p268 = por %p266, %p267
      %p269 = scmp.ne.s32.totalorder %s260, %s261
      %p270 = scmp.eq.s32.totalorder %s35, 0
      %p271 = por %p269, %p270
      %p272 = scmp.ne.s32.totalorder %s260, %s261
      %p273 = scmp.eq.s32.totalorder %s36, 1
      %p274 = por %p272, %p273
      %p276 = scmp.ne.s32.totalorder %s261, %s275
      %p277 = scmp.eq.s32.totalorder %s36, 0
      %p278 = por %p276, %p277
      %s280 = sadd.s32 %s279, 1
      %p283 = scmp.eq.s32.totalorder %s30, 1
      %p284 = scmp.ne.s32.totalorder %s279, %s281
      %p285 = scmp.eq.s32.totalorder %s30, 0
      %p286 = por %p284, %p285
      %p287 = scmp.ne.s32.totalorder %s279, %s281
      %p288 = scmp.eq.s32.totalorder %s35, 1
      %p289 = por %p287, %p288
      %p290 = scmp.ne.s32.totalorder %s281, %s282
      %p291 = scmp.eq.s32.totalorder %s35, 0
      %p292 = por %p290, %p291
      %p293 = scmp.ne.s32.totalorder %s281, %s282
      %p294 = scmp.eq.s32.totalorder %s36, 1
      %p295 = por %p293, %p294
      %p297 = scmp.ne.s32.totalorder %s282, %s296
      %p298 = scmp.eq.s32.totalorder %s36, 0
      %p299 = por %p297, %p298
      %s301 = sadd.s32 %s300, 1
      %p304 = scmp.eq.s32.totalorder %s30, 1
      %p305 = scmp.ne.s32.totalorder %s300, %s302
      %p306 = scmp.eq.s32.totalorder %s30, 0
      %p307 = por %p305, %p306
      %p308 = scmp.ne.s32.totalorder %s300, %s302
      %p309 = scmp.eq.s32.totalorder %s35, 1
      %p310 = por %p308, %p309
      %p311 = scmp.ne.s32.totalorder %s302, %s303
      %p312 = scmp.eq.s32.totalorder %s35, 0
      %p313 = por %p311, %p312
      %p314 = scmp.ne.s32.totalorder %s302, %s303
      %p315 = scmp.eq.s32.totalorder %s36, 1
      %p316 = por %p314, %p315
      %p318 = scmp.ne.s32.totalorder %s303, %s317
      %p319 = scmp.eq.s32.totalorder %s36, 0
      %p320 = por %p318, %p319
      %s322 = sadd.s32 %s321, 1
      %p325 = scmp.eq.s32.totalorder %s30, 1
      %p326 = scmp.ne.s32.totalorder %s321, %s323
      %p327 = scmp.eq.s32.totalorder %s30, 0
      %p328 = por %p326, %p327
      %p329 = scmp.ne.s32.totalorder %s321, %s323
      %p330 = scmp.eq.s32.totalorder %s35, 1
      %p331 = por %p329, %p330
      %p332 = scmp.ne.s32.totalorder %s323, %s324
      %p333 = scmp.eq.s32.totalorder %s35, 0
      %p334 = por %p332, %p333
      %p335 = scmp.ne.s32.totalorder %s323, %s324
      %p336 = scmp.eq.s32.totalorder %s36, 1
      %p337 = por %p335, %p336
      %p339 = scmp.ne.s32.totalorder %s324, %s338
      %p340 = scmp.eq.s32.totalorder %s36, 0
      %p341 = por %p339, %p340
      %s342 = ssub.s32 %s30, %s37
      %p343 = scmp.eq.s32.totalorder %s342, 0
      %s345 = sadd.s32 %s344, 1
      %s346 = scalar_select %p343, %s344, %s345
      %p349 = pneg %p343
      %p350 = scmp.eq.s32.totalorder %s30, 1
      %p351 = por %p349, %p350
      %p352 = scmp.ne.s32.totalorder %s344, %s347
      %p353 = scmp.eq.s32.totalorder %s30, 0
      %p354 = por %p352, %p353
      %p355 = scmp.ne.s32.totalorder %s344, %s347
      %p356 = scmp.eq.s32.totalorder %s35, 1
      %p357 = por %p355, %p356
      %p358 = scmp.ne.s32.totalorder %s347, %s348
      %p359 = scmp.eq.s32.totalorder %s35, 0
      %p360 = por %p358, %p359
      %p361 = scmp.ne.s32.totalorder %s347, %s348
      %p362 = scmp.eq.s32.totalorder %s36, 1
      %p363 = por %p361, %p362
      %p365 = scmp.ne.s32.totalorder %s348, %s364
      %p366 = scmp.eq.s32.totalorder %s36, 0
      %p367 = por %p365, %p366
      %p368 = scmp.le.s32.totalorder 1, %s30
      %p369 = scmp.lt.s32.totalorder %s30, 3
      %p370 = pnand %p368, %p369
      %p371 = pneg %p370
      // Predicated region
      $region9: #{tpu_custom_call.1} parent=5 // pred_check
        _
      $region10: #{tpu_custom_call.1} parent=5 // pred_check_branch
        %373 = sbr.rel (%p370) target = $region12
      $region11: #{tpu_custom_call.1} parent=5 // pred_region
        %s374 = ssub.s32 %s30, 1
        // Predicated region
        $region13: #{tpu_custom_call.1} parent=11 // pred_check
          %p375 = pneg %p103
        $region14: #{tpu_custom_call.1} parent=11 // pred_check_branch
          %377 = sbr.rel (%p375) target = $region16
        $region15: #{tpu_custom_call.1} parent=11 // pred_region
          %s379 = ssub.s32 64, 64
          %380 = vsyncadd [#allocation8], %s379
          %s382 = sshll.u32 [#allocation7], 4
          %s383 = int_to_ptr.vmem [resolvable:$true] %s382
          %385 = dma.hbm_to_vmem [thread:$0]  %s2, 64, %s383, [#allocation8]
        $region16: #{tpu_custom_call.1} parent=11 // pred_fallthru
          _
        // Predicated region
        $region17: #{tpu_custom_call.1} parent=11 // pred_check
          %p386 = pneg %p124
        $region18: #{tpu_custom_call.1} parent=11 // pred_check_branch
          %388 = sbr.rel (%p386) target = $region20
        $region19: #{tpu_custom_call.1} parent=11 // pred_region
          _
        $region20: #{tpu_custom_call.1} parent=11 // pred_fallthru
          _
        // Predicated region
        $region21: #{tpu_custom_call.1} parent=11 // pred_check
          %p389 = pneg %p145
        $region22: #{tpu_custom_call.1} parent=11 // pred_check_branch
          %391 = sbr.rel (%p389) target = $region24
        $region23: #{tpu_custom_call.1} parent=11 // pred_region
          %s393 = ssub.s32 64, 64
          %394 = vsyncadd [#allocation8], %s393
          %s396 = sshll.u32 [#allocation9], 4
          %s397 = int_to_ptr.vmem [resolvable:$true] %s396
          %399 = dma.hbm_to_vmem [thread:$0]  %s4, 64, %s397, [#allocation8]
        $region24: #{tpu_custom_call.1} parent=11 // pred_fallthru
          _
        // Predicated region
        $region25: #{tpu_custom_call.1} parent=11 // pred_check
          %p400 = pneg %p166
        $region26: #{tpu_custom_call.1} parent=11 // pred_check_branch
          %402 = sbr.rel (%p400) target = $region28
        $region27: #{tpu_custom_call.1} parent=11 // pred_region
          _
        $region28: #{tpu_custom_call.1} parent=11 // pred_fallthru
          _
        // Predicated region
        $region29: #{tpu_custom_call.1} parent=11 // pred_check
          %p403 = pneg %p187
        $region30: #{tpu_custom_call.1} parent=11 // pred_check_branch
          %405 = sbr.rel (%p403) target = $region32
        $region31: #{tpu_custom_call.1} parent=11 // pred_region
          %s407 = ssub.s32 512, 512
          %408 = vsyncadd [#allocation11], %s407
          %s409 = sshll.u32 [#allocation10], 4
          %s410 = int_to_ptr.vmem [resolvable:$true] %s409
          %415 = dma.hbm_to_vmem [thread:$0]  %s6, 512, %s410, [#allocation11], 128, 128, 8
        $region32: #{tpu_custom_call.1} parent=11 // pred_fallthru
          _
        // Predicated region
        $region33: #{tpu_custom_call.1} parent=11 // pred_check
          %p416 = pneg %p208
        $region34: #{tpu_custom_call.1} parent=11 // pred_check_branch
          %418 = sbr.rel (%p416) target = $region36
        $region35: #{tpu_custom_call.1} parent=11 // pred_region
          _
        $region36: #{tpu_custom_call.1} parent=11 // pred_fallthru
          _
        // Predicated region
        $region37: #{tpu_custom_call.1} parent=11 // pred_check
          %p419 = pneg %p229
        $region38: #{tpu_custom_call.1} parent=11 // pred_check_branch
          %421 = sbr.rel (%p419) target = $region40
        $region39: #{tpu_custom_call.1} parent=11 // pred_region
          _
        $region40: #{tpu_custom_call.1} parent=11 // pred_fallthru
          _
        // Predicated region
        $region41: #{tpu_custom_call.1} parent=11 // pred_check
          %p422 = pneg %p250
        $region42: #{tpu_custom_call.1} parent=11 // pred_check_branch
          %424 = sbr.rel (%p422) target = $region44
        $region43: #{tpu_custom_call.1} parent=11 // pred_region
          _
        $region44: #{tpu_custom_call.1} parent=11 // pred_fallthru
          _
        // Predicated region
        $region45: #{tpu_custom_call.1} parent=11 // pred_check
          %p425 = pneg %p271
        $region46: #{tpu_custom_call.1} parent=11 // pred_check_branch
          %427 = sbr.rel (%p425) target = $region48
        $region47: #{tpu_custom_call.1} parent=11 // pred_region
          %s429 = ssub.s32 16, 16
          %430 = vsyncadd [#allocation6], %s429
          %s432 = sshll.u32 %s10, 4
          %s433 = int_to_ptr.vmem [resolvable:$true] %s432
          %435 = dma.vmem_to_smem %s433, 16, [#allocation12], [#allocation6]
        $region48: #{tpu_custom_call.1} parent=11 // pred_fallthru
          _
        // Predicated region
        $region49: #{tpu_custom_call.1} parent=11 // pred_check
          %p436 = pneg %p292
        $region50: #{tpu_custom_call.1} parent=11 // pred_check_branch
          %438 = sbr.rel (%p436) target = $region52
        $region51: #{tpu_custom_call.1} parent=11 // pred_region
          _
        $region52: #{tpu_custom_call.1} parent=11 // pred_fallthru
          _
        // Predicated region
        $region53: #{tpu_custom_call.1} parent=11 // pred_check
          %p439 = pneg %p313
        $region54: #{tpu_custom_call.1} parent=11 // pred_check_branch
          %441 = sbr.rel (%p439) target = $region56
        $region55: #{tpu_custom_call.1} parent=11 // pred_region
          _
        $region56: #{tpu_custom_call.1} parent=11 // pred_fallthru
          _
        // Predicated region
        $region57: #{tpu_custom_call.1} parent=11 // pred_check
          %p442 = pneg %p334
        $region58: #{tpu_custom_call.1} parent=11 // pred_check_branch
          %444 = sbr.rel (%p442) target = $region60
        $region59: #{tpu_custom_call.1} parent=11 // pred_region
          _
        $region60: #{tpu_custom_call.1} parent=11 // pred_fallthru
          _
      $region12: #{tpu_custom_call.1} parent=5 // pred_fallthru
        _
      %p445 = scmp.lt.s32.totalorder %s30, 2
      // Predicated region
      $region61: #{tpu_custom_call.1} parent=5 // pred_check
        %p446 = pneg %p445
      $region62: #{tpu_custom_call.1} parent=5 // pred_check_branch
        %448 = sbr.rel (%p446) target = $region64
      $region63: #{tpu_custom_call.1} parent=5 // pred_region
        // Predicated region
        $region65: #{tpu_custom_call.1} parent=63 // pred_check
          %p449 = pneg %p50
        $region66: #{tpu_custom_call.1} parent=63 // pred_check_branch
          %451 = sbr.rel (%p449) target = $region68
        $region67: #{tpu_custom_call.1} parent=63 // pred_region
          %s452 = sand.u32 %s40, 1
          %s453 = scalar_lea.sflag [#allocation4], %s452
          %s454 = sand.u32 %s40, 1
          %s455 = smul.addr %s454, 4
          %s456 = scalar_lea.vmem [#allocation3], %s455
          %s458 = ssub.s32 64, 64
          %459 = vsyncadd %s453, %s458
          %s460 = smul.addr %s30, 64
          %s461 = scalar_lea.hbm %s0, %s460
          %s463 = sshll.u32 %s456, 4
          %s464 = int_to_ptr.vmem [resolvable:$true] %s463
          %466 = dma.hbm_to_vmem [thread:$0]  %s461, 64, %s464, %s453
        $region68: #{tpu_custom_call.1} parent=63 // pred_fallthru
          _
        // Predicated region
        $region69: #{tpu_custom_call.1} parent=63 // pred_check
          %p467 = pneg %p76
        $region70: #{tpu_custom_call.1} parent=63 // pred_check_branch
          %469 = sbr.rel (%p467) target = $region72
        $region71: #{tpu_custom_call.1} parent=63 // pred_region
          %p470 = scmp.lt.s32.totalorder %s30, 1
          %s471 = scalar_select %p470, %s30, 1
          %s472 = smul.addr %s471, 2
          %s473 = smul.addr %s472, 4
          %s474 = scalar_lea.vmem %s1, %s473
        $region72: #{tpu_custom_call.1} parent=63 // pred_fallthru
          _
      $region64: #{tpu_custom_call.1} parent=5 // pred_fallthru
        _
      %p475 = scmp.le.s32.totalorder 1, %s30
      %p476 = scmp.lt.s32.totalorder %s30, 3
      %p477 = pnand %p475, %p476
      %p478 = pneg %p477
      // Predicated region
      $region73: #{tpu_custom_call.1} parent=5 // pred_check
        _
      $region74: #{tpu_custom_call.1} parent=5 // pred_check_branch
        %480 = sbr.rel (%p477) target = $region76
      $region75: #{tpu_custom_call.1} parent=5 // pred_region
        %s481 = ssub.s32 %s30, 1
        %s482 = sand.u32 %s43, 1
        %s483 = scalar_lea.sflag [#allocation4], %s482
        %s484 = sand.u32 %s43, 1
        %s485 = smul.addr %s484, 4
        %s486 = scalar_lea.vmem [#allocation3], %s485
        // Predicated region
        $region77: #{tpu_custom_call.1} parent=75 // pred_check
          %p487 = pneg %p56
        $region78: #{tpu_custom_call.1} parent=75 // pred_check_branch
          %489 = sbr.rel (%p487) target = $region80
        $region79: #{tpu_custom_call.1} parent=75 // pred_region
          %490 = dma.done %s483, 64
        $region80: #{tpu_custom_call.1} parent=75 // pred_fallthru
          _
        // Predicated region
        $region81: #{tpu_custom_call.1} parent=75 // pred_check
          %p491 = pneg %p103
        $region82: #{tpu_custom_call.1} parent=75 // pred_check_branch
          %493 = sbr.rel (%p491) target = $region84
        $region83: #{tpu_custom_call.1} parent=75 // pred_region
          %494 = dma.done [#allocation8], 64
        $region84: #{tpu_custom_call.1} parent=75 // pred_fallthru
          _
        // Predicated region
        $region85: #{tpu_custom_call.1} parent=75 // pred_check
          %p495 = pneg %p145
        $region86: #{tpu_custom_call.1} parent=75 // pred_check_branch
          %497 = sbr.rel (%p495) target = $region88
        $region87: #{tpu_custom_call.1} parent=75 // pred_region
          %498 = dma.done [#allocation8], 64
        $region88: #{tpu_custom_call.1} parent=75 // pred_fallthru
          _
        // Predicated region
        $region89: #{tpu_custom_call.1} parent=75 // pred_check
          %p499 = pneg %p187
        $region90: #{tpu_custom_call.1} parent=75 // pred_check_branch
          %501 = sbr.rel (%p499) target = $region92
        $region91: #{tpu_custom_call.1} parent=75 // pred_region
          %502 = dma.done [#allocation11], 512
        $region92: #{tpu_custom_call.1} parent=75 // pred_fallthru
          _
        // Predicated region
        $region93: #{tpu_custom_call.1} parent=75 // pred_check
          %p503 = pneg %p271
        $region94: #{tpu_custom_call.1} parent=75 // pred_check_branch
          %505 = sbr.rel (%p503) target = $region96
        $region95: #{tpu_custom_call.1} parent=75 // pred_region
          %506 = dma.done [#allocation6], 16
        $region96: #{tpu_custom_call.1} parent=75 // pred_fallthru
          _
        %507 = sfence
        %s508 = sand.u32 %s43, 1
        %s509 = scalar_lea.sflag [#allocation4], %s508
        %s510 = sand.u32 %s43, 1
        %s511 = smul.addr %s510, 4
        %s512 = scalar_lea.vmem [#allocation3], %s511
        %p513 = pneg %p56
        %p514 = pneg %p53
        %p515 = scmp.lt.s32.totalorder %s35, 1
        %s516 = scalar_select %p515, %s35, 1
        %s517 = smul.addr %s516, 2
        %s518 = smul.addr %s517, 4
        %s519 = scalar_lea.vmem %s1, %s518
        %p520 = pneg %p82
        %p521 = pneg %p79
        %p522 = pneg %p103
        %p523 = pneg %p100
        %p524 = pneg %p124
        %p525 = pneg %p121
        %p526 = pneg %p145
        %p527 = pneg %p142
        %p528 = pneg %p166
        %p529 = pneg %p163
        %p530 = pneg %p187
        %p531 = pneg %p184
        %p532 = pneg %p208
        %p533 = pneg %p205
        %p534 = pneg %p229
        %p535 = pneg %p226
        %p536 = pneg %p250
        %p537 = pneg %p247
        %p538 = pneg %p271
        %p539 = pneg %p268
        %p540 = pneg %p292
        %p541 = pneg %p289
        %p542 = pneg %p313
        %p543 = pneg %p310
        %p544 = pneg %p334
        %p545 = pneg %p331
        %p546 = pneg %p360
        %p547 = pneg %p357
        %s548 = sand.u32 %s347, 1
        %s549 = scalar_lea.sflag [#allocation5], %s548
        %s550 = sand.u32 %s347, 1
        %s551 = smul.addr %s550, 64
        %s552 = scalar_lea.vmem [#allocation13], %s551
        %p553 = scmp.lt.s32.totalorder %s35, 1
        %s554 = scalar_select %p553, %s35, 1
        %s555 = smul.addr %s554, 2
        %s556 = smul.addr %s555, 4
        %s557 = scalar_lea.vmem %s1, %s556
        %v558 = vld [vmem:[#allocation7] ss:$2 sm:$0x3]
        %s559 = scalar_lea.vmem [#allocation7], 1
        %v560 = vld [vmem:[%s559] ss:$2 sm:$0x3]
        %v561 = vld [vmem:[%s486] sm:$0xf]
        %v562 = vld [vmem:[%s3] sm:$0xff]
        %v563 = vld [vmem:[%s3 + $0x8] sm:$0xff]
        %v564 = vld [vmem:[%s3 + $0x10] sm:$0xff]
        %v565 = vld [vmem:[%s3 + $0x18] sm:$0xff]
        %v566 = vld [vmem:[%s3 + $0x20] sm:$0xff]
        %v567 = vld [vmem:[%s3 + $0x28] sm:$0xff]
        %v568 = vld [vmem:[%s3 + $0x30] sm:$0xff]
        %v569 = vld [vmem:[%s3 + $0x38] sm:$0xff]
        %v570 = vld [vmem:[%s3 + $0x40] sm:$0xff]
        %v571 = vld [vmem:[%s3 + $0x48] sm:$0xff]
        %v572 = vld [vmem:[%s3 + $0x50] sm:$0xff]
        %v573 = vld [vmem:[%s3 + $0x58] sm:$0xff]
        %v574 = vld [vmem:[%s3 + $0x60] sm:$0xff]
        %v575 = vld [vmem:[%s3 + $0x68] sm:$0xff]
        %v576 = vld [vmem:[%s3 + $0x70] sm:$0xff]
        %v577 = vld [vmem:[%s3 + $0x78] sm:$0xff]
        %vm578 = vcmask 523264
        %v580 = vsel %vm578, %v561, 0
        %582 = vmatprep.subr.mxu0 0.0
        %583 = vmatpush1.msra.mxu0 0.0
        %584 = vmatprep.subr.mxu0 0.0
        %585 = vmatpush1.msra.mxu0 0.0
        %586 = vmatprep.subr.mxu0 0.0
        %587 = vmatpush1.msra.mxu0 0.0
        %588 = vmatprep.subr.mxu0 0.0
        %589 = vmatpush1.msra.mxu0 0.0
        %590 = vmatprep.subr.mxu0 0.0
        %591 = vmatpush1.msra.mxu0 0.0
        %592 = vmatprep.subr.mxu0 0.0
        %593 = vmatpush1.msra.mxu0 0.0
        %594 = vmatprep.subr.mxu0 0.0
        %595 = vmatpush1.msra.mxu0 0.0
        %596 = vmatprep.subr.mxu0 0.0
        %597 = vmatpush1.msra.mxu0 0.0
        %598 = vmatprep.subr.mxu0 %v577
        %599 = vmatpush1.msra.mxu0 %v576
        %600 = vmatprep.subr.mxu0 %v575
        %601 = vmatpush1.msra.mxu0 %v574
        %602 = vmatprep.subr.mxu0 %v573
        %603 = vmatpush1.msra.mxu0 %v572
        %604 = vmatprep.subr.mxu0 %v571
        %605 = vmatpush1.msra.mxu0 %v570
        %606 = vmatprep.subr.mxu0 %v569
        %607 = vmatpush1.msra.mxu0 %v568
        %608 = vmatprep.subr.mxu0 %v567
        %609 = vmatpush1.msra.mxu0 %v566
        %610 = vmatprep.subr.mxu0 %v565
        %611 = vmatpush1.msra.mxu0 %v564
        %612 = vmatprep.subr.mxu0 %v563
        %613 = vmatpush1.msra.mxu0 %v562
        %614 = vmatprep.subr.mxu0 0.0
        %615 = vmatpush2.msra.mxu0 0.0
        %616 = vmatprep.subr.mxu0 0.0
        %617 = vmatpush2.msra.mxu0 0.0
        %618 = vmatprep.subr.mxu0 0.0
        %619 = vmatpush2.msra.mxu0 0.0
        %620 = vmatprep.subr.mxu0 0.0
        %621 = vmatpush2.msra.mxu0 0.0
        %622 = vmatprep.subr.mxu0 0.0
        %623 = vmatpush2.msra.mxu0 0.0
        %624 = vmatprep.subr.mxu0 0.0
        %625 = vmatpush2.msra.mxu0 0.0
        %626 = vmatprep.subr.mxu0 0.0
        %627 = vmatpush2.msra.mxu0 0.0
        %628 = vmatprep.subr.mxu0 0.0
        %629 = vmatpush2.msra.mxu0 0.0
        %630 = vmatprep.subr.mxu0 0.0
        %631 = vmatpush2.msra.mxu0 0.0
        %632 = vmatprep.subr.mxu0 0.0
        %633 = vmatpush2.msra.mxu0 0.0
        %634 = vmatprep.subr.mxu0 0.0
        %635 = vmatpush2.msra.mxu0 0.0
        %636 = vmatprep.subr.mxu0 0.0
        %637 = vmatpush2.msra.mxu0 0.0
        %638 = vmatprep.subr.mxu0 0.0
        %639 = vmatpush2.msra.mxu0 0.0
        %640 = vmatprep.subr.mxu0 0.0
        %641 = vmatpush2.msra.mxu0 0.0
        %642 = vmatprep.subr.mxu0 0.0
        %643 = vmatpush2.msra.mxu0 0.0
        %644 = vmatprep.subr.mxu0 0.0
        %645 = vmatpush2.msra.mxu0 0.0
        %646 = vmatprep.mubr.f32.mxu0 0.0
        %647 = vmatmul.mubr.f32.gmra.mxu0 %v580
        %v648 = vpop.f32.mrf.mxu0
        %v649 = vadd.f32 0.0, %v648
        %v650 = vpop.f32.mrf.mxu0
        %v651 = vadd.f32 0.0, %v650
        %652 = vdwg.mxu0
        %v653 = vld [vmem:[%s557] sm:$0xff]
        %v655 = vcombine.high %v653, %v653
        %v659 = vrot.slane %v649, 4
        %v660 = vrot.slane %v651, 4
        %vm663 = vcmask 1043456
        %v664 = vsel %vm663, %v653, %v659
        %v665 = vsel %vm663, %v655, %v660
        %666 = vrot.lane.b32.xlu0 %v664, 17
        %v667 = vpop.permute.xlu0 %666
        %668 = vrot.lane.b32.xlu0 %v665, 17
        %v669 = vpop.permute.xlu0 %668
        %v670 = vlaneseq
        %v671 = vand.u32 %v670, 127
        %vm672 = vcmp.lt.s32.totalorder %v671, 17
        %v673 = vsel %vm672, %v667, %v669
        %v674 = vsel %vm672, %v669, %v667
        %v675 = vadd.s32 %v558, 4294967295
        %vm676 = vcmp.ge.s32.totalorder %v675, 0
        %vm677 = vcmp.lt.s32.totalorder %v675, 16
        %vm678 = vmand %vm676, %vm677
        %v679 = vadd.s32 %v560, 4294967295
        %vm680 = vcmp.ge.s32.totalorder %v679, 0
        %vm681 = vmand %vm678, %vm680
        %vm682 = vcmp.lt.s32.totalorder %v679, 16
        %vm683 = vmand %vm681, %vm682
        %v684 = vsel %vm683, 1, 0
        %v685 = vlaneseq
        %v686 = vshrl.u32 %v685, 7
        %v687 = vsub.s32 0, %v686
        %v688 = vrot.slane %v684, %v687
        %v689 = vlaneseq
        %v690 = vshrl.u32 %v689, 7
        %v691 = vsub.s32 1, %v690
        %v692 = vrot.slane %v684, %v691
        %vm693 = vcmp.eq.s32.totalorder %v688, 1
        %vm694 = vcmp.eq.s32.totalorder %v692, 1
        %v695 = vsel %vm693, %v674, 0.0
        %v696 = vsel %vm694, %v673, 0.0
        %697 = vrot.lane.b32.xlu0 %v664, 16
        %v698 = vpop.permute.xlu0 %697
        %699 = vrot.lane.b32.xlu0 %v665, 16
        %v700 = vpop.permute.xlu0 %699
        %vm701 = vcmp.lt.s32.totalorder %v671, 16
        %v702 = vsel %vm701, %v698, %v700
        %v703 = vsel %vm701, %v700, %v698
        %vm704 = vcmp.ge.s32.totalorder %v560, 0
        %vm705 = vmand %vm678, %vm704
        %vm706 = vcmp.lt.s32.totalorder %v560, 16
        %vm707 = vmand %vm705, %vm706
        %v708 = vsel %vm707, 1, 0
        %v709 = vlaneseq
        %v710 = vshrl.u32 %v709, 7
        %v711 = vsub.s32 0, %v710
        %v712 = vrot.slane %v708, %v711
        %v713 = vlaneseq
        %v714 = vshrl.u32 %v713, 7
        %v715 = vsub.s32 1, %v714
        %v716 = vrot.slane %v708, %v715
        %vm717 = vcmp.eq.s32.totalorder %v712, 1
        %vm718 = vcmp.eq.s32.totalorder %v716, 1
        %v719 = vsel %vm717, %v703, 0.0
        %v720 = vsel %vm718, %v702, 0.0
        %721 = vrot.lane.b32.xlu0 %v664, 15
        %v722 = vpop.permute.xlu0 %721
        %723 = vrot.lane.b32.xlu0 %v665, 15
        %v724 = vpop.permute.xlu0 %723
        %vm725 = vcmp.lt.s32.totalorder %v671, 15
        %v726 = vsel %vm725, %v722, %v724
        %v727 = vsel %vm725, %v724, %v722
        %v728 = vadd.s32 %v560, 1
        %vm729 = vcmp.ge.s32.totalorder %v728, 0
        %vm730 = vmand %vm678, %vm729
        %vm731 = vcmp.lt.s32.totalorder %v728, 16
        %vm732 = vmand %vm730, %vm731
        %v733 = vsel %vm732, 1, 0
        %v734 = vlaneseq
        %v735 = vshrl.u32 %v734, 7
        %v736 = vsub.s32 0, %v735
        %v737 = vrot.slane %v733, %v736
        %v738 = vlaneseq
        %v739 = vshrl.u32 %v738, 7
        %v740 = vsub.s32 1, %v739
        %v741 = vrot.slane %v733, %v740
        %vm742 = vcmp.eq.s32.totalorder %v737, 1
        %vm743 = vcmp.eq.s32.totalorder %v741, 1
        %v744 = vsel %vm742, %v727, 0.0
        %v745 = vsel %vm743, %v726, 0.0
        %746 = vrot.lane.b32.xlu0 %v664, 1
        %v747 = vpop.permute.xlu0 %746
        %748 = vrot.lane.b32.xlu0 %v665, 1
        %v749 = vpop.permute.xlu0 %748
        %vm750 = vcmp.lt.s32.totalorder %v671, 1
        %v751 = vsel %vm750, %v747, %v749
        %v752 = vsel %vm750, %v749, %v747
        %vm753 = vcmp.ge.s32.totalorder %v558, 0
        %vm754 = vcmp.lt.s32.totalorder %v558, 16
        %vm755 = vmand %vm753, %vm754
        %vm756 = vmand %vm755, %vm680
        %vm757 = vmand %vm756, %vm682
        %v758 = vsel %vm757, 1, 0
        %v759 = vlaneseq
        %v760 = vshrl.u32 %v759, 7
        %v761 = vsub.s32 0, %v760
        %v762 = vrot.slane %v758, %v761
        %v763 = vlaneseq
        %v764 = vshrl.u32 %v763, 7
        %v765 = vsub.s32 1, %v764
        %v766 = vrot.slane %v758, %v765
        %vm767 = vcmp.eq.s32.totalorder %v762, 1
        %vm768 = vcmp.eq.s32.totalorder %v766, 1
        %v769 = vsel %vm767, %v752, 0.0
        %v770 = vsel %vm768, %v751, 0.0
        %771 = vrot.lane.b32.xlu0 %v664, 127
        %v772 = vpop.permute.xlu0 %771
        %773 = vrot.lane.b32.xlu0 %v665, 127
        %v774 = vpop.permute.xlu0 %773
        %vm775 = vcmp.lt.s32.totalorder %v671, 127
        %v776 = vsel %vm775, %v772, %v774
        %v777 = vsel %vm775, %v774, %v772
        %vm778 = vmand %vm755, %vm729
        %vm779 = vmand %vm778, %vm731
        %v780 = vsel %vm779, 1, 0
        %v781 = vlaneseq
        %v782 = vshrl.u32 %v781, 7
        %v783 = vsub.s32 0, %v782
        %v784 = vrot.slane %v780, %v783
        %v785 = vlaneseq
        %v786 = vshrl.u32 %v785, 7
        %v787 = vsub.s32 1, %v786
        %v788 = vrot.slane %v780, %v787
        %vm789 = vcmp.eq.s32.totalorder %v784, 1
        %vm790 = vcmp.eq.s32.totalorder %v788, 1
        %v791 = vsel %vm789, %v776, 0.0
        %v792 = vsel %vm790, %v777, 0.0
        %793 = vrot.lane.b32.xlu0 %v664, 113
        %v794 = vpop.permute.xlu0 %793
        %795 = vrot.lane.b32.xlu0 %v665, 113
        %v796 = vpop.permute.xlu0 %795
        %vm797 = vcmp.lt.s32.totalorder %v671, 113
        %v798 = vsel %vm797, %v794, %v796
        %v799 = vsel %vm797, %v796, %v794
        %v800 = vadd.s32 %v558, 1
        %vm801 = vcmp.ge.s32.totalorder %v800, 0
        %vm802 = vcmp.lt.s32.totalorder %v800, 16
        %vm803 = vmand %vm801, %vm802
        %vm804 = vmand %vm803, %vm680
        %vm805 = vmand %vm804, %vm682
        %v806 = vsel %vm805, 1, 0
        %v807 = vlaneseq
        %v808 = vshrl.u32 %v807, 7
        %v809 = vsub.s32 0, %v808
        %v810 = vrot.slane %v806, %v809
        %v811 = vlaneseq
        %v812 = vshrl.u32 %v811, 7
        %v813 = vsub.s32 1, %v812
        %v814 = vrot.slane %v806, %v813
        %vm815 = vcmp.eq.s32.totalorder %v810, 1
        %vm816 = vcmp.eq.s32.totalorder %v814, 1
        %v817 = vsel %vm815, %v798, 0.0
        %v818 = vsel %vm816, %v799, 0.0
        %819 = vrot.lane.b32.xlu0 %v664, 112
        %v820 = vpop.permute.xlu0 %819
        %821 = vrot.lane.b32.xlu0 %v665, 112
        %v822 = vpop.permute.xlu0 %821
        %vm823 = vcmp.lt.s32.totalorder %v671, 112
        %v824 = vsel %vm823, %v820, %v822
        %v825 = vsel %vm823, %v822, %v820
        %vm826 = vmand %vm803, %vm704
        %vm827 = vmand %vm826, %vm706
        %v828 = vsel %vm827, 1, 0
        %v829 = vlaneseq
        %v830 = vshrl.u32 %v829, 7
        %v831 = vsub.s32 0, %v830
        %v832 = vrot.slane %v828, %v831
        %v833 = vlaneseq
        %v834 = vshrl.u32 %v833, 7
        %v835 = vsub.s32 1, %v834
        %v836 = vrot.slane %v828, %v835
        %vm837 = vcmp.eq.s32.totalorder %v832, 1
        %vm838 = vcmp.eq.s32.totalorder %v836, 1
        %v839 = vsel %vm837, %v824, 0.0
        %v840 = vsel %vm838, %v825, 0.0
        %841 = vrot.lane.b32.xlu0 %v664, 111
        %v842 = vpop.permute.xlu0 %841
        %843 = vrot.lane.b32.xlu0 %v665, 111
        %v844 = vpop.permute.xlu0 %843
        %vm845 = vcmp.lt.s32.totalorder %v671, 111
        %v846 = vsel %vm845, %v842, %v844
        %v847 = vsel %vm845, %v844, %v842
        %vm848 = vmand %vm803, %vm729
        %vm849 = vmand %vm848, %vm731
        %v850 = vsel %vm849, 1, 0
        %v851 = vlaneseq
        %v852 = vshrl.u32 %v851, 7
        %v853 = vsub.s32 0, %v852
        %v854 = vrot.slane %v850, %v853
        %v855 = vlaneseq
        %v856 = vshrl.u32 %v855, 7
        %v857 = vsub.s32 1, %v856
        %v858 = vrot.slane %v850, %v857
        %vm859 = vcmp.eq.s32.totalorder %v854, 1
        %vm860 = vcmp.eq.s32.totalorder %v858, 1
        %v861 = vsel %vm859, %v846, 0.0
        %v862 = vsel %vm860, %v847, 0.0
        %v863 = vld [vmem:[#allocation9] sm:$0xf]
        %v864 = vld [vmem:[%s5] sm:$0xf]
        %866 = vset.pattern.permute.xlu0 0
        %867 = vperm.xlu0 %866, %v864
        %v868 = vpop.permute.xlu0 %867
        %vm870 = vcmask 588800
        %v872 = vsel %vm870, %v863, 0
        %874 = vmatprep.subr.mxu0 0.0
        %875 = vmatpush1.msra.mxu0 0.0
        %876 = vmatprep.subr.mxu0 0.0
        %877 = vmatpush1.msra.mxu0 0.0
        %878 = vmatprep.subr.mxu0 0.0
        %879 = vmatpush1.msra.mxu0 0.0
        %880 = vmatprep.subr.mxu0 0.0
        %881 = vmatpush1.msra.mxu0 0.0
        %882 = vmatprep.subr.mxu0 0.0
        %883 = vmatpush1.msra.mxu0 0.0
        %884 = vmatprep.subr.mxu0 0.0
        %885 = vmatpush1.msra.mxu0 0.0
        %886 = vmatprep.subr.mxu0 0.0
        %887 = vmatpush1.msra.mxu0 0.0
        %888 = vmatprep.subr.mxu0 %v862
        %889 = vmatpush1.msra.mxu0 %v861
        %890 = vmatprep.subr.mxu0 %v840
        %891 = vmatpush1.msra.mxu0 %v839
        %892 = vmatprep.subr.mxu0 %v818
        %893 = vmatpush1.msra.mxu0 %v817
        %894 = vmatprep.subr.mxu0 %v792
        %895 = vmatpush1.msra.mxu0 %v791
        %896 = vmatprep.subr.mxu0 %v665
        %897 = vmatpush1.msra.mxu0 %v664
        %898 = vmatprep.subr.mxu0 %v770
        %899 = vmatpush1.msra.mxu0 %v769
        %900 = vmatprep.subr.mxu0 %v745
        %901 = vmatpush1.msra.mxu0 %v744
        %902 = vmatprep.subr.mxu0 %v720
        %903 = vmatpush1.msra.mxu0 %v719
        %904 = vmatprep.subr.mxu0 %v696
        %905 = vmatpush1.msra.mxu0 %v695
        %906 = vmatprep.subr.mxu0 0.0
        %907 = vmatpush2.msra.mxu0 0.0
        %908 = vmatprep.subr.mxu0 0.0
        %909 = vmatpush2.msra.mxu0 0.0
        %910 = vmatprep.subr.mxu0 0.0
        %911 = vmatpush2.msra.mxu0 0.0
        %912 = vmatprep.subr.mxu0 0.0
        %913 = vmatpush2.msra.mxu0 0.0
        %914 = vmatprep.subr.mxu0 0.0
        %915 = vmatpush2.msra.mxu0 0.0
        %916 = vmatprep.subr.mxu0 0.0
        %917 = vmatpush2.msra.mxu0 0.0
        %918 = vmatprep.subr.mxu0 0.0
        %919 = vmatpush2.msra.mxu0 0.0
        %920 = vmatprep.subr.mxu0 0.0
        %921 = vmatpush2.msra.mxu0 0.0
        %922 = vmatprep.subr.mxu0 0.0
        %923 = vmatpush2.msra.mxu0 0.0
        %924 = vmatprep.subr.mxu0 0.0
        %925 = vmatpush2.msra.mxu0 0.0
        %926 = vmatprep.subr.mxu0 0.0
        %927 = vmatpush2.msra.mxu0 0.0
        %928 = vmatprep.subr.mxu0 0.0
        %929 = vmatpush2.msra.mxu0 0.0
        %930 = vmatprep.subr.mxu0 0.0
        %931 = vmatpush2.msra.mxu0 0.0
        %932 = vmatprep.subr.mxu0 0.0
        %933 = vmatpush2.msra.mxu0 0.0
        %934 = vmatprep.subr.mxu0 0.0
        %935 = vmatpush2.msra.mxu0 0.0
        %936 = vmatprep.subr.mxu0 0.0
        %937 = vmatpush2.msra.mxu0 0.0
        %938 = vmatprep.mubr.f32.mxu0 0.0
        %939 = vmatmul.mubr.f32.gmra.mxu0 %v872
        %v940 = vpop.f32.mrf.mxu0
        %v941 = vadd.f32 %v868, %v940
        %v942 = vpop.f32.mrf.mxu0
        %v943 = vadd.f32 %v868, %v942
        %944 = vdwg.mxu0
        %v945 = vmax.f32 %v941, 0.0
        %v946 = vmax.f32 %v943, 0.0
        %947 = vrot.lane.b32.xlu0 %v945, 17
        %v948 = vpop.permute.xlu0 %947
        %949 = vrot.lane.b32.xlu0 %v946, 17
        %v950 = vpop.permute.xlu0 %949
        %v951 = vsel %vm672, %v948, %v950
        %v952 = vsel %vm672, %v950, %v948
        %v953 = vsel %vm693, %v952, 0.0
        %v954 = vsel %vm694, %v951, 0.0
        %955 = vrot.lane.b32.xlu0 %v945, 16
        %v956 = vpop.permute.xlu0 %955
        %957 = vrot.lane.b32.xlu0 %v946, 16
        %v958 = vpop.permute.xlu0 %957
        %v959 = vsel %vm701, %v956, %v958
        %v960 = vsel %vm701, %v958, %v956
        %v961 = vsel %vm717, %v960, 0.0
        %v962 = vsel %vm718, %v959, 0.0
        %963 = vrot.lane.b32.xlu0 %v945, 15
        %v964 = vpop.permute.xlu0 %963
        %965 = vrot.lane.b32.xlu0 %v946, 15
        %v966 = vpop.permute.xlu0 %965
        %v967 = vsel %vm725, %v964, %v966
        %v968 = vsel %vm725, %v966, %v964
        %v969 = vsel %vm742, %v968, 0.0
        %v970 = vsel %vm743, %v967, 0.0
        %971 = vrot.lane.b32.xlu0 %v945, 1
        %v972 = vpop.permute.xlu0 %971
        %973 = vrot.lane.b32.xlu0 %v946, 1
        %v974 = vpop.permute.xlu0 %973
        %v975 = vsel %vm750, %v972, %v974
        %v976 = vsel %vm750, %v974, %v972
        %v977 = vsel %vm767, %v976, 0.0
        %v978 = vsel %vm768, %v975, 0.0
        %979 = vrot.lane.b32.xlu0 %v945, 127
        %v980 = vpop.permute.xlu0 %979
        %981 = vrot.lane.b32.xlu0 %v946, 127
        %v982 = vpop.permute.xlu0 %981
        %v983 = vsel %vm775, %v980, %v982
        %v984 = vsel %vm775, %v982, %v980
        %v985 = vsel %vm789, %v983, 0.0
        %v986 = vsel %vm790, %v984, 0.0
        %987 = vrot.lane.b32.xlu0 %v945, 113
        %v988 = vpop.permute.xlu0 %987
        %989 = vrot.lane.b32.xlu0 %v946, 113
        %v990 = vpop.permute.xlu0 %989
        %v991 = vsel %vm797, %v988, %v990
        %v992 = vsel %vm797, %v990, %v988
        %v993 = vsel %vm815, %v991, 0.0
        %v994 = vsel %vm816, %v992, 0.0
        %995 = vrot.lane.b32.xlu0 %v945, 112
        %v996 = vpop.permute.xlu0 %995
        %997 = vrot.lane.b32.xlu0 %v946, 112
        %v998 = vpop.permute.xlu0 %997
        %v999 = vsel %vm823, %v996, %v998
        %v1000 = vsel %vm823, %v998, %v996
        %v1001 = vsel %vm837, %v999, 0.0
        %v1002 = vsel %vm838, %v1000, 0.0
        %1003 = vrot.lane.b32.xlu0 %v945, 111
        %v1004 = vpop.permute.xlu0 %1003
        %1005 = vrot.lane.b32.xlu0 %v946, 111
        %v1006 = vpop.permute.xlu0 %1005
        %v1007 = vsel %vm845, %v1004, %v1006
        %v1008 = vsel %vm845, %v1006, %v1004
        %v1009 = vsel %vm859, %v1007, 0.0
        %v1010 = vsel %vm860, %v1008, 0.0
        %v1013 = vrot.slane %v961, 4
        %v1014 = vrot.slane %v962, 4
        %v1019 = vrot.slane %v977, 4
        %v1020 = vrot.slane %v978, 4
        %v1025 = vrot.slane %v985, 4
        %v1026 = vrot.slane %v986, 4
        %v1031 = vrot.slane %v1001, 4
        %v1032 = vrot.slane %v1002, 4
        %v1035 = vsel %vm663, %v953, %v1013
        %v1036 = vsel %vm663, %v954, %v1014
        %v1037 = vsel %vm663, %v969, %v1019
        %v1038 = vsel %vm663, %v970, %v1020
        %v1039 = vsel %vm663, %v945, %v1025
        %v1040 = vsel %vm663, %v946, %v1026
        %v1041 = vsel %vm663, %v993, %v1031
        %v1042 = vsel %vm663, %v994, %v1032
        %v1043 = vld [vmem:[#allocation10] sm:$0xff]
        %v1044 = vld [vmem:[#allocation10 + $0x8] sm:$0xff]
        %v1045 = vld [vmem:[#allocation10 + $0x10] sm:$0xff]
        %v1046 = vld [vmem:[#allocation10 + $0x18] sm:$0xff]
        %v1047 = vld [vmem:[%s7] sm:$0xff]
        %v1048 = vld [vmem:[%s7 + $0x8] sm:$0xff]
        %v1049 = vld [vmem:[%s7 + $0x10] sm:$0xff]
        %v1050 = vld [vmem:[%s7 + $0x18] sm:$0xff]
        %1052 = vset.pattern.permute.xlu0 0
        %1053 = vperm.xlu0 %1052, %v1047
        %v1054 = vpop.permute.xlu0 %1053
        %1057 = vset.pattern.permute.xlu0 0
        %1058 = vperm.xlu0 %1057, %v1048
        %v1059 = vpop.permute.xlu0 %1058
        %1062 = vset.pattern.permute.xlu0 0
        %1063 = vperm.xlu0 %1062, %v1049
        %v1064 = vpop.permute.xlu0 %1063
        %1067 = vset.pattern.permute.xlu0 0
        %1068 = vperm.xlu0 %1067, %v1050
        %v1069 = vpop.permute.xlu0 %1068
        %vm1071 = vcmask 293888
        %v1073 = vsel %vm1071, %v1043, 0
        %v1076 = vsel %vm1071, %v1044, 0
        %v1079 = vsel %vm1071, %v1045, 0
        %v1082 = vsel %vm1071, %v1046, 0
        %v1085 = vsel %vm663, %v1009, 0
        %v1088 = vsel %vm663, %v1010, 0
        %1090 = vmatprep.subr.mxu0 0.0
        %1091 = vmatpush1.msra.mxu0 0.0
        %1092 = vmatprep.subr.mxu0 0.0
        %1093 = vmatpush1.msra.mxu0 0.0
        %1094 = vmatprep.subr.mxu0 0.0
        %1095 = vmatpush1.msra.mxu0 0.0
        %1096 = vmatprep.subr.mxu0 0.0
        %1097 = vmatpush1.msra.mxu0 0.0
        %1098 = vmatprep.subr.mxu0 0.0
        %1099 = vmatpush1.msra.mxu0 0.0
        %1100 = vmatprep.subr.mxu0 0.0
        %1101 = vmatpush1.msra.mxu0 0.0
        %1102 = vmatprep.subr.mxu0 0.0
        %1103 = vmatpush1.msra.mxu0 0.0
        %1104 = vmatprep.subr.mxu0 0.0
        %1105 = vmatpush1.msra.mxu0 0.0
        %1106 = vmatprep.subr.mxu0 0.0
        %1107 = vmatpush1.msra.mxu0 0.0
        %1108 = vmatprep.subr.mxu0 0.0
        %1109 = vmatpush1.msra.mxu0 0.0
        %1110 = vmatprep.subr.mxu0 0.0
        %1111 = vmatpush1.msra.mxu0 0.0
        %1112 = vmatprep.subr.mxu0 %v1088
        %1113 = vmatpush1.msra.mxu0 %v1085
        %1114 = vmatprep.subr.mxu0 %v1042
        %1115 = vmatpush1.msra.mxu0 %v1041
        %1116 = vmatprep.subr.mxu0 %v1040
        %1117 = vmatpush1.msra.mxu0 %v1039
        %1118 = vmatprep.subr.mxu0 %v1038
        %1119 = vmatpush1.msra.mxu0 %v1037
        %1120 = vmatprep.subr.mxu0 %v1036
        %1121 = vmatpush1.msra.mxu0 %v1035
        %1122 = vmatprep.subr.mxu0 0.0
        %1123 = vmatpush2.msra.mxu0 0.0
        %1124 = vmatprep.subr.mxu0 0.0
        %1125 = vmatpush2.msra.mxu0 0.0
        %1126 = vmatprep.subr.mxu0 0.0
        %1127 = vmatpush2.msra.mxu0 0.0
        %1128 = vmatprep.subr.mxu0 0.0
        %1129 = vmatpush2.msra.mxu0 0.0
        %1130 = vmatprep.subr.mxu0 0.0
        %1131 = vmatpush2.msra.mxu0 0.0
        %1132 = vmatprep.subr.mxu0 0.0
        %1133 = vmatpush2.msra.mxu0 0.0
        %1134 = vmatprep.subr.mxu0 0.0
        %1135 = vmatpush2.msra.mxu0 0.0
        %1136 = vmatprep.subr.mxu0 0.0
        %1137 = vmatpush2.msra.mxu0 0.0
        %1138 = vmatprep.subr.mxu0 0.0
        %1139 = vmatpush2.msra.mxu0 0.0
        %1140 = vmatprep.subr.mxu0 0.0
        %1141 = vmatpush2.msra.mxu0 0.0
        %1142 = vmatprep.subr.mxu0 0.0
        %1143 = vmatpush2.msra.mxu0 0.0
        %1144 = vmatprep.subr.mxu0 0.0
        %1145 = vmatpush2.msra.mxu0 0.0
        %1146 = vmatprep.subr.mxu0 0.0
        %1147 = vmatpush2.msra.mxu0 0.0
        %1148 = vmatprep.subr.mxu0 0.0
        %1149 = vmatpush2.msra.mxu0 0.0
        %1150 = vmatprep.subr.mxu0 0.0
        %1151 = vmatpush2.msra.mxu0 0.0
        %1152 = vmatprep.subr.mxu0 0.0
        %1153 = vmatpush2.msra.mxu0 0.0
        %1154 = vmatprep.mubr.f32.mxu0 0.0
        %1155 = vmatmul.mubr.f32.gmra.mxu0 %v1073
        %v1156 = vpop.f32.mrf.mxu0
        %v1157 = vadd.f32 %v1054, %v1156
        %v1158 = vpop.f32.mrf.mxu0
        %v1159 = vadd.f32 %v1054, %v1158
        %1160 = vmatprep.mubr.f32.mxu0 0.0
        %1161 = vmatmul.mubr.f32.gmra.mxu0 %v1076
        %v1162 = vpop.f32.mrf.mxu0
        %v1163 = vadd.f32 %v1059, %v1162
        %v1164 = vpop.f32.mrf.mxu0
        %v1165 = vadd.f32 %v1059, %v1164
        %1166 = vmatprep.mubr.f32.mxu0 0.0
        %1167 = vmatmul.mubr.f32.gmra.mxu0 %v1079
        %v1168 = vpop.f32.mrf.mxu0
        %v1169 = vadd.f32 %v1064, %v1168
        %v1170 = vpop.f32.mrf.mxu0
        %v1171 = vadd.f32 %v1064, %v1170
        %1172 = vmatprep.mubr.f32.mxu0 0.0
        %1173 = vmatmul.mubr.f32.gmra.mxu0 %v1082
        %v1174 = vpop.f32.mrf.mxu0
        %v1175 = vadd.f32 %v1069, %v1174
        %v1176 = vpop.f32.mrf.mxu0
        %v1177 = vadd.f32 %v1069, %v1176
        %1178 = vdwg.mxu0
        %v1179 = vmax.f32 %v1157, %v1159
        %1180 = vmax.xlane.f32.xlu0 %v1179
        %v1181 = vpop.xlane.xlu0 %1180
        %v1182 = vmax.f32 %v1163, %v1165
        %1183 = vmax.xlane.f32.xlu0 %v1182
        %v1184 = vpop.xlane.xlu0 %1183
        %v1185 = vmax.f32 %v1169, %v1171
        %1186 = vmax.xlane.f32.xlu0 %v1185
        %v1187 = vpop.xlane.xlu0 %1186
        %v1188 = vmax.f32 %v1175, %v1177
        %1189 = vmax.xlane.f32.xlu0 %v1188
        %v1190 = vpop.xlane.xlu0 %1189
        %v1191 = vadd.f32 %v1157, %v1159
        %1192 = vadd.xlane.f32.xlu0 %v1191
        %v1193 = vpop.xlane.xlu0 %1192
        %v1194 = vadd.f32 %v1163, %v1165
        %1195 = vadd.xlane.f32.xlu0 %v1194
        %v1196 = vpop.xlane.xlu0 %1195
        %v1197 = vadd.f32 %v1169, %v1171
        %1198 = vadd.xlane.f32.xlu0 %v1197
        %v1199 = vpop.xlane.xlu0 %1198
        %v1200 = vadd.f32 %v1175, %v1177
        %1201 = vadd.xlane.f32.xlu0 %v1200
        %v1202 = vpop.xlane.xlu0 %1201
        %v1203 = vrcp.pop 256.0
        %v1204 = vmul.f32 %v1193, %v1203
        %v1205 = vmul.f32 %v1196, %v1203
        %v1206 = vmul.f32 %v1199, %v1203
        %v1207 = vmul.f32 %v1202, %v1203
        %vm1208 = vcmask 7168
        %v1209 = vsel %vm1208, %v1181, %v1204
        %v1210 = vsel %vm1208, %v1184, %v1205
        %v1211 = vsel %vm1208, %v1187, %v1206
        %v1212 = vsel %vm1208, %v1190, %v1207
        %v1213 = vld [vmem:[%s8] sm:$0x3]
        %vm1214 = vcmask 261120
        %v1216 = vsel %vm1214, %v1213, 0
        %1218 = vmatprep.subr.mxu0 0.0
        %1219 = vmatpush1.msra.mxu0 0.0
        %1220 = vmatprep.subr.mxu0 0.0
        %1221 = vmatpush1.msra.mxu0 0.0
        %1222 = vmatprep.subr.mxu0 0.0
        %1223 = vmatpush1.msra.mxu0 0.0
        %1224 = vmatprep.subr.mxu0 0.0
        %1225 = vmatpush1.msra.mxu0 0.0
        %1226 = vmatprep.subr.mxu0 0.0
        %1227 = vmatpush1.msra.mxu0 0.0
        %1228 = vmatprep.subr.mxu0 0.0
        %1229 = vmatpush1.msra.mxu0 0.0
        %1230 = vmatprep.subr.mxu0 0.0
        %1231 = vmatpush1.msra.mxu0 0.0
        %1232 = vmatprep.subr.mxu0 0.0
        %1233 = vmatpush1.msra.mxu0 0.0
        %1234 = vmatprep.subr.mxu0 0.0
        %1235 = vmatpush1.msra.mxu0 0.0
        %1236 = vmatprep.subr.mxu0 0.0
        %1237 = vmatpush1.msra.mxu0 0.0
        %1238 = vmatprep.subr.mxu0 0.0
        %1239 = vmatpush1.msra.mxu0 0.0
        %1240 = vmatprep.subr.mxu0 0.0
        %1241 = vmatpush1.msra.mxu0 0.0
        %1242 = vmatprep.subr.mxu0 0.0
        %1243 = vmatpush1.msra.mxu0 %v1212
        %1244 = vmatprep.subr.mxu0 0.0
        %1245 = vmatpush1.msra.mxu0 %v1211
        %1246 = vmatprep.subr.mxu0 0.0
        %1247 = vmatpush1.msra.mxu0 %v1210
        %1248 = vmatprep.subr.mxu0 0.0
        %1249 = vmatpush1.msra.mxu0 %v1209
        %1250 = vmatprep.subr.mxu0 0.0
        %1251 = vmatpush2.msra.mxu0 0.0
        %1252 = vmatprep.subr.mxu0 0.0
        %1253 = vmatpush2.msra.mxu0 0.0
        %1254 = vmatprep.subr.mxu0 0.0
        %1255 = vmatpush2.msra.mxu0 0.0
        %1256 = vmatprep.subr.mxu0 0.0
        %1257 = vmatpush2.msra.mxu0 0.0
        %1258 = vmatprep.subr.mxu0 0.0
        %1259 = vmatpush2.msra.mxu0 0.0
        %1260 = vmatprep.subr.mxu0 0.0
        %1261 = vmatpush2.msra.mxu0 0.0
        %1262 = vmatprep.subr.mxu0 0.0
        %1263 = vmatpush2.msra.mxu0 0.0
        %1264 = vmatprep.subr.mxu0 0.0
        %1265 = vmatpush2.msra.mxu0 0.0
        %1266 = vmatprep.subr.mxu0 0.0
        %1267 = vmatpush2.msra.mxu0 0.0
        %1268 = vmatprep.subr.mxu0 0.0
        %1269 = vmatpush2.msra.mxu0 0.0
        %1270 = vmatprep.subr.mxu0 0.0
        %1271 = vmatpush2.msra.mxu0 0.0
        %1272 = vmatprep.subr.mxu0 0.0
        %1273 = vmatpush2.msra.mxu0 0.0
        %1274 = vmatprep.subr.mxu0 0.0
        %1275 = vmatpush2.msra.mxu0 0.0
        %1276 = vmatprep.subr.mxu0 0.0
        %1277 = vmatpush2.msra.mxu0 0.0
        %1278 = vmatprep.subr.mxu0 0.0
        %1279 = vmatpush2.msra.mxu0 0.0
        %1280 = vmatprep.subr.mxu0 0.0
        %1281 = vmatpush2.msra.mxu0 0.0
        %1282 = vmatprep.mubr.f32.mxu0 0.0
        %1283 = vmatmul.mubr.f32.gmra.mxu0 %v1216
        %v1284 = vpop.f32.mrf.mxu0
        %v1285 = vadd.f32 0.0, %v1284
        %v1286 = vpop.f32.mrf.mxu0
        %1287 = vdwg.mxu0
        %v1288 = vmax.f32 %v1285, 0.0
        %v1289 = vld [vmem:[%s9] sm:$0xff]
        %v1290 = vld [vmem:[%s9 + $0x8] sm:$0xff]
        %v1291 = vld [vmem:[%s9 + $0x10] sm:$0xff]
        %v1292 = vld [vmem:[%s9 + $0x18] sm:$0xff]
        %vm1293 = vcmask 15360
        %v1295 = vsel %vm1293, %v1289, 0
        %v1298 = vsel %vm1293, %v1290, 0
        %v1301 = vsel %vm1293, %v1291, 0
        %v1304 = vsel %vm1293, %v1292, 0
        %vm1306 = vcmask 1041408
        %v1308 = vsel %vm1306, %v1288, 0
        %1310 = vmatprep.subr.mxu0 0.0
        %1311 = vmatpush1.msra.mxu0 0.0
        %1312 = vmatprep.subr.mxu0 0.0
        %1313 = vmatpush1.msra.mxu0 0.0
        %1314 = vmatprep.subr.mxu0 0.0
        %1315 = vmatpush1.msra.mxu0 0.0
        %1316 = vmatprep.subr.mxu0 0.0
        %1317 = vmatpush1.msra.mxu0 0.0
        %1318 = vmatprep.subr.mxu0 0.0
        %1319 = vmatpush1.msra.mxu0 0.0
        %1320 = vmatprep.subr.mxu0 0.0
        %1321 = vmatpush1.msra.mxu0 0.0
        %1322 = vmatprep.subr.mxu0 0.0
        %1323 = vmatpush1.msra.mxu0 0.0
        %1324 = vmatprep.subr.mxu0 0.0
        %1325 = vmatpush1.msra.mxu0 0.0
        %1326 = vmatprep.subr.mxu0 0.0
        %1327 = vmatpush1.msra.mxu0 0.0
        %1328 = vmatprep.subr.mxu0 0.0
        %1329 = vmatpush1.msra.mxu0 0.0
        %1330 = vmatprep.subr.mxu0 0.0
        %1331 = vmatpush1.msra.mxu0 0.0
        %1332 = vmatprep.subr.mxu0 0.0
        %1333 = vmatpush1.msra.mxu0 0.0
        %1334 = vmatprep.subr.mxu0 0.0
        %1335 = vmatpush1.msra.mxu0 0.0
        %1336 = vmatprep.subr.mxu0 0.0
        %1337 = vmatpush1.msra.mxu0 0.0
        %1338 = vmatprep.subr.mxu0 0.0
        %1339 = vmatpush1.msra.mxu0 0.0
        %1340 = vmatprep.subr.mxu0 0.0
        %1341 = vmatpush1.msra.mxu0 %v1308
        %1342 = vmatprep.subr.mxu0 0.0
        %1343 = vmatpush2.msra.mxu0 0.0
        %1344 = vmatprep.subr.mxu0 0.0
        %1345 = vmatpush2.msra.mxu0 0.0
        %1346 = vmatprep.subr.mxu0 0.0
        %1347 = vmatpush2.msra.mxu0 0.0
        %1348 = vmatprep.subr.mxu0 0.0
        %1349 = vmatpush2.msra.mxu0 0.0
        %1350 = vmatprep.subr.mxu0 0.0
        %1351 = vmatpush2.msra.mxu0 0.0
        %1352 = vmatprep.subr.mxu0 0.0
        %1353 = vmatpush2.msra.mxu0 0.0
        %1354 = vmatprep.subr.mxu0 0.0
        %1355 = vmatpush2.msra.mxu0 0.0
        %1356 = vmatprep.subr.mxu0 0.0
        %1357 = vmatpush2.msra.mxu0 0.0
        %1358 = vmatprep.subr.mxu0 0.0
        %1359 = vmatpush2.msra.mxu0 0.0
        %1360 = vmatprep.subr.mxu0 0.0
        %1361 = vmatpush2.msra.mxu0 0.0
        %1362 = vmatprep.subr.mxu0 0.0
        %1363 = vmatpush2.msra.mxu0 0.0
        %1364 = vmatprep.subr.mxu0 0.0
        %1365 = vmatpush2.msra.mxu0 0.0
        %1366 = vmatprep.subr.mxu0 0.0
        %1367 = vmatpush2.msra.mxu0 0.0
        %1368 = vmatprep.subr.mxu0 0.0
        %1369 = vmatpush2.msra.mxu0 0.0
        %1370 = vmatprep.subr.mxu0 0.0
        %1371 = vmatpush2.msra.mxu0 0.0
        %1372 = vmatprep.subr.mxu0 0.0
        %1373 = vmatpush2.msra.mxu0 0.0
        %1374 = vmatprep.mubr.f32.mxu0 0.0
        %1375 = vmatmul.mubr.f32.gmra.mxu0 %v1295
        %v1376 = vpop.f32.mrf.mxu0
        %v1377 = vadd.f32 0.0, %v1376
        %v1378 = vpop.f32.mrf.mxu0
        %1379 = vmatprep.mubr.f32.mxu0 0.0
        %1380 = vmatmul.mubr.f32.gmra.mxu0 %v1298
        %v1381 = vpop.f32.mrf.mxu0
        %v1382 = vadd.f32 0.0, %v1381
        %v1383 = vpop.f32.mrf.mxu0
        %1384 = vmatprep.mubr.f32.mxu0 0.0
        %1385 = vmatmul.mubr.f32.gmra.mxu0 %v1301
        %v1386 = vpop.f32.mrf.mxu0
        %v1387 = vadd.f32 0.0, %v1386
        %v1388 = vpop.f32.mrf.mxu0
        %1389 = vmatprep.mubr.f32.mxu0 0.0
        %1390 = vmatmul.mubr.f32.gmra.mxu0 %v1304
        %v1391 = vpop.f32.mrf.mxu0
        %v1392 = vadd.f32 0.0, %v1391
        %v1393 = vpop.f32.mrf.mxu0
        %1394 = vdwg.mxu0
        %1399 = vrot.lane.b32.xlu0 %v1377, 127
        %v1400 = vpop.permute.xlu0 %1399
        %1401 = vrot.lane.b32.xlu0 %v1382, 127
        %v1402 = vpop.permute.xlu0 %1401
        %1403 = vrot.lane.b32.xlu0 %v1387, 127
        %v1404 = vpop.permute.xlu0 %1403
        %1405 = vrot.lane.b32.xlu0 %v1392, 127
        %v1406 = vpop.permute.xlu0 %1405
        %v1411 = vadd.f32 %v1377, %v1400
        %v1412 = vadd.f32 %v1382, %v1402
        %v1413 = vadd.f32 %v1387, %v1404
        %v1414 = vadd.f32 %v1392, %v1406
        %v1415 = vxor.u32 %v1411, 2147483648
        %v1416 = vxor.u32 %v1412, 2147483648
        %v1417 = vxor.u32 %v1413, 2147483648
        %v1418 = vxor.u32 %v1414, 2147483648
        %v1419 = vmul.f32 %v1415, 1.442695
        %v1420 = vpow.pop %v1419
        %v1421 = vmul.f32 %v1416, 1.442695
        %v1422 = vpow.pop %v1421
        %v1423 = vmul.f32 %v1417, 1.442695
        %v1424 = vpow.pop %v1423
        %v1425 = vmul.f32 %v1418, 1.442695
        %v1426 = vpow.pop %v1425
        %v1427 = vadd.f32 %v1420, 1.0
        %v1428 = vadd.f32 %v1422, 1.0
        %v1429 = vadd.f32 %v1424, 1.0
        %v1430 = vadd.f32 %v1426, 1.0
        %v1431 = vrcp.pop %v1427
        %v1432 = vmul.f32 1.0, %v1431
        %v1433 = vrcp.pop %v1428
        %v1434 = vmul.f32 1.0, %v1433
        %v1435 = vrcp.pop %v1429
        %v1436 = vmul.f32 1.0, %v1435
        %v1437 = vrcp.pop %v1430
        %v1438 = vmul.f32 1.0, %v1437
        %1440 = vset.pattern.permute.xlu0 0
        %1441 = vperm.xlu0 %1440, %v1432
        %v1442 = vpop.permute.xlu0 %1441
        %1445 = vset.pattern.permute.xlu0 0
        %1446 = vperm.xlu0 %1445, %v1434
        %v1447 = vpop.permute.xlu0 %1446
        %1450 = vset.pattern.permute.xlu0 0
        %1451 = vperm.xlu0 %1450, %v1436
        %v1452 = vpop.permute.xlu0 %1451
        %1455 = vset.pattern.permute.xlu0 0
        %1456 = vperm.xlu0 %1455, %v1438
        %v1457 = vpop.permute.xlu0 %1456
        %v1459 = vmul.f32 %v1157, %v1442
        %v1460 = vmul.f32 %v1159, %v1442
        %v1461 = vmul.f32 %v1163, %v1447
        %v1462 = vmul.f32 %v1165, %v1447
        %v1463 = vmul.f32 %v1169, %v1452
        %v1464 = vmul.f32 %v1171, %v1452
        %v1465 = vmul.f32 %v1175, %v1457
        %v1466 = vmul.f32 %v1177, %v1457
        %v1467 = vmax.f32 %v1459, %v1463
        %v1468 = vmax.f32 %v1461, %v1465
        %v1469 = vmax.f32 %v1467, %v1468
        %v1470 = vrot.slane %v1469, 4
        %v1471 = vmax.f32 %v1469, %v1470
        %v1472 = vrot.slane %v1471, 2
        %v1473 = vmax.f32 %v1471, %v1472
        %v1474 = vrot.slane %v1473, 1
        %v1475 = vmax.f32 %v1473, %v1474
        %v1476 = vmax.f32 %v1460, %v1464
        %v1477 = vmax.f32 %v1462, %v1466
        %v1478 = vmax.f32 %v1476, %v1477
        %v1479 = vrot.slane %v1478, 4
        %v1480 = vmax.f32 %v1478, %v1479
        %v1481 = vrot.slane %v1480, 2
        %v1482 = vmax.f32 %v1480, %v1481
        %v1483 = vrot.slane %v1482, 1
        %v1484 = vmax.f32 %v1482, %v1483
        %v1485 = vadd.f32 %v1459, %v1461
        %v1486 = vadd.f32 %v1485, %v1463
        %v1487 = vadd.f32 %v1486, %v1465
        %v1488 = vrot.slane %v1487, 4
        %v1489 = vadd.f32 %v1487, %v1488
        %v1490 = vrot.slane %v1489, 2
        %v1491 = vadd.f32 %v1489, %v1490
        %v1492 = vrot.slane %v1491, 1
        %v1493 = vadd.f32 %v1491, %v1492
        %v1494 = vadd.f32 %v1460, %v1462
        %v1495 = vadd.f32 %v1494, %v1464
        %v1496 = vadd.f32 %v1495, %v1466
        %v1497 = vrot.slane %v1496, 4
        %v1498 = vadd.f32 %v1496, %v1497
        %v1499 = vrot.slane %v1498, 2
        %v1500 = vadd.f32 %v1498, %v1499
        %v1501 = vrot.slane %v1500, 1
        %v1502 = vadd.f32 %v1500, %v1501
        %v1503 = vrcp.pop 32.0
        %v1504 = vmul.f32 %v1493, %v1503
        %v1505 = vmul.f32 %v1502, %v1503
        %vm1506 = vcmask 1040384
        %v1507 = vsel %vm1506, %v1475, %v1504
        %v1508 = vsel %vm1506, %v1484, %v1505
        %1509 = vrot.lane.b32.xlu0 %v1507, 51
        %v1510 = vpop.permute.xlu0 %1509
        %1511 = vrot.lane.b32.xlu0 %v1508, 51
        %v1512 = vpop.permute.xlu0 %1511
        %vm1513 = vcmp.lt.s32.totalorder %v671, 51
        %v1514 = vsel %vm1513, %v1510, %v1512
        %v1515 = vsel %vm1513, %v1512, %v1510
        %v1516 = vadd.s32 %v558, 4294967293
        %vm1517 = vcmp.ge.s32.totalorder %v1516, 0
        %vm1518 = vcmp.lt.s32.totalorder %v1516, 16
        %vm1519 = vmand %vm1517, %vm1518
        %v1520 = vadd.s32 %v560, 4294967293
        %vm1521 = vcmp.ge.s32.totalorder %v1520, 0
        %vm1522 = vmand %vm1519, %vm1521
        %vm1523 = vcmp.lt.s32.totalorder %v1520, 16
        %vm1524 = vmand %vm1522, %vm1523
        %v1525 = vsel %vm1524, 1, 0
        %v1526 = vlaneseq
        %v1527 = vshrl.u32 %v1526, 7
        %v1528 = vsub.s32 0, %v1527
        %v1529 = vrot.slane %v1525, %v1528
        %v1530 = vlaneseq
        %v1531 = vshrl.u32 %v1530, 7
        %v1532 = vsub.s32 1, %v1531
        %v1533 = vrot.slane %v1525, %v1532
        %vm1534 = vcmp.eq.s32.totalorder %v1529, 1
        %vm1535 = vcmp.eq.s32.totalorder %v1533, 1
        %v1536 = vsel %vm1534, %v1515, 0.0
        %v1537 = vsel %vm1535, %v1514, 0.0
        %1538 = vrot.lane.b32.xlu0 %v1507, 50
        %v1539 = vpop.permute.xlu0 %1538
        %1540 = vrot.lane.b32.xlu0 %v1508, 50
        %v1541 = vpop.permute.xlu0 %1540
        %vm1542 = vcmp.lt.s32.totalorder %v671, 50
        %v1543 = vsel %vm1542, %v1539, %v1541
        %v1544 = vsel %vm1542, %v1541, %v1539
        %v1545 = vadd.s32 %v560, 4294967294
        %vm1546 = vcmp.ge.s32.totalorder %v1545, 0
        %vm1547 = vmand %vm1519, %vm1546
        %vm1548 = vcmp.lt.s32.totalorder %v1545, 16
        %vm1549 = vmand %vm1547, %vm1548
        %v1550 = vsel %vm1549, 1, 0
        %v1551 = vlaneseq
        %v1552 = vshrl.u32 %v1551, 7
        %v1553 = vsub.s32 0, %v1552
        %v1554 = vrot.slane %v1550, %v1553
        %v1555 = vlaneseq
        %v1556 = vshrl.u32 %v1555, 7
        %v1557 = vsub.s32 1, %v1556
        %v1558 = vrot.slane %v1550, %v1557
        %vm1559 = vcmp.eq.s32.totalorder %v1554, 1
        %vm1560 = vcmp.eq.s32.totalorder %v1558, 1
        %v1561 = vsel %vm1559, %v1544, 0.0
        %v1562 = vsel %vm1560, %v1543, 0.0
        %1563 = vrot.lane.b32.xlu0 %v1507, 49
        %v1564 = vpop.permute.xlu0 %1563
        %1565 = vrot.lane.b32.xlu0 %v1508, 49
        %v1566 = vpop.permute.xlu0 %1565
        %vm1567 = vcmp.lt.s32.totalorder %v671, 49
        %v1568 = vsel %vm1567, %v1564, %v1566
        %v1569 = vsel %vm1567, %v1566, %v1564
        %vm1570 = vmand %vm1519, %vm680
        %vm1571 = vmand %vm1570, %vm682
        %v1572 = vsel %vm1571, 1, 0
        %v1573 = vlaneseq
        %v1574 = vshrl.u32 %v1573, 7
        %v1575 = vsub.s32 0, %v1574
        %v1576 = vrot.slane %v1572, %v1575
        %v1577 = vlaneseq
        %v1578 = vshrl.u32 %v1577, 7
        %v1579 = vsub.s32 1, %v1578
        %v1580 = vrot.slane %v1572, %v1579
        %vm1581 = vcmp.eq.s32.totalorder %v1576, 1
        %vm1582 = vcmp.eq.s32.totalorder %v1580, 1
        %v1583 = vsel %vm1581, %v1569, 0.0
        %v1584 = vsel %vm1582, %v1568, 0.0
        %1585 = vrot.lane.b32.xlu0 %v1507, 48
        %v1586 = vpop.permute.xlu0 %1585
        %1587 = vrot.lane.b32.xlu0 %v1508, 48
        %v1588 = vpop.permute.xlu0 %1587
        %vm1589 = vcmp.lt.s32.totalorder %v671, 48
        %v1590 = vsel %vm1589, %v1586, %v1588
        %v1591 = vsel %vm1589, %v1588, %v1586
        %vm1592 = vmand %vm1519, %vm704
        %vm1593 = vmand %vm1592, %vm706
        %v1594 = vsel %vm1593, 1, 0
        %v1595 = vlaneseq
        %v1596 = vshrl.u32 %v1595, 7
        %v1597 = vsub.s32 0, %v1596
        %v1598 = vrot.slane %v1594, %v1597
        %v1599 = vlaneseq
        %v1600 = vshrl.u32 %v1599, 7
        %v1601 = vsub.s32 1, %v1600
        %v1602 = vrot.slane %v1594, %v1601
        %vm1603 = vcmp.eq.s32.totalorder %v1598, 1
        %vm1604 = vcmp.eq.s32.totalorder %v1602, 1
        %v1605 = vsel %vm1603, %v1591, 0.0
        %v1606 = vsel %vm1604, %v1590, 0.0
        %1607 = vrot.lane.b32.xlu0 %v1507, 47
        %v1608 = vpop.permute.xlu0 %1607
        %1609 = vrot.lane.b32.xlu0 %v1508, 47
        %v1610 = vpop.permute.xlu0 %1609
        %vm1611 = vcmp.lt.s32.totalorder %v671, 47
        %v1612 = vsel %vm1611, %v1608, %v1610
        %v1613 = vsel %vm1611, %v1610, %v1608
        %vm1614 = vmand %vm1519, %vm729
        %vm1615 = vmand %vm1614, %vm731
        %v1616 = vsel %vm1615, 1, 0
        %v1617 = vlaneseq
        %v1618 = vshrl.u32 %v1617, 7
        %v1619 = vsub.s32 0, %v1618
        %v1620 = vrot.slane %v1616, %v1619
        %v1621 = vlaneseq
        %v1622 = vshrl.u32 %v1621, 7
        %v1623 = vsub.s32 1, %v1622
        %v1624 = vrot.slane %v1616, %v1623
        %vm1625 = vcmp.eq.s32.totalorder %v1620, 1
        %vm1626 = vcmp.eq.s32.totalorder %v1624, 1
        %v1627 = vsel %vm1625, %v1613, 0.0
        %v1628 = vsel %vm1626, %v1612, 0.0
        %1629 = vrot.lane.b32.xlu0 %v1507, 46
        %v1630 = vpop.permute.xlu0 %1629
        %1631 = vrot.lane.b32.xlu0 %v1508, 46
        %v1632 = vpop.permute.xlu0 %1631
        %vm1633 = vcmp.lt.s32.totalorder %v671, 46
        %v1634 = vsel %vm1633, %v1630, %v1632
        %v1635 = vsel %vm1633, %v1632, %v1630
        %v1636 = vadd.s32 %v560, 2
        %vm1637 = vcmp.ge.s32.totalorder %v1636, 0
        %vm1638 = vmand %vm1519, %vm1637
        %vm1639 = vcmp.lt.s32.totalorder %v1636, 16
        %vm1640 = vmand %vm1638, %vm1639
        %v1641 = vsel %vm1640, 1, 0
        %v1642 = vlaneseq
        %v1643 = vshrl.u32 %v1642, 7
        %v1644 = vsub.s32 0, %v1643
        %v1645 = vrot.slane %v1641, %v1644
        %v1646 = vlaneseq
        %v1647 = vshrl.u32 %v1646, 7
        %v1648 = vsub.s32 1, %v1647
        %v1649 = vrot.slane %v1641, %v1648
        %vm1650 = vcmp.eq.s32.totalorder %v1645, 1
        %vm1651 = vcmp.eq.s32.totalorder %v1649, 1
        %v1652 = vsel %vm1650, %v1635, 0.0
        %v1653 = vsel %vm1651, %v1634, 0.0
        %1654 = vrot.lane.b32.xlu0 %v1507, 45
        %v1655 = vpop.permute.xlu0 %1654
        %1656 = vrot.lane.b32.xlu0 %v1508, 45
        %v1657 = vpop.permute.xlu0 %1656
        %vm1658 = vcmp.lt.s32.totalorder %v671, 45
        %v1659 = vsel %vm1658, %v1655, %v1657
        %v1660 = vsel %vm1658, %v1657, %v1655
        %v1661 = vadd.s32 %v560, 3
        %vm1662 = vcmp.ge.s32.totalorder %v1661, 0
        %vm1663 = vmand %vm1519, %vm1662
        %vm1664 = vcmp.lt.s32.totalorder %v1661, 16
        %vm1665 = vmand %vm1663, %vm1664
        %v1666 = vsel %vm1665, 1, 0
        %v1667 = vlaneseq
        %v1668 = vshrl.u32 %v1667, 7
        %v1669 = vsub.s32 0, %v1668
        %v1670 = vrot.slane %v1666, %v1669
        %v1671 = vlaneseq
        %v1672 = vshrl.u32 %v1671, 7
        %v1673 = vsub.s32 1, %v1672
        %v1674 = vrot.slane %v1666, %v1673
        %vm1675 = vcmp.eq.s32.totalorder %v1670, 1
        %vm1676 = vcmp.eq.s32.totalorder %v1674, 1
        %v1677 = vsel %vm1675, %v1660, 0.0
        %v1678 = vsel %vm1676, %v1659, 0.0
        %1679 = vrot.lane.b32.xlu0 %v1507, 35
        %v1680 = vpop.permute.xlu0 %1679
        %1681 = vrot.lane.b32.xlu0 %v1508, 35
        %v1682 = vpop.permute.xlu0 %1681
        %vm1683 = vcmp.lt.s32.totalorder %v671, 35
        %v1684 = vsel %vm1683, %v1680, %v1682
        %v1685 = vsel %vm1683, %v1682, %v1680
        %v1686 = vadd.s32 %v558, 4294967294
        %vm1687 = vcmp.ge.s32.totalorder %v1686, 0
        %vm1688 = vcmp.lt.s32.totalorder %v1686, 16
        %vm1689 = vmand %vm1687, %vm1688
        %vm1690 = vmand %vm1689, %vm1521
        %vm1691 = vmand %vm1690, %vm1523
        %v1692 = vsel %vm1691, 1, 0
        %v1693 = vlaneseq
        %v1694 = vshrl.u32 %v1693, 7
        %v1695 = vsub.s32 0, %v1694
        %v1696 = vrot.slane %v1692, %v1695
        %v1697 = vlaneseq
        %v1698 = vshrl.u32 %v1697, 7
        %v1699 = vsub.s32 1, %v1698
        %v1700 = vrot.slane %v1692, %v1699
        %vm1701 = vcmp.eq.s32.totalorder %v1696, 1
        %vm1702 = vcmp.eq.s32.totalorder %v1700, 1
        %v1703 = vsel %vm1701, %v1685, 0.0
        %v1704 = vsel %vm1702, %v1684, 0.0
        %1705 = vrot.lane.b32.xlu0 %v1507, 34
        %v1706 = vpop.permute.xlu0 %1705
        %1707 = vrot.lane.b32.xlu0 %v1508, 34
        %v1708 = vpop.permute.xlu0 %1707
        %vm1709 = vcmp.lt.s32.totalorder %v671, 34
        %v1710 = vsel %vm1709, %v1706, %v1708
        %v1711 = vsel %vm1709, %v1708, %v1706
        %vm1712 = vmand %vm1689, %vm1546
        %vm1713 = vmand %vm1712, %vm1548
        %v1714 = vsel %vm1713, 1, 0
        %v1715 = vlaneseq
        %v1716 = vshrl.u32 %v1715, 7
        %v1717 = vsub.s32 0, %v1716
        %v1718 = vrot.slane %v1714, %v1717
        %v1719 = vlaneseq
        %v1720 = vshrl.u32 %v1719, 7
        %v1721 = vsub.s32 1, %v1720
        %v1722 = vrot.slane %v1714, %v1721
        %vm1723 = vcmp.eq.s32.totalorder %v1718, 1
        %vm1724 = vcmp.eq.s32.totalorder %v1722, 1
        %v1725 = vsel %vm1723, %v1711, 0.0
        %v1726 = vsel %vm1724, %v1710, 0.0
        %1727 = vrot.lane.b32.xlu0 %v1507, 33
        %v1728 = vpop.permute.xlu0 %1727
        %1729 = vrot.lane.b32.xlu0 %v1508, 33
        %v1730 = vpop.permute.xlu0 %1729
        %vm1731 = vcmp.lt.s32.totalorder %v671, 33
        %v1732 = vsel %vm1731, %v1728, %v1730
        %v1733 = vsel %vm1731, %v1730, %v1728
        %vm1734 = vmand %vm1689, %vm680
        %vm1735 = vmand %vm1734, %vm682
        %v1736 = vsel %vm1735, 1, 0
        %v1737 = vlaneseq
        %v1738 = vshrl.u32 %v1737, 7
        %v1739 = vsub.s32 0, %v1738
        %v1740 = vrot.slane %v1736, %v1739
        %v1741 = vlaneseq
        %v1742 = vshrl.u32 %v1741, 7
        %v1743 = vsub.s32 1, %v1742
        %v1744 = vrot.slane %v1736, %v1743
        %vm1745 = vcmp.eq.s32.totalorder %v1740, 1
        %vm1746 = vcmp.eq.s32.totalorder %v1744, 1
        %v1747 = vsel %vm1745, %v1733, 0.0
        %v1748 = vsel %vm1746, %v1732, 0.0
        %1749 = vrot.lane.b32.xlu0 %v1507, 32
        %v1750 = vpop.permute.xlu0 %1749
        %1751 = vrot.lane.b32.xlu0 %v1508, 32
        %v1752 = vpop.permute.xlu0 %1751
        %vm1753 = vcmp.lt.s32.totalorder %v671, 32
        %v1754 = vsel %vm1753, %v1750, %v1752
        %v1755 = vsel %vm1753, %v1752, %v1750
        %vm1756 = vmand %vm1689, %vm704
        %vm1757 = vmand %vm1756, %vm706
        %v1758 = vsel %vm1757, 1, 0
        %v1759 = vlaneseq
        %v1760 = vshrl.u32 %v1759, 7
        %v1761 = vsub.s32 0, %v1760
        %v1762 = vrot.slane %v1758, %v1761
        %v1763 = vlaneseq
        %v1764 = vshrl.u32 %v1763, 7
        %v1765 = vsub.s32 1, %v1764
        %v1766 = vrot.slane %v1758, %v1765
        %vm1767 = vcmp.eq.s32.totalorder %v1762, 1
        %vm1768 = vcmp.eq.s32.totalorder %v1766, 1
        %v1769 = vsel %vm1767, %v1755, 0.0
        %v1770 = vsel %vm1768, %v1754, 0.0
        %1771 = vrot.lane.b32.xlu0 %v1507, 31
        %v1772 = vpop.permute.xlu0 %1771
        %1773 = vrot.lane.b32.xlu0 %v1508, 31
        %v1774 = vpop.permute.xlu0 %1773
        %vm1775 = vcmp.lt.s32.totalorder %v671, 31
        %v1776 = vsel %vm1775, %v1772, %v1774
        %v1777 = vsel %vm1775, %v1774, %v1772
        %vm1778 = vmand %vm1689, %vm729
        %vm1779 = vmand %vm1778, %vm731
        %v1780 = vsel %vm1779, 1, 0
        %v1781 = vlaneseq
        %v1782 = vshrl.u32 %v1781, 7
        %v1783 = vsub.s32 0, %v1782
        %v1784 = vrot.slane %v1780, %v1783
        %v1785 = vlaneseq
        %v1786 = vshrl.u32 %v1785, 7
        %v1787 = vsub.s32 1, %v1786
        %v1788 = vrot.slane %v1780, %v1787
        %vm1789 = vcmp.eq.s32.totalorder %v1784, 1
        %vm1790 = vcmp.eq.s32.totalorder %v1788, 1
        %v1791 = vsel %vm1789, %v1777, 0.0
        %v1792 = vsel %vm1790, %v1776, 0.0
        %1793 = vrot.lane.b32.xlu0 %v1507, 30
        %v1794 = vpop.permute.xlu0 %1793
        %1795 = vrot.lane.b32.xlu0 %v1508, 30
        %v1796 = vpop.permute.xlu0 %1795
        %vm1797 = vcmp.lt.s32.totalorder %v671, 30
        %v1798 = vsel %vm1797, %v1794, %v1796
        %v1799 = vsel %vm1797, %v1796, %v1794
        %vm1800 = vmand %vm1689, %vm1637
        %vm1801 = vmand %vm1800, %vm1639
        %v1802 = vsel %vm1801, 1, 0
        %v1803 = vlaneseq
        %v1804 = vshrl.u32 %v1803, 7
        %v1805 = vsub.s32 0, %v1804
        %v1806 = vrot.slane %v1802, %v1805
        %v1807 = vlaneseq
        %v1808 = vshrl.u32 %v1807, 7
        %v1809 = vsub.s32 1, %v1808
        %v1810 = vrot.slane %v1802, %v1809
        %vm1811 = vcmp.eq.s32.totalorder %v1806, 1
        %vm1812 = vcmp.eq.s32.totalorder %v1810, 1
        %v1813 = vsel %vm1811, %v1799, 0.0
        %v1814 = vsel %vm1812, %v1798, 0.0
        %1815 = vrot.lane.b32.xlu0 %v1507, 29
        %v1816 = vpop.permute.xlu0 %1815
        %1817 = vrot.lane.b32.xlu0 %v1508, 29
        %v1818 = vpop.permute.xlu0 %1817
        %vm1819 = vcmp.lt.s32.totalorder %v671, 29
        %v1820 = vsel %vm1819, %v1816, %v1818
        %v1821 = vsel %vm1819, %v1818, %v1816
        %vm1822 = vmand %vm1689, %vm1662
        %vm1823 = vmand %vm1822, %vm1664
        %v1824 = vsel %vm1823, 1, 0
        %v1825 = vlaneseq
        %v1826 = vshrl.u32 %v1825, 7
        %v1827 = vsub.s32 0, %v1826
        %v1828 = vrot.slane %v1824, %v1827
        %v1829 = vlaneseq
        %v1830 = vshrl.u32 %v1829, 7
        %v1831 = vsub.s32 1, %v1830
        %v1832 = vrot.slane %v1824, %v1831
        %vm1833 = vcmp.eq.s32.totalorder %v1828, 1
        %vm1834 = vcmp.eq.s32.totalorder %v1832, 1
        %v1835 = vsel %vm1833, %v1821, 0.0
        %v1836 = vsel %vm1834, %v1820, 0.0
        %1837 = vrot.lane.b32.xlu0 %v1507, 19
        %v1838 = vpop.permute.xlu0 %1837
        %1839 = vrot.lane.b32.xlu0 %v1508, 19
        %v1840 = vpop.permute.xlu0 %1839
        %vm1841 = vcmp.lt.s32.totalorder %v671, 19
        %v1842 = vsel %vm1841, %v1838, %v1840
        %v1843 = vsel %vm1841, %v1840, %v1838
        %vm1844 = vmand %vm678, %vm1521
        %vm1845 = vmand %vm1844, %vm1523
        %v1846 = vsel %vm1845, 1, 0
        %v1847 = vlaneseq
        %v1848 = vshrl.u32 %v1847, 7
        %v1849 = vsub.s32 0, %v1848
        %v1850 = vrot.slane %v1846, %v1849
        %v1851 = vlaneseq
        %v1852 = vshrl.u32 %v1851, 7
        %v1853 = vsub.s32 1, %v1852
        %v1854 = vrot.slane %v1846, %v1853
        %vm1855 = vcmp.eq.s32.totalorder %v1850, 1
        %vm1856 = vcmp.eq.s32.totalorder %v1854, 1
        %v1857 = vsel %vm1855, %v1843, 0.0
        %v1858 = vsel %vm1856, %v1842, 0.0
        %1859 = vrot.lane.b32.xlu0 %v1507, 18
        %v1860 = vpop.permute.xlu0 %1859
        %1861 = vrot.lane.b32.xlu0 %v1508, 18
        %v1862 = vpop.permute.xlu0 %1861
        %vm1863 = vcmp.lt.s32.totalorder %v671, 18
        %v1864 = vsel %vm1863, %v1860, %v1862
        %v1865 = vsel %vm1863, %v1862, %v1860
        %vm1866 = vmand %vm678, %vm1546
        %vm1867 = vmand %vm1866, %vm1548
        %v1868 = vsel %vm1867, 1, 0
        %v1869 = vlaneseq
        %v1870 = vshrl.u32 %v1869, 7
        %v1871 = vsub.s32 0, %v1870
        %v1872 = vrot.slane %v1868, %v1871
        %v1873 = vlaneseq
        %v1874 = vshrl.u32 %v1873, 7
        %v1875 = vsub.s32 1, %v1874
        %v1876 = vrot.slane %v1868, %v1875
        %vm1877 = vcmp.eq.s32.totalorder %v1872, 1
        %vm1878 = vcmp.eq.s32.totalorder %v1876, 1
        %v1879 = vsel %vm1877, %v1865, 0.0
        %v1880 = vsel %vm1878, %v1864, 0.0
        %1881 = vrot.lane.b32.xlu0 %v1507, 17
        %v1882 = vpop.permute.xlu0 %1881
        %1883 = vrot.lane.b32.xlu0 %v1508, 17
        %v1884 = vpop.permute.xlu0 %1883
        %v1885 = vsel %vm672, %v1882, %v1884
        %v1886 = vsel %vm672, %v1884, %v1882
        %v1887 = vsel %vm693, %v1886, 0.0
        %v1888 = vsel %vm694, %v1885, 0.0
        %1889 = vrot.lane.b32.xlu0 %v1507, 16
        %v1890 = vpop.permute.xlu0 %1889
        %1891 = vrot.lane.b32.xlu0 %v1508, 16
        %v1892 = vpop.permute.xlu0 %1891
        %v1893 = vsel %vm701, %v1890, %v1892
        %v1894 = vsel %vm701, %v1892, %v1890
        %v1895 = vsel %vm717, %v1894, 0.0
        %v1896 = vsel %vm718, %v1893, 0.0
        %1897 = vrot.lane.b32.xlu0 %v1507, 15
        %v1898 = vpop.permute.xlu0 %1897
        %1899 = vrot.lane.b32.xlu0 %v1508, 15
        %v1900 = vpop.permute.xlu0 %1899
        %v1901 = vsel %vm725, %v1898, %v1900
        %v1902 = vsel %vm725, %v1900, %v1898
        %v1903 = vsel %vm742, %v1902, 0.0
        %v1904 = vsel %vm743, %v1901, 0.0
        %1905 = vrot.lane.b32.xlu0 %v1507, 14
        %v1906 = vpop.permute.xlu0 %1905
        %1907 = vrot.lane.b32.xlu0 %v1508, 14
        %v1908 = vpop.permute.xlu0 %1907
        %vm1909 = vcmp.lt.s32.totalorder %v671, 14
        %v1910 = vsel %vm1909, %v1906, %v1908
        %v1911 = vsel %vm1909, %v1908, %v1906
        %vm1912 = vmand %vm678, %vm1637
        %vm1913 = vmand %vm1912, %vm1639
        %v1914 = vsel %vm1913, 1, 0
        %v1915 = vlaneseq
        %v1916 = vshrl.u32 %v1915, 7
        %v1917 = vsub.s32 0, %v1916
        %v1918 = vrot.slane %v1914, %v1917
        %v1919 = vlaneseq
        %v1920 = vshrl.u32 %v1919, 7
        %v1921 = vsub.s32 1, %v1920
        %v1922 = vrot.slane %v1914, %v1921
        %vm1923 = vcmp.eq.s32.totalorder %v1918, 1
        %vm1924 = vcmp.eq.s32.totalorder %v1922, 1
        %v1925 = vsel %vm1923, %v1911, 0.0
        %v1926 = vsel %vm1924, %v1910, 0.0
        %1927 = vrot.lane.b32.xlu0 %v1507, 13
        %v1928 = vpop.permute.xlu0 %1927
        %1929 = vrot.lane.b32.xlu0 %v1508, 13
        %v1930 = vpop.permute.xlu0 %1929
        %vm1931 = vcmp.lt.s32.totalorder %v671, 13
        %v1932 = vsel %vm1931, %v1928, %v1930
        %v1933 = vsel %vm1931, %v1930, %v1928
        %vm1934 = vmand %vm678, %vm1662
        %vm1935 = vmand %vm1934, %vm1664
        %v1936 = vsel %vm1935, 1, 0
        %v1937 = vlaneseq
        %v1938 = vshrl.u32 %v1937, 7
        %v1939 = vsub.s32 0, %v1938
        %v1940 = vrot.slane %v1936, %v1939
        %v1941 = vlaneseq
        %v1942 = vshrl.u32 %v1941, 7
        %v1943 = vsub.s32 1, %v1942
        %v1944 = vrot.slane %v1936, %v1943
        %vm1945 = vcmp.eq.s32.totalorder %v1940, 1
        %vm1946 = vcmp.eq.s32.totalorder %v1944, 1
        %v1947 = vsel %vm1945, %v1933, 0.0
        %v1948 = vsel %vm1946, %v1932, 0.0
        %1949 = vrot.lane.b32.xlu0 %v1507, 3
        %v1950 = vpop.permute.xlu0 %1949
        %1951 = vrot.lane.b32.xlu0 %v1508, 3
        %v1952 = vpop.permute.xlu0 %1951
        %vm1953 = vcmp.lt.s32.totalorder %v671, 3
        %v1954 = vsel %vm1953, %v1950, %v1952
        %v1955 = vsel %vm1953, %v1952, %v1950
        %vm1956 = vmand %vm755, %vm1521
        %vm1957 = vmand %vm1956, %vm1523
        %v1958 = vsel %vm1957, 1, 0
        %v1959 = vlaneseq
        %v1960 = vshrl.u32 %v1959, 7
        %v1961 = vsub.s32 0, %v1960
        %v1962 = vrot.slane %v1958, %v1961
        %v1963 = vlaneseq
        %v1964 = vshrl.u32 %v1963, 7
        %v1965 = vsub.s32 1, %v1964
        %v1966 = vrot.slane %v1958, %v1965
        %vm1967 = vcmp.eq.s32.totalorder %v1962, 1
        %vm1968 = vcmp.eq.s32.totalorder %v1966, 1
        %v1969 = vsel %vm1967, %v1955, 0.0
        %v1970 = vsel %vm1968, %v1954, 0.0
        %1971 = vrot.lane.b32.xlu0 %v1507, 2
        %v1972 = vpop.permute.xlu0 %1971
        %1973 = vrot.lane.b32.xlu0 %v1508, 2
        %v1974 = vpop.permute.xlu0 %1973
        %vm1975 = vcmp.lt.s32.totalorder %v671, 2
        %v1976 = vsel %vm1975, %v1972, %v1974
        %v1977 = vsel %vm1975, %v1974, %v1972
        %vm1978 = vmand %vm755, %vm1546
        %vm1979 = vmand %vm1978, %vm1548
        %v1980 = vsel %vm1979, 1, 0
        %v1981 = vlaneseq
        %v1982 = vshrl.u32 %v1981, 7
        %v1983 = vsub.s32 0, %v1982
        %v1984 = vrot.slane %v1980, %v1983
        %v1985 = vlaneseq
        %v1986 = vshrl.u32 %v1985, 7
        %v1987 = vsub.s32 1, %v1986
        %v1988 = vrot.slane %v1980, %v1987
        %vm1989 = vcmp.eq.s32.totalorder %v1984, 1
        %vm1990 = vcmp.eq.s32.totalorder %v1988, 1
        %v1991 = vsel %vm1989, %v1977, 0.0
        %v1992 = vsel %vm1990, %v1976, 0.0
        %1993 = vrot.lane.b32.xlu0 %v1507, 1
        %v1994 = vpop.permute.xlu0 %1993
        %1995 = vrot.lane.b32.xlu0 %v1508, 1
        %v1996 = vpop.permute.xlu0 %1995
        %v1997 = vsel %vm750, %v1994, %v1996
        %v1998 = vsel %vm750, %v1996, %v1994
        %v1999 = vsel %vm767, %v1998, 0.0
        %v2000 = vsel %vm768, %v1997, 0.0
        %2001 = vrot.lane.b32.xlu0 %v1507, 127
        %v2002 = vpop.permute.xlu0 %2001
        %2003 = vrot.lane.b32.xlu0 %v1508, 127
        %v2004 = vpop.permute.xlu0 %2003
        %v2005 = vsel %vm775, %v2002, %v2004
        %v2006 = vsel %vm775, %v2004, %v2002
        %v2007 = vsel %vm789, %v2005, 0.0
        %v2008 = vsel %vm790, %v2006, 0.0
        %2009 = vrot.lane.b32.xlu0 %v1507, 126
        %v2010 = vpop.permute.xlu0 %2009
        %2011 = vrot.lane.b32.xlu0 %v1508, 126
        %v2012 = vpop.permute.xlu0 %2011
        %vm2013 = vcmp.lt.s32.totalorder %v671, 126
        %v2014 = vsel %vm2013, %v2010, %v2012
        %v2015 = vsel %vm2013, %v2012, %v2010
        %vm2016 = vmand %vm755, %vm1637
        %vm2017 = vmand %vm2016, %vm1639
        %v2018 = vsel %vm2017, 1, 0
        %v2019 = vlaneseq
        %v2020 = vshrl.u32 %v2019, 7
        %v2021 = vsub.s32 0, %v2020
        %v2022 = vrot.slane %v2018, %v2021
        %v2023 = vlaneseq
        %v2024 = vshrl.u32 %v2023, 7
        %v2025 = vsub.s32 1, %v2024
        %v2026 = vrot.slane %v2018, %v2025
        %vm2027 = vcmp.eq.s32.totalorder %v2022, 1
        %vm2028 = vcmp.eq.s32.totalorder %v2026, 1
        %v2029 = vsel %vm2027, %v2014, 0.0
        %v2030 = vsel %vm2028, %v2015, 0.0
        %2031 = vrot.lane.b32.xlu0 %v1507, 125
        %v2032 = vpop.permute.xlu0 %2031
        %2033 = vrot.lane.b32.xlu0 %v1508, 125
        %v2034 = vpop.permute.xlu0 %2033
        %vm2035 = vcmp.lt.s32.totalorder %v671, 125
        %v2036 = vsel %vm2035, %v2032, %v2034
        %v2037 = vsel %vm2035, %v2034, %v2032
        %vm2038 = vmand %vm755, %vm1662
        %vm2039 = vmand %vm2038, %vm1664
        %v2040 = vsel %vm2039, 1, 0
        %v2041 = vlaneseq
        %v2042 = vshrl.u32 %v2041, 7
        %v2043 = vsub.s32 0, %v2042
        %v2044 = vrot.slane %v2040, %v2043
        %v2045 = vlaneseq
        %v2046 = vshrl.u32 %v2045, 7
        %v2047 = vsub.s32 1, %v2046
        %v2048 = vrot.slane %v2040, %v2047
        %vm2049 = vcmp.eq.s32.totalorder %v2044, 1
        %vm2050 = vcmp.eq.s32.totalorder %v2048, 1
        %v2051 = vsel %vm2049, %v2036, 0.0
        %v2052 = vsel %vm2050, %v2037, 0.0
        %2053 = vrot.lane.b32.xlu0 %v1507, 115
        %v2054 = vpop.permute.xlu0 %2053
        %2055 = vrot.lane.b32.xlu0 %v1508, 115
        %v2056 = vpop.permute.xlu0 %2055
        %vm2057 = vcmp.lt.s32.totalorder %v671, 115
        %v2058 = vsel %vm2057, %v2054, %v2056
        %v2059 = vsel %vm2057, %v2056, %v2054
        %vm2060 = vmand %vm803, %vm1521
        %vm2061 = vmand %vm2060, %vm1523
        %v2062 = vsel %vm2061, 1, 0
        %v2063 = vlaneseq
        %v2064 = vshrl.u32 %v2063, 7
        %v2065 = vsub.s32 0, %v2064
        %v2066 = vrot.slane %v2062, %v2065
        %v2067 = vlaneseq
        %v2068 = vshrl.u32 %v2067, 7
        %v2069 = vsub.s32 1, %v2068
        %v2070 = vrot.slane %v2062, %v2069
        %vm2071 = vcmp.eq.s32.totalorder %v2066, 1
        %vm2072 = vcmp.eq.s32.totalorder %v2070, 1
        %v2073 = vsel %vm2071, %v2058, 0.0
        %v2074 = vsel %vm2072, %v2059, 0.0
        %2075 = vrot.lane.b32.xlu0 %v1507, 114
        %v2076 = vpop.permute.xlu0 %2075
        %2077 = vrot.lane.b32.xlu0 %v1508, 114
        %v2078 = vpop.permute.xlu0 %2077
        %vm2079 = vcmp.lt.s32.totalorder %v671, 114
        %v2080 = vsel %vm2079, %v2076, %v2078
        %v2081 = vsel %vm2079, %v2078, %v2076
        %vm2082 = vmand %vm803, %vm1546
        %vm2083 = vmand %vm2082, %vm1548
        %v2084 = vsel %vm2083, 1, 0
        %v2085 = vlaneseq
        %v2086 = vshrl.u32 %v2085, 7
        %v2087 = vsub.s32 0, %v2086
        %v2088 = vrot.slane %v2084, %v2087
        %v2089 = vlaneseq
        %v2090 = vshrl.u32 %v2089, 7
        %v2091 = vsub.s32 1, %v2090
        %v2092 = vrot.slane %v2084, %v2091
        %vm2093 = vcmp.eq.s32.totalorder %v2088, 1
        %vm2094 = vcmp.eq.s32.totalorder %v2092, 1
        %v2095 = vsel %vm2093, %v2080, 0.0
        %v2096 = vsel %vm2094, %v2081, 0.0
        %2097 = vrot.lane.b32.xlu0 %v1507, 113
        %v2098 = vpop.permute.xlu0 %2097
        %2099 = vrot.lane.b32.xlu0 %v1508, 113
        %v2100 = vpop.permute.xlu0 %2099
        %v2101 = vsel %vm797, %v2098, %v2100
        %v2102 = vsel %vm797, %v2100, %v2098
        %v2103 = vsel %vm815, %v2101, 0.0
        %v2104 = vsel %vm816, %v2102, 0.0
        %2105 = vrot.lane.b32.xlu0 %v1507, 112
        %v2106 = vpop.permute.xlu0 %2105
        %2107 = vrot.lane.b32.xlu0 %v1508, 112
        %v2108 = vpop.permute.xlu0 %2107
        %v2109 = vsel %vm823, %v2106, %v2108
        %v2110 = vsel %vm823, %v2108, %v2106
        %v2111 = vsel %vm837, %v2109, 0.0
        %v2112 = vsel %vm838, %v2110, 0.0
        %2113 = vrot.lane.b32.xlu0 %v1507, 111
        %v2114 = vpop.permute.xlu0 %2113
        %2115 = vrot.lane.b32.xlu0 %v1508, 111
        %v2116 = vpop.permute.xlu0 %2115
        %v2117 = vsel %vm845, %v2114, %v2116
        %v2118 = vsel %vm845, %v2116, %v2114
        %v2119 = vsel %vm859, %v2117, 0.0
        %v2120 = vsel %vm860, %v2118, 0.0
        %2121 = vrot.lane.b32.xlu0 %v1507, 110
        %v2122 = vpop.permute.xlu0 %2121
        %2123 = vrot.lane.b32.xlu0 %v1508, 110
        %v2124 = vpop.permute.xlu0 %2123
        %vm2125 = vcmp.lt.s32.totalorder %v671, 110
        %v2126 = vsel %vm2125, %v2122, %v2124
        %v2127 = vsel %vm2125, %v2124, %v2122
        %vm2128 = vmand %vm803, %vm1637
        %vm2129 = vmand %vm2128, %vm1639
        %v2130 = vsel %vm2129, 1, 0
        %v2131 = vlaneseq
        %v2132 = vshrl.u32 %v2131, 7
        %v2133 = vsub.s32 0, %v2132
        %v2134 = vrot.slane %v2130, %v2133
        %v2135 = vlaneseq
        %v2136 = vshrl.u32 %v2135, 7
        %v2137 = vsub.s32 1, %v2136
        %v2138 = vrot.slane %v2130, %v2137
        %vm2139 = vcmp.eq.s32.totalorder %v2134, 1
        %vm2140 = vcmp.eq.s32.totalorder %v2138, 1
        %v2141 = vsel %vm2139, %v2126, 0.0
        %v2142 = vsel %vm2140, %v2127, 0.0
        %2143 = vrot.lane.b32.xlu0 %v1507, 109
        %v2144 = vpop.permute.xlu0 %2143
        %2145 = vrot.lane.b32.xlu0 %v1508, 109
        %v2146 = vpop.permute.xlu0 %2145
        %vm2147 = vcmp.lt.s32.totalorder %v671, 109
        %v2148 = vsel %vm2147, %v2144, %v2146
        %v2149 = vsel %vm2147, %v2146, %v2144
        %vm2150 = vmand %vm803, %vm1662
        %vm2151 = vmand %vm2150, %vm1664
        %v2152 = vsel %vm2151, 1, 0
        %v2153 = vlaneseq
        %v2154 = vshrl.u32 %v2153, 7
        %v2155 = vsub.s32 0, %v2154
        %v2156 = vrot.slane %v2152, %v2155
        %v2157 = vlaneseq
        %v2158 = vshrl.u32 %v2157, 7
        %v2159 = vsub.s32 1, %v2158
        %v2160 = vrot.slane %v2152, %v2159
        %vm2161 = vcmp.eq.s32.totalorder %v2156, 1
        %vm2162 = vcmp.eq.s32.totalorder %v2160, 1
        %v2163 = vsel %vm2161, %v2148, 0.0
        %v2164 = vsel %vm2162, %v2149, 0.0
        %2165 = vrot.lane.b32.xlu0 %v1507, 99
        %v2166 = vpop.permute.xlu0 %2165
        %2167 = vrot.lane.b32.xlu0 %v1508, 99
        %v2168 = vpop.permute.xlu0 %2167
        %vm2169 = vcmp.lt.s32.totalorder %v671, 99
        %v2170 = vsel %vm2169, %v2166, %v2168
        %v2171 = vsel %vm2169, %v2168, %v2166
        %v2172 = vadd.s32 %v558, 2
        %vm2173 = vcmp.ge.s32.totalorder %v2172, 0
        %vm2174 = vcmp.lt.s32.totalorder %v2172, 16
        %vm2175 = vmand %vm2173, %vm2174
        %vm2176 = vmand %vm2175, %vm1521
        %vm2177 = vmand %vm2176, %vm1523
        %v2178 = vsel %vm2177, 1, 0
        %v2179 = vlaneseq
        %v2180 = vshrl.u32 %v2179, 7
        %v2181 = vsub.s32 0, %v2180
        %v2182 = vrot.slane %v2178, %v2181
        %v2183 = vlaneseq
        %v2184 = vshrl.u32 %v2183, 7
        %v2185 = vsub.s32 1, %v2184
        %v2186 = vrot.slane %v2178, %v2185
        %vm2187 = vcmp.eq.s32.totalorder %v2182, 1
        %vm2188 = vcmp.eq.s32.totalorder %v2186, 1
        %v2189 = vsel %vm2187, %v2170, 0.0
        %v2190 = vsel %vm2188, %v2171, 0.0
        %2191 = vrot.lane.b32.xlu0 %v1507, 98
        %v2192 = vpop.permute.xlu0 %2191
        %2193 = vrot.lane.b32.xlu0 %v1508, 98
        %v2194 = vpop.permute.xlu0 %2193
        %vm2195 = vcmp.lt.s32.totalorder %v671, 98
        %v2196 = vsel %vm2195, %v2192, %v2194
        %v2197 = vsel %vm2195, %v2194, %v2192
        %vm2198 = vmand %vm2175, %vm1546
        %vm2199 = vmand %vm2198, %vm1548
        %v2200 = vsel %vm2199, 1, 0
        %v2201 = vlaneseq
        %v2202 = vshrl.u32 %v2201, 7
        %v2203 = vsub.s32 0, %v2202
        %v2204 = vrot.slane %v2200, %v2203
        %v2205 = vlaneseq
        %v2206 = vshrl.u32 %v2205, 7
        %v2207 = vsub.s32 1, %v2206
        %v2208 = vrot.slane %v2200, %v2207
        %vm2209 = vcmp.eq.s32.totalorder %v2204, 1
        %vm2210 = vcmp.eq.s32.totalorder %v2208, 1
        %v2211 = vsel %vm2209, %v2196, 0.0
        %v2212 = vsel %vm2210, %v2197, 0.0
        %2213 = vrot.lane.b32.xlu0 %v1507, 97
        %v2214 = vpop.permute.xlu0 %2213
        %2215 = vrot.lane.b32.xlu0 %v1508, 97
        %v2216 = vpop.permute.xlu0 %2215
        %vm2217 = vcmp.lt.s32.totalorder %v671, 97
        %v2218 = vsel %vm2217, %v2214, %v2216
        %v2219 = vsel %vm2217, %v2216, %v2214
        %vm2220 = vmand %vm2175, %vm680
        %vm2221 = vmand %vm2220, %vm682
        %v2222 = vsel %vm2221, 1, 0
        %v2223 = vlaneseq
        %v2224 = vshrl.u32 %v2223, 7
        %v2225 = vsub.s32 0, %v2224
        %v2226 = vrot.slane %v2222, %v2225
        %v2227 = vlaneseq
        %v2228 = vshrl.u32 %v2227, 7
        %v2229 = vsub.s32 1, %v2228
        %v2230 = vrot.slane %v2222, %v2229
        %vm2231 = vcmp.eq.s32.totalorder %v2226, 1
        %vm2232 = vcmp.eq.s32.totalorder %v2230, 1
        %v2233 = vsel %vm2231, %v2218, 0.0
        %v2234 = vsel %vm2232, %v2219, 0.0
        %2235 = vrot.lane.b32.xlu0 %v1507, 96
        %v2236 = vpop.permute.xlu0 %2235
        %2237 = vrot.lane.b32.xlu0 %v1508, 96
        %v2238 = vpop.permute.xlu0 %2237
        %vm2239 = vcmp.lt.s32.totalorder %v671, 96
        %v2240 = vsel %vm2239, %v2236, %v2238
        %v2241 = vsel %vm2239, %v2238, %v2236
        %vm2242 = vmand %vm2175, %vm704
        %vm2243 = vmand %vm2242, %vm706
        %v2244 = vsel %vm2243, 1, 0
        %v2245 = vlaneseq
        %v2246 = vshrl.u32 %v2245, 7
        %v2247 = vsub.s32 0, %v2246
        %v2248 = vrot.slane %v2244, %v2247
        %v2249 = vlaneseq
        %v2250 = vshrl.u32 %v2249, 7
        %v2251 = vsub.s32 1, %v2250
        %v2252 = vrot.slane %v2244, %v2251
        %vm2253 = vcmp.eq.s32.totalorder %v2248, 1
        %vm2254 = vcmp.eq.s32.totalorder %v2252, 1
        %v2255 = vsel %vm2253, %v2240, 0.0
        %v2256 = vsel %vm2254, %v2241, 0.0
        %2257 = vrot.lane.b32.xlu0 %v1507, 95
        %v2258 = vpop.permute.xlu0 %2257
        %2259 = vrot.lane.b32.xlu0 %v1508, 95
        %v2260 = vpop.permute.xlu0 %2259
        %vm2261 = vcmp.lt.s32.totalorder %v671, 95
        %v2262 = vsel %vm2261, %v2258, %v2260
        %v2263 = vsel %vm2261, %v2260, %v2258
        %vm2264 = vmand %vm2175, %vm729
        %vm2265 = vmand %vm2264, %vm731
        %v2266 = vsel %vm2265, 1, 0
        %v2267 = vlaneseq
        %v2268 = vshrl.u32 %v2267, 7
        %v2269 = vsub.s32 0, %v2268
        %v2270 = vrot.slane %v2266, %v2269
        %v2271 = vlaneseq
        %v2272 = vshrl.u32 %v2271, 7
        %v2273 = vsub.s32 1, %v2272
        %v2274 = vrot.slane %v2266, %v2273
        %vm2275 = vcmp.eq.s32.totalorder %v2270, 1
        %vm2276 = vcmp.eq.s32.totalorder %v2274, 1
        %v2277 = vsel %vm2275, %v2262, 0.0
        %v2278 = vsel %vm2276, %v2263, 0.0
        %2279 = vrot.lane.b32.xlu0 %v1507, 94
        %v2280 = vpop.permute.xlu0 %2279
        %2281 = vrot.lane.b32.xlu0 %v1508, 94
        %v2282 = vpop.permute.xlu0 %2281
        %vm2283 = vcmp.lt.s32.totalorder %v671, 94
        %v2284 = vsel %vm2283, %v2280, %v2282
        %v2285 = vsel %vm2283, %v2282, %v2280
        %vm2286 = vmand %vm2175, %vm1637
        %vm2287 = vmand %vm2286, %vm1639
        %v2288 = vsel %vm2287, 1, 0
        %v2289 = vlaneseq
        %v2290 = vshrl.u32 %v2289, 7
        %v2291 = vsub.s32 0, %v2290
        %v2292 = vrot.slane %v2288, %v2291
        %v2293 = vlaneseq
        %v2294 = vshrl.u32 %v2293, 7
        %v2295 = vsub.s32 1, %v2294
        %v2296 = vrot.slane %v2288, %v2295
        %vm2297 = vcmp.eq.s32.totalorder %v2292, 1
        %vm2298 = vcmp.eq.s32.totalorder %v2296, 1
        %v2299 = vsel %vm2297, %v2284, 0.0
        %v2300 = vsel %vm2298, %v2285, 0.0
        %2301 = vrot.lane.b32.xlu0 %v1507, 93
        %v2302 = vpop.permute.xlu0 %2301
        %2303 = vrot.lane.b32.xlu0 %v1508, 93
        %v2304 = vpop.permute.xlu0 %2303
        %vm2305 = vcmp.lt.s32.totalorder %v671, 93
        %v2306 = vsel %vm2305, %v2302, %v2304
        %v2307 = vsel %vm2305, %v2304, %v2302
        %vm2308 = vmand %vm2175, %vm1662
        %vm2309 = vmand %vm2308, %vm1664
        %v2310 = vsel %vm2309, 1, 0
        %v2311 = vlaneseq
        %v2312 = vshrl.u32 %v2311, 7
        %v2313 = vsub.s32 0, %v2312
        %v2314 = vrot.slane %v2310, %v2313
        %v2315 = vlaneseq
        %v2316 = vshrl.u32 %v2315, 7
        %v2317 = vsub.s32 1, %v2316
        %v2318 = vrot.slane %v2310, %v2317
        %vm2319 = vcmp.eq.s32.totalorder %v2314, 1
        %vm2320 = vcmp.eq.s32.totalorder %v2318, 1
        %v2321 = vsel %vm2319, %v2306, 0.0
        %v2322 = vsel %vm2320, %v2307, 0.0
        %2323 = vrot.lane.b32.xlu0 %v1507, 83
        %v2324 = vpop.permute.xlu0 %2323
        %2325 = vrot.lane.b32.xlu0 %v1508, 83
        %v2326 = vpop.permute.xlu0 %2325
        %vm2327 = vcmp.lt.s32.totalorder %v671, 83
        %v2328 = vsel %vm2327, %v2324, %v2326
        %v2329 = vsel %vm2327, %v2326, %v2324
        %v2330 = vadd.s32 %v558, 3
        %vm2331 = vcmp.ge.s32.totalorder %v2330, 0
        %vm2332 = vcmp.lt.s32.totalorder %v2330, 16
        %vm2333 = vmand %vm2331, %vm2332
        %vm2334 = vmand %vm2333, %vm1521
        %vm2335 = vmand %vm2334, %vm1523
        %v2336 = vsel %vm2335, 1, 0
        %v2337 = vlaneseq
        %v2338 = vshrl.u32 %v2337, 7
        %v2339 = vsub.s32 0, %v2338
        %v2340 = vrot.slane %v2336, %v2339
        %v2341 = vlaneseq
        %v2342 = vshrl.u32 %v2341, 7
        %v2343 = vsub.s32 1, %v2342
        %v2344 = vrot.slane %v2336, %v2343
        %vm2345 = vcmp.eq.s32.totalorder %v2340, 1
        %vm2346 = vcmp.eq.s32.totalorder %v2344, 1
        %v2347 = vsel %vm2345, %v2328, 0.0
        %v2348 = vsel %vm2346, %v2329, 0.0
        %2349 = vrot.lane.b32.xlu0 %v1507, 82
        %v2350 = vpop.permute.xlu0 %2349
        %2351 = vrot.lane.b32.xlu0 %v1508, 82
        %v2352 = vpop.permute.xlu0 %2351
        %vm2353 = vcmp.lt.s32.totalorder %v671, 82
        %v2354 = vsel %vm2353, %v2350, %v2352
        %v2355 = vsel %vm2353, %v2352, %v2350
        %vm2356 = vmand %vm2333, %vm1546
        %vm2357 = vmand %vm2356, %vm1548
        %v2358 = vsel %vm2357, 1, 0
        %v2359 = vlaneseq
        %v2360 = vshrl.u32 %v2359, 7
        %v2361 = vsub.s32 0, %v2360
        %v2362 = vrot.slane %v2358, %v2361
        %v2363 = vlaneseq
        %v2364 = vshrl.u32 %v2363, 7
        %v2365 = vsub.s32 1, %v2364
        %v2366 = vrot.slane %v2358, %v2365
        %vm2367 = vcmp.eq.s32.totalorder %v2362, 1
        %vm2368 = vcmp.eq.s32.totalorder %v2366, 1
        %v2369 = vsel %vm2367, %v2354, 0.0
        %v2370 = vsel %vm2368, %v2355, 0.0
        %2371 = vrot.lane.b32.xlu0 %v1507, 81
        %v2372 = vpop.permute.xlu0 %2371
        %2373 = vrot.lane.b32.xlu0 %v1508, 81
        %v2374 = vpop.permute.xlu0 %2373
        %vm2375 = vcmp.lt.s32.totalorder %v671, 81
        %v2376 = vsel %vm2375, %v2372, %v2374
        %v2377 = vsel %vm2375, %v2374, %v2372
        %vm2378 = vmand %vm2333, %vm680
        %vm2379 = vmand %vm2378, %vm682
        %v2380 = vsel %vm2379, 1, 0
        %v2381 = vlaneseq
        %v2382 = vshrl.u32 %v2381, 7
        %v2383 = vsub.s32 0, %v2382
        %v2384 = vrot.slane %v2380, %v2383
        %v2385 = vlaneseq
        %v2386 = vshrl.u32 %v2385, 7
        %v2387 = vsub.s32 1, %v2386
        %v2388 = vrot.slane %v2380, %v2387
        %vm2389 = vcmp.eq.s32.totalorder %v2384, 1
        %vm2390 = vcmp.eq.s32.totalorder %v2388, 1
        %v2391 = vsel %vm2389, %v2376, 0.0
        %v2392 = vsel %vm2390, %v2377, 0.0
        %2393 = vrot.lane.b32.xlu0 %v1507, 80
        %v2394 = vpop.permute.xlu0 %2393
        %2395 = vrot.lane.b32.xlu0 %v1508, 80
        %v2396 = vpop.permute.xlu0 %2395
        %vm2397 = vcmp.lt.s32.totalorder %v671, 80
        %v2398 = vsel %vm2397, %v2394, %v2396
        %v2399 = vsel %vm2397, %v2396, %v2394
        %vm2400 = vmand %vm2333, %vm704
        %vm2401 = vmand %vm2400, %vm706
        %v2402 = vsel %vm2401, 1, 0
        %v2403 = vlaneseq
        %v2404 = vshrl.u32 %v2403, 7
        %v2405 = vsub.s32 0, %v2404
        %v2406 = vrot.slane %v2402, %v2405
        %v2407 = vlaneseq
        %v2408 = vshrl.u32 %v2407, 7
        %v2409 = vsub.s32 1, %v2408
        %v2410 = vrot.slane %v2402, %v2409
        %vm2411 = vcmp.eq.s32.totalorder %v2406, 1
        %vm2412 = vcmp.eq.s32.totalorder %v2410, 1
        %v2413 = vsel %vm2411, %v2398, 0.0
        %v2414 = vsel %vm2412, %v2399, 0.0
        %2415 = vrot.lane.b32.xlu0 %v1507, 79
        %v2416 = vpop.permute.xlu0 %2415
        %2417 = vrot.lane.b32.xlu0 %v1508, 79
        %v2418 = vpop.permute.xlu0 %2417
        %vm2419 = vcmp.lt.s32.totalorder %v671, 79
        %v2420 = vsel %vm2419, %v2416, %v2418
        %v2421 = vsel %vm2419, %v2418, %v2416
        %vm2422 = vmand %vm2333, %vm729
        %vm2423 = vmand %vm2422, %vm731
        %v2424 = vsel %vm2423, 1, 0
        %v2425 = vlaneseq
        %v2426 = vshrl.u32 %v2425, 7
        %v2427 = vsub.s32 0, %v2426
        %v2428 = vrot.slane %v2424, %v2427
        %v2429 = vlaneseq
        %v2430 = vshrl.u32 %v2429, 7
        %v2431 = vsub.s32 1, %v2430
        %v2432 = vrot.slane %v2424, %v2431
        %vm2433 = vcmp.eq.s32.totalorder %v2428, 1
        %vm2434 = vcmp.eq.s32.totalorder %v2432, 1
        %v2435 = vsel %vm2433, %v2420, 0.0
        %v2436 = vsel %vm2434, %v2421, 0.0
        %2437 = vrot.lane.b32.xlu0 %v1507, 78
        %v2438 = vpop.permute.xlu0 %2437
        %2439 = vrot.lane.b32.xlu0 %v1508, 78
        %v2440 = vpop.permute.xlu0 %2439
        %vm2441 = vcmp.lt.s32.totalorder %v671, 78
        %v2442 = vsel %vm2441, %v2438, %v2440
        %v2443 = vsel %vm2441, %v2440, %v2438
        %vm2444 = vmand %vm2333, %vm1637
        %vm2445 = vmand %vm2444, %vm1639
        %v2446 = vsel %vm2445, 1, 0
        %v2447 = vlaneseq
        %v2448 = vshrl.u32 %v2447, 7
        %v2449 = vsub.s32 0, %v2448
        %v2450 = vrot.slane %v2446, %v2449
        %v2451 = vlaneseq
        %v2452 = vshrl.u32 %v2451, 7
        %v2453 = vsub.s32 1, %v2452
        %v2454 = vrot.slane %v2446, %v2453
        %vm2455 = vcmp.eq.s32.totalorder %v2450, 1
        %vm2456 = vcmp.eq.s32.totalorder %v2454, 1
        %v2457 = vsel %vm2455, %v2442, 0.0
        %v2458 = vsel %vm2456, %v2443, 0.0
        %2459 = vrot.lane.b32.xlu0 %v1507, 77
        %v2460 = vpop.permute.xlu0 %2459
        %2461 = vrot.lane.b32.xlu0 %v1508, 77
        %v2462 = vpop.permute.xlu0 %2461
        %vm2463 = vcmp.lt.s32.totalorder %v671, 77
        %v2464 = vsel %vm2463, %v2460, %v2462
        %v2465 = vsel %vm2463, %v2462, %v2460
        %vm2466 = vmand %vm2333, %vm1662
        %vm2467 = vmand %vm2466, %vm1664
        %v2468 = vsel %vm2467, 1, 0
        %v2469 = vlaneseq
        %v2470 = vshrl.u32 %v2469, 7
        %v2471 = vsub.s32 0, %v2470
        %v2472 = vrot.slane %v2468, %v2471
        %v2473 = vlaneseq
        %v2474 = vshrl.u32 %v2473, 7
        %v2475 = vsub.s32 1, %v2474
        %v2476 = vrot.slane %v2468, %v2475
        %vm2477 = vcmp.eq.s32.totalorder %v2472, 1
        %vm2478 = vcmp.eq.s32.totalorder %v2476, 1
        %v2479 = vsel %vm2477, %v2464, 0.0
        %v2480 = vsel %vm2478, %v2465, 0.0
        %s2481 = sld [smem:[#allocation12]]
        %v2482 = vstv %s2481
        %v2483 = vmul.f32 %v2482, %v1536
        %v2484 = vmul.f32 %v2482, %v1537
        %v2485 = vadd.f32 %v2483, 0.0
        %v2486 = vadd.f32 %v2484, 0.0
        %s2487 = sld [smem:[#allocation12 + $0x1]]
        %v2488 = vstv %s2487
        %v2489 = vmul.f32 %v2488, %v1536
        %v2490 = vmul.f32 %v2488, %v1537
        %v2493 = vrot.slane %v2489, 1
        %v2494 = vrot.slane %v2490, 1
        %v2497 = vadd.f32 %v2485, %v2493
        %v2498 = vadd.f32 %v2486, %v2494
        %s2499 = sld [smem:[#allocation12 + $0x2]]
        %v2500 = vstv %s2499
        %v2501 = vmul.f32 %v2500, %v1561
        %v2502 = vmul.f32 %v2500, %v1562
        %v2503 = vadd.f32 %v2497, %v2501
        %v2504 = vadd.f32 %v2498, %v2502
        %s2505 = sld [smem:[#allocation12 + $0x3]]
        %v2506 = vstv %s2505
        %v2507 = vmul.f32 %v2506, %v1561
        %v2508 = vmul.f32 %v2506, %v1562
        %v2511 = vrot.slane %v2507, 1
        %v2512 = vrot.slane %v2508, 1
        %v2515 = vadd.f32 %v2503, %v2511
        %v2516 = vadd.f32 %v2504, %v2512
        %s2517 = sld [smem:[#allocation12 + $0x4]]
        %v2518 = vstv %s2517
        %v2519 = vmul.f32 %v2518, %v1583
        %v2520 = vmul.f32 %v2518, %v1584
        %v2521 = vadd.f32 %v2515, %v2519
        %v2522 = vadd.f32 %v2516, %v2520
        %s2523 = sld [smem:[#allocation12 + $0x5]]
        %v2524 = vstv %s2523
        %v2525 = vmul.f32 %v2524, %v1583
        %v2526 = vmul.f32 %v2524, %v1584
        %v2529 = vrot.slane %v2525, 1
        %v2530 = vrot.slane %v2526, 1
        %v2533 = vadd.f32 %v2521, %v2529
        %v2534 = vadd.f32 %v2522, %v2530
        %s2535 = sld [smem:[#allocation12 + $0x6]]
        %v2536 = vstv %s2535
        %v2537 = vmul.f32 %v2536, %v1605
        %v2538 = vmul.f32 %v2536, %v1606
        %v2539 = vadd.f32 %v2533, %v2537
        %v2540 = vadd.f32 %v2534, %v2538
        %s2541 = sld [smem:[#allocation12 + $0x7]]
        %v2542 = vstv %s2541
        %v2543 = vmul.f32 %v2542, %v1605
        %v2544 = vmul.f32 %v2542, %v1606
        %v2547 = vrot.slane %v2543, 1
        %v2548 = vrot.slane %v2544, 1
        %v2551 = vadd.f32 %v2539, %v2547
        %v2552 = vadd.f32 %v2540, %v2548
        %s2553 = sld [smem:[#allocation12 + $0x8]]
        %v2554 = vstv %s2553
        %v2555 = vmul.f32 %v2554, %v1627
        %v2556 = vmul.f32 %v2554, %v1628
        %v2557 = vadd.f32 %v2551, %v2555
        %v2558 = vadd.f32 %v2552, %v2556
        %s2559 = sld [smem:[#allocation12 + $0x9]]
        %v2560 = vstv %s2559
        %v2561 = vmul.f32 %v2560, %v1627
        %v2562 = vmul.f32 %v2560, %v1628
        %v2565 = vrot.slane %v2561, 1
        %v2566 = vrot.slane %v2562, 1
        %v2569 = vadd.f32 %v2557, %v2565
        %v2570 = vadd.f32 %v2558, %v2566
        %s2571 = sld [smem:[#allocation12 + $0xa]]
        %v2572 = vstv %s2571
        %v2573 = vmul.f32 %v2572, %v1652
        %v2574 = vmul.f32 %v2572, %v1653
        %v2575 = vadd.f32 %v2569, %v2573
        %v2576 = vadd.f32 %v2570, %v2574
        %s2577 = sld [smem:[#allocation12 + $0xb]]
        %v2578 = vstv %s2577
        %v2579 = vmul.f32 %v2578, %v1652
        %v2580 = vmul.f32 %v2578, %v1653
        %v2583 = vrot.slane %v2579, 1
        %v2584 = vrot.slane %v2580, 1
        %v2587 = vadd.f32 %v2575, %v2583
        %v2588 = vadd.f32 %v2576, %v2584
        %s2589 = sld [smem:[#allocation12 + $0xc]]
        %v2590 = vstv %s2589
        %v2591 = vmul.f32 %v2590, %v1677
        %v2592 = vmul.f32 %v2590, %v1678
        %v2593 = vadd.f32 %v2587, %v2591
        %v2594 = vadd.f32 %v2588, %v2592
        %s2595 = sld [smem:[#allocation12 + $0xd]]
        %v2596 = vstv %s2595
        %v2597 = vmul.f32 %v2596, %v1677
        %v2598 = vmul.f32 %v2596, %v1678
        %v2601 = vrot.slane %v2597, 1
        %v2602 = vrot.slane %v2598, 1
        %v2605 = vadd.f32 %v2593, %v2601
        %v2606 = vadd.f32 %v2594, %v2602
        %s2607 = sld [smem:[#allocation12 + $0xe]]
        %v2608 = vstv %s2607
        %v2609 = vmul.f32 %v2608, %v1703
        %v2610 = vmul.f32 %v2608, %v1704
        %v2611 = vadd.f32 %v2605, %v2609
        %v2612 = vadd.f32 %v2606, %v2610
        %s2613 = sld [smem:[#allocation12 + $0xf]]
        %v2614 = vstv %s2613
        %v2615 = vmul.f32 %v2614, %v1703
        %v2616 = vmul.f32 %v2614, %v1704
        %v2619 = vrot.slane %v2615, 1
        %v2620 = vrot.slane %v2616, 1
        %v2623 = vadd.f32 %v2611, %v2619
        %v2624 = vadd.f32 %v2612, %v2620
        %s2625 = sld [smem:[#allocation12 + $0x10]]
        %v2626 = vstv %s2625
        %v2627 = vmul.f32 %v2626, %v1725
        %v2628 = vmul.f32 %v2626, %v1726
        %v2629 = vadd.f32 %v2623, %v2627
        %v2630 = vadd.f32 %v2624, %v2628
        %s2631 = sld [smem:[#allocation12 + $0x11]]
        %v2632 = vstv %s2631
        %v2633 = vmul.f32 %v2632, %v1725
        %v2634 = vmul.f32 %v2632, %v1726
        %v2637 = vrot.slane %v2633, 1
        %v2638 = vrot.slane %v2634, 1
        %v2641 = vadd.f32 %v2629, %v2637
        %v2642 = vadd.f32 %v2630, %v2638
        %s2643 = sld [smem:[#allocation12 + $0x12]]
        %v2644 = vstv %s2643
        %v2645 = vmul.f32 %v2644, %v1747
        %v2646 = vmul.f32 %v2644, %v1748
        %v2647 = vadd.f32 %v2641, %v2645
        %v2648 = vadd.f32 %v2642, %v2646
        %s2649 = sld [smem:[#allocation12 + $0x13]]
        %v2650 = vstv %s2649
        %v2651 = vmul.f32 %v2650, %v1747
        %v2652 = vmul.f32 %v2650, %v1748
        %v2655 = vrot.slane %v2651, 1
        %v2656 = vrot.slane %v2652, 1
        %v2659 = vadd.f32 %v2647, %v2655
        %v2660 = vadd.f32 %v2648, %v2656
        %s2661 = sld [smem:[#allocation12 + $0x14]]
        %v2662 = vstv %s2661
        %v2663 = vmul.f32 %v2662, %v1769
        %v2664 = vmul.f32 %v2662, %v1770
        %v2665 = vadd.f32 %v2659, %v2663
        %v2666 = vadd.f32 %v2660, %v2664
        %s2667 = sld [smem:[#allocation12 + $0x15]]
        %v2668 = vstv %s2667
        %v2669 = vmul.f32 %v2668, %v1769
        %v2670 = vmul.f32 %v2668, %v1770
        %v2673 = vrot.slane %v2669, 1
        %v2674 = vrot.slane %v2670, 1
        %v2677 = vadd.f32 %v2665, %v2673
        %v2678 = vadd.f32 %v2666, %v2674
        %s2679 = sld [smem:[#allocation12 + $0x16]]
        %v2680 = vstv %s2679
        %v2681 = vmul.f32 %v2680, %v1791
        %v2682 = vmul.f32 %v2680, %v1792
        %v2683 = vadd.f32 %v2677, %v2681
        %v2684 = vadd.f32 %v2678, %v2682
        %s2685 = sld [smem:[#allocation12 + $0x17]]
        %v2686 = vstv %s2685
        %v2687 = vmul.f32 %v2686, %v1791
        %v2688 = vmul.f32 %v2686, %v1792
        %v2691 = vrot.slane %v2687, 1
        %v2692 = vrot.slane %v2688, 1
        %v2695 = vadd.f32 %v2683, %v2691
        %v2696 = vadd.f32 %v2684, %v2692
        %s2697 = sld [smem:[#allocation12 + $0x18]]
        %v2698 = vstv %s2697
        %v2699 = vmul.f32 %v2698, %v1813
        %v2700 = vmul.f32 %v2698, %v1814
        %v2701 = vadd.f32 %v2695, %v2699
        %v2702 = vadd.f32 %v2696, %v2700
        %s2703 = sld [smem:[#allocation12 + $0x19]]
        %v2704 = vstv %s2703
        %v2705 = vmul.f32 %v2704, %v1813
        %v2706 = vmul.f32 %v2704, %v1814
        %v2709 = vrot.slane %v2705, 1
        %v2710 = vrot.slane %v2706, 1
        %v2713 = vadd.f32 %v2701, %v2709
        %v2714 = vadd.f32 %v2702, %v2710
        %s2715 = sld [smem:[#allocation12 + $0x1a]]
        %v2716 = vstv %s2715
        %v2717 = vmul.f32 %v2716, %v1835
        %v2718 = vmul.f32 %v2716, %v1836
        %v2719 = vadd.f32 %v2713, %v2717
        %v2720 = vadd.f32 %v2714, %v2718
        %s2721 = sld [smem:[#allocation12 + $0x1b]]
        %v2722 = vstv %s2721
        %v2723 = vmul.f32 %v2722, %v1835
        %v2724 = vmul.f32 %v2722, %v1836
        %v2727 = vrot.slane %v2723, 1
        %v2728 = vrot.slane %v2724, 1
        %v2731 = vadd.f32 %v2719, %v2727
        %v2732 = vadd.f32 %v2720, %v2728
        %s2733 = sld [smem:[#allocation12 + $0x1c]]
        %v2734 = vstv %s2733
        %v2735 = vmul.f32 %v2734, %v1857
        %v2736 = vmul.f32 %v2734, %v1858
        %v2737 = vadd.f32 %v2731, %v2735
        %v2738 = vadd.f32 %v2732, %v2736
        %s2739 = sld [smem:[#allocation12 + $0x1d]]
        %v2740 = vstv %s2739
        %v2741 = vmul.f32 %v2740, %v1857
        %v2742 = vmul.f32 %v2740, %v1858
        %v2745 = vrot.slane %v2741, 1
        %v2746 = vrot.slane %v2742, 1
        %v2749 = vadd.f32 %v2737, %v2745
        %v2750 = vadd.f32 %v2738, %v2746
        %s2751 = sld [smem:[#allocation12 + $0x1e]]
        %v2752 = vstv %s2751
        %v2753 = vmul.f32 %v2752, %v1879
        %v2754 = vmul.f32 %v2752, %v1880
        %v2755 = vadd.f32 %v2749, %v2753
        %v2756 = vadd.f32 %v2750, %v2754
        %s2757 = sld [smem:[#allocation12 + $0x1f]]
        %v2758 = vstv %s2757
        %v2759 = vmul.f32 %v2758, %v1879
        %v2760 = vmul.f32 %v2758, %v1880
        %v2763 = vrot.slane %v2759, 1
        %v2764 = vrot.slane %v2760, 1
        %v2767 = vadd.f32 %v2755, %v2763
        %v2768 = vadd.f32 %v2756, %v2764
        %s2769 = sld [smem:[#allocation12 + $0x20]]
        %v2770 = vstv %s2769
        %v2771 = vmul.f32 %v2770, %v1887
        %v2772 = vmul.f32 %v2770, %v1888
        %v2773 = vadd.f32 %v2767, %v2771
        %v2774 = vadd.f32 %v2768, %v2772
        %s2775 = sld [smem:[#allocation12 + $0x21]]
        %v2776 = vstv %s2775
        %v2777 = vmul.f32 %v2776, %v1887
        %v2778 = vmul.f32 %v2776, %v1888
        %v2781 = vrot.slane %v2777, 1
        %v2782 = vrot.slane %v2778, 1
        %v2785 = vadd.f32 %v2773, %v2781
        %v2786 = vadd.f32 %v2774, %v2782
        %s2787 = sld [smem:[#allocation12 + $0x22]]
        %v2788 = vstv %s2787
        %v2789 = vmul.f32 %v2788, %v1895
        %v2790 = vmul.f32 %v2788, %v1896
        %v2791 = vadd.f32 %v2785, %v2789
        %v2792 = vadd.f32 %v2786, %v2790
        %s2793 = sld [smem:[#allocation12 + $0x23]]
        %v2794 = vstv %s2793
        %v2795 = vmul.f32 %v2794, %v1895
        %v2796 = vmul.f32 %v2794, %v1896
        %v2799 = vrot.slane %v2795, 1
        %v2800 = vrot.slane %v2796, 1
        %v2803 = vadd.f32 %v2791, %v2799
        %v2804 = vadd.f32 %v2792, %v2800
        %s2805 = sld [smem:[#allocation12 + $0x24]]
        %v2806 = vstv %s2805
        %v2807 = vmul.f32 %v2806, %v1903
        %v2808 = vmul.f32 %v2806, %v1904
        %v2809 = vadd.f32 %v2803, %v2807
        %v2810 = vadd.f32 %v2804, %v2808
        %s2811 = sld [smem:[#allocation12 + $0x25]]
        %v2812 = vstv %s2811
        %v2813 = vmul.f32 %v2812, %v1903
        %v2814 = vmul.f32 %v2812, %v1904
        %v2817 = vrot.slane %v2813, 1
        %v2818 = vrot.slane %v2814, 1
        %v2821 = vadd.f32 %v2809, %v2817
        %v2822 = vadd.f32 %v2810, %v2818
        %s2823 = sld [smem:[#allocation12 + $0x26]]
        %v2824 = vstv %s2823
        %v2825 = vmul.f32 %v2824, %v1925
        %v2826 = vmul.f32 %v2824, %v1926
        %v2827 = vadd.f32 %v2821, %v2825
        %v2828 = vadd.f32 %v2822, %v2826
        %s2829 = sld [smem:[#allocation12 + $0x27]]
        %v2830 = vstv %s2829
        %v2831 = vmul.f32 %v2830, %v1925
        %v2832 = vmul.f32 %v2830, %v1926
        %v2835 = vrot.slane %v2831, 1
        %v2836 = vrot.slane %v2832, 1
        %v2839 = vadd.f32 %v2827, %v2835
        %v2840 = vadd.f32 %v2828, %v2836
        %s2841 = sld [smem:[#allocation12 + $0x28]]
        %v2842 = vstv %s2841
        %v2843 = vmul.f32 %v2842, %v1947
        %v2844 = vmul.f32 %v2842, %v1948
        %v2845 = vadd.f32 %v2839, %v2843
        %v2846 = vadd.f32 %v2840, %v2844
        %s2847 = sld [smem:[#allocation12 + $0x29]]
        %v2848 = vstv %s2847
        %v2849 = vmul.f32 %v2848, %v1947
        %v2850 = vmul.f32 %v2848, %v1948
        %v2853 = vrot.slane %v2849, 1
        %v2854 = vrot.slane %v2850, 1
        %v2857 = vadd.f32 %v2845, %v2853
        %v2858 = vadd.f32 %v2846, %v2854
        %s2859 = sld [smem:[#allocation12 + $0x2a]]
        %v2860 = vstv %s2859
        %v2861 = vmul.f32 %v2860, %v1969
        %v2862 = vmul.f32 %v2860, %v1970
        %v2863 = vadd.f32 %v2857, %v2861
        %v2864 = vadd.f32 %v2858, %v2862
        %s2865 = sld [smem:[#allocation12 + $0x2b]]
        %v2866 = vstv %s2865
        %v2867 = vmul.f32 %v2866, %v1969
        %v2868 = vmul.f32 %v2866, %v1970
        %v2871 = vrot.slane %v2867, 1
        %v2872 = vrot.slane %v2868, 1
        %v2875 = vadd.f32 %v2863, %v2871
        %v2876 = vadd.f32 %v2864, %v2872
        %s2877 = sld [smem:[#allocation12 + $0x2c]]
        %v2878 = vstv %s2877
        %v2879 = vmul.f32 %v2878, %v1991
        %v2880 = vmul.f32 %v2878, %v1992
        %v2881 = vadd.f32 %v2875, %v2879
        %v2882 = vadd.f32 %v2876, %v2880
        %s2883 = sld [smem:[#allocation12 + $0x2d]]
        %v2884 = vstv %s2883
        %v2885 = vmul.f32 %v2884, %v1991
        %v2886 = vmul.f32 %v2884, %v1992
        %v2889 = vrot.slane %v2885, 1
        %v2890 = vrot.slane %v2886, 1
        %v2893 = vadd.f32 %v2881, %v2889
        %v2894 = vadd.f32 %v2882, %v2890
        %s2895 = sld [smem:[#allocation12 + $0x2e]]
        %v2896 = vstv %s2895
        %v2897 = vmul.f32 %v2896, %v1999
        %v2898 = vmul.f32 %v2896, %v2000
        %v2899 = vadd.f32 %v2893, %v2897
        %v2900 = vadd.f32 %v2894, %v2898
        %s2901 = sld [smem:[#allocation12 + $0x2f]]
        %v2902 = vstv %s2901
        %v2903 = vmul.f32 %v2902, %v1999
        %v2904 = vmul.f32 %v2902, %v2000
        %v2907 = vrot.slane %v2903, 1
        %v2908 = vrot.slane %v2904, 1
        %v2911 = vadd.f32 %v2899, %v2907
        %v2912 = vadd.f32 %v2900, %v2908
        %s2913 = sld [smem:[#allocation12 + $0x30]]
        %v2914 = vstv %s2913
        %v2915 = vmul.f32 %v2914, %v1507
        %v2916 = vmul.f32 %v2914, %v1508
        %v2917 = vadd.f32 %v2911, %v2915
        %v2918 = vadd.f32 %v2912, %v2916
        %s2919 = sld [smem:[#allocation12 + $0x31]]
        %v2920 = vstv %s2919
        %v2921 = vmul.f32 %v2920, %v1507
        %v2922 = vmul.f32 %v2920, %v1508
        %v2925 = vrot.slane %v2921, 1
        %v2926 = vrot.slane %v2922, 1
        %v2929 = vadd.f32 %v2917, %v2925
        %v2930 = vadd.f32 %v2918, %v2926
        %s2931 = sld [smem:[#allocation12 + $0x32]]
        %v2932 = vstv %s2931
        %v2933 = vmul.f32 %v2932, %v2007
        %v2934 = vmul.f32 %v2932, %v2008
        %v2935 = vadd.f32 %v2929, %v2933
        %v2936 = vadd.f32 %v2930, %v2934
        %s2937 = sld [smem:[#allocation12 + $0x33]]
        %v2938 = vstv %s2937
        %v2939 = vmul.f32 %v2938, %v2007
        %v2940 = vmul.f32 %v2938, %v2008
        %v2943 = vrot.slane %v2939, 1
        %v2944 = vrot.slane %v2940, 1
        %v2947 = vadd.f32 %v2935, %v2943
        %v2948 = vadd.f32 %v2936, %v2944
        %s2949 = sld [smem:[#allocation12 + $0x34]]
        %v2950 = vstv %s2949
        %v2951 = vmul.f32 %v2950, %v2029
        %v2952 = vmul.f32 %v2950, %v2030
        %v2953 = vadd.f32 %v2947, %v2951
        %v2954 = vadd.f32 %v2948, %v2952
        %s2955 = sld [smem:[#allocation12 + $0x35]]
        %v2956 = vstv %s2955
        %v2957 = vmul.f32 %v2956, %v2029
        %v2958 = vmul.f32 %v2956, %v2030
        %v2961 = vrot.slane %v2957, 1
        %v2962 = vrot.slane %v2958, 1
        %v2965 = vadd.f32 %v2953, %v2961
        %v2966 = vadd.f32 %v2954, %v2962
        %s2967 = sld [smem:[#allocation12 + $0x36]]
        %v2968 = vstv %s2967
        %v2969 = vmul.f32 %v2968, %v2051
        %v2970 = vmul.f32 %v2968, %v2052
        %v2971 = vadd.f32 %v2965, %v2969
        %v2972 = vadd.f32 %v2966, %v2970
        %s2973 = sld [smem:[#allocation12 + $0x37]]
        %v2974 = vstv %s2973
        %v2975 = vmul.f32 %v2974, %v2051
        %v2976 = vmul.f32 %v2974, %v2052
        %v2979 = vrot.slane %v2975, 1
        %v2980 = vrot.slane %v2976, 1
        %v2983 = vadd.f32 %v2971, %v2979
        %v2984 = vadd.f32 %v2972, %v2980
        %s2985 = sld [smem:[#allocation12 + $0x38]]
        %v2986 = vstv %s2985
        %v2987 = vmul.f32 %v2986, %v2073
        %v2988 = vmul.f32 %v2986, %v2074
        %v2989 = vadd.f32 %v2983, %v2987
        %v2990 = vadd.f32 %v2984, %v2988
        %s2991 = sld [smem:[#allocation12 + $0x39]]
        %v2992 = vstv %s2991
        %v2993 = vmul.f32 %v2992, %v2073
        %v2994 = vmul.f32 %v2992, %v2074
        %v2997 = vrot.slane %v2993, 1
        %v2998 = vrot.slane %v2994, 1
        %v3001 = vadd.f32 %v2989, %v2997
        %v3002 = vadd.f32 %v2990, %v2998
        %s3003 = sld [smem:[#allocation12 + $0x3a]]
        %v3004 = vstv %s3003
        %v3005 = vmul.f32 %v3004, %v2095
        %v3006 = vmul.f32 %v3004, %v2096
        %v3007 = vadd.f32 %v3001, %v3005
        %v3008 = vadd.f32 %v3002, %v3006
        %s3009 = sld [smem:[#allocation12 + $0x3b]]
        %v3010 = vstv %s3009
        %v3011 = vmul.f32 %v3010, %v2095
        %v3012 = vmul.f32 %v3010, %v2096
        %v3015 = vrot.slane %v3011, 1
        %v3016 = vrot.slane %v3012, 1
        %v3019 = vadd.f32 %v3007, %v3015
        %v3020 = vadd.f32 %v3008, %v3016
        %s3021 = sld [smem:[#allocation12 + $0x3c]]
        %v3022 = vstv %s3021
        %v3023 = vmul.f32 %v3022, %v2103
        %v3024 = vmul.f32 %v3022, %v2104
        %v3025 = vadd.f32 %v3019, %v3023
        %v3026 = vadd.f32 %v3020, %v3024
        %s3027 = sld [smem:[#allocation12 + $0x3d]]
        %v3028 = vstv %s3027
        %v3029 = vmul.f32 %v3028, %v2103
        %v3030 = vmul.f32 %v3028, %v2104
        %v3033 = vrot.slane %v3029, 1
        %v3034 = vrot.slane %v3030, 1
        %v3037 = vadd.f32 %v3025, %v3033
        %v3038 = vadd.f32 %v3026, %v3034
        %s3039 = sld [smem:[#allocation12 + $0x3e]]
        %v3040 = vstv %s3039
        %v3041 = vmul.f32 %v3040, %v2111
        %v3042 = vmul.f32 %v3040, %v2112
        %v3043 = vadd.f32 %v3037, %v3041
        %v3044 = vadd.f32 %v3038, %v3042
        %s3045 = sld [smem:[#allocation12 + $0x3f]]
        %v3046 = vstv %s3045
        %v3047 = vmul.f32 %v3046, %v2111
        %v3048 = vmul.f32 %v3046, %v2112
        %v3051 = vrot.slane %v3047, 1
        %v3052 = vrot.slane %v3048, 1
        %v3055 = vadd.f32 %v3043, %v3051
        %v3056 = vadd.f32 %v3044, %v3052
        %s3057 = sld [smem:[#allocation12 + $0x40]]
        %v3058 = vstv %s3057
        %v3059 = vmul.f32 %v3058, %v2119
        %v3060 = vmul.f32 %v3058, %v2120
        %v3061 = vadd.f32 %v3055, %v3059
        %v3062 = vadd.f32 %v3056, %v3060
        %s3063 = sld [smem:[#allocation12 + $0x41]]
        %v3064 = vstv %s3063
        %v3065 = vmul.f32 %v3064, %v2119
        %v3066 = vmul.f32 %v3064, %v2120
        %v3069 = vrot.slane %v3065, 1
        %v3070 = vrot.slane %v3066, 1
        %v3073 = vadd.f32 %v3061, %v3069
        %v3074 = vadd.f32 %v3062, %v3070
        %s3075 = sld [smem:[#allocation12 + $0x42]]
        %v3076 = vstv %s3075
        %v3077 = vmul.f32 %v3076, %v2141
        %v3078 = vmul.f32 %v3076, %v2142
        %v3079 = vadd.f32 %v3073, %v3077
        %v3080 = vadd.f32 %v3074, %v3078
        %s3081 = sld [smem:[#allocation12 + $0x43]]
        %v3082 = vstv %s3081
        %v3083 = vmul.f32 %v3082, %v2141
        %v3084 = vmul.f32 %v3082, %v2142
        %v3087 = vrot.slane %v3083, 1
        %v3088 = vrot.slane %v3084, 1
        %v3091 = vadd.f32 %v3079, %v3087
        %v3092 = vadd.f32 %v3080, %v3088
        %s3093 = sld [smem:[#allocation12 + $0x44]]
        %v3094 = vstv %s3093
        %v3095 = vmul.f32 %v3094, %v2163
        %v3096 = vmul.f32 %v3094, %v2164
        %v3097 = vadd.f32 %v3091, %v3095
        %v3098 = vadd.f32 %v3092, %v3096
        %s3099 = sld [smem:[#allocation12 + $0x45]]
        %v3100 = vstv %s3099
        %v3101 = vmul.f32 %v3100, %v2163
        %v3102 = vmul.f32 %v3100, %v2164
        %v3105 = vrot.slane %v3101, 1
        %v3106 = vrot.slane %v3102, 1
        %v3109 = vadd.f32 %v3097, %v3105
        %v3110 = vadd.f32 %v3098, %v3106
        %s3111 = sld [smem:[#allocation12 + $0x46]]
        %v3112 = vstv %s3111
        %v3113 = vmul.f32 %v3112, %v2189
        %v3114 = vmul.f32 %v3112, %v2190
        %v3115 = vadd.f32 %v3109, %v3113
        %v3116 = vadd.f32 %v3110, %v3114
        %s3117 = sld [smem:[#allocation12 + $0x47]]
        %v3118 = vstv %s3117
        %v3119 = vmul.f32 %v3118, %v2189
        %v3120 = vmul.f32 %v3118, %v2190
        %v3123 = vrot.slane %v3119, 1
        %v3124 = vrot.slane %v3120, 1
        %v3127 = vadd.f32 %v3115, %v3123
        %v3128 = vadd.f32 %v3116, %v3124
        %s3129 = sld [smem:[#allocation12 + $0x48]]
        %v3130 = vstv %s3129
        %v3131 = vmul.f32 %v3130, %v2211
        %v3132 = vmul.f32 %v3130, %v2212
        %v3133 = vadd.f32 %v3127, %v3131
        %v3134 = vadd.f32 %v3128, %v3132
        %s3135 = sld [smem:[#allocation12 + $0x49]]
        %v3136 = vstv %s3135
        %v3137 = vmul.f32 %v3136, %v2211
        %v3138 = vmul.f32 %v3136, %v2212
        %v3141 = vrot.slane %v3137, 1
        %v3142 = vrot.slane %v3138, 1
        %v3145 = vadd.f32 %v3133, %v3141
        %v3146 = vadd.f32 %v3134, %v3142
        %s3147 = sld [smem:[#allocation12 + $0x4a]]
        %v3148 = vstv %s3147
        %v3149 = vmul.f32 %v3148, %v2233
        %v3150 = vmul.f32 %v3148, %v2234
        %v3151 = vadd.f32 %v3145, %v3149
        %v3152 = vadd.f32 %v3146, %v3150
        %s3153 = sld [smem:[#allocation12 + $0x4b]]
        %v3154 = vstv %s3153
        %v3155 = vmul.f32 %v3154, %v2233
        %v3156 = vmul.f32 %v3154, %v2234
        %v3159 = vrot.slane %v3155, 1
        %v3160 = vrot.slane %v3156, 1
        %v3163 = vadd.f32 %v3151, %v3159
        %v3164 = vadd.f32 %v3152, %v3160
        %s3165 = sld [smem:[#allocation12 + $0x4c]]
        %v3166 = vstv %s3165
        %v3167 = vmul.f32 %v3166, %v2255
        %v3168 = vmul.f32 %v3166, %v2256
        %v3169 = vadd.f32 %v3163, %v3167
        %v3170 = vadd.f32 %v3164, %v3168
        %s3171 = sld [smem:[#allocation12 + $0x4d]]
        %v3172 = vstv %s3171
        %v3173 = vmul.f32 %v3172, %v2255
        %v3174 = vmul.f32 %v3172, %v2256
        %v3177 = vrot.slane %v3173, 1
        %v3178 = vrot.slane %v3174, 1
        %v3181 = vadd.f32 %v3169, %v3177
        %v3182 = vadd.f32 %v3170, %v3178
        %s3183 = sld [smem:[#allocation12 + $0x4e]]
        %v3184 = vstv %s3183
        %v3185 = vmul.f32 %v3184, %v2277
        %v3186 = vmul.f32 %v3184, %v2278
        %v3187 = vadd.f32 %v3181, %v3185
        %v3188 = vadd.f32 %v3182, %v3186
        %s3189 = sld [smem:[#allocation12 + $0x4f]]
        %v3190 = vstv %s3189
        %v3191 = vmul.f32 %v3190, %v2277
        %v3192 = vmul.f32 %v3190, %v2278
        %v3195 = vrot.slane %v3191, 1
        %v3196 = vrot.slane %v3192, 1
        %v3199 = vadd.f32 %v3187, %v3195
        %v3200 = vadd.f32 %v3188, %v3196
        %s3201 = sld [smem:[#allocation12 + $0x50]]
        %v3202 = vstv %s3201
        %v3203 = vmul.f32 %v3202, %v2299
        %v3204 = vmul.f32 %v3202, %v2300
        %v3205 = vadd.f32 %v3199, %v3203
        %v3206 = vadd.f32 %v3200, %v3204
        %s3207 = sld [smem:[#allocation12 + $0x51]]
        %v3208 = vstv %s3207
        %v3209 = vmul.f32 %v3208, %v2299
        %v3210 = vmul.f32 %v3208, %v2300
        %v3213 = vrot.slane %v3209, 1
        %v3214 = vrot.slane %v3210, 1
        %v3217 = vadd.f32 %v3205, %v3213
        %v3218 = vadd.f32 %v3206, %v3214
        %s3219 = sld [smem:[#allocation12 + $0x52]]
        %v3220 = vstv %s3219
        %v3221 = vmul.f32 %v3220, %v2321
        %v3222 = vmul.f32 %v3220, %v2322
        %v3223 = vadd.f32 %v3217, %v3221
        %v3224 = vadd.f32 %v3218, %v3222
        %s3225 = sld [smem:[#allocation12 + $0x53]]
        %v3226 = vstv %s3225
        %v3227 = vmul.f32 %v3226, %v2321
        %v3228 = vmul.f32 %v3226, %v2322
        %v3231 = vrot.slane %v3227, 1
        %v3232 = vrot.slane %v3228, 1
        %v3235 = vadd.f32 %v3223, %v3231
        %v3236 = vadd.f32 %v3224, %v3232
        %s3237 = sld [smem:[#allocation12 + $0x54]]
        %v3238 = vstv %s3237
        %v3239 = vmul.f32 %v3238, %v2347
        %v3240 = vmul.f32 %v3238, %v2348
        %v3241 = vadd.f32 %v3235, %v3239
        %v3242 = vadd.f32 %v3236, %v3240
        %s3243 = sld [smem:[#allocation12 + $0x55]]
        %v3244 = vstv %s3243
        %v3245 = vmul.f32 %v3244, %v2347
        %v3246 = vmul.f32 %v3244, %v2348
        %v3249 = vrot.slane %v3245, 1
        %v3250 = vrot.slane %v3246, 1
        %v3253 = vadd.f32 %v3241, %v3249
        %v3254 = vadd.f32 %v3242, %v3250
        %s3255 = sld [smem:[#allocation12 + $0x56]]
        %v3256 = vstv %s3255
        %v3257 = vmul.f32 %v3256, %v2369
        %v3258 = vmul.f32 %v3256, %v2370
        %v3259 = vadd.f32 %v3253, %v3257
        %v3260 = vadd.f32 %v3254, %v3258
        %s3261 = sld [smem:[#allocation12 + $0x57]]
        %v3262 = vstv %s3261
        %v3263 = vmul.f32 %v3262, %v2369
        %v3264 = vmul.f32 %v3262, %v2370
        %v3267 = vrot.slane %v3263, 1
        %v3268 = vrot.slane %v3264, 1
        %v3271 = vadd.f32 %v3259, %v3267
        %v3272 = vadd.f32 %v3260, %v3268
        %s3273 = sld [smem:[#allocation12 + $0x58]]
        %v3274 = vstv %s3273
        %v3275 = vmul.f32 %v3274, %v2391
        %v3276 = vmul.f32 %v3274, %v2392
        %v3277 = vadd.f32 %v3271, %v3275
        %v3278 = vadd.f32 %v3272, %v3276
        %s3279 = sld [smem:[#allocation12 + $0x59]]
        %v3280 = vstv %s3279
        %v3281 = vmul.f32 %v3280, %v2391
        %v3282 = vmul.f32 %v3280, %v2392
        %v3285 = vrot.slane %v3281, 1
        %v3286 = vrot.slane %v3282, 1
        %v3289 = vadd.f32 %v3277, %v3285
        %v3290 = vadd.f32 %v3278, %v3286
        %s3291 = sld [smem:[#allocation12 + $0x5a]]
        %v3292 = vstv %s3291
        %v3293 = vmul.f32 %v3292, %v2413
        %v3294 = vmul.f32 %v3292, %v2414
        %v3295 = vadd.f32 %v3289, %v3293
        %v3296 = vadd.f32 %v3290, %v3294
        %s3297 = sld [smem:[#allocation12 + $0x5b]]
        %v3298 = vstv %s3297
        %v3299 = vmul.f32 %v3298, %v2413
        %v3300 = vmul.f32 %v3298, %v2414
        %v3303 = vrot.slane %v3299, 1
        %v3304 = vrot.slane %v3300, 1
        %v3307 = vadd.f32 %v3295, %v3303
        %v3308 = vadd.f32 %v3296, %v3304
        %s3309 = sld [smem:[#allocation12 + $0x5c]]
        %v3310 = vstv %s3309
        %v3311 = vmul.f32 %v3310, %v2435
        %v3312 = vmul.f32 %v3310, %v2436
        %v3313 = vadd.f32 %v3307, %v3311
        %v3314 = vadd.f32 %v3308, %v3312
        %s3315 = sld [smem:[#allocation12 + $0x5d]]
        %v3316 = vstv %s3315
        %v3317 = vmul.f32 %v3316, %v2435
        %v3318 = vmul.f32 %v3316, %v2436
        %v3321 = vrot.slane %v3317, 1
        %v3322 = vrot.slane %v3318, 1
        %v3325 = vadd.f32 %v3313, %v3321
        %v3326 = vadd.f32 %v3314, %v3322
        %s3327 = sld [smem:[#allocation12 + $0x5e]]
        %v3328 = vstv %s3327
        %v3329 = vmul.f32 %v3328, %v2457
        %v3330 = vmul.f32 %v3328, %v2458
        %v3331 = vadd.f32 %v3325, %v3329
        %v3332 = vadd.f32 %v3326, %v3330
        %s3333 = sld [smem:[#allocation12 + $0x5f]]
        %v3334 = vstv %s3333
        %v3335 = vmul.f32 %v3334, %v2457
        %v3336 = vmul.f32 %v3334, %v2458
        %v3339 = vrot.slane %v3335, 1
        %v3340 = vrot.slane %v3336, 1
        %v3343 = vadd.f32 %v3331, %v3339
        %v3344 = vadd.f32 %v3332, %v3340
        %s3345 = sld [smem:[#allocation12 + $0x60]]
        %v3346 = vstv %s3345
        %v3347 = vmul.f32 %v3346, %v2479
        %v3348 = vmul.f32 %v3346, %v2480
        %v3349 = vadd.f32 %v3343, %v3347
        %v3350 = vadd.f32 %v3344, %v3348
        %s3351 = sld [smem:[#allocation12 + $0x61]]
        %v3352 = vstv %s3351
        %v3353 = vmul.f32 %v3352, %v2479
        %v3354 = vmul.f32 %v3352, %v2480
        %v3357 = vrot.slane %v3353, 1
        %v3358 = vrot.slane %v3354, 1
        %v3361 = vadd.f32 %v3349, %v3357
        %v3362 = vadd.f32 %v3350, %v3358
        %s3363 = sld [smem:[#allocation2]]
        %v3364 = vstv %s3363
        %v3365 = vadd.f32 %v3361, %v3364
        %v3366 = vadd.f32 %v3362, %v3364
        %v3367 = vxor.u32 %v3365, 2147483648
        %v3368 = vxor.u32 %v3366, 2147483648
        %v3369 = vmul.f32 %v3367, 1.442695
        %v3370 = vpow.pop %v3369
        %v3371 = vmul.f32 %v3368, 1.442695
        %v3372 = vpow.pop %v3371
        %v3373 = vadd.f32 %v3370, 1.0
        %v3374 = vadd.f32 %v3372, 1.0
        %v3375 = vrcp.pop %v3373
        %v3376 = vmul.f32 1.0, %v3375
        %v3377 = vrcp.pop %v3374
        %v3378 = vmul.f32 1.0, %v3377
        %v3379 = vlaneseq
        %v3380 = vshrl.u32 %v3379, 7
        %v3381 = vsub.s32 0, %v3380
        %v3382 = vrot.slane %v3376, %v3381
        %v3383 = vlaneseq
        %v3384 = vshrl.u32 %v3383, 7
        %v3385 = vsub.s32 0, %v3384
        %v3386 = vrot.slane %v3378, %v3385
        %v3387 = vmul.f32 %v1459, %v3382
        %v3388 = vmul.f32 %v1460, %v3386
        %v3389 = vmul.f32 %v1461, %v3382
        %v3390 = vmul.f32 %v1462, %v3386
        %v3391 = vmul.f32 %v1463, %v3382
        %v3392 = vmul.f32 %v1464, %v3386
        %v3393 = vmul.f32 %v1465, %v3382
        %v3394 = vmul.f32 %v1466, %v3386
        %v3395 = vadd.f32 %v1157, %v3387
        %v3396 = vadd.f32 %v1159, %v3388
        %v3397 = vadd.f32 %v1163, %v3389
        %v3398 = vadd.f32 %v1165, %v3390
        %v3399 = vadd.f32 %v1169, %v3391
        %v3400 = vadd.f32 %v1171, %v3392
        %v3401 = vadd.f32 %v1175, %v3393
        %v3402 = vadd.f32 %v1177, %v3394
        %v3403 = vld [vmem:[%s12] sm:$0xff]
        %v3404 = vld [vmem:[%s12 + $0x8] sm:$0xff]
        %v3405 = vld [vmem:[%s12 + $0x10] sm:$0xff]
        %v3406 = vld [vmem:[%s12 + $0x18] sm:$0xff]
        %3408 = vset.pattern.permute.xlu0 0
        %3409 = vperm.xlu0 %3408, %v3403
        %v3410 = vpop.permute.xlu0 %3409
        %3413 = vset.pattern.permute.xlu0 0
        %3414 = vperm.xlu0 %3413, %v3404
        %v3415 = vpop.permute.xlu0 %3414
        %3418 = vset.pattern.permute.xlu0 0
        %3419 = vperm.xlu0 %3418, %v3405
        %v3420 = vpop.permute.xlu0 %3419
        %3423 = vset.pattern.permute.xlu0 0
        %3424 = vperm.xlu0 %3423, %v3406
        %v3425 = vpop.permute.xlu0 %3424
        %v3427 = vmul.f32 %v3395, %v3410
        %v3428 = vmul.f32 %v3396, %v3410
        %v3429 = vmul.f32 %v3397, %v3415
        %v3430 = vmul.f32 %v3398, %v3415
        %v3431 = vmul.f32 %v3399, %v3420
        %v3432 = vmul.f32 %v3400, %v3420
        %v3433 = vmul.f32 %v3401, %v3425
        %v3434 = vmul.f32 %v3402, %v3425
        %v3435 = vld [vmem:[%s13] sm:$0xff]
        %v3436 = vld [vmem:[%s13 + $0x8] sm:$0xff]
        %v3437 = vld [vmem:[%s13 + $0x10] sm:$0xff]
        %v3438 = vld [vmem:[%s13 + $0x18] sm:$0xff]
        %3440 = vset.pattern.permute.xlu0 0
        %3441 = vperm.xlu0 %3440, %v3435
        %v3442 = vpop.permute.xlu0 %3441
        %3445 = vset.pattern.permute.xlu0 0
        %3446 = vperm.xlu0 %3445, %v3436
        %v3447 = vpop.permute.xlu0 %3446
        %3450 = vset.pattern.permute.xlu0 0
        %3451 = vperm.xlu0 %3450, %v3437
        %v3452 = vpop.permute.xlu0 %3451
        %3455 = vset.pattern.permute.xlu0 0
        %3456 = vperm.xlu0 %3455, %v3438
        %v3457 = vpop.permute.xlu0 %3456
        %v3459 = vadd.f32 %v3427, %v3442
        %v3460 = vadd.f32 %v3428, %v3442
        %v3461 = vadd.f32 %v3429, %v3447
        %v3462 = vadd.f32 %v3430, %v3447
        %v3463 = vadd.f32 %v3431, %v3452
        %v3464 = vadd.f32 %v3432, %v3452
        %v3465 = vadd.f32 %v3433, %v3457
        %v3466 = vadd.f32 %v3434, %v3457
        %v3467 = vmax.f32 %v3459, 0.0
        %v3468 = vmax.f32 %v3460, 0.0
        %v3469 = vmax.f32 %v3461, 0.0
        %v3470 = vmax.f32 %v3462, 0.0
        %v3471 = vmax.f32 %v3463, 0.0
        %v3472 = vmax.f32 %v3464, 0.0
        %v3473 = vmax.f32 %v3465, 0.0
        %v3474 = vmax.f32 %v3466, 0.0
        %3475 = vst [vmem:[%s552] sm:$0xff] %v3467
        %3476 = vst [vmem:[%s552 + $0x8] sm:$0xff] %v3468
        %3477 = vst [vmem:[%s552 + $0x10] sm:$0xff] %v3469
        %3478 = vst [vmem:[%s552 + $0x18] sm:$0xff] %v3470
        %3479 = vst [vmem:[%s552 + $0x20] sm:$0xff] %v3471
        %3480 = vst [vmem:[%s552 + $0x28] sm:$0xff] %v3472
        %3481 = vst [vmem:[%s552 + $0x30] sm:$0xff] %v3473
        %3482 = vst [vmem:[%s552 + $0x38] sm:$0xff] %v3474
        %s3483 = sand.u32 %s347, 1
        %s3484 = scalar_lea.sflag [#allocation5], %s3483
        %s3485 = sand.u32 %s347, 1
        %s3486 = smul.addr %s3485, 64
        %s3487 = scalar_lea.vmem [#allocation13], %s3486
        // Predicated region
        $region97: #{tpu_custom_call.1} parent=75 // pred_check
          %p3488 = pneg %p357
        $region98: #{tpu_custom_call.1} parent=75 // pred_check_branch
          %3490 = sbr.rel (%p3488) target = $region100
        $region99: #{tpu_custom_call.1} parent=75 // pred_region
          %s3492 = ssub.s32 1024, 1024
          %3493 = vsyncadd %s3484, %s3492
          %s3494 = smul.addr %s35, 8
          %s3495 = smul.addr %s3494, 128
          %s3496 = scalar_lea.hbm %s14, %s3495
          %s3497 = sshll.u32 %s3487, 4
          %s3498 = int_to_ptr.vmem [resolvable:$true] %s3497
          %3503 = dma.vmem_to_hbm [thread:$0]  %s3498, 1024, %s3496, %s3484, 256, 256, 16
        $region100: #{tpu_custom_call.1} parent=75 // pred_fallthru
          _
      $region76: #{tpu_custom_call.1} parent=5 // pred_fallthru
        _
      %p3504 = scmp.le.s32.totalorder 2, %s30
      // Predicated region
      $region101: #{tpu_custom_call.1} parent=5 // pred_check
        %p3505 = pneg %p3504
      $region102: #{tpu_custom_call.1} parent=5 // pred_check_branch
        %3507 = sbr.rel (%p3505) target = $region104
      $region103: #{tpu_custom_call.1} parent=5 // pred_region
        %s3508 = ssub.s32 %s30, 2
        // Predicated region
        $region105: #{tpu_custom_call.1} parent=103 // pred_check
          %p3509 = pneg %p363
        $region106: #{tpu_custom_call.1} parent=103 // pred_check_branch
          %3511 = sbr.rel (%p3509) target = $region108
        $region107: #{tpu_custom_call.1} parent=103 // pred_region
          %s3512 = sand.u32 %s348, 1
          %s3513 = scalar_lea.sflag [#allocation5], %s3512
          %s3514 = sand.u32 %s348, 1
          %s3515 = smul.addr %s3514, 64
          %s3516 = scalar_lea.vmem [#allocation13], %s3515
          %3517 = dma.done %s3513, 1024
        $region108: #{tpu_custom_call.1} parent=103 // pred_fallthru
          _
      $region104: #{tpu_custom_call.1} parent=5 // pred_fallthru
        _
    $region6: #{tpu_custom_call.1} parent=1 // loop_footer
      %s34 = sadd.s32 1, %s30
    $region7: #{tpu_custom_call.1} parent=1 // loop_footer_branch
      %29 = sbr.rel target = $region3
    $region8: #{tpu_custom_call.1} parent=1 // loop_exit
      _
    %3518 = vsyncpa [#allocation4], 1
    %s3519 = scalar_lea.sflag [#allocation4], 1
    %3520 = vsyncpa %s3519, 1
    %3521 = vsyncpa [#allocation8], 1
    %3522 = vsyncpa [#allocation11], 1
    %3523 = vsyncpa [#allocation5], 1
    %s3524 = scalar_lea.sflag [#allocation5], 1
    %3525 = vsyncpa %s3524, 1
    %3526 = vsyncpa [#allocation6], 1
    %s3527 = scalar_lea.sflag [#allocation6], 1
    %3528 = vsyncpa %s3527, 1

</llo_original>
